<compile_context>
chip_gen: v5e
topology: v5e:2x2
jax: 0.10.0
libtpu: 0.0.40
codegen_flags: <defaults>
</compile_context>

<pallas_src>
import functools

import jax
import jax.numpy as jnp
from jax import lax
from jax.experimental import pallas as pl
from jax.experimental.pallas import tpu as pltpu

NS = 0.01    # leaky_relu negative slope (ns in the torch module)
EPS = 1e-5   # nn.InstanceNorm1d default eps


def _pitch_classifier_kernel(*refs, L, ks):
    """refs = [x, w1, b1, ..., w9, b9, S, S_T, pos, out]. One grid step = NB batch elems."""
    x_ref = refs[0]
    o_ref = refs[-1]
    pos_ref = refs[-2]      # (1, lanes) i32: lane position within its length-L segment
    st_ref = refs[-3]       # (NB, lanes) f32: segment indicator, transposed
    s_ref = refs[-4]        # (lanes, NB) f32: segment indicator
    wb = refs[1:-4]
    ws = wb[0::2]           # each (K, C_out, C_in)
    bs = wb[1::2]           # each (C_out, 1)

    h = x_ref[0]                              # (C_in, lanes) f32
    lanes = x_ref.shape[-1]
    inv_l = 1.0 / L

    pos_row = pos_ref[...]                    # (1, lanes) i32
    s_mat = s_ref[...]                        # (lanes, NB)
    st_mat = st_ref[...]                      # (NB, lanes)

    def conv(h, w_ref, b_ref, K, leaky, norm, res=None):
        if K == 1:
            out = jnp.dot(w_ref[0], h, preferred_element_type=jnp.float32)
        else:
            p = K // 2
            # rolled[s][c, j] == h[c, (j + s) % lanes]  (whole-slab XLU rotations;
            # pltpu.roll follows jnp.roll semantics, so roll by lanes-s shifts left by s).
            rolled = {0: h}
            for s in range(1, p + 1):
                rolled[s] = pltpu.roll(h, lanes - s, axis=1)
                rolled[-s] = pltpu.roll(h, s, axis=1)
            # Lane-position masks, hoisted out of the tap loop (broadcasts hoisted too).
            posC = jnp.broadcast_to(pos_row, h.shape)                 # (C_in, lanes)
            left_m = [posC == t for t in range(p)]                    # segment starts
            right_m = [posC == (L - 1 - u) for u in range(p)]         # segment ends
            out = None
            for k in range(K):
                d = k - p
                tap = rolled[d]
                if d < 0:
                    # left reflect: pos t < -d needs h[j + (-2t - d)] (torch pad_layer)
                    for t in range(-d):
                        tap = jnp.where(left_m[t], rolled[-2 * t - d], tap)
                elif d > 0:
                    # right reflect: pos L-1-u (u < d) needs h[j + (2u - d)]
                    for u in range(d):
                        tap = jnp.where(right_m[u], rolled[2 * u - d], tap)
                part = jnp.dot(w_ref[k], tap, preferred_element_type=jnp.float32)
                out = part if out is None else out + part

        out = out + b_ref[...]                                        # (C_out, 1) broadcast

        if leaky:
            out = jnp.where(out >= 0, out, NS * out)

        if norm:
            # InstanceNorm1d: per-(batch, channel) stats over L, reductions on the MXU
            # via the 0/1 segment-indicator matrix (padded lanes contribute nothing and
            # come back as exact zeros through S.T).
            mean = jnp.dot(out, s_mat, preferred_element_type=jnp.float32) * inv_l
            msq = jnp.dot(out * out, s_mat, preferred_element_type=jnp.float32) * inv_l
            rsv = lax.rsqrt(msq - mean * mean + EPS)                  # one-pass var, f32
            mean_b = jnp.dot(mean, st_mat, preferred_element_type=jnp.float32)
            rsv_b = jnp.dot(rsv, st_mat, preferred_element_type=jnp.float32)
            out = (out - mean_b) * rsv_b

        if res is not None:
            out = out + res
        return out

    # block 1: conv1, conv2 -> ins_norm1, drop1, no residual
    h = conv(h, ws[0], bs[0], ks[0], True, False)
    h = conv(h, ws[1], bs[1], ks[1], True, True)
    # block 2: conv3, conv4 -> ins_norm2, drop2, + residual
    r = h
    h = conv(h, ws[2], bs[2], ks[2], True, False)
    h = conv(h, ws[3], bs[3], ks[3], True, True, res=r)
    # block 3: conv5, conv6 -> ins_norm3, drop3, + residual
    r = h
    h = conv(h, ws[4], bs[4], ks[4], True, False)
    h = conv(h, ws[5], bs[5], ks[5], True, True, res=r)
    # block 4: conv7, conv8 -> ins_norm4, drop4, no residual
    h = conv(h, ws[6], bs[6], ks[6], True, False)
    h = conv(h, ws[7], bs[7], ks[7], True, True)
    # conv9: kernel_size=1, no padding, no activation
    h = conv(h, ws[8], bs[8], ks[8], False, False)

    o_ref[0] = h.astype(o_ref.dtype)


def pitch_classifier_forward(x, params, *, target_lanes=1024, min_grid_steps=2,
                             vmem_budget_bytes=48 * 2**20):
    """x: (N, c_in, L) f32; params: list of 9 (w (C_out, C_in, K), b (C_out,))."""
    N, c_in, L = x.shape
    ks = tuple(int(w.shape[-1]) for w, _ in params)
    n_class = int(params[-1][0].shape[0])
    assert all(k == 1 or k % 2 == 1 for k in ks), "only odd kernel sizes supported"
    assert L > max(ks) // 2, "reflect padding needs L > kernel_size // 2"

    # ---- lane sizing against a VMEM budget (safe for v7x 64 MiB / v5e-v6e 128 MiB) ----
    c_max = max([c_in] + [int(w.shape[0]) for w, _ in params])
    k_max = max(ks)
    # rough live f32 bytes per packed lane: input slab + K rolled slabs + acc/res/norm temps
    bytes_per_lane = 4 * ((k_max + 4) * c_max + 2 * c_in + 2 * n_class)
    budget_lanes = max(L, (vmem_budget_bytes // bytes_per_lane) // 128 * 128)
    max_lanes = min(max(target_lanes, L), budget_lanes)

    # Fold NB batch elements into the lane axis; keep >= min_grid_steps grid steps so
    # both v7x TensorCores get work (costs nothing on single-TC v5e/v6e).
    max_nb = N if N < min_grid_steps else max(1, N // min_grid_steps)
    NB = 1
    for nb in range(1, max_nb + 1):
        if N % nb == 0 and nb * L <= max_lanes:
            NB = nb
    n_blk = N // NB
    lanes = NB * L
    lanes_pad = -(-lanes // 128) * 128          # lane-dense loads/stores

    vmem_limit = int(min(56 * 2**20, max(32 * 2**20, 4 * bytes_per_lane * lanes_pad)))

    # ---- pack activations: (N, C, L) -> (n_blk, C, NB*L) + zero lane padding ----
    x_f = (x.reshape(n_blk, NB, c_in, L)
            .transpose(0, 2, 1, 3)
            .reshape(n_blk, c_in, lanes))
    if lanes_pad > lanes:
        x_f = jnp.pad(x_f, ((0, 0), (0, 0), (0, lanes_pad - lanes)))

    # ---- constant helper inputs: segment indicators + lane positions ----
    lane_idx = jnp.arange(lanes_pad, dtype=jnp.int32)
    pos = (lane_idx % jnp.int32(L)).reshape(1, lanes_pad)                 # (1, lanes_pad)
    seg = lane_idx // jnp.int32(L)
    S = jnp.where((seg[:, None] == jnp.arange(NB, dtype=jnp.int32)[None, :])
                  & (lane_idx[:, None] < lanes),
                  1.0, 0.0).astype(jnp.float32)                           # (lanes_pad, NB)
    ST = S.T                                                              # (NB, lanes_pad)

    # ---- weights: (C_out, C_in, K) -> (K, C_out, C_in); bias -> (C_out, 1) ----
    flat_args = []
    in_specs = [pl.BlockSpec((1, c_in, lanes_pad), lambda n: (n, 0, 0))]
    for w, b in params:
        co, ci, k = w.shape
        wf = jnp.transpose(w, (2, 0, 1))
        bf = b.reshape(co, 1)
        flat_args += [wf, bf]
        # Constant block indices: Mosaic skips re-DMA across grid steps for these.
        in_specs += [pl.BlockSpec((k, co, ci), lambda n: (0, 0, 0)),
                     pl.BlockSpec((co, 1), lambda n: (0, 0))]
    flat_args += [S, ST, pos]
    in_specs += [pl.BlockSpec((lanes_pad, NB), lambda n: (0, 0)),
                 pl.BlockSpec((NB, lanes_pad), lambda n: (0, 0)),
                 pl.BlockSpec((1, lanes_pad), lambda n: (0, 0))]

    kernel = functools.partial(_pitch_classifier_kernel, L=L, ks=ks)

    # TODO(synk): for very long L (realistic audio) add an L-tile grid axis with a
    # receptive-field halo so the working set fits v7x's 64 MiB VMEM even at C_h=512.
    out_f = pl.pallas_call(
        kernel,
        out_shape=jax.ShapeDtypeStruct((n_blk, n_class, lanes_pad), x.dtype),
        grid_spec=pltpu.PrefetchScalarGridSpec(
            num_scalar_prefetch=0,
            grid=(n_blk,),
            in_specs=in_specs,
            out_specs=pl.BlockSpec((1, n_class, lanes_pad), lambda n: (n, 0, 0)),
        ),
        compiler_params=pltpu.CompilerParams(
            dimension_semantics=("parallel",),
            vmem_limit_bytes=vmem_limit),
    )(x_f, *flat_args)

    # Unfold the lane-packed batch back to (N, n_class, L) -- layout plumbing only.
    out = out_f[:, :, :lanes]
    return (out.reshape(n_blk, n_class, NB, L)
               .transpose(0, 2, 1, 3)
               .reshape(N, n_class, L))


def init_params(key, c_in, c_h, n_class):
    """Deterministic init matching nn.Conv1d default (U[-1/sqrt(fan_in), ...])."""
    specs = [
        (c_h, c_in, 5), (c_h, c_h, 5),                  # conv1, conv2
        (c_h, c_h, 5), (c_h, c_h, 5),                   # conv3, conv4
        (c_h, c_h, 5), (c_h, c_h, 5),                   # conv5, conv6
        (c_h // 2, c_h, 3), (c_h // 2, c_h // 2, 3),    # conv7, conv8
        (n_class, c_h // 2, 1),                         # conv9
    ]
    params = []
    for i, (co, ci, k) in enumerate(specs):
        kw, kb = jax.random.split(jax.random.fold_in(key, i))
        bound = 1.0 / (ci * k) ** 0.5
        w = jax.random.uniform(kw, (co, ci, k), jnp.float32, -bound, bound)
        b = jax.random.uniform(kb, (co,), jnp.float32, -bound, bound)
        params.append((w, b))
    return params


# ----------------------- pure-JAX reference (sanity check) -----------------------
def _ref_conv(x, w, b, *, leaky, norm=False, residual=None):
    C_out, C_in, K = w.shape
    N, _, L = x.shape
    pad = (K // 2, K // 2 - 1) if K % 2 == 0 else (K // 2, K // 2)
    xp = jnp.pad(x, ((0, 0), (0, 0), pad), mode='reflect')
    out = b[None, :, None]
    for k in range(K):
        out = out + jnp.einsum('oi,nil->nol', w[:, :, k], xp[:, :, k:k + L])
    if leaky:
        out = jnp.where(out >= 0, out, NS * out)
    if norm:
        mean = jnp.mean(out, axis=-1, keepdims=True)
        var = jnp.mean((out - mean) ** 2, axis=-1, keepdims=True)
        out = (out - mean) * lax.rsqrt(var + EPS)
    if residual is not None:
        out = out + residual
    return out


def _ref_forward(x, params):
    (w1, b1), (w2, b2), (w3, b3), (w4, b4), (w5, b5), (w6, b6), \
        (w7, b7), (w8, b8), (w9, b9) = params
    h = _ref_conv(x, w1, b1, leaky=True)
    h = _ref_conv(h, w2, b2, leaky=True, norm=True)
    r = h
    h = _ref_conv(h, w3, b3, leaky=True)
    h = _ref_conv(h, w4, b4, leaky=True, norm=True, residual=r)
    r = h
    h = _ref_conv(h, w5, b5, leaky=True)
    h = _ref_conv(h, w6, b6, leaky=True, norm=True, residual=r)
    h = _ref_conv(h, w7, b7, leaky=True)
    h = _ref_conv(h, w8, b8, leaky=True, norm=True)
    return _ref_conv(h, w9, b9, leaky=False)


if __name__ == "__main__":
    # TODO(synk): nn.Dropout is stochastic in training mode; treated as identity
    # (inference semantics) here.
    N, C_IN, C_H, N_CLASS, L = 4, 32, 32, 16, 128
    key = jax.random.PRNGKey(0)
    kx, kp = jax.random.split(key)
    x = jax.random.normal(kx, (N, C_IN, L), dtype=jnp.float32)
    params = init_params(kp, C_IN, C_H, N_CLASS)

    out = jax.block_until_ready(pitch_classifier_forward(x, params))
    assert out.shape == (N, N_CLASS, L), out.shape
    assert bool(jnp.all(jnp.isfinite(out)))

    ref = jax.block_until_ready(_ref_forward(x, params))
    assert bool(jnp.allclose(out, ref, rtol=1e-2, atol=1e-2)), \
        float(jnp.max(jnp.abs(out - ref)))

    print("KERNEL_OK")
</pallas_src>

<mosaic_0001>
module attributes {stable_mosaic.version = 11 : i64} {
  func.func @_pitch_classifier_kernel(%arg0: i32, %arg1: memref<1x32x256xf32, #tpu.memory_space<vmem>>, %arg2: memref<5x32x32xf32, #tpu.memory_space<vmem>>, %arg3: memref<32x1xf32, #tpu.memory_space<vmem>>, %arg4: memref<5x32x32xf32, #tpu.memory_space<vmem>>, %arg5: memref<32x1xf32, #tpu.memory_space<vmem>>, %arg6: memref<5x32x32xf32, #tpu.memory_space<vmem>>, %arg7: memref<32x1xf32, #tpu.memory_space<vmem>>, %arg8: memref<5x32x32xf32, #tpu.memory_space<vmem>>, %arg9: memref<32x1xf32, #tpu.memory_space<vmem>>, %arg10: memref<5x32x32xf32, #tpu.memory_space<vmem>>, %arg11: memref<32x1xf32, #tpu.memory_space<vmem>>, %arg12: memref<5x32x32xf32, #tpu.memory_space<vmem>>, %arg13: memref<32x1xf32, #tpu.memory_space<vmem>>, %arg14: memref<3x16x32xf32, #tpu.memory_space<vmem>>, %arg15: memref<16x1xf32, #tpu.memory_space<vmem>>, %arg16: memref<3x16x16xf32, #tpu.memory_space<vmem>>, %arg17: memref<16x1xf32, #tpu.memory_space<vmem>>, %arg18: memref<1x16x16xf32, #tpu.memory_space<vmem>>, %arg19: memref<16x1xf32, #tpu.memory_space<vmem>>, %arg20: memref<256x2xf32, #tpu.memory_space<vmem>>, %arg21: memref<2x256xf32, #tpu.memory_space<vmem>>, %arg22: memref<1x256xi32, #tpu.memory_space<vmem>>, %arg23: memref<1x16x256xf32, #tpu.memory_space<vmem>>) attributes {dimension_semantics = [#tpu.dimension_semantics<parallel>], iteration_bounds = array<i64: 2>, scalar_prefetch = 0 : i64, scratch_operands = 0 : i64, tpu.core_type = #tpu.core_type<tc>, window_params = [{transform_indices = @transform_0, window_bounds = array<i64: 1, 32, 256>}, {pipeline_mode = #tpu.pipeline_mode<synchronous>, transform_indices = @transform_1, window_bounds = array<i64: 5, 32, 32>}, {pipeline_mode = #tpu.pipeline_mode<synchronous>, transform_indices = @transform_2, window_bounds = array<i64: 32, 1>}, {pipeline_mode = #tpu.pipeline_mode<synchronous>, transform_indices = @transform_3, window_bounds = array<i64: 5, 32, 32>}, {pipeline_mode = #tpu.pipeline_mode<synchronous>, transform_indices = @transform_4, window_bounds = array<i64: 32, 1>}, {pipeline_mode = #tpu.pipeline_mode<synchronous>, transform_indices = @transform_5, window_bounds = array<i64: 5, 32, 32>}, {pipeline_mode = #tpu.pipeline_mode<synchronous>, transform_indices = @transform_6, window_bounds = array<i64: 32, 1>}, {pipeline_mode = #tpu.pipeline_mode<synchronous>, transform_indices = @transform_7, window_bounds = array<i64: 5, 32, 32>}, {pipeline_mode = #tpu.pipeline_mode<synchronous>, transform_indices = @transform_8, window_bounds = array<i64: 32, 1>}, {pipeline_mode = #tpu.pipeline_mode<synchronous>, transform_indices = @transform_9, window_bounds = array<i64: 5, 32, 32>}, {pipeline_mode = #tpu.pipeline_mode<synchronous>, transform_indices = @transform_10, window_bounds = array<i64: 32, 1>}, {pipeline_mode = #tpu.pipeline_mode<synchronous>, transform_indices = @transform_11, window_bounds = array<i64: 5, 32, 32>}, {pipeline_mode = #tpu.pipeline_mode<synchronous>, transform_indices = @transform_12, window_bounds = array<i64: 32, 1>}, {pipeline_mode = #tpu.pipeline_mode<synchronous>, transform_indices = @transform_13, window_bounds = array<i64: 3, 16, 32>}, {pipeline_mode = #tpu.pipeline_mode<synchronous>, transform_indices = @transform_14, window_bounds = array<i64: 16, 1>}, {pipeline_mode = #tpu.pipeline_mode<synchronous>, transform_indices = @transform_15, window_bounds = array<i64: 3, 16, 16>}, {pipeline_mode = #tpu.pipeline_mode<synchronous>, transform_indices = @transform_16, window_bounds = array<i64: 16, 1>}, {pipeline_mode = #tpu.pipeline_mode<synchronous>, transform_indices = @transform_17, window_bounds = array<i64: 1, 16, 16>}, {pipeline_mode = #tpu.pipeline_mode<synchronous>, transform_indices = @transform_18, window_bounds = array<i64: 16, 1>}, {pipeline_mode = #tpu.pipeline_mode<synchronous>, transform_indices = @transform_19, window_bounds = array<i64: 256, 2>}, {pipeline_mode = #tpu.pipeline_mode<synchronous>, transform_indices = @transform_20, window_bounds = array<i64: 2, 256>}, {pipeline_mode = #tpu.pipeline_mode<synchronous>, transform_indices = @transform_21, window_bounds = array<i64: 1, 256>}, {transform_indices = @transform_22, window_bounds = array<i64: 1, 16, 256>}]} {
    %c0 = arith.constant 0 : index
    %c0_0 = arith.constant 0 : index
    %c0_1 = arith.constant 0 : index
    %0 = vector.load %arg1[%c0, %c0_0, %c0_1] : memref<1x32x256xf32, #tpu.memory_space<vmem>>, vector<1x32x256xf32>
    %1 = vector.shape_cast %0 : vector<1x32x256xf32> to vector<32x256xf32>
    %c0_2 = arith.constant 0 : index
    %c0_3 = arith.constant 0 : index
    %2 = vector.load %arg22[%c0_2, %c0_3] : memref<1x256xi32, #tpu.memory_space<vmem>>, vector<1x256xi32>
    %c0_4 = arith.constant 0 : index
    %c0_5 = arith.constant 0 : index
    %3 = vector.load %arg20[%c0_4, %c0_5] : memref<256x2xf32, #tpu.memory_space<vmem>>, vector<256x2xf32>
    %c0_6 = arith.constant 0 : index
    %c0_7 = arith.constant 0 : index
    %4 = vector.load %arg21[%c0_6, %c0_7] : memref<2x256xf32, #tpu.memory_space<vmem>>, vector<2x256xf32>
    %c255_i32 = arith.constant 255 : i32
    %5 = tpu.dynamic_rotate %1 by %c255_i32 dim 1 : vector<32x256xf32>, i32 -> vector<32x256xf32>
    %c1_i32 = arith.constant 1 : i32
    %6 = tpu.dynamic_rotate %1 by %c1_i32 dim 1 : vector<32x256xf32>, i32 -> vector<32x256xf32>
    %c254_i32 = arith.constant 254 : i32
    %7 = tpu.dynamic_rotate %1 by %c254_i32 dim 1 : vector<32x256xf32>, i32 -> vector<32x256xf32>
    %c2_i32 = arith.constant 2 : i32
    %8 = tpu.dynamic_rotate %1 by %c2_i32 dim 1 : vector<32x256xf32>, i32 -> vector<32x256xf32>
    %9 = vector.shape_cast %2 : vector<1x256xi32> to vector<1x256xi32>
    %10 = vector.broadcast %9 : vector<1x256xi32> to vector<32x256xi32>
    %c0_i32 = arith.constant 0 : i32
    %11 = vector.broadcast %c0_i32 : i32 to vector<32x256xi32>
    %12 = arith.cmpi eq, %10, %11 : vector<32x256xi32>
    %c1_i32_8 = arith.constant 1 : i32
    %13 = vector.broadcast %c1_i32_8 : i32 to vector<32x256xi32>
    %14 = arith.cmpi eq, %10, %13 : vector<32x256xi32>
    %c127_i32 = arith.constant 127 : i32
    %15 = vector.broadcast %c127_i32 : i32 to vector<32x256xi32>
    %16 = arith.cmpi eq, %10, %15 : vector<32x256xi32>
    %c126_i32 = arith.constant 126 : i32
    %17 = vector.broadcast %c126_i32 : i32 to vector<32x256xi32>
    %18 = arith.cmpi eq, %10, %17 : vector<32x256xi32>
    %19 = arith.select %12, %7, %8 : vector<32x256xi1>, vector<32x256xf32>
    %20 = arith.select %14, %1, %19 : vector<32x256xi1>, vector<32x256xf32>
    %c0_9 = arith.constant 0 : index
    %c0_10 = arith.constant 0 : index
    %c0_11 = arith.constant 0 : index
    %21 = vector.load %arg2[%c0_9, %c0_10, %c0_11] : memref<5x32x32xf32, #tpu.memory_space<vmem>>, vector<1x32x32xf32>
    %22 = vector.shape_cast %21 : vector<1x32x32xf32> to vector<32x32xf32>
    %cst = arith.constant dense<0.000000e+00> : vector<32x256xf32>
    %23 = tpu.matmul %22, %20, %cst {dimension_numbers = #tpu.dot_dimension_numbers<[1], [0], [0], [1], [0, 0, 1, 1], [], []>} : vector<32x32xf32>, vector<32x256xf32>, vector<32x256xf32> -> vector<32x256xf32>
    %24 = arith.select %12, %5, %6 : vector<32x256xi1>, vector<32x256xf32>
    %c1 = arith.constant 1 : index
    %c0_12 = arith.constant 0 : index
    %c0_13 = arith.constant 0 : index
    %25 = vector.load %arg2[%c1, %c0_12, %c0_13] : memref<5x32x32xf32, #tpu.memory_space<vmem>>, vector<1x32x32xf32>
    %26 = vector.shape_cast %25 : vector<1x32x32xf32> to vector<32x32xf32>
    %cst_14 = arith.constant dense<0.000000e+00> : vector<32x256xf32>
    %27 = tpu.matmul %26, %24, %cst_14 {dimension_numbers = #tpu.dot_dimension_numbers<[1], [0], [0], [1], [0, 0, 1, 1], [], []>} : vector<32x32xf32>, vector<32x256xf32>, vector<32x256xf32> -> vector<32x256xf32>
    %28 = arith.addf %23, %27 : vector<32x256xf32>
    %c2 = arith.constant 2 : index
    %c0_15 = arith.constant 0 : index
    %c0_16 = arith.constant 0 : index
    %29 = vector.load %arg2[%c2, %c0_15, %c0_16] : memref<5x32x32xf32, #tpu.memory_space<vmem>>, vector<1x32x32xf32>
    %30 = vector.shape_cast %29 : vector<1x32x32xf32> to vector<32x32xf32>
    %cst_17 = arith.constant dense<0.000000e+00> : vector<32x256xf32>
    %31 = tpu.matmul %30, %1, %cst_17 {dimension_numbers = #tpu.dot_dimension_numbers<[1], [0], [0], [1], [0, 0, 1, 1], [], []>} : vector<32x32xf32>, vector<32x256xf32>, vector<32x256xf32> -> vector<32x256xf32>
    %32 = arith.addf %28, %31 : vector<32x256xf32>
    %33 = arith.select %16, %6, %5 : vector<32x256xi1>, vector<32x256xf32>
    %c3 = arith.constant 3 : index
    %c0_18 = arith.constant 0 : index
    %c0_19 = arith.constant 0 : index
    %34 = vector.load %arg2[%c3, %c0_18, %c0_19] : memref<5x32x32xf32, #tpu.memory_space<vmem>>, vector<1x32x32xf32>
    %35 = vector.shape_cast %34 : vector<1x32x32xf32> to vector<32x32xf32>
    %cst_20 = arith.constant dense<0.000000e+00> : vector<32x256xf32>
    %36 = tpu.matmul %35, %33, %cst_20 {dimension_numbers = #tpu.dot_dimension_numbers<[1], [0], [0], [1], [0, 0, 1, 1], [], []>} : vector<32x32xf32>, vector<32x256xf32>, vector<32x256xf32> -> vector<32x256xf32>
    %37 = arith.addf %32, %36 : vector<32x256xf32>
    %38 = arith.select %16, %8, %7 : vector<32x256xi1>, vector<32x256xf32>
    %39 = arith.select %18, %1, %38 : vector<32x256xi1>, vector<32x256xf32>
    %c4 = arith.constant 4 : index
    %c0_21 = arith.constant 0 : index
    %c0_22 = arith.constant 0 : index
    %40 = vector.load %arg2[%c4, %c0_21, %c0_22] : memref<5x32x32xf32, #tpu.memory_space<vmem>>, vector<1x32x32xf32>
    %41 = vector.shape_cast %40 : vector<1x32x32xf32> to vector<32x32xf32>
    %cst_23 = arith.constant dense<0.000000e+00> : vector<32x256xf32>
    %42 = tpu.matmul %41, %39, %cst_23 {dimension_numbers = #tpu.dot_dimension_numbers<[1], [0], [0], [1], [0, 0, 1, 1], [], []>} : vector<32x32xf32>, vector<32x256xf32>, vector<32x256xf32> -> vector<32x256xf32>
    %43 = arith.addf %37, %42 : vector<32x256xf32>
    %c0_24 = arith.constant 0 : index
    %c0_25 = arith.constant 0 : index
    %44 = vector.load %arg3[%c0_24, %c0_25] : memref<32x1xf32, #tpu.memory_space<vmem>>, vector<32x1xf32>
    %45 = vector.broadcast %44 : vector<32x1xf32> to vector<32x256xf32>
    %46 = arith.addf %43, %45 : vector<32x256xf32>
    %cst_26 = arith.constant 0.000000e+00 : f32
    %47 = vector.broadcast %cst_26 : f32 to vector<32x256xf32>
    %48 = arith.cmpf oge, %46, %47 : vector<32x256xf32>
    %cst_27 = arith.constant 0.00999999977 : f32
    %49 = vector.broadcast %cst_27 : f32 to vector<32x256xf32>
    %50 = arith.mulf %49, %46 : vector<32x256xf32>
    %51 = arith.select %48, %46, %50 : vector<32x256xi1>, vector<32x256xf32>
    %c255_i32_28 = arith.constant 255 : i32
    %52 = tpu.dynamic_rotate %51 by %c255_i32_28 dim 1 : vector<32x256xf32>, i32 -> vector<32x256xf32>
    %c1_i32_29 = arith.constant 1 : i32
    %53 = tpu.dynamic_rotate %51 by %c1_i32_29 dim 1 : vector<32x256xf32>, i32 -> vector<32x256xf32>
    %c254_i32_30 = arith.constant 254 : i32
    %54 = tpu.dynamic_rotate %51 by %c254_i32_30 dim 1 : vector<32x256xf32>, i32 -> vector<32x256xf32>
    %c2_i32_31 = arith.constant 2 : i32
    %55 = tpu.dynamic_rotate %51 by %c2_i32_31 dim 1 : vector<32x256xf32>, i32 -> vector<32x256xf32>
    %56 = vector.shape_cast %2 : vector<1x256xi32> to vector<1x256xi32>
    %57 = vector.broadcast %56 : vector<1x256xi32> to vector<32x256xi32>
    %c0_i32_32 = arith.constant 0 : i32
    %58 = vector.broadcast %c0_i32_32 : i32 to vector<32x256xi32>
    %59 = arith.cmpi eq, %57, %58 : vector<32x256xi32>
    %c1_i32_33 = arith.constant 1 : i32
    %60 = vector.broadcast %c1_i32_33 : i32 to vector<32x256xi32>
    %61 = arith.cmpi eq, %57, %60 : vector<32x256xi32>
    %c127_i32_34 = arith.constant 127 : i32
    %62 = vector.broadcast %c127_i32_34 : i32 to vector<32x256xi32>
    %63 = arith.cmpi eq, %57, %62 : vector<32x256xi32>
    %c126_i32_35 = arith.constant 126 : i32
    %64 = vector.broadcast %c126_i32_35 : i32 to vector<32x256xi32>
    %65 = arith.cmpi eq, %57, %64 : vector<32x256xi32>
    %66 = arith.select %59, %54, %55 : vector<32x256xi1>, vector<32x256xf32>
    %67 = arith.select %61, %51, %66 : vector<32x256xi1>, vector<32x256xf32>
    %c0_36 = arith.constant 0 : index
    %c0_37 = arith.constant 0 : index
    %c0_38 = arith.constant 0 : index
    %68 = vector.load %arg4[%c0_36, %c0_37, %c0_38] : memref<5x32x32xf32, #tpu.memory_space<vmem>>, vector<1x32x32xf32>
    %69 = vector.shape_cast %68 : vector<1x32x32xf32> to vector<32x32xf32>
    %cst_39 = arith.constant dense<0.000000e+00> : vector<32x256xf32>
    %70 = tpu.matmul %69, %67, %cst_39 {dimension_numbers = #tpu.dot_dimension_numbers<[1], [0], [0], [1], [0, 0, 1, 1], [], []>} : vector<32x32xf32>, vector<32x256xf32>, vector<32x256xf32> -> vector<32x256xf32>
    %71 = arith.select %59, %52, %53 : vector<32x256xi1>, vector<32x256xf32>
    %c1_40 = arith.constant 1 : index
    %c0_41 = arith.constant 0 : index
    %c0_42 = arith.constant 0 : index
    %72 = vector.load %arg4[%c1_40, %c0_41, %c0_42] : memref<5x32x32xf32, #tpu.memory_space<vmem>>, vector<1x32x32xf32>
    %73 = vector.shape_cast %72 : vector<1x32x32xf32> to vector<32x32xf32>
    %cst_43 = arith.constant dense<0.000000e+00> : vector<32x256xf32>
    %74 = tpu.matmul %73, %71, %cst_43 {dimension_numbers = #tpu.dot_dimension_numbers<[1], [0], [0], [1], [0, 0, 1, 1], [], []>} : vector<32x32xf32>, vector<32x256xf32>, vector<32x256xf32> -> vector<32x256xf32>
    %75 = arith.addf %70, %74 : vector<32x256xf32>
    %c2_44 = arith.constant 2 : index
    %c0_45 = arith.constant 0 : index
    %c0_46 = arith.constant 0 : index
    %76 = vector.load %arg4[%c2_44, %c0_45, %c0_46] : memref<5x32x32xf32, #tpu.memory_space<vmem>>, vector<1x32x32xf32>
    %77 = vector.shape_cast %76 : vector<1x32x32xf32> to vector<32x32xf32>
    %cst_47 = arith.constant dense<0.000000e+00> : vector<32x256xf32>
    %78 = tpu.matmul %77, %51, %cst_47 {dimension_numbers = #tpu.dot_dimension_numbers<[1], [0], [0], [1], [0, 0, 1, 1], [], []>} : vector<32x32xf32>, vector<32x256xf32>, vector<32x256xf32> -> vector<32x256xf32>
    %79 = arith.addf %75, %78 : vector<32x256xf32>
    %80 = arith.select %63, %53, %52 : vector<32x256xi1>, vector<32x256xf32>
    %c3_48 = arith.constant 3 : index
    %c0_49 = arith.constant 0 : index
    %c0_50 = arith.constant 0 : index
    %81 = vector.load %arg4[%c3_48, %c0_49, %c0_50] : memref<5x32x32xf32, #tpu.memory_space<vmem>>, vector<1x32x32xf32>
    %82 = vector.shape_cast %81 : vector<1x32x32xf32> to vector<32x32xf32>
    %cst_51 = arith.constant dense<0.000000e+00> : vector<32x256xf32>
    %83 = tpu.matmul %82, %80, %cst_51 {dimension_numbers = #tpu.dot_dimension_numbers<[1], [0], [0], [1], [0, 0, 1, 1], [], []>} : vector<32x32xf32>, vector<32x256xf32>, vector<32x256xf32> -> vector<32x256xf32>
    %84 = arith.addf %79, %83 : vector<32x256xf32>
    %85 = arith.select %63, %55, %54 : vector<32x256xi1>, vector<32x256xf32>
    %86 = arith.select %65, %51, %85 : vector<32x256xi1>, vector<32x256xf32>
    %c4_52 = arith.constant 4 : index
    %c0_53 = arith.constant 0 : index
    %c0_54 = arith.constant 0 : index
    %87 = vector.load %arg4[%c4_52, %c0_53, %c0_54] : memref<5x32x32xf32, #tpu.memory_space<vmem>>, vector<1x32x32xf32>
    %88 = vector.shape_cast %87 : vector<1x32x32xf32> to vector<32x32xf32>
    %cst_55 = arith.constant dense<0.000000e+00> : vector<32x256xf32>
    %89 = tpu.matmul %88, %86, %cst_55 {dimension_numbers = #tpu.dot_dimension_numbers<[1], [0], [0], [1], [0, 0, 1, 1], [], []>} : vector<32x32xf32>, vector<32x256xf32>, vector<32x256xf32> -> vector<32x256xf32>
    %90 = arith.addf %84, %89 : vector<32x256xf32>
    %c0_56 = arith.constant 0 : index
    %c0_57 = arith.constant 0 : index
    %91 = vector.load %arg5[%c0_56, %c0_57] : memref<32x1xf32, #tpu.memory_space<vmem>>, vector<32x1xf32>
    %92 = vector.broadcast %91 : vector<32x1xf32> to vector<32x256xf32>
    %93 = arith.addf %90, %92 : vector<32x256xf32>
    %cst_58 = arith.constant 0.000000e+00 : f32
    %94 = vector.broadcast %cst_58 : f32 to vector<32x256xf32>
    %95 = arith.cmpf oge, %93, %94 : vector<32x256xf32>
    %cst_59 = arith.constant 0.00999999977 : f32
    %96 = vector.broadcast %cst_59 : f32 to vector<32x256xf32>
    %97 = arith.mulf %96, %93 : vector<32x256xf32>
    %98 = arith.select %95, %93, %97 : vector<32x256xi1>, vector<32x256xf32>
    %cst_60 = arith.constant dense<0.000000e+00> : vector<32x2xf32>
    %99 = tpu.matmul %98, %3, %cst_60 {dimension_numbers = #tpu.dot_dimension_numbers<[1], [0], [0], [1], [0, 0, 1, 1], [], []>} : vector<32x256xf32>, vector<256x2xf32>, vector<32x2xf32> -> vector<32x2xf32>
    %cst_61 = arith.constant 7.812500e-03 : f32
    %100 = vector.broadcast %cst_61 : f32 to vector<32x2xf32>
    %101 = arith.mulf %99, %100 : vector<32x2xf32>
    %102 = arith.mulf %98, %98 : vector<32x256xf32>
    %cst_62 = arith.constant dense<0.000000e+00> : vector<32x2xf32>
    %103 = tpu.matmul %102, %3, %cst_62 {dimension_numbers = #tpu.dot_dimension_numbers<[1], [0], [0], [1], [0, 0, 1, 1], [], []>} : vector<32x256xf32>, vector<256x2xf32>, vector<32x2xf32> -> vector<32x2xf32>
    %cst_63 = arith.constant 7.812500e-03 : f32
    %104 = vector.broadcast %cst_63 : f32 to vector<32x2xf32>
    %105 = arith.mulf %103, %104 : vector<32x2xf32>
    %106 = arith.mulf %101, %101 : vector<32x2xf32>
    %107 = arith.subf %105, %106 : vector<32x2xf32>
    %cst_64 = arith.constant 9.99999974E-6 : f32
    %108 = vector.broadcast %cst_64 : f32 to vector<32x2xf32>
    %109 = arith.addf %107, %108 : vector<32x2xf32>
    %110 = math.rsqrt %109 : vector<32x2xf32>
    %cst_65 = arith.constant dense<0.000000e+00> : vector<32x256xf32>
    %111 = tpu.matmul %101, %4, %cst_65 {dimension_numbers = #tpu.dot_dimension_numbers<[1], [0], [0], [1], [0, 0, 1, 1], [], []>} : vector<32x2xf32>, vector<2x256xf32>, vector<32x256xf32> -> vector<32x256xf32>
    %cst_66 = arith.constant dense<0.000000e+00> : vector<32x256xf32>
    %112 = tpu.matmul %110, %4, %cst_66 {dimension_numbers = #tpu.dot_dimension_numbers<[1], [0], [0], [1], [0, 0, 1, 1], [], []>} : vector<32x2xf32>, vector<2x256xf32>, vector<32x256xf32> -> vector<32x256xf32>
    %113 = arith.subf %98, %111 : vector<32x256xf32>
    %114 = arith.mulf %113, %112 : vector<32x256xf32>
    %c255_i32_67 = arith.constant 255 : i32
    %115 = tpu.dynamic_rotate %114 by %c255_i32_67 dim 1 : vector<32x256xf32>, i32 -> vector<32x256xf32>
    %c1_i32_68 = arith.constant 1 : i32
    %116 = tpu.dynamic_rotate %114 by %c1_i32_68 dim 1 : vector<32x256xf32>, i32 -> vector<32x256xf32>
    %c254_i32_69 = arith.constant 254 : i32
    %117 = tpu.dynamic_rotate %114 by %c254_i32_69 dim 1 : vector<32x256xf32>, i32 -> vector<32x256xf32>
    %c2_i32_70 = arith.constant 2 : i32
    %118 = tpu.dynamic_rotate %114 by %c2_i32_70 dim 1 : vector<32x256xf32>, i32 -> vector<32x256xf32>
    %119 = vector.shape_cast %2 : vector<1x256xi32> to vector<1x256xi32>
    %120 = vector.broadcast %119 : vector<1x256xi32> to vector<32x256xi32>
    %c0_i32_71 = arith.constant 0 : i32
    %121 = vector.broadcast %c0_i32_71 : i32 to vector<32x256xi32>
    %122 = arith.cmpi eq, %120, %121 : vector<32x256xi32>
    %c1_i32_72 = arith.constant 1 : i32
    %123 = vector.broadcast %c1_i32_72 : i32 to vector<32x256xi32>
    %124 = arith.cmpi eq, %120, %123 : vector<32x256xi32>
    %c127_i32_73 = arith.constant 127 : i32
    %125 = vector.broadcast %c127_i32_73 : i32 to vector<32x256xi32>
    %126 = arith.cmpi eq, %120, %125 : vector<32x256xi32>
    %c126_i32_74 = arith.constant 126 : i32
    %127 = vector.broadcast %c126_i32_74 : i32 to vector<32x256xi32>
    %128 = arith.cmpi eq, %120, %127 : vector<32x256xi32>
    %129 = arith.select %122, %117, %118 : vector<32x256xi1>, vector<32x256xf32>
    %130 = arith.select %124, %114, %129 : vector<32x256xi1>, vector<32x256xf32>
    %c0_75 = arith.constant 0 : index
    %c0_76 = arith.constant 0 : index
    %c0_77 = arith.constant 0 : index
    %131 = vector.load %arg6[%c0_75, %c0_76, %c0_77] : memref<5x32x32xf32, #tpu.memory_space<vmem>>, vector<1x32x32xf32>
    %132 = vector.shape_cast %131 : vector<1x32x32xf32> to vector<32x32xf32>
    %cst_78 = arith.constant dense<0.000000e+00> : vector<32x256xf32>
    %133 = tpu.matmul %132, %130, %cst_78 {dimension_numbers = #tpu.dot_dimension_numbers<[1], [0], [0], [1], [0, 0, 1, 1], [], []>} : vector<32x32xf32>, vector<32x256xf32>, vector<32x256xf32> -> vector<32x256xf32>
    %134 = arith.select %122, %115, %116 : vector<32x256xi1>, vector<32x256xf32>
    %c1_79 = arith.constant 1 : index
    %c0_80 = arith.constant 0 : index
    %c0_81 = arith.constant 0 : index
    %135 = vector.load %arg6[%c1_79, %c0_80, %c0_81] : memref<5x32x32xf32, #tpu.memory_space<vmem>>, vector<1x32x32xf32>
    %136 = vector.shape_cast %135 : vector<1x32x32xf32> to vector<32x32xf32>
    %cst_82 = arith.constant dense<0.000000e+00> : vector<32x256xf32>
    %137 = tpu.matmul %136, %134, %cst_82 {dimension_numbers = #tpu.dot_dimension_numbers<[1], [0], [0], [1], [0, 0, 1, 1], [], []>} : vector<32x32xf32>, vector<32x256xf32>, vector<32x256xf32> -> vector<32x256xf32>
    %138 = arith.addf %133, %137 : vector<32x256xf32>
    %c2_83 = arith.constant 2 : index
    %c0_84 = arith.constant 0 : index
    %c0_85 = arith.constant 0 : index
    %139 = vector.load %arg6[%c2_83, %c0_84, %c0_85] : memref<5x32x32xf32, #tpu.memory_space<vmem>>, vector<1x32x32xf32>
    %140 = vector.shape_cast %139 : vector<1x32x32xf32> to vector<32x32xf32>
    %cst_86 = arith.constant dense<0.000000e+00> : vector<32x256xf32>
    %141 = tpu.matmul %140, %114, %cst_86 {dimension_numbers = #tpu.dot_dimension_numbers<[1], [0], [0], [1], [0, 0, 1, 1], [], []>} : vector<32x32xf32>, vector<32x256xf32>, vector<32x256xf32> -> vector<32x256xf32>
    %142 = arith.addf %138, %141 : vector<32x256xf32>
    %143 = arith.select %126, %116, %115 : vector<32x256xi1>, vector<32x256xf32>
    %c3_87 = arith.constant 3 : index
    %c0_88 = arith.constant 0 : index
    %c0_89 = arith.constant 0 : index
    %144 = vector.load %arg6[%c3_87, %c0_88, %c0_89] : memref<5x32x32xf32, #tpu.memory_space<vmem>>, vector<1x32x32xf32>
    %145 = vector.shape_cast %144 : vector<1x32x32xf32> to vector<32x32xf32>
    %cst_90 = arith.constant dense<0.000000e+00> : vector<32x256xf32>
    %146 = tpu.matmul %145, %143, %cst_90 {dimension_numbers = #tpu.dot_dimension_numbers<[1], [0], [0], [1], [0, 0, 1, 1], [], []>} : vector<32x32xf32>, vector<32x256xf32>, vector<32x256xf32> -> vector<32x256xf32>
    %147 = arith.addf %142, %146 : vector<32x256xf32>
    %148 = arith.select %126, %118, %117 : vector<32x256xi1>, vector<32x256xf32>
    %149 = arith.select %128, %114, %148 : vector<32x256xi1>, vector<32x256xf32>
    %c4_91 = arith.constant 4 : index
    %c0_92 = arith.constant 0 : index
    %c0_93 = arith.constant 0 : index
    %150 = vector.load %arg6[%c4_91, %c0_92, %c0_93] : memref<5x32x32xf32, #tpu.memory_space<vmem>>, vector<1x32x32xf32>
    %151 = vector.shape_cast %150 : vector<1x32x32xf32> to vector<32x32xf32>
    %cst_94 = arith.constant dense<0.000000e+00> : vector<32x256xf32>
    %152 = tpu.matmul %151, %149, %cst_94 {dimension_numbers = #tpu.dot_dimension_numbers<[1], [0], [0], [1], [0, 0, 1, 1], [], []>} : vector<32x32xf32>, vector<32x256xf32>, vector<32x256xf32> -> vector<32x256xf32>
    %153 = arith.addf %147, %152 : vector<32x256xf32>
    %c0_95 = arith.constant 0 : index
    %c0_96 = arith.constant 0 : index
    %154 = vector.load %arg7[%c0_95, %c0_96] : memref<32x1xf32, #tpu.memory_space<vmem>>, vector<32x1xf32>
    %155 = vector.broadcast %154 : vector<32x1xf32> to vector<32x256xf32>
    %156 = arith.addf %153, %155 : vector<32x256xf32>
    %cst_97 = arith.constant 0.000000e+00 : f32
    %157 = vector.broadcast %cst_97 : f32 to vector<32x256xf32>
    %158 = arith.cmpf oge, %156, %157 : vector<32x256xf32>
    %cst_98 = arith.constant 0.00999999977 : f32
    %159 = vector.broadcast %cst_98 : f32 to vector<32x256xf32>
    %160 = arith.mulf %159, %156 : vector<32x256xf32>
    %161 = arith.select %158, %156, %160 : vector<32x256xi1>, vector<32x256xf32>
    %c255_i32_99 = arith.constant 255 : i32
    %162 = tpu.dynamic_rotate %161 by %c255_i32_99 dim 1 : vector<32x256xf32>, i32 -> vector<32x256xf32>
    %c1_i32_100 = arith.constant 1 : i32
    %163 = tpu.dynamic_rotate %161 by %c1_i32_100 dim 1 : vector<32x256xf32>, i32 -> vector<32x256xf32>
    %c254_i32_101 = arith.constant 254 : i32
    %164 = tpu.dynamic_rotate %161 by %c254_i32_101 dim 1 : vector<32x256xf32>, i32 -> vector<32x256xf32>
    %c2_i32_102 = arith.constant 2 : i32
    %165 = tpu.dynamic_rotate %161 by %c2_i32_102 dim 1 : vector<32x256xf32>, i32 -> vector<32x256xf32>
    %166 = vector.shape_cast %2 : vector<1x256xi32> to vector<1x256xi32>
    %167 = vector.broadcast %166 : vector<1x256xi32> to vector<32x256xi32>
    %c0_i32_103 = arith.constant 0 : i32
    %168 = vector.broadcast %c0_i32_103 : i32 to vector<32x256xi32>
    %169 = arith.cmpi eq, %167, %168 : vector<32x256xi32>
    %c1_i32_104 = arith.constant 1 : i32
    %170 = vector.broadcast %c1_i32_104 : i32 to vector<32x256xi32>
    %171 = arith.cmpi eq, %167, %170 : vector<32x256xi32>
    %c127_i32_105 = arith.constant 127 : i32
    %172 = vector.broadcast %c127_i32_105 : i32 to vector<32x256xi32>
    %173 = arith.cmpi eq, %167, %172 : vector<32x256xi32>
    %c126_i32_106 = arith.constant 126 : i32
    %174 = vector.broadcast %c126_i32_106 : i32 to vector<32x256xi32>
    %175 = arith.cmpi eq, %167, %174 : vector<32x256xi32>
    %176 = arith.select %169, %164, %165 : vector<32x256xi1>, vector<32x256xf32>
    %177 = arith.select %171, %161, %176 : vector<32x256xi1>, vector<32x256xf32>
    %c0_107 = arith.constant 0 : index
    %c0_108 = arith.constant 0 : index
    %c0_109 = arith.constant 0 : index
    %178 = vector.load %arg8[%c0_107, %c0_108, %c0_109] : memref<5x32x32xf32, #tpu.memory_space<vmem>>, vector<1x32x32xf32>
    %179 = vector.shape_cast %178 : vector<1x32x32xf32> to vector<32x32xf32>
    %cst_110 = arith.constant dense<0.000000e+00> : vector<32x256xf32>
    %180 = tpu.matmul %179, %177, %cst_110 {dimension_numbers = #tpu.dot_dimension_numbers<[1], [0], [0], [1], [0, 0, 1, 1], [], []>} : vector<32x32xf32>, vector<32x256xf32>, vector<32x256xf32> -> vector<32x256xf32>
    %181 = arith.select %169, %162, %163 : vector<32x256xi1>, vector<32x256xf32>
    %c1_111 = arith.constant 1 : index
    %c0_112 = arith.constant 0 : index
    %c0_113 = arith.constant 0 : index
    %182 = vector.load %arg8[%c1_111, %c0_112, %c0_113] : memref<5x32x32xf32, #tpu.memory_space<vmem>>, vector<1x32x32xf32>
    %183 = vector.shape_cast %182 : vector<1x32x32xf32> to vector<32x32xf32>
    %cst_114 = arith.constant dense<0.000000e+00> : vector<32x256xf32>
    %184 = tpu.matmul %183, %181, %cst_114 {dimension_numbers = #tpu.dot_dimension_numbers<[1], [0], [0], [1], [0, 0, 1, 1], [], []>} : vector<32x32xf32>, vector<32x256xf32>, vector<32x256xf32> -> vector<32x256xf32>
    %185 = arith.addf %180, %184 : vector<32x256xf32>
    %c2_115 = arith.constant 2 : index
    %c0_116 = arith.constant 0 : index
    %c0_117 = arith.constant 0 : index
    %186 = vector.load %arg8[%c2_115, %c0_116, %c0_117] : memref<5x32x32xf32, #tpu.memory_space<vmem>>, vector<1x32x32xf32>
    %187 = vector.shape_cast %186 : vector<1x32x32xf32> to vector<32x32xf32>
    %cst_118 = arith.constant dense<0.000000e+00> : vector<32x256xf32>
    %188 = tpu.matmul %187, %161, %cst_118 {dimension_numbers = #tpu.dot_dimension_numbers<[1], [0], [0], [1], [0, 0, 1, 1], [], []>} : vector<32x32xf32>, vector<32x256xf32>, vector<32x256xf32> -> vector<32x256xf32>
    %189 = arith.addf %185, %188 : vector<32x256xf32>
    %190 = arith.select %173, %163, %162 : vector<32x256xi1>, vector<32x256xf32>
    %c3_119 = arith.constant 3 : index
    %c0_120 = arith.constant 0 : index
    %c0_121 = arith.constant 0 : index
    %191 = vector.load %arg8[%c3_119, %c0_120, %c0_121] : memref<5x32x32xf32, #tpu.memory_space<vmem>>, vector<1x32x32xf32>
    %192 = vector.shape_cast %191 : vector<1x32x32xf32> to vector<32x32xf32>
    %cst_122 = arith.constant dense<0.000000e+00> : vector<32x256xf32>
    %193 = tpu.matmul %192, %190, %cst_122 {dimension_numbers = #tpu.dot_dimension_numbers<[1], [0], [0], [1], [0, 0, 1, 1], [], []>} : vector<32x32xf32>, vector<32x256xf32>, vector<32x256xf32> -> vector<32x256xf32>
    %194 = arith.addf %189, %193 : vector<32x256xf32>
    %195 = arith.select %173, %165, %164 : vector<32x256xi1>, vector<32x256xf32>
    %196 = arith.select %175, %161, %195 : vector<32x256xi1>, vector<32x256xf32>
    %c4_123 = arith.constant 4 : index
    %c0_124 = arith.constant 0 : index
    %c0_125 = arith.constant 0 : index
    %197 = vector.load %arg8[%c4_123, %c0_124, %c0_125] : memref<5x32x32xf32, #tpu.memory_space<vmem>>, vector<1x32x32xf32>
    %198 = vector.shape_cast %197 : vector<1x32x32xf32> to vector<32x32xf32>
    %cst_126 = arith.constant dense<0.000000e+00> : vector<32x256xf32>
    %199 = tpu.matmul %198, %196, %cst_126 {dimension_numbers = #tpu.dot_dimension_numbers<[1], [0], [0], [1], [0, 0, 1, 1], [], []>} : vector<32x32xf32>, vector<32x256xf32>, vector<32x256xf32> -> vector<32x256xf32>
    %200 = arith.addf %194, %199 : vector<32x256xf32>
    %c0_127 = arith.constant 0 : index
    %c0_128 = arith.constant 0 : index
    %201 = vector.load %arg9[%c0_127, %c0_128] : memref<32x1xf32, #tpu.memory_space<vmem>>, vector<32x1xf32>
    %202 = vector.broadcast %201 : vector<32x1xf32> to vector<32x256xf32>
    %203 = arith.addf %200, %202 : vector<32x256xf32>
    %cst_129 = arith.constant 0.000000e+00 : f32
    %204 = vector.broadcast %cst_129 : f32 to vector<32x256xf32>
    %205 = arith.cmpf oge, %203, %204 : vector<32x256xf32>
    %cst_130 = arith.constant 0.00999999977 : f32
    %206 = vector.broadcast %cst_130 : f32 to vector<32x256xf32>
    %207 = arith.mulf %206, %203 : vector<32x256xf32>
    %208 = arith.select %205, %203, %207 : vector<32x256xi1>, vector<32x256xf32>
    %cst_131 = arith.constant dense<0.000000e+00> : vector<32x2xf32>
    %209 = tpu.matmul %208, %3, %cst_131 {dimension_numbers = #tpu.dot_dimension_numbers<[1], [0], [0], [1], [0, 0, 1, 1], [], []>} : vector<32x256xf32>, vector<256x2xf32>, vector<32x2xf32> -> vector<32x2xf32>
    %cst_132 = arith.constant 7.812500e-03 : f32
    %210 = vector.broadcast %cst_132 : f32 to vector<32x2xf32>
    %211 = arith.mulf %209, %210 : vector<32x2xf32>
    %212 = arith.mulf %208, %208 : vector<32x256xf32>
    %cst_133 = arith.constant dense<0.000000e+00> : vector<32x2xf32>
    %213 = tpu.matmul %212, %3, %cst_133 {dimension_numbers = #tpu.dot_dimension_numbers<[1], [0], [0], [1], [0, 0, 1, 1], [], []>} : vector<32x256xf32>, vector<256x2xf32>, vector<32x2xf32> -> vector<32x2xf32>
    %cst_134 = arith.constant 7.812500e-03 : f32
    %214 = vector.broadcast %cst_134 : f32 to vector<32x2xf32>
    %215 = arith.mulf %213, %214 : vector<32x2xf32>
    %216 = arith.mulf %211, %211 : vector<32x2xf32>
    %217 = arith.subf %215, %216 : vector<32x2xf32>
    %cst_135 = arith.constant 9.99999974E-6 : f32
    %218 = vector.broadcast %cst_135 : f32 to vector<32x2xf32>
    %219 = arith.addf %217, %218 : vector<32x2xf32>
    %220 = math.rsqrt %219 : vector<32x2xf32>
    %cst_136 = arith.constant dense<0.000000e+00> : vector<32x256xf32>
    %221 = tpu.matmul %211, %4, %cst_136 {dimension_numbers = #tpu.dot_dimension_numbers<[1], [0], [0], [1], [0, 0, 1, 1], [], []>} : vector<32x2xf32>, vector<2x256xf32>, vector<32x256xf32> -> vector<32x256xf32>
    %cst_137 = arith.constant dense<0.000000e+00> : vector<32x256xf32>
    %222 = tpu.matmul %220, %4, %cst_137 {dimension_numbers = #tpu.dot_dimension_numbers<[1], [0], [0], [1], [0, 0, 1, 1], [], []>} : vector<32x2xf32>, vector<2x256xf32>, vector<32x256xf32> -> vector<32x256xf32>
    %223 = arith.subf %208, %221 : vector<32x256xf32>
    %224 = arith.mulf %223, %222 : vector<32x256xf32>
    %225 = arith.addf %224, %114 : vector<32x256xf32>
    %c255_i32_138 = arith.constant 255 : i32
    %226 = tpu.dynamic_rotate %225 by %c255_i32_138 dim 1 : vector<32x256xf32>, i32 -> vector<32x256xf32>
    %c1_i32_139 = arith.constant 1 : i32
    %227 = tpu.dynamic_rotate %225 by %c1_i32_139 dim 1 : vector<32x256xf32>, i32 -> vector<32x256xf32>
    %c254_i32_140 = arith.constant 254 : i32
    %228 = tpu.dynamic_rotate %225 by %c254_i32_140 dim 1 : vector<32x256xf32>, i32 -> vector<32x256xf32>
    %c2_i32_141 = arith.constant 2 : i32
    %229 = tpu.dynamic_rotate %225 by %c2_i32_141 dim 1 : vector<32x256xf32>, i32 -> vector<32x256xf32>
    %230 = vector.shape_cast %2 : vector<1x256xi32> to vector<1x256xi32>
    %231 = vector.broadcast %230 : vector<1x256xi32> to vector<32x256xi32>
    %c0_i32_142 = arith.constant 0 : i32
    %232 = vector.broadcast %c0_i32_142 : i32 to vector<32x256xi32>
    %233 = arith.cmpi eq, %231, %232 : vector<32x256xi32>
    %c1_i32_143 = arith.constant 1 : i32
    %234 = vector.broadcast %c1_i32_143 : i32 to vector<32x256xi32>
    %235 = arith.cmpi eq, %231, %234 : vector<32x256xi32>
    %c127_i32_144 = arith.constant 127 : i32
    %236 = vector.broadcast %c127_i32_144 : i32 to vector<32x256xi32>
    %237 = arith.cmpi eq, %231, %236 : vector<32x256xi32>
    %c126_i32_145 = arith.constant 126 : i32
    %238 = vector.broadcast %c126_i32_145 : i32 to vector<32x256xi32>
    %239 = arith.cmpi eq, %231, %238 : vector<32x256xi32>
    %240 = arith.select %233, %228, %229 : vector<32x256xi1>, vector<32x256xf32>
    %241 = arith.select %235, %225, %240 : vector<32x256xi1>, vector<32x256xf32>
    %c0_146 = arith.constant 0 : index
    %c0_147 = arith.constant 0 : index
    %c0_148 = arith.constant 0 : index
    %242 = vector.load %arg10[%c0_146, %c0_147, %c0_148] : memref<5x32x32xf32, #tpu.memory_space<vmem>>, vector<1x32x32xf32>
    %243 = vector.shape_cast %242 : vector<1x32x32xf32> to vector<32x32xf32>
    %cst_149 = arith.constant dense<0.000000e+00> : vector<32x256xf32>
    %244 = tpu.matmul %243, %241, %cst_149 {dimension_numbers = #tpu.dot_dimension_numbers<[1], [0], [0], [1], [0, 0, 1, 1], [], []>} : vector<32x32xf32>, vector<32x256xf32>, vector<32x256xf32> -> vector<32x256xf32>
    %245 = arith.select %233, %226, %227 : vector<32x256xi1>, vector<32x256xf32>
    %c1_150 = arith.constant 1 : index
    %c0_151 = arith.constant 0 : index
    %c0_152 = arith.constant 0 : index
    %246 = vector.load %arg10[%c1_150, %c0_151, %c0_152] : memref<5x32x32xf32, #tpu.memory_space<vmem>>, vector<1x32x32xf32>
    %247 = vector.shape_cast %246 : vector<1x32x32xf32> to vector<32x32xf32>
    %cst_153 = arith.constant dense<0.000000e+00> : vector<32x256xf32>
    %248 = tpu.matmul %247, %245, %cst_153 {dimension_numbers = #tpu.dot_dimension_numbers<[1], [0], [0], [1], [0, 0, 1, 1], [], []>} : vector<32x32xf32>, vector<32x256xf32>, vector<32x256xf32> -> vector<32x256xf32>
    %249 = arith.addf %244, %248 : vector<32x256xf32>
    %c2_154 = arith.constant 2 : index
    %c0_155 = arith.constant 0 : index
    %c0_156 = arith.constant 0 : index
    %250 = vector.load %arg10[%c2_154, %c0_155, %c0_156] : memref<5x32x32xf32, #tpu.memory_space<vmem>>, vector<1x32x32xf32>
    %251 = vector.shape_cast %250 : vector<1x32x32xf32> to vector<32x32xf32>
    %cst_157 = arith.constant dense<0.000000e+00> : vector<32x256xf32>
    %252 = tpu.matmul %251, %225, %cst_157 {dimension_numbers = #tpu.dot_dimension_numbers<[1], [0], [0], [1], [0, 0, 1, 1], [], []>} : vector<32x32xf32>, vector<32x256xf32>, vector<32x256xf32> -> vector<32x256xf32>
    %253 = arith.addf %249, %252 : vector<32x256xf32>
    %254 = arith.select %237, %227, %226 : vector<32x256xi1>, vector<32x256xf32>
    %c3_158 = arith.constant 3 : index
    %c0_159 = arith.constant 0 : index
    %c0_160 = arith.constant 0 : index
    %255 = vector.load %arg10[%c3_158, %c0_159, %c0_160] : memref<5x32x32xf32, #tpu.memory_space<vmem>>, vector<1x32x32xf32>
    %256 = vector.shape_cast %255 : vector<1x32x32xf32> to vector<32x32xf32>
    %cst_161 = arith.constant dense<0.000000e+00> : vector<32x256xf32>
    %257 = tpu.matmul %256, %254, %cst_161 {dimension_numbers = #tpu.dot_dimension_numbers<[1], [0], [0], [1], [0, 0, 1, 1], [], []>} : vector<32x32xf32>, vector<32x256xf32>, vector<32x256xf32> -> vector<32x256xf32>
    %258 = arith.addf %253, %257 : vector<32x256xf32>
    %259 = arith.select %237, %229, %228 : vector<32x256xi1>, vector<32x256xf32>
    %260 = arith.select %239, %225, %259 : vector<32x256xi1>, vector<32x256xf32>
    %c4_162 = arith.constant 4 : index
    %c0_163 = arith.constant 0 : index
    %c0_164 = arith.constant 0 : index
    %261 = vector.load %arg10[%c4_162, %c0_163, %c0_164] : memref<5x32x32xf32, #tpu.memory_space<vmem>>, vector<1x32x32xf32>
    %262 = vector.shape_cast %261 : vector<1x32x32xf32> to vector<32x32xf32>
    %cst_165 = arith.constant dense<0.000000e+00> : vector<32x256xf32>
    %263 = tpu.matmul %262, %260, %cst_165 {dimension_numbers = #tpu.dot_dimension_numbers<[1], [0], [0], [1], [0, 0, 1, 1], [], []>} : vector<32x32xf32>, vector<32x256xf32>, vector<32x256xf32> -> vector<32x256xf32>
    %264 = arith.addf %258, %263 : vector<32x256xf32>
    %c0_166 = arith.constant 0 : index
    %c0_167 = arith.constant 0 : index
    %265 = vector.load %arg11[%c0_166, %c0_167] : memref<32x1xf32, #tpu.memory_space<vmem>>, vector<32x1xf32>
    %266 = vector.broadcast %265 : vector<32x1xf32> to vector<32x256xf32>
    %267 = arith.addf %264, %266 : vector<32x256xf32>
    %cst_168 = arith.constant 0.000000e+00 : f32
    %268 = vector.broadcast %cst_168 : f32 to vector<32x256xf32>
    %269 = arith.cmpf oge, %267, %268 : vector<32x256xf32>
    %cst_169 = arith.constant 0.00999999977 : f32
    %270 = vector.broadcast %cst_169 : f32 to vector<32x256xf32>
    %271 = arith.mulf %270, %267 : vector<32x256xf32>
    %272 = arith.select %269, %267, %271 : vector<32x256xi1>, vector<32x256xf32>
    %c255_i32_170 = arith.constant 255 : i32
    %273 = tpu.dynamic_rotate %272 by %c255_i32_170 dim 1 : vector<32x256xf32>, i32 -> vector<32x256xf32>
    %c1_i32_171 = arith.constant 1 : i32
    %274 = tpu.dynamic_rotate %272 by %c1_i32_171 dim 1 : vector<32x256xf32>, i32 -> vector<32x256xf32>
    %c254_i32_172 = arith.constant 254 : i32
    %275 = tpu.dynamic_rotate %272 by %c254_i32_172 dim 1 : vector<32x256xf32>, i32 -> vector<32x256xf32>
    %c2_i32_173 = arith.constant 2 : i32
    %276 = tpu.dynamic_rotate %272 by %c2_i32_173 dim 1 : vector<32x256xf32>, i32 -> vector<32x256xf32>
    %277 = vector.shape_cast %2 : vector<1x256xi32> to vector<1x256xi32>
    %278 = vector.broadcast %277 : vector<1x256xi32> to vector<32x256xi32>
    %c0_i32_174 = arith.constant 0 : i32
    %279 = vector.broadcast %c0_i32_174 : i32 to vector<32x256xi32>
    %280 = arith.cmpi eq, %278, %279 : vector<32x256xi32>
    %c1_i32_175 = arith.constant 1 : i32
    %281 = vector.broadcast %c1_i32_175 : i32 to vector<32x256xi32>
    %282 = arith.cmpi eq, %278, %281 : vector<32x256xi32>
    %c127_i32_176 = arith.constant 127 : i32
    %283 = vector.broadcast %c127_i32_176 : i32 to vector<32x256xi32>
    %284 = arith.cmpi eq, %278, %283 : vector<32x256xi32>
    %c126_i32_177 = arith.constant 126 : i32
    %285 = vector.broadcast %c126_i32_177 : i32 to vector<32x256xi32>
    %286 = arith.cmpi eq, %278, %285 : vector<32x256xi32>
    %287 = arith.select %280, %275, %276 : vector<32x256xi1>, vector<32x256xf32>
    %288 = arith.select %282, %272, %287 : vector<32x256xi1>, vector<32x256xf32>
    %c0_178 = arith.constant 0 : index
    %c0_179 = arith.constant 0 : index
    %c0_180 = arith.constant 0 : index
    %289 = vector.load %arg12[%c0_178, %c0_179, %c0_180] : memref<5x32x32xf32, #tpu.memory_space<vmem>>, vector<1x32x32xf32>
    %290 = vector.shape_cast %289 : vector<1x32x32xf32> to vector<32x32xf32>
    %cst_181 = arith.constant dense<0.000000e+00> : vector<32x256xf32>
    %291 = tpu.matmul %290, %288, %cst_181 {dimension_numbers = #tpu.dot_dimension_numbers<[1], [0], [0], [1], [0, 0, 1, 1], [], []>} : vector<32x32xf32>, vector<32x256xf32>, vector<32x256xf32> -> vector<32x256xf32>
    %292 = arith.select %280, %273, %274 : vector<32x256xi1>, vector<32x256xf32>
    %c1_182 = arith.constant 1 : index
    %c0_183 = arith.constant 0 : index
    %c0_184 = arith.constant 0 : index
    %293 = vector.load %arg12[%c1_182, %c0_183, %c0_184] : memref<5x32x32xf32, #tpu.memory_space<vmem>>, vector<1x32x32xf32>
    %294 = vector.shape_cast %293 : vector<1x32x32xf32> to vector<32x32xf32>
    %cst_185 = arith.constant dense<0.000000e+00> : vector<32x256xf32>
    %295 = tpu.matmul %294, %292, %cst_185 {dimension_numbers = #tpu.dot_dimension_numbers<[1], [0], [0], [1], [0, 0, 1, 1], [], []>} : vector<32x32xf32>, vector<32x256xf32>, vector<32x256xf32> -> vector<32x256xf32>
    %296 = arith.addf %291, %295 : vector<32x256xf32>
    %c2_186 = arith.constant 2 : index
    %c0_187 = arith.constant 0 : index
    %c0_188 = arith.constant 0 : index
    %297 = vector.load %arg12[%c2_186, %c0_187, %c0_188] : memref<5x32x32xf32, #tpu.memory_space<vmem>>, vector<1x32x32xf32>
    %298 = vector.shape_cast %297 : vector<1x32x32xf32> to vector<32x32xf32>
    %cst_189 = arith.constant dense<0.000000e+00> : vector<32x256xf32>
    %299 = tpu.matmul %298, %272, %cst_189 {dimension_numbers = #tpu.dot_dimension_numbers<[1], [0], [0], [1], [0, 0, 1, 1], [], []>} : vector<32x32xf32>, vector<32x256xf32>, vector<32x256xf32> -> vector<32x256xf32>
    %300 = arith.addf %296, %299 : vector<32x256xf32>
    %301 = arith.select %284, %274, %273 : vector<32x256xi1>, vector<32x256xf32>
    %c3_190 = arith.constant 3 : index
    %c0_191 = arith.constant 0 : index
    %c0_192 = arith.constant 0 : index
    %302 = vector.load %arg12[%c3_190, %c0_191, %c0_192] : memref<5x32x32xf32, #tpu.memory_space<vmem>>, vector<1x32x32xf32>
    %303 = vector.shape_cast %302 : vector<1x32x32xf32> to vector<32x32xf32>
    %cst_193 = arith.constant dense<0.000000e+00> : vector<32x256xf32>
    %304 = tpu.matmul %303, %301, %cst_193 {dimension_numbers = #tpu.dot_dimension_numbers<[1], [0], [0], [1], [0, 0, 1, 1], [], []>} : vector<32x32xf32>, vector<32x256xf32>, vector<32x256xf32> -> vector<32x256xf32>
    %305 = arith.addf %300, %304 : vector<32x256xf32>
    %306 = arith.select %284, %276, %275 : vector<32x256xi1>, vector<32x256xf32>
    %307 = arith.select %286, %272, %306 : vector<32x256xi1>, vector<32x256xf32>
    %c4_194 = arith.constant 4 : index
    %c0_195 = arith.constant 0 : index
    %c0_196 = arith.constant 0 : index
    %308 = vector.load %arg12[%c4_194, %c0_195, %c0_196] : memref<5x32x32xf32, #tpu.memory_space<vmem>>, vector<1x32x32xf32>
    %309 = vector.shape_cast %308 : vector<1x32x32xf32> to vector<32x32xf32>
    %cst_197 = arith.constant dense<0.000000e+00> : vector<32x256xf32>
    %310 = tpu.matmul %309, %307, %cst_197 {dimension_numbers = #tpu.dot_dimension_numbers<[1], [0], [0], [1], [0, 0, 1, 1], [], []>} : vector<32x32xf32>, vector<32x256xf32>, vector<32x256xf32> -> vector<32x256xf32>
    %311 = arith.addf %305, %310 : vector<32x256xf32>
    %c0_198 = arith.constant 0 : index
    %c0_199 = arith.constant 0 : index
    %312 = vector.load %arg13[%c0_198, %c0_199] : memref<32x1xf32, #tpu.memory_space<vmem>>, vector<32x1xf32>
    %313 = vector.broadcast %312 : vector<32x1xf32> to vector<32x256xf32>
    %314 = arith.addf %311, %313 : vector<32x256xf32>
    %cst_200 = arith.constant 0.000000e+00 : f32
    %315 = vector.broadcast %cst_200 : f32 to vector<32x256xf32>
    %316 = arith.cmpf oge, %314, %315 : vector<32x256xf32>
    %cst_201 = arith.constant 0.00999999977 : f32
    %317 = vector.broadcast %cst_201 : f32 to vector<32x256xf32>
    %318 = arith.mulf %317, %314 : vector<32x256xf32>
    %319 = arith.select %316, %314, %318 : vector<32x256xi1>, vector<32x256xf32>
    %cst_202 = arith.constant dense<0.000000e+00> : vector<32x2xf32>
    %320 = tpu.matmul %319, %3, %cst_202 {dimension_numbers = #tpu.dot_dimension_numbers<[1], [0], [0], [1], [0, 0, 1, 1], [], []>} : vector<32x256xf32>, vector<256x2xf32>, vector<32x2xf32> -> vector<32x2xf32>
    %cst_203 = arith.constant 7.812500e-03 : f32
    %321 = vector.broadcast %cst_203 : f32 to vector<32x2xf32>
    %322 = arith.mulf %320, %321 : vector<32x2xf32>
    %323 = arith.mulf %319, %319 : vector<32x256xf32>
    %cst_204 = arith.constant dense<0.000000e+00> : vector<32x2xf32>
    %324 = tpu.matmul %323, %3, %cst_204 {dimension_numbers = #tpu.dot_dimension_numbers<[1], [0], [0], [1], [0, 0, 1, 1], [], []>} : vector<32x256xf32>, vector<256x2xf32>, vector<32x2xf32> -> vector<32x2xf32>
    %cst_205 = arith.constant 7.812500e-03 : f32
    %325 = vector.broadcast %cst_205 : f32 to vector<32x2xf32>
    %326 = arith.mulf %324, %325 : vector<32x2xf32>
    %327 = arith.mulf %322, %322 : vector<32x2xf32>
    %328 = arith.subf %326, %327 : vector<32x2xf32>
    %cst_206 = arith.constant 9.99999974E-6 : f32
    %329 = vector.broadcast %cst_206 : f32 to vector<32x2xf32>
    %330 = arith.addf %328, %329 : vector<32x2xf32>
    %331 = math.rsqrt %330 : vector<32x2xf32>
    %cst_207 = arith.constant dense<0.000000e+00> : vector<32x256xf32>
    %332 = tpu.matmul %322, %4, %cst_207 {dimension_numbers = #tpu.dot_dimension_numbers<[1], [0], [0], [1], [0, 0, 1, 1], [], []>} : vector<32x2xf32>, vector<2x256xf32>, vector<32x256xf32> -> vector<32x256xf32>
    %cst_208 = arith.constant dense<0.000000e+00> : vector<32x256xf32>
    %333 = tpu.matmul %331, %4, %cst_208 {dimension_numbers = #tpu.dot_dimension_numbers<[1], [0], [0], [1], [0, 0, 1, 1], [], []>} : vector<32x2xf32>, vector<2x256xf32>, vector<32x256xf32> -> vector<32x256xf32>
    %334 = arith.subf %319, %332 : vector<32x256xf32>
    %335 = arith.mulf %334, %333 : vector<32x256xf32>
    %336 = arith.addf %335, %225 : vector<32x256xf32>
    %c255_i32_209 = arith.constant 255 : i32
    %337 = tpu.dynamic_rotate %336 by %c255_i32_209 dim 1 : vector<32x256xf32>, i32 -> vector<32x256xf32>
    %c1_i32_210 = arith.constant 1 : i32
    %338 = tpu.dynamic_rotate %336 by %c1_i32_210 dim 1 : vector<32x256xf32>, i32 -> vector<32x256xf32>
    %339 = vector.shape_cast %2 : vector<1x256xi32> to vector<1x256xi32>
    %340 = vector.broadcast %339 : vector<1x256xi32> to vector<32x256xi32>
    %c0_i32_211 = arith.constant 0 : i32
    %341 = vector.broadcast %c0_i32_211 : i32 to vector<32x256xi32>
    %342 = arith.cmpi eq, %340, %341 : vector<32x256xi32>
    %c127_i32_212 = arith.constant 127 : i32
    %343 = vector.broadcast %c127_i32_212 : i32 to vector<32x256xi32>
    %344 = arith.cmpi eq, %340, %343 : vector<32x256xi32>
    %345 = arith.select %342, %337, %338 : vector<32x256xi1>, vector<32x256xf32>
    %c0_213 = arith.constant 0 : index
    %c0_214 = arith.constant 0 : index
    %c0_215 = arith.constant 0 : index
    %346 = vector.load %arg14[%c0_213, %c0_214, %c0_215] : memref<3x16x32xf32, #tpu.memory_space<vmem>>, vector<1x16x32xf32>
    %347 = vector.shape_cast %346 : vector<1x16x32xf32> to vector<16x32xf32>
    %cst_216 = arith.constant dense<0.000000e+00> : vector<16x256xf32>
    %348 = tpu.matmul %347, %345, %cst_216 {dimension_numbers = #tpu.dot_dimension_numbers<[1], [0], [0], [1], [0, 0, 1, 1], [], []>} : vector<16x32xf32>, vector<32x256xf32>, vector<16x256xf32> -> vector<16x256xf32>
    %c1_217 = arith.constant 1 : index
    %c0_218 = arith.constant 0 : index
    %c0_219 = arith.constant 0 : index
    %349 = vector.load %arg14[%c1_217, %c0_218, %c0_219] : memref<3x16x32xf32, #tpu.memory_space<vmem>>, vector<1x16x32xf32>
    %350 = vector.shape_cast %349 : vector<1x16x32xf32> to vector<16x32xf32>
    %cst_220 = arith.constant dense<0.000000e+00> : vector<16x256xf32>
    %351 = tpu.matmul %350, %336, %cst_220 {dimension_numbers = #tpu.dot_dimension_numbers<[1], [0], [0], [1], [0, 0, 1, 1], [], []>} : vector<16x32xf32>, vector<32x256xf32>, vector<16x256xf32> -> vector<16x256xf32>
    %352 = arith.addf %348, %351 : vector<16x256xf32>
    %353 = arith.select %344, %338, %337 : vector<32x256xi1>, vector<32x256xf32>
    %c2_221 = arith.constant 2 : index
    %c0_222 = arith.constant 0 : index
    %c0_223 = arith.constant 0 : index
    %354 = vector.load %arg14[%c2_221, %c0_222, %c0_223] : memref<3x16x32xf32, #tpu.memory_space<vmem>>, vector<1x16x32xf32>
    %355 = vector.shape_cast %354 : vector<1x16x32xf32> to vector<16x32xf32>
    %cst_224 = arith.constant dense<0.000000e+00> : vector<16x256xf32>
    %356 = tpu.matmul %355, %353, %cst_224 {dimension_numbers = #tpu.dot_dimension_numbers<[1], [0], [0], [1], [0, 0, 1, 1], [], []>} : vector<16x32xf32>, vector<32x256xf32>, vector<16x256xf32> -> vector<16x256xf32>
    %357 = arith.addf %352, %356 : vector<16x256xf32>
    %c0_225 = arith.constant 0 : index
    %c0_226 = arith.constant 0 : index
    %358 = vector.load %arg15[%c0_225, %c0_226] : memref<16x1xf32, #tpu.memory_space<vmem>>, vector<16x1xf32>
    %359 = vector.broadcast %358 : vector<16x1xf32> to vector<16x256xf32>
    %360 = arith.addf %357, %359 : vector<16x256xf32>
    %cst_227 = arith.constant 0.000000e+00 : f32
    %361 = vector.broadcast %cst_227 : f32 to vector<16x256xf32>
    %362 = arith.cmpf oge, %360, %361 : vector<16x256xf32>
    %cst_228 = arith.constant 0.00999999977 : f32
    %363 = vector.broadcast %cst_228 : f32 to vector<16x256xf32>
    %364 = arith.mulf %363, %360 : vector<16x256xf32>
    %365 = arith.select %362, %360, %364 : vector<16x256xi1>, vector<16x256xf32>
    %c255_i32_229 = arith.constant 255 : i32
    %366 = tpu.dynamic_rotate %365 by %c255_i32_229 dim 1 : vector<16x256xf32>, i32 -> vector<16x256xf32>
    %c1_i32_230 = arith.constant 1 : i32
    %367 = tpu.dynamic_rotate %365 by %c1_i32_230 dim 1 : vector<16x256xf32>, i32 -> vector<16x256xf32>
    %368 = vector.shape_cast %2 : vector<1x256xi32> to vector<1x256xi32>
    %369 = vector.broadcast %368 : vector<1x256xi32> to vector<16x256xi32>
    %c0_i32_231 = arith.constant 0 : i32
    %370 = vector.broadcast %c0_i32_231 : i32 to vector<16x256xi32>
    %371 = arith.cmpi eq, %369, %370 : vector<16x256xi32>
    %c127_i32_232 = arith.constant 127 : i32
    %372 = vector.broadcast %c127_i32_232 : i32 to vector<16x256xi32>
    %373 = arith.cmpi eq, %369, %372 : vector<16x256xi32>
    %374 = arith.select %371, %366, %367 : vector<16x256xi1>, vector<16x256xf32>
    %c0_233 = arith.constant 0 : index
    %c0_234 = arith.constant 0 : index
    %c0_235 = arith.constant 0 : index
    %375 = vector.load %arg16[%c0_233, %c0_234, %c0_235] : memref<3x16x16xf32, #tpu.memory_space<vmem>>, vector<1x16x16xf32>
    %376 = vector.shape_cast %375 : vector<1x16x16xf32> to vector<16x16xf32>
    %cst_236 = arith.constant dense<0.000000e+00> : vector<16x256xf32>
    %377 = tpu.matmul %376, %374, %cst_236 {dimension_numbers = #tpu.dot_dimension_numbers<[1], [0], [0], [1], [0, 0, 1, 1], [], []>} : vector<16x16xf32>, vector<16x256xf32>, vector<16x256xf32> -> vector<16x256xf32>
    %c1_237 = arith.constant 1 : index
    %c0_238 = arith.constant 0 : index
    %c0_239 = arith.constant 0 : index
    %378 = vector.load %arg16[%c1_237, %c0_238, %c0_239] : memref<3x16x16xf32, #tpu.memory_space<vmem>>, vector<1x16x16xf32>
    %379 = vector.shape_cast %378 : vector<1x16x16xf32> to vector<16x16xf32>
    %cst_240 = arith.constant dense<0.000000e+00> : vector<16x256xf32>
    %380 = tpu.matmul %379, %365, %cst_240 {dimension_numbers = #tpu.dot_dimension_numbers<[1], [0], [0], [1], [0, 0, 1, 1], [], []>} : vector<16x16xf32>, vector<16x256xf32>, vector<16x256xf32> -> vector<16x256xf32>
    %381 = arith.addf %377, %380 : vector<16x256xf32>
    %382 = arith.select %373, %367, %366 : vector<16x256xi1>, vector<16x256xf32>
    %c2_241 = arith.constant 2 : index
    %c0_242 = arith.constant 0 : index
    %c0_243 = arith.constant 0 : index
    %383 = vector.load %arg16[%c2_241, %c0_242, %c0_243] : memref<3x16x16xf32, #tpu.memory_space<vmem>>, vector<1x16x16xf32>
    %384 = vector.shape_cast %383 : vector<1x16x16xf32> to vector<16x16xf32>
    %cst_244 = arith.constant dense<0.000000e+00> : vector<16x256xf32>
    %385 = tpu.matmul %384, %382, %cst_244 {dimension_numbers = #tpu.dot_dimension_numbers<[1], [0], [0], [1], [0, 0, 1, 1], [], []>} : vector<16x16xf32>, vector<16x256xf32>, vector<16x256xf32> -> vector<16x256xf32>
    %386 = arith.addf %381, %385 : vector<16x256xf32>
    %c0_245 = arith.constant 0 : index
    %c0_246 = arith.constant 0 : index
    %387 = vector.load %arg17[%c0_245, %c0_246] : memref<16x1xf32, #tpu.memory_space<vmem>>, vector<16x1xf32>
    %388 = vector.broadcast %387 : vector<16x1xf32> to vector<16x256xf32>
    %389 = arith.addf %386, %388 : vector<16x256xf32>
    %cst_247 = arith.constant 0.000000e+00 : f32
    %390 = vector.broadcast %cst_247 : f32 to vector<16x256xf32>
    %391 = arith.cmpf oge, %389, %390 : vector<16x256xf32>
    %cst_248 = arith.constant 0.00999999977 : f32
    %392 = vector.broadcast %cst_248 : f32 to vector<16x256xf32>
    %393 = arith.mulf %392, %389 : vector<16x256xf32>
    %394 = arith.select %391, %389, %393 : vector<16x256xi1>, vector<16x256xf32>
    %cst_249 = arith.constant dense<0.000000e+00> : vector<16x2xf32>
    %395 = tpu.matmul %394, %3, %cst_249 {dimension_numbers = #tpu.dot_dimension_numbers<[1], [0], [0], [1], [0, 0, 1, 1], [], []>} : vector<16x256xf32>, vector<256x2xf32>, vector<16x2xf32> -> vector<16x2xf32>
    %cst_250 = arith.constant 7.812500e-03 : f32
    %396 = vector.broadcast %cst_250 : f32 to vector<16x2xf32>
    %397 = arith.mulf %395, %396 : vector<16x2xf32>
    %398 = arith.mulf %394, %394 : vector<16x256xf32>
    %cst_251 = arith.constant dense<0.000000e+00> : vector<16x2xf32>
    %399 = tpu.matmul %398, %3, %cst_251 {dimension_numbers = #tpu.dot_dimension_numbers<[1], [0], [0], [1], [0, 0, 1, 1], [], []>} : vector<16x256xf32>, vector<256x2xf32>, vector<16x2xf32> -> vector<16x2xf32>
    %cst_252 = arith.constant 7.812500e-03 : f32
    %400 = vector.broadcast %cst_252 : f32 to vector<16x2xf32>
    %401 = arith.mulf %399, %400 : vector<16x2xf32>
    %402 = arith.mulf %397, %397 : vector<16x2xf32>
    %403 = arith.subf %401, %402 : vector<16x2xf32>
    %cst_253 = arith.constant 9.99999974E-6 : f32
    %404 = vector.broadcast %cst_253 : f32 to vector<16x2xf32>
    %405 = arith.addf %403, %404 : vector<16x2xf32>
    %406 = math.rsqrt %405 : vector<16x2xf32>
    %cst_254 = arith.constant dense<0.000000e+00> : vector<16x256xf32>
    %407 = tpu.matmul %397, %4, %cst_254 {dimension_numbers = #tpu.dot_dimension_numbers<[1], [0], [0], [1], [0, 0, 1, 1], [], []>} : vector<16x2xf32>, vector<2x256xf32>, vector<16x256xf32> -> vector<16x256xf32>
    %cst_255 = arith.constant dense<0.000000e+00> : vector<16x256xf32>
    %408 = tpu.matmul %406, %4, %cst_255 {dimension_numbers = #tpu.dot_dimension_numbers<[1], [0], [0], [1], [0, 0, 1, 1], [], []>} : vector<16x2xf32>, vector<2x256xf32>, vector<16x256xf32> -> vector<16x256xf32>
    %409 = arith.subf %394, %407 : vector<16x256xf32>
    %410 = arith.mulf %409, %408 : vector<16x256xf32>
    %c0_256 = arith.constant 0 : index
    %c0_257 = arith.constant 0 : index
    %c0_258 = arith.constant 0 : index
    %411 = vector.load %arg18[%c0_256, %c0_257, %c0_258] : memref<1x16x16xf32, #tpu.memory_space<vmem>>, vector<1x16x16xf32>
    %412 = vector.shape_cast %411 : vector<1x16x16xf32> to vector<16x16xf32>
    %cst_259 = arith.constant dense<0.000000e+00> : vector<16x256xf32>
    %413 = tpu.matmul %412, %410, %cst_259 {dimension_numbers = #tpu.dot_dimension_numbers<[1], [0], [0], [1], [0, 0, 1, 1], [], []>} : vector<16x16xf32>, vector<16x256xf32>, vector<16x256xf32> -> vector<16x256xf32>
    %c0_260 = arith.constant 0 : index
    %c0_261 = arith.constant 0 : index
    %414 = vector.load %arg19[%c0_260, %c0_261] : memref<16x1xf32, #tpu.memory_space<vmem>>, vector<16x1xf32>
    %415 = vector.broadcast %414 : vector<16x1xf32> to vector<16x256xf32>
    %416 = arith.addf %413, %415 : vector<16x256xf32>
    %c0_262 = arith.constant 0 : index
    %c0_263 = arith.constant 0 : index
    %c0_264 = arith.constant 0 : index
    %417 = vector.load %arg23[%c0_262, %c0_263, %c0_264] : memref<1x16x256xf32, #tpu.memory_space<vmem>>, vector<1x16x256xf32>
    %418 = vector.shape_cast %417 : vector<1x16x256xf32> to vector<16x256xf32>
    %419 = vector.shape_cast %416 : vector<16x256xf32> to vector<1x16x256xf32>
    tpu.vector_store %arg23[%c0_262, %c0_263, %c0_264], %419 {strides = array<i32>} : memref<1x16x256xf32, #tpu.memory_space<vmem>>, vector<1x16x256xf32>,
    return
  }
  func.func @transform_0(%arg0: i32) -> (i32, i32, i32) {
    %c0_i32 = arith.constant 0 : i32
    %c0_i32_0 = arith.constant 0 : i32
    %c0_i32_1 = arith.constant 0 : i32
    return %arg0, %c0_i32, %c0_i32_0 : i32, i32, i32
  }
  func.func @transform_1(%arg0: i32) -> (i32, i32, i32) {
    %c0_i32 = arith.constant 0 : i32
    %c0_i32_0 = arith.constant 0 : i32
    %c0_i32_1 = arith.constant 0 : i32
    %c0_i32_2 = arith.constant 0 : i32
    return %c0_i32, %c0_i32_0, %c0_i32_1 : i32, i32, i32
  }
  func.func @transform_2(%arg0: i32) -> (i32, i32) {
    %c0_i32 = arith.constant 0 : i32
    %c0_i32_0 = arith.constant 0 : i32
    %c0_i32_1 = arith.constant 0 : i32
    return %c0_i32, %c0_i32_0 : i32, i32
  }
  func.func @transform_3(%arg0: i32) -> (i32, i32, i32) {
    %c0_i32 = arith.constant 0 : i32
    %c0_i32_0 = arith.constant 0 : i32
    %c0_i32_1 = arith.constant 0 : i32
    %c0_i32_2 = arith.constant 0 : i32
    return %c0_i32, %c0_i32_0, %c0_i32_1 : i32, i32, i32
  }
  func.func @transform_4(%arg0: i32) -> (i32, i32) {
    %c0_i32 = arith.constant 0 : i32
    %c0_i32_0 = arith.constant 0 : i32
    %c0_i32_1 = arith.constant 0 : i32
    return %c0_i32, %c0_i32_0 : i32, i32
  }
  func.func @transform_5(%arg0: i32) -> (i32, i32, i32) {
    %c0_i32 = arith.constant 0 : i32
    %c0_i32_0 = arith.constant 0 : i32
    %c0_i32_1 = arith.constant 0 : i32
    %c0_i32_2 = arith.constant 0 : i32
    return %c0_i32, %c0_i32_0, %c0_i32_1 : i32, i32, i32
  }
  func.func @transform_6(%arg0: i32) -> (i32, i32) {
    %c0_i32 = arith.constant 0 : i32
    %c0_i32_0 = arith.constant 0 : i32
    %c0_i32_1 = arith.constant 0 : i32
    return %c0_i32, %c0_i32_0 : i32, i32
  }
  func.func @transform_7(%arg0: i32) -> (i32, i32, i32) {
    %c0_i32 = arith.constant 0 : i32
    %c0_i32_0 = arith.constant 0 : i32
    %c0_i32_1 = arith.constant 0 : i32
    %c0_i32_2 = arith.constant 0 : i32
    return %c0_i32, %c0_i32_0, %c0_i32_1 : i32, i32, i32
  }
  func.func @transform_8(%arg0: i32) -> (i32, i32) {
    %c0_i32 = arith.constant 0 : i32
    %c0_i32_0 = arith.constant 0 : i32
    %c0_i32_1 = arith.constant 0 : i32
    return %c0_i32, %c0_i32_0 : i32, i32
  }
  func.func @transform_9(%arg0: i32) -> (i32, i32, i32) {
    %c0_i32 = arith.constant 0 : i32
    %c0_i32_0 = arith.constant 0 : i32
    %c0_i32_1 = arith.constant 0 : i32
    %c0_i32_2 = arith.constant 0 : i32
    return %c0_i32, %c0_i32_0, %c0_i32_1 : i32, i32, i32
  }
  func.func @transform_10(%arg0: i32) -> (i32, i32) {
    %c0_i32 = arith.constant 0 : i32
    %c0_i32_0 = arith.constant 0 : i32
    %c0_i32_1 = arith.constant 0 : i32
    return %c0_i32, %c0_i32_0 : i32, i32
  }
  func.func @transform_11(%arg0: i32) -> (i32, i32, i32) {
    %c0_i32 = arith.constant 0 : i32
    %c0_i32_0 = arith.constant 0 : i32
    %c0_i32_1 = arith.constant 0 : i32
    %c0_i32_2 = arith.constant 0 : i32
    return %c0_i32, %c0_i32_0, %c0_i32_1 : i32, i32, i32
  }
  func.func @transform_12(%arg0: i32) -> (i32, i32) {
    %c0_i32 = arith.constant 0 : i32
    %c0_i32_0 = arith.constant 0 : i32
    %c0_i32_1 = arith.constant 0 : i32
    return %c0_i32, %c0_i32_0 : i32, i32
  }
  func.func @transform_13(%arg0: i32) -> (i32, i32, i32) {
    %c0_i32 = arith.constant 0 : i32
    %c0_i32_0 = arith.constant 0 : i32
    %c0_i32_1 = arith.constant 0 : i32
    %c0_i32_2 = arith.constant 0 : i32
    return %c0_i32, %c0_i32_0, %c0_i32_1 : i32, i32, i32
  }
  func.func @transform_14(%arg0: i32) -> (i32, i32) {
    %c0_i32 = arith.constant 0 : i32
    %c0_i32_0 = arith.constant 0 : i32
    %c0_i32_1 = arith.constant 0 : i32
    return %c0_i32, %c0_i32_0 : i32, i32
  }
  func.func @transform_15(%arg0: i32) -> (i32, i32, i32) {
    %c0_i32 = arith.constant 0 : i32
    %c0_i32_0 = arith.constant 0 : i32
    %c0_i32_1 = arith.constant 0 : i32
    %c0_i32_2 = arith.constant 0 : i32
    return %c0_i32, %c0_i32_0, %c0_i32_1 : i32, i32, i32
  }
  func.func @transform_16(%arg0: i32) -> (i32, i32) {
    %c0_i32 = arith.constant 0 : i32
    %c0_i32_0 = arith.constant 0 : i32
    %c0_i32_1 = arith.constant 0 : i32
    return %c0_i32, %c0_i32_0 : i32, i32
  }
  func.func @transform_17(%arg0: i32) -> (i32, i32, i32) {
    %c0_i32 = arith.constant 0 : i32
    %c0_i32_0 = arith.constant 0 : i32
    %c0_i32_1 = arith.constant 0 : i32
    %c0_i32_2 = arith.constant 0 : i32
    return %c0_i32, %c0_i32_0, %c0_i32_1 : i32, i32, i32
  }
  func.func @transform_18(%arg0: i32) -> (i32, i32) {
    %c0_i32 = arith.constant 0 : i32
    %c0_i32_0 = arith.constant 0 : i32
    %c0_i32_1 = arith.constant 0 : i32
    return %c0_i32, %c0_i32_0 : i32, i32
  }
  func.func @transform_19(%arg0: i32) -> (i32, i32) {
    %c0_i32 = arith.constant 0 : i32
    %c0_i32_0 = arith.constant 0 : i32
    %c0_i32_1 = arith.constant 0 : i32
    return %c0_i32, %c0_i32_0 : i32, i32
  }
  func.func @transform_20(%arg0: i32) -> (i32, i32) {
    %c0_i32 = arith.constant 0 : i32
    %c0_i32_0 = arith.constant 0 : i32
    %c0_i32_1 = arith.constant 0 : i32
    return %c0_i32, %c0_i32_0 : i32, i32
  }
  func.func @transform_21(%arg0: i32) -> (i32, i32) {
    %c0_i32 = arith.constant 0 : i32
    %c0_i32_0 = arith.constant 0 : i32
    %c0_i32_1 = arith.constant 0 : i32
    return %c0_i32, %c0_i32_0 : i32, i32
  }
  func.func @transform_22(%arg0: i32) -> (i32, i32, i32) {
    %c0_i32 = arith.constant 0 : i32
    %c0_i32_0 = arith.constant 0 : i32
    %c0_i32_1 = arith.constant 0 : i32
    return %arg0, %c0_i32, %c0_i32_0 : i32, i32, i32
  }
}

</mosaic_0001>

<llo_original>
// kernel: tpu_custom_call.1
$region0: #{tpu_custom_call.1}
  #allocation0 [shape = 'u32[]', space=smem, size = 0x4, offset = 0x4, fixed_abs, tag = 'smem constant byte address 0x4 - core index']
  #allocation1 [shape = 'u32[72,128]{1,0:T(1,128)}', space=vmem, size = 0x9000, scoped, tag = 'internal scratch']
  %s0 = inlined_call_operand.vmem [shape: f32[2,32,256], index: 0, kind: input, shape index: {}]
  %s1 = inlined_call_operand.vmem [shape: f32[5,32,32], index: 1, kind: input, shape index: {}]
  %s2 = inlined_call_operand.vmem [shape: f32[32,1], index: 2, kind: input, shape index: {}]
  %s3 = inlined_call_operand.hbm [shape: f32[5,32,32], index: 3, kind: input, shape index: {}]
  %s4 = inlined_call_operand.vmem [shape: f32[32,1], index: 4, kind: input, shape index: {}]
  %s5 = inlined_call_operand.hbm [shape: f32[5,32,32], index: 5, kind: input, shape index: {}]
  %s6 = inlined_call_operand.vmem [shape: f32[32,1], index: 6, kind: input, shape index: {}]
  %s7 = inlined_call_operand.hbm [shape: f32[5,32,32], index: 7, kind: input, shape index: {}]
  %s8 = inlined_call_operand.vmem [shape: f32[32,1], index: 8, kind: input, shape index: {}]
  %s9 = inlined_call_operand.hbm [shape: f32[5,32,32], index: 9, kind: input, shape index: {}]
  %s10 = inlined_call_operand.vmem [shape: f32[32,1], index: 10, kind: input, shape index: {}]
  %s11 = inlined_call_operand.hbm [shape: f32[5,32,32], index: 11, kind: input, shape index: {}]
  %s12 = inlined_call_operand.vmem [shape: f32[32,1], index: 12, kind: input, shape index: {}]
  %s13 = inlined_call_operand.vmem [shape: f32[3,16,32], index: 13, kind: input, shape index: {}]
  %s14 = inlined_call_operand.vmem [shape: f32[16,1], index: 14, kind: input, shape index: {}]
  %s15 = inlined_call_operand.vmem [shape: f32[3,16,16], index: 15, kind: input, shape index: {}]
  %s16 = inlined_call_operand.vmem [shape: f32[16,1], index: 16, kind: input, shape index: {}]
  %s17 = inlined_call_operand.vmem [shape: f32[1,16,16], index: 17, kind: input, shape index: {}]
  %s18 = inlined_call_operand.vmem [shape: f32[16,1], index: 18, kind: input, shape index: {}]
  %s19 = inlined_call_operand.vmem [shape: f32[256,2], index: 19, kind: input, shape index: {}]
  %s20 = inlined_call_operand.vmem [shape: f32[2,256], index: 20, kind: input, shape index: {}]
  %s21 = inlined_call_operand.vmem [shape: s32[1,256], index: 21, kind: input, shape index: {}]
  %s22 = inlined_call_operand.hbm [shape: f32[2,16,256], index: 22, kind: output, shape index: {}]
  %s23 = sld [smem:[#allocation0]]
  $region141: #{tpu_custom_call.1} parent=0
    _
  %s25 = ssub.s32 1, %s23
  %s26 = scalar_select 0, %s25, %s23
  $region1: #{tpu_custom_call.1} parent=0
    #allocation2 [shape = 'u8[81920]{0}', space=vmem, size = 0x14000, scoped, tag = 'input window, operand 3, single buffered']
    #allocation3 [shape = 's32[2]{0}', space=sflag, size = 0x8, scoped, tag = 'scoped memory for tpu_custom_call.1']
    #allocation4 [shape = 's32[2]{0}', space=sflag, size = 0x8, scoped, tag = 'scoped memory for tpu_custom_call.1']
    #allocation5 [shape = 'u8[81920]{0}', space=vmem, size = 0x14000, scoped, tag = 'input window, operand 5, single buffered']
    #allocation6 [shape = 's32[1]{0}', space=sflag, size = 0x4, scoped, tag = 'scoped memory for tpu_custom_call.1']
    #allocation7 [shape = 'u8[81920]{0}', space=vmem, size = 0x14000, scoped, tag = 'input window, operand 7, single buffered']
    #allocation8 [shape = 'u8[81920]{0}', space=vmem, size = 0x14000, scoped, tag = 'input window, operand 9, single buffered']
    #allocation9 [shape = 's32[1]{0}', space=sflag, size = 0x4, scoped, tag = 'scoped memory for tpu_custom_call.1']
    #allocation10 [shape = 'u8[81920]{0}', space=vmem, size = 0x14000, scoped, tag = 'input window, operand 11, single buffered']
    #allocation11 [shape = 'u8[32768]{0}', space=vmem, size = 0x8000, scoped, tag = 'output window, operand 0']
    %27 = vsyncpa [#allocation3], 0
    %28 = vsyncpa [#allocation6], 0
    %29 = vsyncpa [#allocation9], 0
    %30 = vsyncpa [#allocation4], 0
    %s31 = scalar_lea.sflag [#allocation4], 1
    %32 = vsyncpa %s31, 0
    loop: start=0, step=1, limit=4
    $region2: #{tpu_custom_call.1} parent=1 // loop_pre_header
      _
    $region3: #{tpu_custom_call.1} parent=1 // loop_header
      %s34 = sphi 0, %s38
      %p35 = scmp.ge.s32.totalorder %s34, 4
      %s44 = sphi 0, %s46
      %s47 = sphi 0, %s44
      %s48 = sphi 0, %s47
      %s64 = sphi 0, %s48
      %s68 = sphi 0, %s68
      %s70 = sphi 0, %s68
      %s71 = sphi 0, %s70
      %s85 = sphi 0, %s71
      %s89 = sphi 0, %s89
      %s91 = sphi 0, %s89
      %s92 = sphi 0, %s91
      %s106 = sphi 0, %s92
      %s110 = sphi 0, %s110
      %s112 = sphi 0, %s110
      %s113 = sphi 0, %s112
      %s127 = sphi 0, %s113
      %s131 = sphi 0, %s131
      %s133 = sphi 0, %s131
      %s134 = sphi 0, %s133
      %s148 = sphi 0, %s134
      %s152 = sphi 0, %s152
      %s154 = sphi 0, %s152
      %s155 = sphi 0, %s154
      %s169 = sphi 0, %s155
      %s173 = sphi 0, %s173
      %s175 = sphi 0, %s173
      %s176 = sphi 0, %s175
      %s190 = sphi 0, %s176
      %s194 = sphi 0, %s194
      %s196 = sphi 0, %s194
      %s197 = sphi 0, %s196
      %s211 = sphi 0, %s197
      %s215 = sphi 0, %s215
      %s217 = sphi 0, %s215
      %s218 = sphi 0, %s217
      %s232 = sphi 0, %s218
      %s236 = sphi 0, %s236
      %s238 = sphi 0, %s236
      %s239 = sphi 0, %s238
      %s253 = sphi 0, %s239
      %s257 = sphi 0, %s257
      %s259 = sphi 0, %s257
      %s260 = sphi 0, %s259
      %s274 = sphi 0, %s260
      %s278 = sphi 0, %s278
      %s280 = sphi 0, %s278
      %s281 = sphi 0, %s280
      %s295 = sphi 0, %s281
      %s299 = sphi 0, %s299
      %s301 = sphi 0, %s299
      %s302 = sphi 0, %s301
      %s316 = sphi 0, %s302
      %s320 = sphi 0, %s320
      %s322 = sphi 0, %s320
      %s323 = sphi 0, %s322
      %s337 = sphi 0, %s323
      %s341 = sphi 0, %s341
      %s343 = sphi 0, %s341
      %s344 = sphi 0, %s343
      %s358 = sphi 0, %s344
      %s362 = sphi 0, %s362
      %s364 = sphi 0, %s362
      %s365 = sphi 0, %s364
      %s379 = sphi 0, %s365
      %s383 = sphi 0, %s383
      %s385 = sphi 0, %s383
      %s386 = sphi 0, %s385
      %s400 = sphi 0, %s386
      %s404 = sphi 0, %s404
      %s406 = sphi 0, %s404
      %s407 = sphi 0, %s406
      %s421 = sphi 0, %s407
      %s425 = sphi 0, %s425
      %s427 = sphi 0, %s425
      %s428 = sphi 0, %s427
      %s442 = sphi 0, %s428
      %s446 = sphi 0, %s446
      %s448 = sphi 0, %s446
      %s449 = sphi 0, %s448
      %s463 = sphi 0, %s449
      %s467 = sphi 0, %s467
      %s469 = sphi 0, %s467
      %s470 = sphi 0, %s469
      %s484 = sphi 0, %s470
      %s488 = sphi 0, %s488
      %s490 = sphi 0, %s488
      %s491 = sphi 0, %s490
      %s505 = sphi 0, %s491
      %s511 = sphi 0, %s513
      %s514 = sphi 0, %s511
      %s515 = sphi 0, %s514
      %s531 = sphi 0, %s515
    $region4: #{tpu_custom_call.1} parent=1 // loop_header_branch
      %37 = sbr.rel (%p35) target = $region8
    $region5: #{tpu_custom_call.1} parent=1 // loop_body
      %s39 = ssub.s32 %s34, 1
      %s40 = ssub.s32 %s34, 2
      %s41 = sadd.s32 %s34, 1
      %s42 = ssub.s32 %s34, %s41
      %p43 = scmp.eq.s32.totalorder %s42, 0
      %s45 = sadd.s32 %s44, 1
      %s46 = scalar_select %p43, %s44, %s45
      %p49 = pneg %p43
      %p50 = scmp.eq.s32.totalorder %s34, 1
      %p51 = por %p49, %p50
      %p52 = scmp.ne.s32.totalorder %s44, %s47
      %p53 = scmp.eq.s32.totalorder %s34, 0
      %p54 = por %p52, %p53
      %p55 = scmp.ne.s32.totalorder %s44, %s47
      %p56 = scmp.eq.s32.totalorder %s39, 1
      %p57 = por %p55, %p56
      %p58 = scmp.ne.s32.totalorder %s47, %s48
      %p59 = scmp.eq.s32.totalorder %s39, 0
      %p60 = por %p58, %p59
      %p61 = scmp.ne.s32.totalorder %s47, %s48
      %p62 = scmp.eq.s32.totalorder %s40, 1
      %p63 = por %p61, %p62
      %p65 = scmp.ne.s32.totalorder %s48, %s64
      %p66 = scmp.eq.s32.totalorder %s40, 0
      %p67 = por %p65, %p66
      %s69 = sadd.s32 %s68, 1
      %p72 = scmp.eq.s32.totalorder %s34, 1
      %p73 = scmp.ne.s32.totalorder %s68, %s70
      %p74 = scmp.eq.s32.totalorder %s34, 0
      %p75 = por %p73, %p74
      %p76 = scmp.ne.s32.totalorder %s68, %s70
      %p77 = scmp.eq.s32.totalorder %s39, 1
      %p78 = por %p76, %p77
      %p79 = scmp.ne.s32.totalorder %s70, %s71
      %p80 = scmp.eq.s32.totalorder %s39, 0
      %p81 = por %p79, %p80
      %p82 = scmp.ne.s32.totalorder %s70, %s71
      %p83 = scmp.eq.s32.totalorder %s40, 1
      %p84 = por %p82, %p83
      %p86 = scmp.ne.s32.totalorder %s71, %s85
      %p87 = scmp.eq.s32.totalorder %s40, 0
      %p88 = por %p86, %p87
      %s90 = sadd.s32 %s89, 1
      %p93 = scmp.eq.s32.totalorder %s34, 1
      %p94 = scmp.ne.s32.totalorder %s89, %s91
      %p95 = scmp.eq.s32.totalorder %s34, 0
      %p96 = por %p94, %p95
      %p97 = scmp.ne.s32.totalorder %s89, %s91
      %p98 = scmp.eq.s32.totalorder %s39, 1
      %p99 = por %p97, %p98
      %p100 = scmp.ne.s32.totalorder %s91, %s92
      %p101 = scmp.eq.s32.totalorder %s39, 0
      %p102 = por %p100, %p101
      %p103 = scmp.ne.s32.totalorder %s91, %s92
      %p104 = scmp.eq.s32.totalorder %s40, 1
      %p105 = por %p103, %p104
      %p107 = scmp.ne.s32.totalorder %s92, %s106
      %p108 = scmp.eq.s32.totalorder %s40, 0
      %p109 = por %p107, %p108
      %s111 = sadd.s32 %s110, 1
      %p114 = scmp.eq.s32.totalorder %s34, 1
      %p115 = scmp.ne.s32.totalorder %s110, %s112
      %p116 = scmp.eq.s32.totalorder %s34, 0
      %p117 = por %p115, %p116
      %p118 = scmp.ne.s32.totalorder %s110, %s112
      %p119 = scmp.eq.s32.totalorder %s39, 1
      %p120 = por %p118, %p119
      %p121 = scmp.ne.s32.totalorder %s112, %s113
      %p122 = scmp.eq.s32.totalorder %s39, 0
      %p123 = por %p121, %p122
      %p124 = scmp.ne.s32.totalorder %s112, %s113
      %p125 = scmp.eq.s32.totalorder %s40, 1
      %p126 = por %p124, %p125
      %p128 = scmp.ne.s32.totalorder %s113, %s127
      %p129 = scmp.eq.s32.totalorder %s40, 0
      %p130 = por %p128, %p129
      %s132 = sadd.s32 %s131, 1
      %p135 = scmp.eq.s32.totalorder %s34, 1
      %p136 = scmp.ne.s32.totalorder %s131, %s133
      %p137 = scmp.eq.s32.totalorder %s34, 0
      %p138 = por %p136, %p137
      %p139 = scmp.ne.s32.totalorder %s131, %s133
      %p140 = scmp.eq.s32.totalorder %s39, 1
      %p141 = por %p139, %p140
      %p142 = scmp.ne.s32.totalorder %s133, %s134
      %p143 = scmp.eq.s32.totalorder %s39, 0
      %p144 = por %p142, %p143
      %p145 = scmp.ne.s32.totalorder %s133, %s134
      %p146 = scmp.eq.s32.totalorder %s40, 1
      %p147 = por %p145, %p146
      %p149 = scmp.ne.s32.totalorder %s134, %s148
      %p150 = scmp.eq.s32.totalorder %s40, 0
      %p151 = por %p149, %p150
      %s153 = sadd.s32 %s152, 1
      %p156 = scmp.eq.s32.totalorder %s34, 1
      %p157 = scmp.ne.s32.totalorder %s152, %s154
      %p158 = scmp.eq.s32.totalorder %s34, 0
      %p159 = por %p157, %p158
      %p160 = scmp.ne.s32.totalorder %s152, %s154
      %p161 = scmp.eq.s32.totalorder %s39, 1
      %p162 = por %p160, %p161
      %p163 = scmp.ne.s32.totalorder %s154, %s155
      %p164 = scmp.eq.s32.totalorder %s39, 0
      %p165 = por %p163, %p164
      %p166 = scmp.ne.s32.totalorder %s154, %s155
      %p167 = scmp.eq.s32.totalorder %s40, 1
      %p168 = por %p166, %p167
      %p170 = scmp.ne.s32.totalorder %s155, %s169
      %p171 = scmp.eq.s32.totalorder %s40, 0
      %p172 = por %p170, %p171
      %s174 = sadd.s32 %s173, 1
      %p177 = scmp.eq.s32.totalorder %s34, 1
      %p178 = scmp.ne.s32.totalorder %s173, %s175
      %p179 = scmp.eq.s32.totalorder %s34, 0
      %p180 = por %p178, %p179
      %p181 = scmp.ne.s32.totalorder %s173, %s175
      %p182 = scmp.eq.s32.totalorder %s39, 1
      %p183 = por %p181, %p182
      %p184 = scmp.ne.s32.totalorder %s175, %s176
      %p185 = scmp.eq.s32.totalorder %s39, 0
      %p186 = por %p184, %p185
      %p187 = scmp.ne.s32.totalorder %s175, %s176
      %p188 = scmp.eq.s32.totalorder %s40, 1
      %p189 = por %p187, %p188
      %p191 = scmp.ne.s32.totalorder %s176, %s190
      %p192 = scmp.eq.s32.totalorder %s40, 0
      %p193 = por %p191, %p192
      %s195 = sadd.s32 %s194, 1
      %p198 = scmp.eq.s32.totalorder %s34, 1
      %p199 = scmp.ne.s32.totalorder %s194, %s196
      %p200 = scmp.eq.s32.totalorder %s34, 0
      %p201 = por %p199, %p200
      %p202 = scmp.ne.s32.totalorder %s194, %s196
      %p203 = scmp.eq.s32.totalorder %s39, 1
      %p204 = por %p202, %p203
      %p205 = scmp.ne.s32.totalorder %s196, %s197
      %p206 = scmp.eq.s32.totalorder %s39, 0
      %p207 = por %p205, %p206
      %p208 = scmp.ne.s32.totalorder %s196, %s197
      %p209 = scmp.eq.s32.totalorder %s40, 1
      %p210 = por %p208, %p209
      %p212 = scmp.ne.s32.totalorder %s197, %s211
      %p213 = scmp.eq.s32.totalorder %s40, 0
      %p214 = por %p212, %p213
      %s216 = sadd.s32 %s215, 1
      %p219 = scmp.eq.s32.totalorder %s34, 1
      %p220 = scmp.ne.s32.totalorder %s215, %s217
      %p221 = scmp.eq.s32.totalorder %s34, 0
      %p222 = por %p220, %p221
      %p223 = scmp.ne.s32.totalorder %s215, %s217
      %p224 = scmp.eq.s32.totalorder %s39, 1
      %p225 = por %p223, %p224
      %p226 = scmp.ne.s32.totalorder %s217, %s218
      %p227 = scmp.eq.s32.totalorder %s39, 0
      %p228 = por %p226, %p227
      %p229 = scmp.ne.s32.totalorder %s217, %s218
      %p230 = scmp.eq.s32.totalorder %s40, 1
      %p231 = por %p229, %p230
      %p233 = scmp.ne.s32.totalorder %s218, %s232
      %p234 = scmp.eq.s32.totalorder %s40, 0
      %p235 = por %p233, %p234
      %s237 = sadd.s32 %s236, 1
      %p240 = scmp.eq.s32.totalorder %s34, 1
      %p241 = scmp.ne.s32.totalorder %s236, %s238
      %p242 = scmp.eq.s32.totalorder %s34, 0
      %p243 = por %p241, %p242
      %p244 = scmp.ne.s32.totalorder %s236, %s238
      %p245 = scmp.eq.s32.totalorder %s39, 1
      %p246 = por %p244, %p245
      %p247 = scmp.ne.s32.totalorder %s238, %s239
      %p248 = scmp.eq.s32.totalorder %s39, 0
      %p249 = por %p247, %p248
      %p250 = scmp.ne.s32.totalorder %s238, %s239
      %p251 = scmp.eq.s32.totalorder %s40, 1
      %p252 = por %p250, %p251
      %p254 = scmp.ne.s32.totalorder %s239, %s253
      %p255 = scmp.eq.s32.totalorder %s40, 0
      %p256 = por %p254, %p255
      %s258 = sadd.s32 %s257, 1
      %p261 = scmp.eq.s32.totalorder %s34, 1
      %p262 = scmp.ne.s32.totalorder %s257, %s259
      %p263 = scmp.eq.s32.totalorder %s34, 0
      %p264 = por %p262, %p263
      %p265 = scmp.ne.s32.totalorder %s257, %s259
      %p266 = scmp.eq.s32.totalorder %s39, 1
      %p267 = por %p265, %p266
      %p268 = scmp.ne.s32.totalorder %s259, %s260
      %p269 = scmp.eq.s32.totalorder %s39, 0
      %p270 = por %p268, %p269
      %p271 = scmp.ne.s32.totalorder %s259, %s260
      %p272 = scmp.eq.s32.totalorder %s40, 1
      %p273 = por %p271, %p272
      %p275 = scmp.ne.s32.totalorder %s260, %s274
      %p276 = scmp.eq.s32.totalorder %s40, 0
      %p277 = por %p275, %p276
      %s279 = sadd.s32 %s278, 1
      %p282 = scmp.eq.s32.totalorder %s34, 1
      %p283 = scmp.ne.s32.totalorder %s278, %s280
      %p284 = scmp.eq.s32.totalorder %s34, 0
      %p285 = por %p283, %p284
      %p286 = scmp.ne.s32.totalorder %s278, %s280
      %p287 = scmp.eq.s32.totalorder %s39, 1
      %p288 = por %p286, %p287
      %p289 = scmp.ne.s32.totalorder %s280, %s281
      %p290 = scmp.eq.s32.totalorder %s39, 0
      %p291 = por %p289, %p290
      %p292 = scmp.ne.s32.totalorder %s280, %s281
      %p293 = scmp.eq.s32.totalorder %s40, 1
      %p294 = por %p292, %p293
      %p296 = scmp.ne.s32.totalorder %s281, %s295
      %p297 = scmp.eq.s32.totalorder %s40, 0
      %p298 = por %p296, %p297
      %s300 = sadd.s32 %s299, 1
      %p303 = scmp.eq.s32.totalorder %s34, 1
      %p304 = scmp.ne.s32.totalorder %s299, %s301
      %p305 = scmp.eq.s32.totalorder %s34, 0
      %p306 = por %p304, %p305
      %p307 = scmp.ne.s32.totalorder %s299, %s301
      %p308 = scmp.eq.s32.totalorder %s39, 1
      %p309 = por %p307, %p308
      %p310 = scmp.ne.s32.totalorder %s301, %s302
      %p311 = scmp.eq.s32.totalorder %s39, 0
      %p312 = por %p310, %p311
      %p313 = scmp.ne.s32.totalorder %s301, %s302
      %p314 = scmp.eq.s32.totalorder %s40, 1
      %p315 = por %p313, %p314
      %p317 = scmp.ne.s32.totalorder %s302, %s316
      %p318 = scmp.eq.s32.totalorder %s40, 0
      %p319 = por %p317, %p318
      %s321 = sadd.s32 %s320, 1
      %p324 = scmp.eq.s32.totalorder %s34, 1
      %p325 = scmp.ne.s32.totalorder %s320, %s322
      %p326 = scmp.eq.s32.totalorder %s34, 0
      %p327 = por %p325, %p326
      %p328 = scmp.ne.s32.totalorder %s320, %s322
      %p329 = scmp.eq.s32.totalorder %s39, 1
      %p330 = por %p328, %p329
      %p331 = scmp.ne.s32.totalorder %s322, %s323
      %p332 = scmp.eq.s32.totalorder %s39, 0
      %p333 = por %p331, %p332
      %p334 = scmp.ne.s32.totalorder %s322, %s323
      %p335 = scmp.eq.s32.totalorder %s40, 1
      %p336 = por %p334, %p335
      %p338 = scmp.ne.s32.totalorder %s323, %s337
      %p339 = scmp.eq.s32.totalorder %s40, 0
      %p340 = por %p338, %p339
      %s342 = sadd.s32 %s341, 1
      %p345 = scmp.eq.s32.totalorder %s34, 1
      %p346 = scmp.ne.s32.totalorder %s341, %s343
      %p347 = scmp.eq.s32.totalorder %s34, 0
      %p348 = por %p346, %p347
      %p349 = scmp.ne.s32.totalorder %s341, %s343
      %p350 = scmp.eq.s32.totalorder %s39, 1
      %p351 = por %p349, %p350
      %p352 = scmp.ne.s32.totalorder %s343, %s344
      %p353 = scmp.eq.s32.totalorder %s39, 0
      %p354 = por %p352, %p353
      %p355 = scmp.ne.s32.totalorder %s343, %s344
      %p356 = scmp.eq.s32.totalorder %s40, 1
      %p357 = por %p355, %p356
      %p359 = scmp.ne.s32.totalorder %s344, %s358
      %p360 = scmp.eq.s32.totalorder %s40, 0
      %p361 = por %p359, %p360
      %s363 = sadd.s32 %s362, 1
      %p366 = scmp.eq.s32.totalorder %s34, 1
      %p367 = scmp.ne.s32.totalorder %s362, %s364
      %p368 = scmp.eq.s32.totalorder %s34, 0
      %p369 = por %p367, %p368
      %p370 = scmp.ne.s32.totalorder %s362, %s364
      %p371 = scmp.eq.s32.totalorder %s39, 1
      %p372 = por %p370, %p371
      %p373 = scmp.ne.s32.totalorder %s364, %s365
      %p374 = scmp.eq.s32.totalorder %s39, 0
      %p375 = por %p373, %p374
      %p376 = scmp.ne.s32.totalorder %s364, %s365
      %p377 = scmp.eq.s32.totalorder %s40, 1
      %p378 = por %p376, %p377
      %p380 = scmp.ne.s32.totalorder %s365, %s379
      %p381 = scmp.eq.s32.totalorder %s40, 0
      %p382 = por %p380, %p381
      %s384 = sadd.s32 %s383, 1
      %p387 = scmp.eq.s32.totalorder %s34, 1
      %p388 = scmp.ne.s32.totalorder %s383, %s385
      %p389 = scmp.eq.s32.totalorder %s34, 0
      %p390 = por %p388, %p389
      %p391 = scmp.ne.s32.totalorder %s383, %s385
      %p392 = scmp.eq.s32.totalorder %s39, 1
      %p393 = por %p391, %p392
      %p394 = scmp.ne.s32.totalorder %s385, %s386
      %p395 = scmp.eq.s32.totalorder %s39, 0
      %p396 = por %p394, %p395
      %p397 = scmp.ne.s32.totalorder %s385, %s386
      %p398 = scmp.eq.s32.totalorder %s40, 1
      %p399 = por %p397, %p398
      %p401 = scmp.ne.s32.totalorder %s386, %s400
      %p402 = scmp.eq.s32.totalorder %s40, 0
      %p403 = por %p401, %p402
      %s405 = sadd.s32 %s404, 1
      %p408 = scmp.eq.s32.totalorder %s34, 1
      %p409 = scmp.ne.s32.totalorder %s404, %s406
      %p410 = scmp.eq.s32.totalorder %s34, 0
      %p411 = por %p409, %p410
      %p412 = scmp.ne.s32.totalorder %s404, %s406
      %p413 = scmp.eq.s32.totalorder %s39, 1
      %p414 = por %p412, %p413
      %p415 = scmp.ne.s32.totalorder %s406, %s407
      %p416 = scmp.eq.s32.totalorder %s39, 0
      %p417 = por %p415, %p416
      %p418 = scmp.ne.s32.totalorder %s406, %s407
      %p419 = scmp.eq.s32.totalorder %s40, 1
      %p420 = por %p418, %p419
      %p422 = scmp.ne.s32.totalorder %s407, %s421
      %p423 = scmp.eq.s32.totalorder %s40, 0
      %p424 = por %p422, %p423
      %s426 = sadd.s32 %s425, 1
      %p429 = scmp.eq.s32.totalorder %s34, 1
      %p430 = scmp.ne.s32.totalorder %s425, %s427
      %p431 = scmp.eq.s32.totalorder %s34, 0
      %p432 = por %p430, %p431
      %p433 = scmp.ne.s32.totalorder %s425, %s427
      %p434 = scmp.eq.s32.totalorder %s39, 1
      %p435 = por %p433, %p434
      %p436 = scmp.ne.s32.totalorder %s427, %s428
      %p437 = scmp.eq.s32.totalorder %s39, 0
      %p438 = por %p436, %p437
      %p439 = scmp.ne.s32.totalorder %s427, %s428
      %p440 = scmp.eq.s32.totalorder %s40, 1
      %p441 = por %p439, %p440
      %p443 = scmp.ne.s32.totalorder %s428, %s442
      %p444 = scmp.eq.s32.totalorder %s40, 0
      %p445 = por %p443, %p444
      %s447 = sadd.s32 %s446, 1
      %p450 = scmp.eq.s32.totalorder %s34, 1
      %p451 = scmp.ne.s32.totalorder %s446, %s448
      %p452 = scmp.eq.s32.totalorder %s34, 0
      %p453 = por %p451, %p452
      %p454 = scmp.ne.s32.totalorder %s446, %s448
      %p455 = scmp.eq.s32.totalorder %s39, 1
      %p456 = por %p454, %p455
      %p457 = scmp.ne.s32.totalorder %s448, %s449
      %p458 = scmp.eq.s32.totalorder %s39, 0
      %p459 = por %p457, %p458
      %p460 = scmp.ne.s32.totalorder %s448, %s449
      %p461 = scmp.eq.s32.totalorder %s40, 1
      %p462 = por %p460, %p461
      %p464 = scmp.ne.s32.totalorder %s449, %s463
      %p465 = scmp.eq.s32.totalorder %s40, 0
      %p466 = por %p464, %p465
      %s468 = sadd.s32 %s467, 1
      %p471 = scmp.eq.s32.totalorder %s34, 1
      %p472 = scmp.ne.s32.totalorder %s467, %s469
      %p473 = scmp.eq.s32.totalorder %s34, 0
      %p474 = por %p472, %p473
      %p475 = scmp.ne.s32.totalorder %s467, %s469
      %p476 = scmp.eq.s32.totalorder %s39, 1
      %p477 = por %p475, %p476
      %p478 = scmp.ne.s32.totalorder %s469, %s470
      %p479 = scmp.eq.s32.totalorder %s39, 0
      %p480 = por %p478, %p479
      %p481 = scmp.ne.s32.totalorder %s469, %s470
      %p482 = scmp.eq.s32.totalorder %s40, 1
      %p483 = por %p481, %p482
      %p485 = scmp.ne.s32.totalorder %s470, %s484
      %p486 = scmp.eq.s32.totalorder %s40, 0
      %p487 = por %p485, %p486
      %s489 = sadd.s32 %s488, 1
      %p492 = scmp.eq.s32.totalorder %s34, 1
      %p493 = scmp.ne.s32.totalorder %s488, %s490
      %p494 = scmp.eq.s32.totalorder %s34, 0
      %p495 = por %p493, %p494
      %p496 = scmp.ne.s32.totalorder %s488, %s490
      %p497 = scmp.eq.s32.totalorder %s39, 1
      %p498 = por %p496, %p497
      %p499 = scmp.ne.s32.totalorder %s490, %s491
      %p500 = scmp.eq.s32.totalorder %s39, 0
      %p501 = por %p499, %p500
      %p502 = scmp.ne.s32.totalorder %s490, %s491
      %p503 = scmp.eq.s32.totalorder %s40, 1
      %p504 = por %p502, %p503
      %p506 = scmp.ne.s32.totalorder %s491, %s505
      %p507 = scmp.eq.s32.totalorder %s40, 0
      %p508 = por %p506, %p507
      %s509 = ssub.s32 %s34, %s41
      %p510 = scmp.eq.s32.totalorder %s509, 0
      %s512 = sadd.s32 %s511, 1
      %s513 = scalar_select %p510, %s511, %s512
      %p516 = pneg %p510
      %p517 = scmp.eq.s32.totalorder %s34, 1
      %p518 = por %p516, %p517
      %p519 = scmp.ne.s32.totalorder %s511, %s514
      %p520 = scmp.eq.s32.totalorder %s34, 0
      %p521 = por %p519, %p520
      %p522 = scmp.ne.s32.totalorder %s511, %s514
      %p523 = scmp.eq.s32.totalorder %s39, 1
      %p524 = por %p522, %p523
      %p525 = scmp.ne.s32.totalorder %s514, %s515
      %p526 = scmp.eq.s32.totalorder %s39, 0
      %p527 = por %p525, %p526
      %p528 = scmp.ne.s32.totalorder %s514, %s515
      %p529 = scmp.eq.s32.totalorder %s40, 1
      %p530 = por %p528, %p529
      %p532 = scmp.ne.s32.totalorder %s515, %s531
      %p533 = scmp.eq.s32.totalorder %s40, 0
      %p534 = por %p532, %p533
      %p535 = scmp.le.s32.totalorder 1, %s34
      %p536 = scmp.lt.s32.totalorder %s34, 3
      %p537 = pnand %p535, %p536
      %p538 = pneg %p537
      // Predicated region
      $region9: #{tpu_custom_call.1} parent=5 // pred_check
        _
      $region10: #{tpu_custom_call.1} parent=5 // pred_check_branch
        %540 = sbr.rel (%p537) target = $region12
      $region11: #{tpu_custom_call.1} parent=5 // pred_region
        %s541 = ssub.s32 %s34, 1
        // Predicated region
        $region13: #{tpu_custom_call.1} parent=11 // pred_check
          %p542 = pneg %p81
        $region14: #{tpu_custom_call.1} parent=11 // pred_check_branch
          %544 = sbr.rel (%p542) target = $region16
        $region15: #{tpu_custom_call.1} parent=11 // pred_region
          _
        $region16: #{tpu_custom_call.1} parent=11 // pred_fallthru
          _
        // Predicated region
        $region17: #{tpu_custom_call.1} parent=11 // pred_check
          %p545 = pneg %p102
        $region18: #{tpu_custom_call.1} parent=11 // pred_check_branch
          %547 = sbr.rel (%p545) target = $region20
        $region19: #{tpu_custom_call.1} parent=11 // pred_region
          _
        $region20: #{tpu_custom_call.1} parent=11 // pred_fallthru
          _
        // Predicated region
        $region21: #{tpu_custom_call.1} parent=11 // pred_check
          %p548 = pneg %p123
        $region22: #{tpu_custom_call.1} parent=11 // pred_check_branch
          %550 = sbr.rel (%p548) target = $region24
        $region23: #{tpu_custom_call.1} parent=11 // pred_region
          %552 = vsyncadd [#allocation3], 0
          %s553 = sshll.u32 %s3, 4
          %s554 = int_to_ptr.hbm [resolvable:$true] %s553
          %s555 = sshll.u32 [#allocation2], 4
          %s556 = int_to_ptr.vmem [resolvable:$true] %s555
          %561 = dma.hbm_to_vmem [thread:$0]  %s554, 2560, %s556, [#allocation3], 128, 128, 8
        $region24: #{tpu_custom_call.1} parent=11 // pred_fallthru
          _
        // Predicated region
        $region25: #{tpu_custom_call.1} parent=11 // pred_check
          %p562 = pneg %p144
        $region26: #{tpu_custom_call.1} parent=11 // pred_check_branch
          %564 = sbr.rel (%p562) target = $region28
        $region27: #{tpu_custom_call.1} parent=11 // pred_region
          _
        $region28: #{tpu_custom_call.1} parent=11 // pred_fallthru
          _
        // Predicated region
        $region29: #{tpu_custom_call.1} parent=11 // pred_check
          %p565 = pneg %p165
        $region30: #{tpu_custom_call.1} parent=11 // pred_check_branch
          %567 = sbr.rel (%p565) target = $region32
        $region31: #{tpu_custom_call.1} parent=11 // pred_region
          %569 = vsyncadd [#allocation6], 0
          %s570 = sshll.u32 %s5, 4
          %s571 = int_to_ptr.hbm [resolvable:$true] %s570
          %s572 = sshll.u32 [#allocation5], 4
          %s573 = int_to_ptr.vmem [resolvable:$true] %s572
          %578 = dma.hbm_to_vmem [thread:$0]  %s571, 2560, %s573, [#allocation6], 128, 128, 8
        $region32: #{tpu_custom_call.1} parent=11 // pred_fallthru
          _
        // Predicated region
        $region33: #{tpu_custom_call.1} parent=11 // pred_check
          %p579 = pneg %p186
        $region34: #{tpu_custom_call.1} parent=11 // pred_check_branch
          %581 = sbr.rel (%p579) target = $region36
        $region35: #{tpu_custom_call.1} parent=11 // pred_region
          _
        $region36: #{tpu_custom_call.1} parent=11 // pred_fallthru
          _
        // Predicated region
        $region37: #{tpu_custom_call.1} parent=11 // pred_check
          %p582 = pneg %p207
        $region38: #{tpu_custom_call.1} parent=11 // pred_check_branch
          %584 = sbr.rel (%p582) target = $region40
        $region39: #{tpu_custom_call.1} parent=11 // pred_region
          %586 = vsyncadd [#allocation6], 0
          %s587 = sshll.u32 %s7, 4
          %s588 = int_to_ptr.hbm [resolvable:$true] %s587
          %s589 = sshll.u32 [#allocation7], 4
          %s590 = int_to_ptr.vmem [resolvable:$true] %s589
          %595 = dma.hbm_to_vmem [thread:$0]  %s588, 2560, %s590, [#allocation6], 128, 128, 8
        $region40: #{tpu_custom_call.1} parent=11 // pred_fallthru
          _
        // Predicated region
        $region41: #{tpu_custom_call.1} parent=11 // pred_check
          %p596 = pneg %p228
        $region42: #{tpu_custom_call.1} parent=11 // pred_check_branch
          %598 = sbr.rel (%p596) target = $region44
        $region43: #{tpu_custom_call.1} parent=11 // pred_region
          _
        $region44: #{tpu_custom_call.1} parent=11 // pred_fallthru
          _
        // Predicated region
        $region45: #{tpu_custom_call.1} parent=11 // pred_check
          %p599 = pneg %p249
        $region46: #{tpu_custom_call.1} parent=11 // pred_check_branch
          %601 = sbr.rel (%p599) target = $region48
        $region47: #{tpu_custom_call.1} parent=11 // pred_region
          %603 = vsyncadd [#allocation9], 0
          %s604 = sshll.u32 %s9, 4
          %s605 = int_to_ptr.hbm [resolvable:$true] %s604
          %s606 = sshll.u32 [#allocation8], 4
          %s607 = int_to_ptr.vmem [resolvable:$true] %s606
          %612 = dma.hbm_to_vmem [thread:$0]  %s605, 2560, %s607, [#allocation9], 128, 128, 8
        $region48: #{tpu_custom_call.1} parent=11 // pred_fallthru
          _
        // Predicated region
        $region49: #{tpu_custom_call.1} parent=11 // pred_check
          %p613 = pneg %p270
        $region50: #{tpu_custom_call.1} parent=11 // pred_check_branch
          %615 = sbr.rel (%p613) target = $region52
        $region51: #{tpu_custom_call.1} parent=11 // pred_region
          _
        $region52: #{tpu_custom_call.1} parent=11 // pred_fallthru
          _
        // Predicated region
        $region53: #{tpu_custom_call.1} parent=11 // pred_check
          %p616 = pneg %p291
        $region54: #{tpu_custom_call.1} parent=11 // pred_check_branch
          %618 = sbr.rel (%p616) target = $region56
        $region55: #{tpu_custom_call.1} parent=11 // pred_region
          %620 = vsyncadd [#allocation9], 0
          %s621 = sshll.u32 %s11, 4
          %s622 = int_to_ptr.hbm [resolvable:$true] %s621
          %s623 = sshll.u32 [#allocation10], 4
          %s624 = int_to_ptr.vmem [resolvable:$true] %s623
          %629 = dma.hbm_to_vmem [thread:$0]  %s622, 2560, %s624, [#allocation9], 128, 128, 8
        $region56: #{tpu_custom_call.1} parent=11 // pred_fallthru
          _
        // Predicated region
        $region57: #{tpu_custom_call.1} parent=11 // pred_check
          %p630 = pneg %p312
        $region58: #{tpu_custom_call.1} parent=11 // pred_check_branch
          %632 = sbr.rel (%p630) target = $region60
        $region59: #{tpu_custom_call.1} parent=11 // pred_region
          _
        $region60: #{tpu_custom_call.1} parent=11 // pred_fallthru
          _
        // Predicated region
        $region61: #{tpu_custom_call.1} parent=11 // pred_check
          %p633 = pneg %p333
        $region62: #{tpu_custom_call.1} parent=11 // pred_check_branch
          %635 = sbr.rel (%p633) target = $region64
        $region63: #{tpu_custom_call.1} parent=11 // pred_region
          _
        $region64: #{tpu_custom_call.1} parent=11 // pred_fallthru
          _
        // Predicated region
        $region65: #{tpu_custom_call.1} parent=11 // pred_check
          %p636 = pneg %p354
        $region66: #{tpu_custom_call.1} parent=11 // pred_check_branch
          %638 = sbr.rel (%p636) target = $region68
        $region67: #{tpu_custom_call.1} parent=11 // pred_region
          _
        $region68: #{tpu_custom_call.1} parent=11 // pred_fallthru
          _
        // Predicated region
        $region69: #{tpu_custom_call.1} parent=11 // pred_check
          %p639 = pneg %p375
        $region70: #{tpu_custom_call.1} parent=11 // pred_check_branch
          %641 = sbr.rel (%p639) target = $region72
        $region71: #{tpu_custom_call.1} parent=11 // pred_region
          _
        $region72: #{tpu_custom_call.1} parent=11 // pred_fallthru
          _
        // Predicated region
        $region73: #{tpu_custom_call.1} parent=11 // pred_check
          %p642 = pneg %p396
        $region74: #{tpu_custom_call.1} parent=11 // pred_check_branch
          %644 = sbr.rel (%p642) target = $region76
        $region75: #{tpu_custom_call.1} parent=11 // pred_region
          _
        $region76: #{tpu_custom_call.1} parent=11 // pred_fallthru
          _
        // Predicated region
        $region77: #{tpu_custom_call.1} parent=11 // pred_check
          %p645 = pneg %p417
        $region78: #{tpu_custom_call.1} parent=11 // pred_check_branch
          %647 = sbr.rel (%p645) target = $region80
        $region79: #{tpu_custom_call.1} parent=11 // pred_region
          _
        $region80: #{tpu_custom_call.1} parent=11 // pred_fallthru
          _
        // Predicated region
        $region81: #{tpu_custom_call.1} parent=11 // pred_check
          %p648 = pneg %p438
        $region82: #{tpu_custom_call.1} parent=11 // pred_check_branch
          %650 = sbr.rel (%p648) target = $region84
        $region83: #{tpu_custom_call.1} parent=11 // pred_region
          _
        $region84: #{tpu_custom_call.1} parent=11 // pred_fallthru
          _
        // Predicated region
        $region85: #{tpu_custom_call.1} parent=11 // pred_check
          %p651 = pneg %p459
        $region86: #{tpu_custom_call.1} parent=11 // pred_check_branch
          %653 = sbr.rel (%p651) target = $region88
        $region87: #{tpu_custom_call.1} parent=11 // pred_region
          _
        $region88: #{tpu_custom_call.1} parent=11 // pred_fallthru
          _
        // Predicated region
        $region89: #{tpu_custom_call.1} parent=11 // pred_check
          %p654 = pneg %p480
        $region90: #{tpu_custom_call.1} parent=11 // pred_check_branch
          %656 = sbr.rel (%p654) target = $region92
        $region91: #{tpu_custom_call.1} parent=11 // pred_region
          _
        $region92: #{tpu_custom_call.1} parent=11 // pred_fallthru
          _
        // Predicated region
        $region93: #{tpu_custom_call.1} parent=11 // pred_check
          %p657 = pneg %p501
        $region94: #{tpu_custom_call.1} parent=11 // pred_check_branch
          %659 = sbr.rel (%p657) target = $region96
        $region95: #{tpu_custom_call.1} parent=11 // pred_region
          _
        $region96: #{tpu_custom_call.1} parent=11 // pred_fallthru
          _
      $region12: #{tpu_custom_call.1} parent=5 // pred_fallthru
        _
      %p660 = scmp.lt.s32.totalorder %s34, 2
      // Predicated region
      $region97: #{tpu_custom_call.1} parent=5 // pred_check
        %p661 = pneg %p660
      $region98: #{tpu_custom_call.1} parent=5 // pred_check_branch
        %663 = sbr.rel (%p661) target = $region100
      $region99: #{tpu_custom_call.1} parent=5 // pred_region
        // Predicated region
        $region101: #{tpu_custom_call.1} parent=99 // pred_check
          %p664 = pneg %p54
        $region102: #{tpu_custom_call.1} parent=99 // pred_check_branch
          %666 = sbr.rel (%p664) target = $region104
        $region103: #{tpu_custom_call.1} parent=99 // pred_region
          %p667 = scmp.lt.s32.totalorder %s34, 1
          %s668 = scalar_select %p667, %s34, 1
          %s669 = smul.addr %s668, 8
          %s670 = smul.addr %s669, 8
          %s671 = scalar_lea.vmem %s0, %s670
        $region104: #{tpu_custom_call.1} parent=99 // pred_fallthru
          _
      $region100: #{tpu_custom_call.1} parent=5 // pred_fallthru
        _
      %p672 = scmp.le.s32.totalorder 1, %s34
      %p673 = scmp.lt.s32.totalorder %s34, 3
      %p674 = pnand %p672, %p673
      %p675 = pneg %p674
      // Predicated region
      $region105: #{tpu_custom_call.1} parent=5 // pred_check
        _
      $region106: #{tpu_custom_call.1} parent=5 // pred_check_branch
        %677 = sbr.rel (%p674) target = $region108
      $region107: #{tpu_custom_call.1} parent=5 // pred_region
        %s678 = ssub.s32 %s34, 1
        // Predicated region
        $region109: #{tpu_custom_call.1} parent=107 // pred_check
          %p679 = pneg %p123
        $region110: #{tpu_custom_call.1} parent=107 // pred_check_branch
          %681 = sbr.rel (%p679) target = $region112
        $region111: #{tpu_custom_call.1} parent=107 // pred_region
          %683 = dma.done [#allocation3], 2560
        $region112: #{tpu_custom_call.1} parent=107 // pred_fallthru
          _
        // Predicated region
        $region113: #{tpu_custom_call.1} parent=107 // pred_check
          %p684 = pneg %p165
        $region114: #{tpu_custom_call.1} parent=107 // pred_check_branch
          %686 = sbr.rel (%p684) target = $region116
        $region115: #{tpu_custom_call.1} parent=107 // pred_region
          %688 = dma.done [#allocation6], 2560
        $region116: #{tpu_custom_call.1} parent=107 // pred_fallthru
          _
        // Predicated region
        $region117: #{tpu_custom_call.1} parent=107 // pred_check
          %p689 = pneg %p207
        $region118: #{tpu_custom_call.1} parent=107 // pred_check_branch
          %691 = sbr.rel (%p689) target = $region120
        $region119: #{tpu_custom_call.1} parent=107 // pred_region
          %693 = dma.done [#allocation6], 2560
        $region120: #{tpu_custom_call.1} parent=107 // pred_fallthru
          _
        // Predicated region
        $region121: #{tpu_custom_call.1} parent=107 // pred_check
          %p694 = pneg %p249
        $region122: #{tpu_custom_call.1} parent=107 // pred_check_branch
          %696 = sbr.rel (%p694) target = $region124
        $region123: #{tpu_custom_call.1} parent=107 // pred_region
          %698 = dma.done [#allocation9], 2560
        $region124: #{tpu_custom_call.1} parent=107 // pred_fallthru
          _
        // Predicated region
        $region125: #{tpu_custom_call.1} parent=107 // pred_check
          %p699 = pneg %p291
        $region126: #{tpu_custom_call.1} parent=107 // pred_check_branch
          %701 = sbr.rel (%p699) target = $region128
        $region127: #{tpu_custom_call.1} parent=107 // pred_region
          %703 = dma.done [#allocation9], 2560
        $region128: #{tpu_custom_call.1} parent=107 // pred_fallthru
          _
        %p704 = scmp.lt.s32.totalorder %s39, 1
        %s705 = scalar_select %p704, %s39, 1
        %s706 = smul.addr %s705, 8
        %s707 = smul.addr %s706, 8
        %s708 = scalar_lea.vmem %s0, %s707
        %p709 = pneg %p60
        %p710 = pneg %p57
        %p711 = pneg %p81
        %p712 = pneg %p78
        %p713 = pneg %p102
        %p714 = pneg %p99
        %p715 = pneg %p123
        %p716 = pneg %p120
        %p717 = pneg %p144
        %p718 = pneg %p141
        %p719 = pneg %p165
        %p720 = pneg %p162
        %p721 = pneg %p186
        %p722 = pneg %p183
        %p723 = pneg %p207
        %p724 = pneg %p204
        %p725 = pneg %p228
        %p726 = pneg %p225
        %p727 = pneg %p249
        %p728 = pneg %p246
        %p729 = pneg %p270
        %p730 = pneg %p267
        %p731 = pneg %p291
        %p732 = pneg %p288
        %p733 = pneg %p312
        %p734 = pneg %p309
        %p735 = pneg %p333
        %p736 = pneg %p330
        %p737 = pneg %p354
        %p738 = pneg %p351
        %p739 = pneg %p375
        %p740 = pneg %p372
        %p741 = pneg %p396
        %p742 = pneg %p393
        %p743 = pneg %p417
        %p744 = pneg %p414
        %p745 = pneg %p438
        %p746 = pneg %p435
        %p747 = pneg %p459
        %p748 = pneg %p456
        %p749 = pneg %p480
        %p750 = pneg %p477
        %p751 = pneg %p501
        %p752 = pneg %p498
        %p753 = pneg %p527
        %p754 = pneg %p524
        %s755 = sand.u32 %s514, 1
        %s756 = scalar_lea.sflag [#allocation4], %s755
        %s757 = sand.u32 %s514, 1
        %s758 = smul.addr %s757, 32
        %s759 = scalar_lea.vmem [#allocation11], %s758
        %p760 = scmp.lt.s32.totalorder %s39, 1
        %s761 = scalar_select %p760, %s39, 1
        %s762 = smul.addr %s761, 8
        %s763 = smul.addr %s762, 8
        %s764 = scalar_lea.vmem %s0, %s763
        %v765 = vld [vmem:[%s764] sm:$0xff]
        %v766 = vld [vmem:[%s764 + $0x8] sm:$0xff]
        %v767 = vld [vmem:[%s764 + $0x10] sm:$0xff]
        %v768 = vld [vmem:[%s764 + $0x18] sm:$0xff]
        %v769 = vld [vmem:[%s764 + $0x20] sm:$0xff]
        %v770 = vld [vmem:[%s764 + $0x28] sm:$0xff]
        %v771 = vld [vmem:[%s764 + $0x30] sm:$0xff]
        %v772 = vld [vmem:[%s764 + $0x38] sm:$0xff]
        %v773 = vld [vmem:[%s21] sm:$0x3]
        %v774 = vld [vmem:[%s19] sm:$0xff]
        %v775 = vld [vmem:[%s19 + $0x8] sm:$0xff]
        %v776 = vld [vmem:[%s19 + $0x10] sm:$0xff]
        %v777 = vld [vmem:[%s19 + $0x18] sm:$0xff]
        %v778 = vld [vmem:[%s19 + $0x20] sm:$0xff]
        %v779 = vld [vmem:[%s19 + $0x28] sm:$0xff]
        %v780 = vld [vmem:[%s19 + $0x30] sm:$0xff]
        %v781 = vld [vmem:[%s19 + $0x38] sm:$0xff]
        %v782 = vld [vmem:[%s19 + $0x40] sm:$0xff]
        %v783 = vld [vmem:[%s19 + $0x48] sm:$0xff]
        %v784 = vld [vmem:[%s19 + $0x50] sm:$0xff]
        %v785 = vld [vmem:[%s19 + $0x58] sm:$0xff]
        %v786 = vld [vmem:[%s19 + $0x60] sm:$0xff]
        %v787 = vld [vmem:[%s19 + $0x68] sm:$0xff]
        %v788 = vld [vmem:[%s19 + $0x70] sm:$0xff]
        %v789 = vld [vmem:[%s19 + $0x78] sm:$0xff]
        %v790 = vld [vmem:[%s19 + $0x80] sm:$0xff]
        %v791 = vld [vmem:[%s19 + $0x88] sm:$0xff]
        %v792 = vld [vmem:[%s19 + $0x90] sm:$0xff]
        %v793 = vld [vmem:[%s19 + $0x98] sm:$0xff]
        %v794 = vld [vmem:[%s19 + $0xa0] sm:$0xff]
        %v795 = vld [vmem:[%s19 + $0xa8] sm:$0xff]
        %v796 = vld [vmem:[%s19 + $0xb0] sm:$0xff]
        %v797 = vld [vmem:[%s19 + $0xb8] sm:$0xff]
        %v798 = vld [vmem:[%s19 + $0xc0] sm:$0xff]
        %v799 = vld [vmem:[%s19 + $0xc8] sm:$0xff]
        %v800 = vld [vmem:[%s19 + $0xd0] sm:$0xff]
        %v801 = vld [vmem:[%s19 + $0xd8] sm:$0xff]
        %v802 = vld [vmem:[%s19 + $0xe0] sm:$0xff]
        %v803 = vld [vmem:[%s19 + $0xe8] sm:$0xff]
        %v804 = vld [vmem:[%s19 + $0xf0] sm:$0xff]
        %v805 = vld [vmem:[%s19 + $0xf8] sm:$0xff]
        %v806 = vld [vmem:[%s20] sm:$0xf]
        %807 = vrot.lane.b32.xlu0 %v765, 127
        %v808 = vpop.permute.xlu0 %807
        %809 = vrot.lane.b32.xlu0 %v767, 127
        %v810 = vpop.permute.xlu0 %809
        %811 = vrot.lane.b32.xlu0 %v769, 127
        %v812 = vpop.permute.xlu0 %811
        %813 = vrot.lane.b32.xlu0 %v771, 127
        %v814 = vpop.permute.xlu0 %813
        %815 = vrot.lane.b32.xlu0 %v766, 127
        %v816 = vpop.permute.xlu0 %815
        %817 = vrot.lane.b32.xlu0 %v768, 127
        %v818 = vpop.permute.xlu0 %817
        %819 = vrot.lane.b32.xlu0 %v770, 127
        %v820 = vpop.permute.xlu0 %819
        %821 = vrot.lane.b32.xlu0 %v772, 127
        %v822 = vpop.permute.xlu0 %821
        %v823 = vlaneseq
        %v824 = vand.u32 %v823, 127
        %vm825 = vcmp.lt.s32.totalorder %v824, 127
        %v826 = vsel %vm825, %v808, %v816
        %v827 = vsel %vm825, %v810, %v818
        %v828 = vsel %vm825, %v812, %v820
        %v829 = vsel %vm825, %v814, %v822
        %v830 = vsel %vm825, %v816, %v808
        %v831 = vsel %vm825, %v818, %v810
        %v832 = vsel %vm825, %v820, %v812
        %v833 = vsel %vm825, %v822, %v814
        %834 = vrot.lane.b32.xlu0 %v765, 1
        %v835 = vpop.permute.xlu0 %834
        %836 = vrot.lane.b32.xlu0 %v767, 1
        %v837 = vpop.permute.xlu0 %836
        %838 = vrot.lane.b32.xlu0 %v769, 1
        %v839 = vpop.permute.xlu0 %838
        %840 = vrot.lane.b32.xlu0 %v771, 1
        %v841 = vpop.permute.xlu0 %840
        %842 = vrot.lane.b32.xlu0 %v766, 1
        %v843 = vpop.permute.xlu0 %842
        %844 = vrot.lane.b32.xlu0 %v768, 1
        %v845 = vpop.permute.xlu0 %844
        %846 = vrot.lane.b32.xlu0 %v770, 1
        %v847 = vpop.permute.xlu0 %846
        %848 = vrot.lane.b32.xlu0 %v772, 1
        %v849 = vpop.permute.xlu0 %848
        %vm850 = vcmp.lt.s32.totalorder %v824, 1
        %v851 = vsel %vm850, %v835, %v843
        %v852 = vsel %vm850, %v837, %v845
        %v853 = vsel %vm850, %v839, %v847
        %v854 = vsel %vm850, %v841, %v849
        %v855 = vsel %vm850, %v843, %v835
        %v856 = vsel %vm850, %v845, %v837
        %v857 = vsel %vm850, %v847, %v839
        %v858 = vsel %vm850, %v849, %v841
        %859 = vrot.lane.b32.xlu0 %v765, 126
        %v860 = vpop.permute.xlu0 %859
        %861 = vrot.lane.b32.xlu0 %v767, 126
        %v862 = vpop.permute.xlu0 %861
        %863 = vrot.lane.b32.xlu0 %v769, 126
        %v864 = vpop.permute.xlu0 %863
        %865 = vrot.lane.b32.xlu0 %v771, 126
        %v866 = vpop.permute.xlu0 %865
        %867 = vrot.lane.b32.xlu0 %v766, 126
        %v868 = vpop.permute.xlu0 %867
        %869 = vrot.lane.b32.xlu0 %v768, 126
        %v870 = vpop.permute.xlu0 %869
        %871 = vrot.lane.b32.xlu0 %v770, 126
        %v872 = vpop.permute.xlu0 %871
        %873 = vrot.lane.b32.xlu0 %v772, 126
        %v874 = vpop.permute.xlu0 %873
        %vm875 = vcmp.lt.s32.totalorder %v824, 126
        %v876 = vsel %vm875, %v860, %v868
        %v877 = vsel %vm875, %v862, %v870
        %v878 = vsel %vm875, %v864, %v872
        %v879 = vsel %vm875, %v866, %v874
        %v880 = vsel %vm875, %v868, %v860
        %v881 = vsel %vm875, %v870, %v862
        %v882 = vsel %vm875, %v872, %v864
        %v883 = vsel %vm875, %v874, %v866
        %884 = vrot.lane.b32.xlu0 %v765, 2
        %v885 = vpop.permute.xlu0 %884
        %886 = vrot.lane.b32.xlu0 %v767, 2
        %v887 = vpop.permute.xlu0 %886
        %888 = vrot.lane.b32.xlu0 %v769, 2
        %v889 = vpop.permute.xlu0 %888
        %890 = vrot.lane.b32.xlu0 %v771, 2
        %v891 = vpop.permute.xlu0 %890
        %892 = vrot.lane.b32.xlu0 %v766, 2
        %v893 = vpop.permute.xlu0 %892
        %894 = vrot.lane.b32.xlu0 %v768, 2
        %v895 = vpop.permute.xlu0 %894
        %896 = vrot.lane.b32.xlu0 %v770, 2
        %v897 = vpop.permute.xlu0 %896
        %898 = vrot.lane.b32.xlu0 %v772, 2
        %v899 = vpop.permute.xlu0 %898
        %vm900 = vcmp.lt.s32.totalorder %v824, 2
        %v901 = vsel %vm900, %v885, %v893
        %v902 = vsel %vm900, %v887, %v895
        %v903 = vsel %vm900, %v889, %v897
        %v904 = vsel %vm900, %v891, %v899
        %v905 = vsel %vm900, %v893, %v885
        %v906 = vsel %vm900, %v895, %v887
        %v907 = vsel %vm900, %v897, %v889
        %v908 = vsel %vm900, %v899, %v891
        %v909 = vperm.slane %v773, 0
        %v910 = vperm.slane %v773, 1
        %vm911 = vcmp.eq.s32.totalorder %v909, 0
        %vm912 = vcmp.eq.s32.totalorder %v910, 0
        %vm913 = vcmp.eq.s32.totalorder %v909, 1
        %vm914 = vcmp.eq.s32.totalorder %v910, 1
        %vm915 = vcmp.eq.s32.totalorder %v909, 127
        %vm916 = vcmp.eq.s32.totalorder %v910, 127
        %vm917 = vcmp.eq.s32.totalorder %v909, 126
        %vm918 = vcmp.eq.s32.totalorder %v910, 126
        %v919 = vsel %vm911, %v876, %v905
        %v920 = vsel %vm912, %v880, %v901
        %v921 = vsel %vm911, %v877, %v906
        %v922 = vsel %vm912, %v881, %v902
        %v923 = vsel %vm911, %v878, %v907
        %v924 = vsel %vm912, %v882, %v903
        %v925 = vsel %vm911, %v879, %v908
        %v926 = vsel %vm912, %v883, %v904
        %v927 = vsel %vm913, %v765, %v919
        %v928 = vsel %vm914, %v766, %v920
        %v929 = vsel %vm913, %v767, %v921
        %v930 = vsel %vm914, %v768, %v922
        %v931 = vsel %vm913, %v769, %v923
        %v932 = vsel %vm914, %v770, %v924
        %v933 = vsel %vm913, %v771, %v925
        %v934 = vsel %vm914, %v772, %v926
        %v935 = vld [vmem:[%s1] sm:$0xff]
        %v936 = vld [vmem:[%s1 + $0x8] sm:$0xff]
        %v937 = vld [vmem:[%s1 + $0x10] sm:$0xff]
        %v938 = vld [vmem:[%s1 + $0x18] sm:$0xff]
        %v939 = vsel %vm911, %v826, %v855
        %v940 = vsel %vm912, %v830, %v851
        %v941 = vsel %vm911, %v827, %v856
        %v942 = vsel %vm912, %v831, %v852
        %v943 = vsel %vm911, %v828, %v857
        %v944 = vsel %vm912, %v832, %v853
        %v945 = vsel %vm911, %v829, %v858
        %v946 = vsel %vm912, %v833, %v854
        %s947 = scalar_lea.vmem %s1, 32
        %v948 = vld [vmem:[%s947] sm:$0xff]
        %v949 = vld [vmem:[%s947 + $0x8] sm:$0xff]
        %v950 = vld [vmem:[%s947 + $0x10] sm:$0xff]
        %v951 = vld [vmem:[%s947 + $0x18] sm:$0xff]
        %vm952 = vcmask 261120
        %v954 = vsel %vm952, %v948, 0
        %v957 = vsel %vm952, %v949, 0
        %v960 = vsel %vm952, %v950, 0
        %v963 = vsel %vm952, %v951, 0
        %965 = vmatpush.msra.mxu0 0.0
        %966 = vmatpush.msra.mxu0 0.0
        %967 = vmatpush.msra.mxu0 0.0
        %968 = vmatpush.msra.mxu0 0.0
        %969 = vmatpush.msra.mxu0 0.0
        %970 = vmatpush.msra.mxu0 0.0
        %971 = vmatpush.msra.mxu0 0.0
        %972 = vmatpush.msra.mxu0 0.0
        %973 = vmatpush.msra.mxu0 0.0
        %974 = vmatpush.msra.mxu0 0.0
        %975 = vmatpush.msra.mxu0 0.0
        %976 = vmatpush.msra.mxu0 0.0
        %977 = vmatpush.msra.mxu0 %v945
        %978 = vmatpush.msra.mxu0 %v943
        %979 = vmatpush.msra.mxu0 %v941
        %980 = vmatpush.msra.mxu0 %v939
        %981 = vmatmul.f32.gmra.mxu0 %v954
        %v982 = vpop.f32.mrf.mxu0
        %v983 = vadd.f32 0.0, %v982
        %984 = vmatmul.f32.gmra.mxu0 %v957
        %v985 = vpop.f32.mrf.mxu0
        %v986 = vadd.f32 0.0, %v985
        %987 = vmatmul.f32.gmra.mxu0 %v960
        %v988 = vpop.f32.mrf.mxu0
        %v989 = vadd.f32 0.0, %v988
        %990 = vmatmul.f32.gmra.mxu0 %v963
        %v991 = vpop.f32.mrf.mxu0
        %v992 = vadd.f32 0.0, %v991
        %993 = vdwg.mxu0
        %994 = vmatpush.msra.mxu0 0.0
        %995 = vmatpush.msra.mxu0 0.0
        %996 = vmatpush.msra.mxu0 0.0
        %997 = vmatpush.msra.mxu0 0.0
        %998 = vmatpush.msra.mxu0 0.0
        %999 = vmatpush.msra.mxu0 0.0
        %1000 = vmatpush.msra.mxu0 0.0
        %1001 = vmatpush.msra.mxu0 0.0
        %1002 = vmatpush.msra.mxu0 0.0
        %1003 = vmatpush.msra.mxu0 0.0
        %1004 = vmatpush.msra.mxu0 0.0
        %1005 = vmatpush.msra.mxu0 0.0
        %1006 = vmatpush.msra.mxu0 %v946
        %1007 = vmatpush.msra.mxu0 %v944
        %1008 = vmatpush.msra.mxu0 %v942
        %1009 = vmatpush.msra.mxu0 %v940
        %1010 = vmatmul.f32.gmra.mxu0 %v954
        %v1011 = vpop.f32.mrf.mxu0
        %v1012 = vadd.f32 0.0, %v1011
        %1013 = vmatmul.f32.gmra.mxu0 %v957
        %v1014 = vpop.f32.mrf.mxu0
        %v1015 = vadd.f32 0.0, %v1014
        %1016 = vmatmul.f32.gmra.mxu0 %v960
        %v1017 = vpop.f32.mrf.mxu0
        %v1018 = vadd.f32 0.0, %v1017
        %1019 = vmatmul.f32.gmra.mxu0 %v963
        %v1020 = vpop.f32.mrf.mxu0
        %v1021 = vadd.f32 0.0, %v1020
        %1022 = vdwg.mxu0
        %v1024 = vsel %vm952, %v935, 0
        %v1027 = vsel %vm952, %v936, 0
        %v1030 = vsel %vm952, %v937, 0
        %v1033 = vsel %vm952, %v938, 0
        %1035 = vmatpush.msra.mxu0 0.0
        %1036 = vmatpush.msra.mxu0 0.0
        %1037 = vmatpush.msra.mxu0 0.0
        %1038 = vmatpush.msra.mxu0 0.0
        %1039 = vmatpush.msra.mxu0 0.0
        %1040 = vmatpush.msra.mxu0 0.0
        %1041 = vmatpush.msra.mxu0 0.0
        %1042 = vmatpush.msra.mxu0 0.0
        %1043 = vmatpush.msra.mxu0 0.0
        %1044 = vmatpush.msra.mxu0 0.0
        %1045 = vmatpush.msra.mxu0 0.0
        %1046 = vmatpush.msra.mxu0 0.0
        %1047 = vmatpush.msra.mxu0 %v933
        %1048 = vmatpush.msra.mxu0 %v931
        %1049 = vmatpush.msra.mxu0 %v929
        %1050 = vmatpush.msra.mxu0 %v927
        %1051 = vmatmul.f32.gmra.mxu0 %v1024
        %v1052 = vpop.f32.mrf.mxu0
        %v1053 = vadd.f32 %v983, %v1052
        %1054 = vmatmul.f32.gmra.mxu0 %v1027
        %v1055 = vpop.f32.mrf.mxu0
        %v1056 = vadd.f32 %v986, %v1055
        %1057 = vmatmul.f32.gmra.mxu0 %v1030
        %v1058 = vpop.f32.mrf.mxu0
        %v1059 = vadd.f32 %v989, %v1058
        %1060 = vmatmul.f32.gmra.mxu0 %v1033
        %v1061 = vpop.f32.mrf.mxu0
        %v1062 = vadd.f32 %v992, %v1061
        %1063 = vdwg.mxu0
        %1064 = vmatpush.msra.mxu0 0.0
        %1065 = vmatpush.msra.mxu0 0.0
        %1066 = vmatpush.msra.mxu0 0.0
        %1067 = vmatpush.msra.mxu0 0.0
        %1068 = vmatpush.msra.mxu0 0.0
        %1069 = vmatpush.msra.mxu0 0.0
        %1070 = vmatpush.msra.mxu0 0.0
        %1071 = vmatpush.msra.mxu0 0.0
        %1072 = vmatpush.msra.mxu0 0.0
        %1073 = vmatpush.msra.mxu0 0.0
        %1074 = vmatpush.msra.mxu0 0.0
        %1075 = vmatpush.msra.mxu0 0.0
        %1076 = vmatpush.msra.mxu0 %v934
        %1077 = vmatpush.msra.mxu0 %v932
        %1078 = vmatpush.msra.mxu0 %v930
        %1079 = vmatpush.msra.mxu0 %v928
        %1080 = vmatmul.f32.gmra.mxu0 %v1024
        %v1081 = vpop.f32.mrf.mxu0
        %v1082 = vadd.f32 %v1012, %v1081
        %1083 = vmatmul.f32.gmra.mxu0 %v1027
        %v1084 = vpop.f32.mrf.mxu0
        %v1085 = vadd.f32 %v1015, %v1084
        %1086 = vmatmul.f32.gmra.mxu0 %v1030
        %v1087 = vpop.f32.mrf.mxu0
        %v1088 = vadd.f32 %v1018, %v1087
        %1089 = vmatmul.f32.gmra.mxu0 %v1033
        %v1090 = vpop.f32.mrf.mxu0
        %v1091 = vadd.f32 %v1021, %v1090
        %1092 = vdwg.mxu0
        %s1093 = scalar_lea.vmem %s1, 64
        %v1094 = vld [vmem:[%s1093] sm:$0xff]
        %v1095 = vld [vmem:[%s1093 + $0x8] sm:$0xff]
        %v1096 = vld [vmem:[%s1093 + $0x10] sm:$0xff]
        %v1097 = vld [vmem:[%s1093 + $0x18] sm:$0xff]
        %v1099 = vsel %vm952, %v1094, 0
        %v1102 = vsel %vm952, %v1095, 0
        %v1105 = vsel %vm952, %v1096, 0
        %v1108 = vsel %vm952, %v1097, 0
        %1110 = vmatpush.msra.mxu0 0.0
        %1111 = vmatpush.msra.mxu0 0.0
        %1112 = vmatpush.msra.mxu0 0.0
        %1113 = vmatpush.msra.mxu0 0.0
        %1114 = vmatpush.msra.mxu0 0.0
        %1115 = vmatpush.msra.mxu0 0.0
        %1116 = vmatpush.msra.mxu0 0.0
        %1117 = vmatpush.msra.mxu0 0.0
        %1118 = vmatpush.msra.mxu0 0.0
        %1119 = vmatpush.msra.mxu0 0.0
        %1120 = vmatpush.msra.mxu0 0.0
        %1121 = vmatpush.msra.mxu0 0.0
        %1122 = vmatpush.msra.mxu0 %v771
        %1123 = vmatpush.msra.mxu0 %v769
        %1124 = vmatpush.msra.mxu0 %v767
        %1125 = vmatpush.msra.mxu0 %v765
        %1126 = vmatmul.f32.gmra.mxu0 %v1099
        %v1127 = vpop.f32.mrf.mxu0
        %v1128 = vadd.f32 0.0, %v1127
        %1129 = vmatmul.f32.gmra.mxu0 %v1102
        %v1130 = vpop.f32.mrf.mxu0
        %v1131 = vadd.f32 0.0, %v1130
        %1132 = vmatmul.f32.gmra.mxu0 %v1105
        %v1133 = vpop.f32.mrf.mxu0
        %v1134 = vadd.f32 0.0, %v1133
        %1135 = vmatmul.f32.gmra.mxu0 %v1108
        %v1136 = vpop.f32.mrf.mxu0
        %v1137 = vadd.f32 0.0, %v1136
        %1138 = vdwg.mxu0
        %1139 = vmatpush.msra.mxu0 0.0
        %1140 = vmatpush.msra.mxu0 0.0
        %1141 = vmatpush.msra.mxu0 0.0
        %1142 = vmatpush.msra.mxu0 0.0
        %1143 = vmatpush.msra.mxu0 0.0
        %1144 = vmatpush.msra.mxu0 0.0
        %1145 = vmatpush.msra.mxu0 0.0
        %1146 = vmatpush.msra.mxu0 0.0
        %1147 = vmatpush.msra.mxu0 0.0
        %1148 = vmatpush.msra.mxu0 0.0
        %1149 = vmatpush.msra.mxu0 0.0
        %1150 = vmatpush.msra.mxu0 0.0
        %1151 = vmatpush.msra.mxu0 %v772
        %1152 = vmatpush.msra.mxu0 %v770
        %1153 = vmatpush.msra.mxu0 %v768
        %1154 = vmatpush.msra.mxu0 %v766
        %1155 = vmatmul.f32.gmra.mxu0 %v1099
        %v1156 = vpop.f32.mrf.mxu0
        %v1157 = vadd.f32 0.0, %v1156
        %1158 = vmatmul.f32.gmra.mxu0 %v1102
        %v1159 = vpop.f32.mrf.mxu0
        %v1160 = vadd.f32 0.0, %v1159
        %1161 = vmatmul.f32.gmra.mxu0 %v1105
        %v1162 = vpop.f32.mrf.mxu0
        %v1163 = vadd.f32 0.0, %v1162
        %1164 = vmatmul.f32.gmra.mxu0 %v1108
        %v1165 = vpop.f32.mrf.mxu0
        %v1166 = vadd.f32 0.0, %v1165
        %1167 = vdwg.mxu0
        %v1168 = vadd.f32 %v1053, %v1128
        %v1169 = vadd.f32 %v1082, %v1157
        %v1170 = vadd.f32 %v1056, %v1131
        %v1171 = vadd.f32 %v1085, %v1160
        %v1172 = vadd.f32 %v1059, %v1134
        %v1173 = vadd.f32 %v1088, %v1163
        %v1174 = vadd.f32 %v1062, %v1137
        %v1175 = vadd.f32 %v1091, %v1166
        %v1176 = vsel %vm915, %v855, %v826
        %v1177 = vsel %vm916, %v851, %v830
        %v1178 = vsel %vm915, %v856, %v827
        %v1179 = vsel %vm916, %v852, %v831
        %v1180 = vsel %vm915, %v857, %v828
        %v1181 = vsel %vm916, %v853, %v832
        %v1182 = vsel %vm915, %v858, %v829
        %v1183 = vsel %vm916, %v854, %v833
        %s1184 = scalar_lea.vmem %s1, 96
        %v1185 = vld [vmem:[%s1184] sm:$0xff]
        %v1186 = vld [vmem:[%s1184 + $0x8] sm:$0xff]
        %v1187 = vld [vmem:[%s1184 + $0x10] sm:$0xff]
        %v1188 = vld [vmem:[%s1184 + $0x18] sm:$0xff]
        %v1190 = vsel %vm952, %v1185, 0
        %v1193 = vsel %vm952, %v1186, 0
        %v1196 = vsel %vm952, %v1187, 0
        %v1199 = vsel %vm952, %v1188, 0
        %1201 = vmatpush.msra.mxu0 0.0
        %1202 = vmatpush.msra.mxu0 0.0
        %1203 = vmatpush.msra.mxu0 0.0
        %1204 = vmatpush.msra.mxu0 0.0
        %1205 = vmatpush.msra.mxu0 0.0
        %1206 = vmatpush.msra.mxu0 0.0
        %1207 = vmatpush.msra.mxu0 0.0
        %1208 = vmatpush.msra.mxu0 0.0
        %1209 = vmatpush.msra.mxu0 0.0
        %1210 = vmatpush.msra.mxu0 0.0
        %1211 = vmatpush.msra.mxu0 0.0
        %1212 = vmatpush.msra.mxu0 0.0
        %1213 = vmatpush.msra.mxu0 %v1182
        %1214 = vmatpush.msra.mxu0 %v1180
        %1215 = vmatpush.msra.mxu0 %v1178
        %1216 = vmatpush.msra.mxu0 %v1176
        %1217 = vmatmul.f32.gmra.mxu0 %v1190
        %v1218 = vpop.f32.mrf.mxu0
        %v1219 = vadd.f32 0.0, %v1218
        %1220 = vmatmul.f32.gmra.mxu0 %v1193
        %v1221 = vpop.f32.mrf.mxu0
        %v1222 = vadd.f32 0.0, %v1221
        %1223 = vmatmul.f32.gmra.mxu0 %v1196
        %v1224 = vpop.f32.mrf.mxu0
        %v1225 = vadd.f32 0.0, %v1224
        %1226 = vmatmul.f32.gmra.mxu0 %v1199
        %v1227 = vpop.f32.mrf.mxu0
        %v1228 = vadd.f32 0.0, %v1227
        %1229 = vdwg.mxu0
        %1230 = vmatpush.msra.mxu0 0.0
        %1231 = vmatpush.msra.mxu0 0.0
        %1232 = vmatpush.msra.mxu0 0.0
        %1233 = vmatpush.msra.mxu0 0.0
        %1234 = vmatpush.msra.mxu0 0.0
        %1235 = vmatpush.msra.mxu0 0.0
        %1236 = vmatpush.msra.mxu0 0.0
        %1237 = vmatpush.msra.mxu0 0.0
        %1238 = vmatpush.msra.mxu0 0.0
        %1239 = vmatpush.msra.mxu0 0.0
        %1240 = vmatpush.msra.mxu0 0.0
        %1241 = vmatpush.msra.mxu0 0.0
        %1242 = vmatpush.msra.mxu0 %v1183
        %1243 = vmatpush.msra.mxu0 %v1181
        %1244 = vmatpush.msra.mxu0 %v1179
        %1245 = vmatpush.msra.mxu0 %v1177
        %1246 = vmatmul.f32.gmra.mxu0 %v1190
        %v1247 = vpop.f32.mrf.mxu0
        %v1248 = vadd.f32 0.0, %v1247
        %1249 = vmatmul.f32.gmra.mxu0 %v1193
        %v1250 = vpop.f32.mrf.mxu0
        %v1251 = vadd.f32 0.0, %v1250
        %1252 = vmatmul.f32.gmra.mxu0 %v1196
        %v1253 = vpop.f32.mrf.mxu0
        %v1254 = vadd.f32 0.0, %v1253
        %1255 = vmatmul.f32.gmra.mxu0 %v1199
        %v1256 = vpop.f32.mrf.mxu0
        %v1257 = vadd.f32 0.0, %v1256
        %1258 = vdwg.mxu0
        %v1259 = vadd.f32 %v1168, %v1219
        %v1260 = vadd.f32 %v1169, %v1248
        %v1261 = vadd.f32 %v1170, %v1222
        %v1262 = vadd.f32 %v1171, %v1251
        %v1263 = vadd.f32 %v1172, %v1225
        %v1264 = vadd.f32 %v1173, %v1254
        %v1265 = vadd.f32 %v1174, %v1228
        %v1266 = vadd.f32 %v1175, %v1257
        %v1267 = vsel %vm915, %v905, %v876
        %v1268 = vsel %vm916, %v901, %v880
        %v1269 = vsel %vm915, %v906, %v877
        %v1270 = vsel %vm916, %v902, %v881
        %v1271 = vsel %vm915, %v907, %v878
        %v1272 = vsel %vm916, %v903, %v882
        %v1273 = vsel %vm915, %v908, %v879
        %v1274 = vsel %vm916, %v904, %v883
        %v1275 = vsel %vm917, %v765, %v1267
        %v1276 = vsel %vm918, %v766, %v1268
        %v1277 = vsel %vm917, %v767, %v1269
        %v1278 = vsel %vm918, %v768, %v1270
        %v1279 = vsel %vm917, %v769, %v1271
        %v1280 = vsel %vm918, %v770, %v1272
        %v1281 = vsel %vm917, %v771, %v1273
        %v1282 = vsel %vm918, %v772, %v1274
        %s1283 = scalar_lea.vmem %s1, 128
        %v1284 = vld [vmem:[%s1283] sm:$0xff]
        %v1285 = vld [vmem:[%s1283 + $0x8] sm:$0xff]
        %v1286 = vld [vmem:[%s1283 + $0x10] sm:$0xff]
        %v1287 = vld [vmem:[%s1283 + $0x18] sm:$0xff]
        %v1289 = vsel %vm952, %v1284, 0
        %v1292 = vsel %vm952, %v1285, 0
        %v1295 = vsel %vm952, %v1286, 0
        %v1298 = vsel %vm952, %v1287, 0
        %1300 = vmatpush.msra.mxu0 0.0
        %1301 = vmatpush.msra.mxu0 0.0
        %1302 = vmatpush.msra.mxu0 0.0
        %1303 = vmatpush.msra.mxu0 0.0
        %1304 = vmatpush.msra.mxu0 0.0
        %1305 = vmatpush.msra.mxu0 0.0
        %1306 = vmatpush.msra.mxu0 0.0
        %1307 = vmatpush.msra.mxu0 0.0
        %1308 = vmatpush.msra.mxu0 0.0
        %1309 = vmatpush.msra.mxu0 0.0
        %1310 = vmatpush.msra.mxu0 0.0
        %1311 = vmatpush.msra.mxu0 0.0
        %1312 = vmatpush.msra.mxu0 %v1281
        %1313 = vmatpush.msra.mxu0 %v1279
        %1314 = vmatpush.msra.mxu0 %v1277
        %1315 = vmatpush.msra.mxu0 %v1275
        %1316 = vmatmul.f32.gmra.mxu0 %v1289
        %v1317 = vpop.f32.mrf.mxu0
        %v1318 = vadd.f32 0.0, %v1317
        %1319 = vmatmul.f32.gmra.mxu0 %v1292
        %v1320 = vpop.f32.mrf.mxu0
        %v1321 = vadd.f32 0.0, %v1320
        %1322 = vmatmul.f32.gmra.mxu0 %v1295
        %v1323 = vpop.f32.mrf.mxu0
        %v1324 = vadd.f32 0.0, %v1323
        %1325 = vmatmul.f32.gmra.mxu0 %v1298
        %v1326 = vpop.f32.mrf.mxu0
        %v1327 = vadd.f32 0.0, %v1326
        %1328 = vdwg.mxu0
        %1329 = vmatpush.msra.mxu0 0.0
        %1330 = vmatpush.msra.mxu0 0.0
        %1331 = vmatpush.msra.mxu0 0.0
        %1332 = vmatpush.msra.mxu0 0.0
        %1333 = vmatpush.msra.mxu0 0.0
        %1334 = vmatpush.msra.mxu0 0.0
        %1335 = vmatpush.msra.mxu0 0.0
        %1336 = vmatpush.msra.mxu0 0.0
        %1337 = vmatpush.msra.mxu0 0.0
        %1338 = vmatpush.msra.mxu0 0.0
        %1339 = vmatpush.msra.mxu0 0.0
        %1340 = vmatpush.msra.mxu0 0.0
        %1341 = vmatpush.msra.mxu0 %v1282
        %1342 = vmatpush.msra.mxu0 %v1280
        %1343 = vmatpush.msra.mxu0 %v1278
        %1344 = vmatpush.msra.mxu0 %v1276
        %1345 = vmatmul.f32.gmra.mxu0 %v1289
        %v1346 = vpop.f32.mrf.mxu0
        %v1347 = vadd.f32 0.0, %v1346
        %1348 = vmatmul.f32.gmra.mxu0 %v1292
        %v1349 = vpop.f32.mrf.mxu0
        %v1350 = vadd.f32 0.0, %v1349
        %1351 = vmatmul.f32.gmra.mxu0 %v1295
        %v1352 = vpop.f32.mrf.mxu0
        %v1353 = vadd.f32 0.0, %v1352
        %1354 = vmatmul.f32.gmra.mxu0 %v1298
        %v1355 = vpop.f32.mrf.mxu0
        %v1356 = vadd.f32 0.0, %v1355
        %1357 = vdwg.mxu0
        %v1358 = vadd.f32 %v1259, %v1318
        %v1359 = vadd.f32 %v1260, %v1347
        %v1360 = vadd.f32 %v1261, %v1321
        %v1361 = vadd.f32 %v1262, %v1350
        %v1362 = vadd.f32 %v1263, %v1324
        %v1363 = vadd.f32 %v1264, %v1353
        %v1364 = vadd.f32 %v1265, %v1327
        %v1365 = vadd.f32 %v1266, %v1356
        %v1366 = vld [vmem:[%s2] sm:$0xff]
        %v1367 = vld [vmem:[%s2 + $0x8] sm:$0xff]
        %v1368 = vld [vmem:[%s2 + $0x10] sm:$0xff]
        %v1369 = vld [vmem:[%s2 + $0x18] sm:$0xff]
        %1371 = vset.pattern.permute.xlu0 0
        %1372 = vperm.xlu0 %1371, %v1366
        %v1373 = vpop.permute.xlu0 %1372
        %1376 = vset.pattern.permute.xlu0 0
        %1377 = vperm.xlu0 %1376, %v1367
        %v1378 = vpop.permute.xlu0 %1377
        %1381 = vset.pattern.permute.xlu0 0
        %1382 = vperm.xlu0 %1381, %v1368
        %v1383 = vpop.permute.xlu0 %1382
        %1386 = vset.pattern.permute.xlu0 0
        %1387 = vperm.xlu0 %1386, %v1369
        %v1388 = vpop.permute.xlu0 %1387
        %v1390 = vadd.f32 %v1358, %v1373
        %v1391 = vadd.f32 %v1359, %v1373
        %v1392 = vadd.f32 %v1360, %v1378
        %v1393 = vadd.f32 %v1361, %v1378
        %v1394 = vadd.f32 %v1362, %v1383
        %v1395 = vadd.f32 %v1363, %v1383
        %v1396 = vadd.f32 %v1364, %v1388
        %v1397 = vadd.f32 %v1365, %v1388
        %vm1398 = vcmp.ge.f32.partialorder %v1390, 0.0
        %vm1399 = vcmp.ge.f32.partialorder %v1391, 0.0
        %vm1400 = vcmp.ge.f32.partialorder %v1392, 0.0
        %vm1401 = vcmp.ge.f32.partialorder %v1393, 0.0
        %vm1402 = vcmp.ge.f32.partialorder %v1394, 0.0
        %vm1403 = vcmp.ge.f32.partialorder %v1395, 0.0
        %vm1404 = vcmp.ge.f32.partialorder %v1396, 0.0
        %vm1405 = vcmp.ge.f32.partialorder %v1397, 0.0
        %v1406 = vmul.f32 %v1390, 0.01
        %v1407 = vmul.f32 %v1391, 0.01
        %v1408 = vmul.f32 %v1392, 0.01
        %v1409 = vmul.f32 %v1393, 0.01
        %v1410 = vmul.f32 %v1394, 0.01
        %v1411 = vmul.f32 %v1395, 0.01
        %v1412 = vmul.f32 %v1396, 0.01
        %v1413 = vmul.f32 %v1397, 0.01
        %v1414 = vsel %vm1398, %v1390, %v1406
        %v1415 = vsel %vm1399, %v1391, %v1407
        %v1416 = vsel %vm1400, %v1392, %v1408
        %v1417 = vsel %vm1401, %v1393, %v1409
        %v1418 = vsel %vm1402, %v1394, %v1410
        %v1419 = vsel %vm1403, %v1395, %v1411
        %v1420 = vsel %vm1404, %v1396, %v1412
        %v1421 = vsel %vm1405, %v1397, %v1413
        %1422 = vrot.lane.b32.xlu0 %v1414, 127
        %v1423 = vpop.permute.xlu0 %1422
        %1424 = vrot.lane.b32.xlu0 %v1416, 127
        %v1425 = vpop.permute.xlu0 %1424
        %1426 = vrot.lane.b32.xlu0 %v1418, 127
        %v1427 = vpop.permute.xlu0 %1426
        %1428 = vrot.lane.b32.xlu0 %v1420, 127
        %v1429 = vpop.permute.xlu0 %1428
        %1430 = vrot.lane.b32.xlu0 %v1415, 127
        %v1431 = vpop.permute.xlu0 %1430
        %1432 = vrot.lane.b32.xlu0 %v1417, 127
        %v1433 = vpop.permute.xlu0 %1432
        %1434 = vrot.lane.b32.xlu0 %v1419, 127
        %v1435 = vpop.permute.xlu0 %1434
        %1436 = vrot.lane.b32.xlu0 %v1421, 127
        %v1437 = vpop.permute.xlu0 %1436
        %v1438 = vsel %vm825, %v1423, %v1431
        %v1439 = vsel %vm825, %v1425, %v1433
        %v1440 = vsel %vm825, %v1427, %v1435
        %v1441 = vsel %vm825, %v1429, %v1437
        %v1442 = vsel %vm825, %v1431, %v1423
        %v1443 = vsel %vm825, %v1433, %v1425
        %v1444 = vsel %vm825, %v1435, %v1427
        %v1445 = vsel %vm825, %v1437, %v1429
        %1446 = vrot.lane.b32.xlu0 %v1414, 1
        %v1447 = vpop.permute.xlu0 %1446
        %1448 = vrot.lane.b32.xlu0 %v1416, 1
        %v1449 = vpop.permute.xlu0 %1448
        %1450 = vrot.lane.b32.xlu0 %v1418, 1
        %v1451 = vpop.permute.xlu0 %1450
        %1452 = vrot.lane.b32.xlu0 %v1420, 1
        %v1453 = vpop.permute.xlu0 %1452
        %1454 = vrot.lane.b32.xlu0 %v1415, 1
        %v1455 = vpop.permute.xlu0 %1454
        %1456 = vrot.lane.b32.xlu0 %v1417, 1
        %v1457 = vpop.permute.xlu0 %1456
        %1458 = vrot.lane.b32.xlu0 %v1419, 1
        %v1459 = vpop.permute.xlu0 %1458
        %1460 = vrot.lane.b32.xlu0 %v1421, 1
        %v1461 = vpop.permute.xlu0 %1460
        %v1462 = vsel %vm850, %v1447, %v1455
        %v1463 = vsel %vm850, %v1449, %v1457
        %v1464 = vsel %vm850, %v1451, %v1459
        %v1465 = vsel %vm850, %v1453, %v1461
        %v1466 = vsel %vm850, %v1455, %v1447
        %v1467 = vsel %vm850, %v1457, %v1449
        %v1468 = vsel %vm850, %v1459, %v1451
        %v1469 = vsel %vm850, %v1461, %v1453
        %1470 = vrot.lane.b32.xlu0 %v1414, 126
        %v1471 = vpop.permute.xlu0 %1470
        %1472 = vrot.lane.b32.xlu0 %v1416, 126
        %v1473 = vpop.permute.xlu0 %1472
        %1474 = vrot.lane.b32.xlu0 %v1418, 126
        %v1475 = vpop.permute.xlu0 %1474
        %1476 = vrot.lane.b32.xlu0 %v1420, 126
        %v1477 = vpop.permute.xlu0 %1476
        %1478 = vrot.lane.b32.xlu0 %v1415, 126
        %v1479 = vpop.permute.xlu0 %1478
        %1480 = vrot.lane.b32.xlu0 %v1417, 126
        %v1481 = vpop.permute.xlu0 %1480
        %1482 = vrot.lane.b32.xlu0 %v1419, 126
        %v1483 = vpop.permute.xlu0 %1482
        %1484 = vrot.lane.b32.xlu0 %v1421, 126
        %v1485 = vpop.permute.xlu0 %1484
        %v1486 = vsel %vm875, %v1471, %v1479
        %v1487 = vsel %vm875, %v1473, %v1481
        %v1488 = vsel %vm875, %v1475, %v1483
        %v1489 = vsel %vm875, %v1477, %v1485
        %v1490 = vsel %vm875, %v1479, %v1471
        %v1491 = vsel %vm875, %v1481, %v1473
        %v1492 = vsel %vm875, %v1483, %v1475
        %v1493 = vsel %vm875, %v1485, %v1477
        %1494 = vrot.lane.b32.xlu0 %v1414, 2
        %v1495 = vpop.permute.xlu0 %1494
        %1496 = vrot.lane.b32.xlu0 %v1416, 2
        %v1497 = vpop.permute.xlu0 %1496
        %1498 = vrot.lane.b32.xlu0 %v1418, 2
        %v1499 = vpop.permute.xlu0 %1498
        %1500 = vrot.lane.b32.xlu0 %v1420, 2
        %v1501 = vpop.permute.xlu0 %1500
        %1502 = vrot.lane.b32.xlu0 %v1415, 2
        %v1503 = vpop.permute.xlu0 %1502
        %1504 = vrot.lane.b32.xlu0 %v1417, 2
        %v1505 = vpop.permute.xlu0 %1504
        %1506 = vrot.lane.b32.xlu0 %v1419, 2
        %v1507 = vpop.permute.xlu0 %1506
        %1508 = vrot.lane.b32.xlu0 %v1421, 2
        %v1509 = vpop.permute.xlu0 %1508
        %v1510 = vsel %vm900, %v1495, %v1503
        %v1511 = vsel %vm900, %v1497, %v1505
        %v1512 = vsel %vm900, %v1499, %v1507
        %v1513 = vsel %vm900, %v1501, %v1509
        %v1514 = vsel %vm900, %v1503, %v1495
        %v1515 = vsel %vm900, %v1505, %v1497
        %v1516 = vsel %vm900, %v1507, %v1499
        %v1517 = vsel %vm900, %v1509, %v1501
        %v1518 = vsel %vm911, %v1486, %v1514
        %v1519 = vsel %vm912, %v1490, %v1510
        %v1520 = vsel %vm911, %v1487, %v1515
        %v1521 = vsel %vm912, %v1491, %v1511
        %v1522 = vsel %vm911, %v1488, %v1516
        %v1523 = vsel %vm912, %v1492, %v1512
        %v1524 = vsel %vm911, %v1489, %v1517
        %v1525 = vsel %vm912, %v1493, %v1513
        %v1526 = vsel %vm913, %v1414, %v1518
        %v1527 = vsel %vm914, %v1415, %v1519
        %v1528 = vsel %vm913, %v1416, %v1520
        %v1529 = vsel %vm914, %v1417, %v1521
        %v1530 = vsel %vm913, %v1418, %v1522
        %v1531 = vsel %vm914, %v1419, %v1523
        %v1532 = vsel %vm913, %v1420, %v1524
        %v1533 = vsel %vm914, %v1421, %v1525
        %v1534 = vld [vmem:[#allocation2] sm:$0xff]
        %v1535 = vld [vmem:[#allocation2 + $0x8] sm:$0xff]
        %v1536 = vld [vmem:[#allocation2 + $0x10] sm:$0xff]
        %v1537 = vld [vmem:[#allocation2 + $0x18] sm:$0xff]
        %v1538 = vsel %vm911, %v1438, %v1466
        %v1539 = vsel %vm912, %v1442, %v1462
        %v1540 = vsel %vm911, %v1439, %v1467
        %v1541 = vsel %vm912, %v1443, %v1463
        %v1542 = vsel %vm911, %v1440, %v1468
        %v1543 = vsel %vm912, %v1444, %v1464
        %v1544 = vsel %vm911, %v1441, %v1469
        %v1545 = vsel %vm912, %v1445, %v1465
        %s1546 = scalar_lea.vmem [#allocation2], 32
        %v1547 = vld [vmem:[%s1546] sm:$0xff]
        %v1548 = vld [vmem:[%s1546 + $0x8] sm:$0xff]
        %v1549 = vld [vmem:[%s1546 + $0x10] sm:$0xff]
        %v1550 = vld [vmem:[%s1546 + $0x18] sm:$0xff]
        %v1552 = vsel %vm952, %v1547, 0
        %v1555 = vsel %vm952, %v1548, 0
        %v1558 = vsel %vm952, %v1549, 0
        %v1561 = vsel %vm952, %v1550, 0
        %1563 = vmatpush.msra.mxu0 0.0
        %1564 = vmatpush.msra.mxu0 0.0
        %1565 = vmatpush.msra.mxu0 0.0
        %1566 = vmatpush.msra.mxu0 0.0
        %1567 = vmatpush.msra.mxu0 0.0
        %1568 = vmatpush.msra.mxu0 0.0
        %1569 = vmatpush.msra.mxu0 0.0
        %1570 = vmatpush.msra.mxu0 0.0
        %1571 = vmatpush.msra.mxu0 0.0
        %1572 = vmatpush.msra.mxu0 0.0
        %1573 = vmatpush.msra.mxu0 0.0
        %1574 = vmatpush.msra.mxu0 0.0
        %1575 = vmatpush.msra.mxu0 %v1544
        %1576 = vmatpush.msra.mxu0 %v1542
        %1577 = vmatpush.msra.mxu0 %v1540
        %1578 = vmatpush.msra.mxu0 %v1538
        %1579 = vmatmul.f32.gmra.mxu0 %v1552
        %v1580 = vpop.f32.mrf.mxu0
        %v1581 = vadd.f32 0.0, %v1580
        %1582 = vmatmul.f32.gmra.mxu0 %v1555
        %v1583 = vpop.f32.mrf.mxu0
        %v1584 = vadd.f32 0.0, %v1583
        %1585 = vmatmul.f32.gmra.mxu0 %v1558
        %v1586 = vpop.f32.mrf.mxu0
        %v1587 = vadd.f32 0.0, %v1586
        %1588 = vmatmul.f32.gmra.mxu0 %v1561
        %v1589 = vpop.f32.mrf.mxu0
        %v1590 = vadd.f32 0.0, %v1589
        %1591 = vdwg.mxu0
        %1592 = vmatpush.msra.mxu0 0.0
        %1593 = vmatpush.msra.mxu0 0.0
        %1594 = vmatpush.msra.mxu0 0.0
        %1595 = vmatpush.msra.mxu0 0.0
        %1596 = vmatpush.msra.mxu0 0.0
        %1597 = vmatpush.msra.mxu0 0.0
        %1598 = vmatpush.msra.mxu0 0.0
        %1599 = vmatpush.msra.mxu0 0.0
        %1600 = vmatpush.msra.mxu0 0.0
        %1601 = vmatpush.msra.mxu0 0.0
        %1602 = vmatpush.msra.mxu0 0.0
        %1603 = vmatpush.msra.mxu0 0.0
        %1604 = vmatpush.msra.mxu0 %v1545
        %1605 = vmatpush.msra.mxu0 %v1543
        %1606 = vmatpush.msra.mxu0 %v1541
        %1607 = vmatpush.msra.mxu0 %v1539
        %1608 = vmatmul.f32.gmra.mxu0 %v1552
        %v1609 = vpop.f32.mrf.mxu0
        %v1610 = vadd.f32 0.0, %v1609
        %1611 = vmatmul.f32.gmra.mxu0 %v1555
        %v1612 = vpop.f32.mrf.mxu0
        %v1613 = vadd.f32 0.0, %v1612
        %1614 = vmatmul.f32.gmra.mxu0 %v1558
        %v1615 = vpop.f32.mrf.mxu0
        %v1616 = vadd.f32 0.0, %v1615
        %1617 = vmatmul.f32.gmra.mxu0 %v1561
        %v1618 = vpop.f32.mrf.mxu0
        %v1619 = vadd.f32 0.0, %v1618
        %1620 = vdwg.mxu0
        %v1622 = vsel %vm952, %v1534, 0
        %v1625 = vsel %vm952, %v1535, 0
        %v1628 = vsel %vm952, %v1536, 0
        %v1631 = vsel %vm952, %v1537, 0
        %1633 = vmatpush.msra.mxu0 0.0
        %1634 = vmatpush.msra.mxu0 0.0
        %1635 = vmatpush.msra.mxu0 0.0
        %1636 = vmatpush.msra.mxu0 0.0
        %1637 = vmatpush.msra.mxu0 0.0
        %1638 = vmatpush.msra.mxu0 0.0
        %1639 = vmatpush.msra.mxu0 0.0
        %1640 = vmatpush.msra.mxu0 0.0
        %1641 = vmatpush.msra.mxu0 0.0
        %1642 = vmatpush.msra.mxu0 0.0
        %1643 = vmatpush.msra.mxu0 0.0
        %1644 = vmatpush.msra.mxu0 0.0
        %1645 = vmatpush.msra.mxu0 %v1532
        %1646 = vmatpush.msra.mxu0 %v1530
        %1647 = vmatpush.msra.mxu0 %v1528
        %1648 = vmatpush.msra.mxu0 %v1526
        %1649 = vmatmul.f32.gmra.mxu0 %v1622
        %v1650 = vpop.f32.mrf.mxu0
        %v1651 = vadd.f32 %v1581, %v1650
        %1652 = vmatmul.f32.gmra.mxu0 %v1625
        %v1653 = vpop.f32.mrf.mxu0
        %v1654 = vadd.f32 %v1584, %v1653
        %1655 = vmatmul.f32.gmra.mxu0 %v1628
        %v1656 = vpop.f32.mrf.mxu0
        %v1657 = vadd.f32 %v1587, %v1656
        %1658 = vmatmul.f32.gmra.mxu0 %v1631
        %v1659 = vpop.f32.mrf.mxu0
        %v1660 = vadd.f32 %v1590, %v1659
        %1661 = vdwg.mxu0
        %1662 = vmatpush.msra.mxu0 0.0
        %1663 = vmatpush.msra.mxu0 0.0
        %1664 = vmatpush.msra.mxu0 0.0
        %1665 = vmatpush.msra.mxu0 0.0
        %1666 = vmatpush.msra.mxu0 0.0
        %1667 = vmatpush.msra.mxu0 0.0
        %1668 = vmatpush.msra.mxu0 0.0
        %1669 = vmatpush.msra.mxu0 0.0
        %1670 = vmatpush.msra.mxu0 0.0
        %1671 = vmatpush.msra.mxu0 0.0
        %1672 = vmatpush.msra.mxu0 0.0
        %1673 = vmatpush.msra.mxu0 0.0
        %1674 = vmatpush.msra.mxu0 %v1533
        %1675 = vmatpush.msra.mxu0 %v1531
        %1676 = vmatpush.msra.mxu0 %v1529
        %1677 = vmatpush.msra.mxu0 %v1527
        %1678 = vmatmul.f32.gmra.mxu0 %v1622
        %v1679 = vpop.f32.mrf.mxu0
        %v1680 = vadd.f32 %v1610, %v1679
        %1681 = vmatmul.f32.gmra.mxu0 %v1625
        %v1682 = vpop.f32.mrf.mxu0
        %v1683 = vadd.f32 %v1613, %v1682
        %1684 = vmatmul.f32.gmra.mxu0 %v1628
        %v1685 = vpop.f32.mrf.mxu0
        %v1686 = vadd.f32 %v1616, %v1685
        %1687 = vmatmul.f32.gmra.mxu0 %v1631
        %v1688 = vpop.f32.mrf.mxu0
        %v1689 = vadd.f32 %v1619, %v1688
        %1690 = vdwg.mxu0
        %s1691 = scalar_lea.vmem [#allocation2], 64
        %v1692 = vld [vmem:[%s1691] sm:$0xff]
        %v1693 = vld [vmem:[%s1691 + $0x8] sm:$0xff]
        %v1694 = vld [vmem:[%s1691 + $0x10] sm:$0xff]
        %v1695 = vld [vmem:[%s1691 + $0x18] sm:$0xff]
        %v1697 = vsel %vm952, %v1692, 0
        %v1700 = vsel %vm952, %v1693, 0
        %v1703 = vsel %vm952, %v1694, 0
        %v1706 = vsel %vm952, %v1695, 0
        %1708 = vmatpush.msra.mxu0 0.0
        %1709 = vmatpush.msra.mxu0 0.0
        %1710 = vmatpush.msra.mxu0 0.0
        %1711 = vmatpush.msra.mxu0 0.0
        %1712 = vmatpush.msra.mxu0 0.0
        %1713 = vmatpush.msra.mxu0 0.0
        %1714 = vmatpush.msra.mxu0 0.0
        %1715 = vmatpush.msra.mxu0 0.0
        %1716 = vmatpush.msra.mxu0 0.0
        %1717 = vmatpush.msra.mxu0 0.0
        %1718 = vmatpush.msra.mxu0 0.0
        %1719 = vmatpush.msra.mxu0 0.0
        %1720 = vmatpush.msra.mxu0 %v1420
        %1721 = vmatpush.msra.mxu0 %v1418
        %1722 = vmatpush.msra.mxu0 %v1416
        %1723 = vmatpush.msra.mxu0 %v1414
        %1724 = vmatmul.f32.gmra.mxu0 %v1697
        %v1725 = vpop.f32.mrf.mxu0
        %v1726 = vadd.f32 0.0, %v1725
        %1727 = vmatmul.f32.gmra.mxu0 %v1700
        %v1728 = vpop.f32.mrf.mxu0
        %v1729 = vadd.f32 0.0, %v1728
        %1730 = vmatmul.f32.gmra.mxu0 %v1703
        %v1731 = vpop.f32.mrf.mxu0
        %v1732 = vadd.f32 0.0, %v1731
        %1733 = vmatmul.f32.gmra.mxu0 %v1706
        %v1734 = vpop.f32.mrf.mxu0
        %v1735 = vadd.f32 0.0, %v1734
        %1736 = vdwg.mxu0
        %1737 = vmatpush.msra.mxu0 0.0
        %1738 = vmatpush.msra.mxu0 0.0
        %1739 = vmatpush.msra.mxu0 0.0
        %1740 = vmatpush.msra.mxu0 0.0
        %1741 = vmatpush.msra.mxu0 0.0
        %1742 = vmatpush.msra.mxu0 0.0
        %1743 = vmatpush.msra.mxu0 0.0
        %1744 = vmatpush.msra.mxu0 0.0
        %1745 = vmatpush.msra.mxu0 0.0
        %1746 = vmatpush.msra.mxu0 0.0
        %1747 = vmatpush.msra.mxu0 0.0
        %1748 = vmatpush.msra.mxu0 0.0
        %1749 = vmatpush.msra.mxu0 %v1421
        %1750 = vmatpush.msra.mxu0 %v1419
        %1751 = vmatpush.msra.mxu0 %v1417
        %1752 = vmatpush.msra.mxu0 %v1415
        %1753 = vmatmul.f32.gmra.mxu0 %v1697
        %v1754 = vpop.f32.mrf.mxu0
        %v1755 = vadd.f32 0.0, %v1754
        %1756 = vmatmul.f32.gmra.mxu0 %v1700
        %v1757 = vpop.f32.mrf.mxu0
        %v1758 = vadd.f32 0.0, %v1757
        %1759 = vmatmul.f32.gmra.mxu0 %v1703
        %v1760 = vpop.f32.mrf.mxu0
        %v1761 = vadd.f32 0.0, %v1760
        %1762 = vmatmul.f32.gmra.mxu0 %v1706
        %v1763 = vpop.f32.mrf.mxu0
        %v1764 = vadd.f32 0.0, %v1763
        %1765 = vdwg.mxu0
        %v1766 = vadd.f32 %v1651, %v1726
        %v1767 = vadd.f32 %v1680, %v1755
        %v1768 = vadd.f32 %v1654, %v1729
        %v1769 = vadd.f32 %v1683, %v1758
        %v1770 = vadd.f32 %v1657, %v1732
        %v1771 = vadd.f32 %v1686, %v1761
        %v1772 = vadd.f32 %v1660, %v1735
        %v1773 = vadd.f32 %v1689, %v1764
        %v1774 = vsel %vm915, %v1466, %v1438
        %v1775 = vsel %vm916, %v1462, %v1442
        %v1776 = vsel %vm915, %v1467, %v1439
        %v1777 = vsel %vm916, %v1463, %v1443
        %v1778 = vsel %vm915, %v1468, %v1440
        %v1779 = vsel %vm916, %v1464, %v1444
        %v1780 = vsel %vm915, %v1469, %v1441
        %v1781 = vsel %vm916, %v1465, %v1445
        %s1782 = scalar_lea.vmem [#allocation2], 96
        %v1783 = vld [vmem:[%s1782] sm:$0xff]
        %v1784 = vld [vmem:[%s1782 + $0x8] sm:$0xff]
        %v1785 = vld [vmem:[%s1782 + $0x10] sm:$0xff]
        %v1786 = vld [vmem:[%s1782 + $0x18] sm:$0xff]
        %v1788 = vsel %vm952, %v1783, 0
        %v1791 = vsel %vm952, %v1784, 0
        %v1794 = vsel %vm952, %v1785, 0
        %v1797 = vsel %vm952, %v1786, 0
        %1799 = vmatpush.msra.mxu0 0.0
        %1800 = vmatpush.msra.mxu0 0.0
        %1801 = vmatpush.msra.mxu0 0.0
        %1802 = vmatpush.msra.mxu0 0.0
        %1803 = vmatpush.msra.mxu0 0.0
        %1804 = vmatpush.msra.mxu0 0.0
        %1805 = vmatpush.msra.mxu0 0.0
        %1806 = vmatpush.msra.mxu0 0.0
        %1807 = vmatpush.msra.mxu0 0.0
        %1808 = vmatpush.msra.mxu0 0.0
        %1809 = vmatpush.msra.mxu0 0.0
        %1810 = vmatpush.msra.mxu0 0.0
        %1811 = vmatpush.msra.mxu0 %v1780
        %1812 = vmatpush.msra.mxu0 %v1778
        %1813 = vmatpush.msra.mxu0 %v1776
        %1814 = vmatpush.msra.mxu0 %v1774
        %1815 = vmatmul.f32.gmra.mxu0 %v1788
        %v1816 = vpop.f32.mrf.mxu0
        %v1817 = vadd.f32 0.0, %v1816
        %1818 = vmatmul.f32.gmra.mxu0 %v1791
        %v1819 = vpop.f32.mrf.mxu0
        %v1820 = vadd.f32 0.0, %v1819
        %1821 = vmatmul.f32.gmra.mxu0 %v1794
        %v1822 = vpop.f32.mrf.mxu0
        %v1823 = vadd.f32 0.0, %v1822
        %1824 = vmatmul.f32.gmra.mxu0 %v1797
        %v1825 = vpop.f32.mrf.mxu0
        %v1826 = vadd.f32 0.0, %v1825
        %1827 = vdwg.mxu0
        %1828 = vmatpush.msra.mxu0 0.0
        %1829 = vmatpush.msra.mxu0 0.0
        %1830 = vmatpush.msra.mxu0 0.0
        %1831 = vmatpush.msra.mxu0 0.0
        %1832 = vmatpush.msra.mxu0 0.0
        %1833 = vmatpush.msra.mxu0 0.0
        %1834 = vmatpush.msra.mxu0 0.0
        %1835 = vmatpush.msra.mxu0 0.0
        %1836 = vmatpush.msra.mxu0 0.0
        %1837 = vmatpush.msra.mxu0 0.0
        %1838 = vmatpush.msra.mxu0 0.0
        %1839 = vmatpush.msra.mxu0 0.0
        %1840 = vmatpush.msra.mxu0 %v1781
        %1841 = vmatpush.msra.mxu0 %v1779
        %1842 = vmatpush.msra.mxu0 %v1777
        %1843 = vmatpush.msra.mxu0 %v1775
        %1844 = vmatmul.f32.gmra.mxu0 %v1788
        %v1845 = vpop.f32.mrf.mxu0
        %v1846 = vadd.f32 0.0, %v1845
        %1847 = vmatmul.f32.gmra.mxu0 %v1791
        %v1848 = vpop.f32.mrf.mxu0
        %v1849 = vadd.f32 0.0, %v1848
        %1850 = vmatmul.f32.gmra.mxu0 %v1794
        %v1851 = vpop.f32.mrf.mxu0
        %v1852 = vadd.f32 0.0, %v1851
        %1853 = vmatmul.f32.gmra.mxu0 %v1797
        %v1854 = vpop.f32.mrf.mxu0
        %v1855 = vadd.f32 0.0, %v1854
        %1856 = vdwg.mxu0
        %v1857 = vadd.f32 %v1766, %v1817
        %v1858 = vadd.f32 %v1767, %v1846
        %v1859 = vadd.f32 %v1768, %v1820
        %v1860 = vadd.f32 %v1769, %v1849
        %v1861 = vadd.f32 %v1770, %v1823
        %v1862 = vadd.f32 %v1771, %v1852
        %v1863 = vadd.f32 %v1772, %v1826
        %v1864 = vadd.f32 %v1773, %v1855
        %v1865 = vsel %vm915, %v1514, %v1486
        %v1866 = vsel %vm916, %v1510, %v1490
        %v1867 = vsel %vm915, %v1515, %v1487
        %v1868 = vsel %vm916, %v1511, %v1491
        %v1869 = vsel %vm915, %v1516, %v1488
        %v1870 = vsel %vm916, %v1512, %v1492
        %v1871 = vsel %vm915, %v1517, %v1489
        %v1872 = vsel %vm916, %v1513, %v1493
        %v1873 = vsel %vm917, %v1414, %v1865
        %v1874 = vsel %vm918, %v1415, %v1866
        %v1875 = vsel %vm917, %v1416, %v1867
        %v1876 = vsel %vm918, %v1417, %v1868
        %v1877 = vsel %vm917, %v1418, %v1869
        %v1878 = vsel %vm918, %v1419, %v1870
        %v1879 = vsel %vm917, %v1420, %v1871
        %v1880 = vsel %vm918, %v1421, %v1872
        %s1881 = scalar_lea.vmem [#allocation2], 128
        %v1882 = vld [vmem:[%s1881] sm:$0xff]
        %v1883 = vld [vmem:[%s1881 + $0x8] sm:$0xff]
        %v1884 = vld [vmem:[%s1881 + $0x10] sm:$0xff]
        %v1885 = vld [vmem:[%s1881 + $0x18] sm:$0xff]
        %v1887 = vsel %vm952, %v1882, 0
        %v1890 = vsel %vm952, %v1883, 0
        %v1893 = vsel %vm952, %v1884, 0
        %v1896 = vsel %vm952, %v1885, 0
        %1898 = vmatpush.msra.mxu0 0.0
        %1899 = vmatpush.msra.mxu0 0.0
        %1900 = vmatpush.msra.mxu0 0.0
        %1901 = vmatpush.msra.mxu0 0.0
        %1902 = vmatpush.msra.mxu0 0.0
        %1903 = vmatpush.msra.mxu0 0.0
        %1904 = vmatpush.msra.mxu0 0.0
        %1905 = vmatpush.msra.mxu0 0.0
        %1906 = vmatpush.msra.mxu0 0.0
        %1907 = vmatpush.msra.mxu0 0.0
        %1908 = vmatpush.msra.mxu0 0.0
        %1909 = vmatpush.msra.mxu0 0.0
        %1910 = vmatpush.msra.mxu0 %v1879
        %1911 = vmatpush.msra.mxu0 %v1877
        %1912 = vmatpush.msra.mxu0 %v1875
        %1913 = vmatpush.msra.mxu0 %v1873
        %1914 = vmatmul.f32.gmra.mxu0 %v1887
        %v1915 = vpop.f32.mrf.mxu0
        %v1916 = vadd.f32 0.0, %v1915
        %1917 = vmatmul.f32.gmra.mxu0 %v1890
        %v1918 = vpop.f32.mrf.mxu0
        %v1919 = vadd.f32 0.0, %v1918
        %1920 = vmatmul.f32.gmra.mxu0 %v1893
        %v1921 = vpop.f32.mrf.mxu0
        %v1922 = vadd.f32 0.0, %v1921
        %1923 = vmatmul.f32.gmra.mxu0 %v1896
        %v1924 = vpop.f32.mrf.mxu0
        %v1925 = vadd.f32 0.0, %v1924
        %1926 = vdwg.mxu0
        %1927 = vmatpush.msra.mxu0 0.0
        %1928 = vmatpush.msra.mxu0 0.0
        %1929 = vmatpush.msra.mxu0 0.0
        %1930 = vmatpush.msra.mxu0 0.0
        %1931 = vmatpush.msra.mxu0 0.0
        %1932 = vmatpush.msra.mxu0 0.0
        %1933 = vmatpush.msra.mxu0 0.0
        %1934 = vmatpush.msra.mxu0 0.0
        %1935 = vmatpush.msra.mxu0 0.0
        %1936 = vmatpush.msra.mxu0 0.0
        %1937 = vmatpush.msra.mxu0 0.0
        %1938 = vmatpush.msra.mxu0 0.0
        %1939 = vmatpush.msra.mxu0 %v1880
        %1940 = vmatpush.msra.mxu0 %v1878
        %1941 = vmatpush.msra.mxu0 %v1876
        %1942 = vmatpush.msra.mxu0 %v1874
        %1943 = vmatmul.f32.gmra.mxu0 %v1887
        %v1944 = vpop.f32.mrf.mxu0
        %v1945 = vadd.f32 0.0, %v1944
        %1946 = vmatmul.f32.gmra.mxu0 %v1890
        %v1947 = vpop.f32.mrf.mxu0
        %v1948 = vadd.f32 0.0, %v1947
        %1949 = vmatmul.f32.gmra.mxu0 %v1893
        %v1950 = vpop.f32.mrf.mxu0
        %v1951 = vadd.f32 0.0, %v1950
        %1952 = vmatmul.f32.gmra.mxu0 %v1896
        %v1953 = vpop.f32.mrf.mxu0
        %v1954 = vadd.f32 0.0, %v1953
        %1955 = vdwg.mxu0
        %v1956 = vadd.f32 %v1857, %v1916
        %v1957 = vadd.f32 %v1858, %v1945
        %v1958 = vadd.f32 %v1859, %v1919
        %v1959 = vadd.f32 %v1860, %v1948
        %v1960 = vadd.f32 %v1861, %v1922
        %v1961 = vadd.f32 %v1862, %v1951
        %v1962 = vadd.f32 %v1863, %v1925
        %v1963 = vadd.f32 %v1864, %v1954
        %v1964 = vld [vmem:[%s4] sm:$0xff]
        %v1965 = vld [vmem:[%s4 + $0x8] sm:$0xff]
        %v1966 = vld [vmem:[%s4 + $0x10] sm:$0xff]
        %v1967 = vld [vmem:[%s4 + $0x18] sm:$0xff]
        %1969 = vset.pattern.permute.xlu0 0
        %1970 = vperm.xlu0 %1969, %v1964
        %v1971 = vpop.permute.xlu0 %1970
        %1974 = vset.pattern.permute.xlu0 0
        %1975 = vperm.xlu0 %1974, %v1965
        %v1976 = vpop.permute.xlu0 %1975
        %1979 = vset.pattern.permute.xlu0 0
        %1980 = vperm.xlu0 %1979, %v1966
        %v1981 = vpop.permute.xlu0 %1980
        %1984 = vset.pattern.permute.xlu0 0
        %1985 = vperm.xlu0 %1984, %v1967
        %v1986 = vpop.permute.xlu0 %1985
        %v1988 = vadd.f32 %v1956, %v1971
        %v1989 = vadd.f32 %v1957, %v1971
        %v1990 = vadd.f32 %v1958, %v1976
        %v1991 = vadd.f32 %v1959, %v1976
        %v1992 = vadd.f32 %v1960, %v1981
        %v1993 = vadd.f32 %v1961, %v1981
        %v1994 = vadd.f32 %v1962, %v1986
        %v1995 = vadd.f32 %v1963, %v1986
        %vm1996 = vcmp.ge.f32.partialorder %v1988, 0.0
        %vm1997 = vcmp.ge.f32.partialorder %v1989, 0.0
        %vm1998 = vcmp.ge.f32.partialorder %v1990, 0.0
        %vm1999 = vcmp.ge.f32.partialorder %v1991, 0.0
        %vm2000 = vcmp.ge.f32.partialorder %v1992, 0.0
        %vm2001 = vcmp.ge.f32.partialorder %v1993, 0.0
        %vm2002 = vcmp.ge.f32.partialorder %v1994, 0.0
        %vm2003 = vcmp.ge.f32.partialorder %v1995, 0.0
        %v2004 = vmul.f32 %v1988, 0.01
        %v2005 = vmul.f32 %v1989, 0.01
        %v2006 = vmul.f32 %v1990, 0.01
        %v2007 = vmul.f32 %v1991, 0.01
        %v2008 = vmul.f32 %v1992, 0.01
        %v2009 = vmul.f32 %v1993, 0.01
        %v2010 = vmul.f32 %v1994, 0.01
        %v2011 = vmul.f32 %v1995, 0.01
        %v2012 = vsel %vm1996, %v1988, %v2004
        %v2013 = vsel %vm1997, %v1989, %v2005
        %v2014 = vsel %vm1998, %v1990, %v2006
        %v2015 = vsel %vm1999, %v1991, %v2007
        %v2016 = vsel %vm2000, %v1992, %v2008
        %v2017 = vsel %vm2001, %v1993, %v2009
        %v2018 = vsel %vm2002, %v1994, %v2010
        %v2019 = vsel %vm2003, %v1995, %v2011
        %2020 = vmatpush.msra.mxu0 %v789
        %2021 = vmatpush.msra.mxu0 %v788
        %2022 = vmatpush.msra.mxu0 %v787
        %2023 = vmatpush.msra.mxu0 %v786
        %2024 = vmatpush.msra.mxu0 %v785
        %2025 = vmatpush.msra.mxu0 %v784
        %2026 = vmatpush.msra.mxu0 %v783
        %2027 = vmatpush.msra.mxu0 %v782
        %2028 = vmatpush.msra.mxu0 %v781
        %2029 = vmatpush.msra.mxu0 %v780
        %2030 = vmatpush.msra.mxu0 %v779
        %2031 = vmatpush.msra.mxu0 %v778
        %2032 = vmatpush.msra.mxu0 %v777
        %2033 = vmatpush.msra.mxu0 %v776
        %2034 = vmatpush.msra.mxu0 %v775
        %2035 = vmatpush.msra.mxu0 %v774
        %2036 = vmatmul.f32.gmra.mxu0 %v2012
        %v2037 = vpop.f32.mrf.mxu0
        %v2038 = vadd.f32 0.0, %v2037
        %2039 = vmatmul.f32.gmra.mxu0 %v2014
        %v2040 = vpop.f32.mrf.mxu0
        %v2041 = vadd.f32 0.0, %v2040
        %2042 = vmatmul.f32.gmra.mxu0 %v2016
        %v2043 = vpop.f32.mrf.mxu0
        %v2044 = vadd.f32 0.0, %v2043
        %2045 = vmatmul.f32.gmra.mxu0 %v2018
        %v2046 = vpop.f32.mrf.mxu0
        %v2047 = vadd.f32 0.0, %v2046
        %2048 = vdwg.mxu0
        %2049 = vmatpush.msra.mxu0 %v805
        %2050 = vmatpush.msra.mxu0 %v804
        %2051 = vmatpush.msra.mxu0 %v803
        %2052 = vmatpush.msra.mxu0 %v802
        %2053 = vmatpush.msra.mxu0 %v801
        %2054 = vmatpush.msra.mxu0 %v800
        %2055 = vmatpush.msra.mxu0 %v799
        %2056 = vmatpush.msra.mxu0 %v798
        %2057 = vmatpush.msra.mxu0 %v797
        %2058 = vmatpush.msra.mxu0 %v796
        %2059 = vmatpush.msra.mxu0 %v795
        %2060 = vmatpush.msra.mxu0 %v794
        %2061 = vmatpush.msra.mxu0 %v793
        %2062 = vmatpush.msra.mxu0 %v792
        %2063 = vmatpush.msra.mxu0 %v791
        %2064 = vmatpush.msra.mxu0 %v790
        %2065 = vmatmul.f32.gmra.mxu0 %v2013
        %v2066 = vpop.f32.mrf.mxu0
        %v2067 = vadd.f32 %v2038, %v2066
        %2068 = vmatmul.f32.gmra.mxu0 %v2015
        %v2069 = vpop.f32.mrf.mxu0
        %v2070 = vadd.f32 %v2041, %v2069
        %2071 = vmatmul.f32.gmra.mxu0 %v2017
        %v2072 = vpop.f32.mrf.mxu0
        %v2073 = vadd.f32 %v2044, %v2072
        %2074 = vmatmul.f32.gmra.mxu0 %v2019
        %v2075 = vpop.f32.mrf.mxu0
        %v2076 = vadd.f32 %v2047, %v2075
        %2077 = vdwg.mxu0
        %v2078 = vmul.f32 %v2067, 0.0078125
        %v2079 = vmul.f32 %v2070, 0.0078125
        %v2080 = vmul.f32 %v2073, 0.0078125
        %v2081 = vmul.f32 %v2076, 0.0078125
        %v2082 = vmul.f32 %v2012, %v2012
        %v2083 = vmul.f32 %v2013, %v2013
        %v2084 = vmul.f32 %v2014, %v2014
        %v2085 = vmul.f32 %v2015, %v2015
        %v2086 = vmul.f32 %v2016, %v2016
        %v2087 = vmul.f32 %v2017, %v2017
        %v2088 = vmul.f32 %v2018, %v2018
        %v2089 = vmul.f32 %v2019, %v2019
        %2090 = vmatpush.msra.mxu0 %v789
        %2091 = vmatpush.msra.mxu0 %v788
        %2092 = vmatpush.msra.mxu0 %v787
        %2093 = vmatpush.msra.mxu0 %v786
        %2094 = vmatpush.msra.mxu0 %v785
        %2095 = vmatpush.msra.mxu0 %v784
        %2096 = vmatpush.msra.mxu0 %v783
        %2097 = vmatpush.msra.mxu0 %v782
        %2098 = vmatpush.msra.mxu0 %v781
        %2099 = vmatpush.msra.mxu0 %v780
        %2100 = vmatpush.msra.mxu0 %v779
        %2101 = vmatpush.msra.mxu0 %v778
        %2102 = vmatpush.msra.mxu0 %v777
        %2103 = vmatpush.msra.mxu0 %v776
        %2104 = vmatpush.msra.mxu0 %v775
        %2105 = vmatpush.msra.mxu0 %v774
        %2106 = vmatmul.f32.gmra.mxu0 %v2082
        %v2107 = vpop.f32.mrf.mxu0
        %v2108 = vadd.f32 0.0, %v2107
        %2109 = vmatmul.f32.gmra.mxu0 %v2084
        %v2110 = vpop.f32.mrf.mxu0
        %v2111 = vadd.f32 0.0, %v2110
        %2112 = vmatmul.f32.gmra.mxu0 %v2086
        %v2113 = vpop.f32.mrf.mxu0
        %v2114 = vadd.f32 0.0, %v2113
        %2115 = vmatmul.f32.gmra.mxu0 %v2088
        %v2116 = vpop.f32.mrf.mxu0
        %v2117 = vadd.f32 0.0, %v2116
        %2118 = vdwg.mxu0
        %2119 = vmatpush.msra.mxu0 %v805
        %2120 = vmatpush.msra.mxu0 %v804
        %2121 = vmatpush.msra.mxu0 %v803
        %2122 = vmatpush.msra.mxu0 %v802
        %2123 = vmatpush.msra.mxu0 %v801
        %2124 = vmatpush.msra.mxu0 %v800
        %2125 = vmatpush.msra.mxu0 %v799
        %2126 = vmatpush.msra.mxu0 %v798
        %2127 = vmatpush.msra.mxu0 %v797
        %2128 = vmatpush.msra.mxu0 %v796
        %2129 = vmatpush.msra.mxu0 %v795
        %2130 = vmatpush.msra.mxu0 %v794
        %2131 = vmatpush.msra.mxu0 %v793
        %2132 = vmatpush.msra.mxu0 %v792
        %2133 = vmatpush.msra.mxu0 %v791
        %2134 = vmatpush.msra.mxu0 %v790
        %2135 = vmatmul.f32.gmra.mxu0 %v2083
        %v2136 = vpop.f32.mrf.mxu0
        %v2137 = vadd.f32 %v2108, %v2136
        %2138 = vmatmul.f32.gmra.mxu0 %v2085
        %v2139 = vpop.f32.mrf.mxu0
        %v2140 = vadd.f32 %v2111, %v2139
        %2141 = vmatmul.f32.gmra.mxu0 %v2087
        %v2142 = vpop.f32.mrf.mxu0
        %v2143 = vadd.f32 %v2114, %v2142
        %2144 = vmatmul.f32.gmra.mxu0 %v2089
        %v2145 = vpop.f32.mrf.mxu0
        %v2146 = vadd.f32 %v2117, %v2145
        %2147 = vdwg.mxu0
        %v2148 = vmul.f32 %v2137, 0.0078125
        %v2149 = vmul.f32 %v2140, 0.0078125
        %v2150 = vmul.f32 %v2143, 0.0078125
        %v2151 = vmul.f32 %v2146, 0.0078125
        %v2152 = vmul.f32 %v2078, %v2078
        %v2153 = vmul.f32 %v2079, %v2079
        %v2154 = vmul.f32 %v2080, %v2080
        %v2155 = vmul.f32 %v2081, %v2081
        %v2156 = vsub.f32 %v2148, %v2152
        %v2157 = vsub.f32 %v2149, %v2153
        %v2158 = vsub.f32 %v2150, %v2154
        %v2159 = vsub.f32 %v2151, %v2155
        %v2160 = vadd.f32 %v2156, 1e-05
        %v2161 = vadd.f32 %v2157, 1e-05
        %v2162 = vadd.f32 %v2158, 1e-05
        %v2163 = vadd.f32 %v2159, 1e-05
        %v2164 = vrsqrt.pop %v2160
        %v2165 = vmul.f32 %v2164, %v2160
        %v2166 = vmul.f32 %v2165, %v2164
        %v2167 = vmul.f32 0.5, %v2166
        %v2168 = vsub.f32 1.5, %v2167
        %v2169 = vmul.f32 %v2164, %v2168
        %vm2170 = vweird.f32 %v2160
        %vm2171 = vweird.f32 %v2164
        %vm2172 = vmor %vm2170, %vm2171
        %v2173 = vsel %vm2172, %v2164, %v2169
        %v2174 = vrsqrt.pop %v2161
        %v2175 = vmul.f32 %v2174, %v2161
        %v2176 = vmul.f32 %v2175, %v2174
        %v2177 = vmul.f32 0.5, %v2176
        %v2178 = vsub.f32 1.5, %v2177
        %v2179 = vmul.f32 %v2174, %v2178
        %vm2180 = vweird.f32 %v2161
        %vm2181 = vweird.f32 %v2174
        %vm2182 = vmor %vm2180, %vm2181
        %v2183 = vsel %vm2182, %v2174, %v2179
        %v2184 = vrsqrt.pop %v2162
        %v2185 = vmul.f32 %v2184, %v2162
        %v2186 = vmul.f32 %v2185, %v2184
        %v2187 = vmul.f32 0.5, %v2186
        %v2188 = vsub.f32 1.5, %v2187
        %v2189 = vmul.f32 %v2184, %v2188
        %vm2190 = vweird.f32 %v2162
        %vm2191 = vweird.f32 %v2184
        %vm2192 = vmor %vm2190, %vm2191
        %v2193 = vsel %vm2192, %v2184, %v2189
        %v2194 = vrsqrt.pop %v2163
        %v2195 = vmul.f32 %v2194, %v2163
        %v2196 = vmul.f32 %v2195, %v2194
        %v2197 = vmul.f32 0.5, %v2196
        %v2198 = vsub.f32 1.5, %v2197
        %v2199 = vmul.f32 %v2194, %v2198
        %vm2200 = vweird.f32 %v2163
        %vm2201 = vweird.f32 %v2194
        %vm2202 = vmor %vm2200, %vm2201
        %v2203 = vsel %vm2202, %v2194, %v2199
        %2205 = vst [vmem:[#allocation1] ss:$4 sm:$0xff] %v806
        %v2206 = vld.sshfl [vmem:[#allocation1] sm:$0xff pattern:$0x73625140]
        %v2207 = vld.sshfl [vmem:[#allocation1 + $0x8] sm:$0xff pattern:$0x73625140]
        %vm2208 = vcmask 15360
        %v2210 = vsel %vm2208, %v2078, 0
        %v2213 = vsel %vm2208, %v2079, 0
        %v2216 = vsel %vm2208, %v2080, 0
        %v2219 = vsel %vm2208, %v2081, 0
        %vm2221 = vcmask 1041408
        %v2222 = vsel %vm2221, %v2206, 0
        %v2224 = vsel %vm2221, %v2207, 0
        %2226 = vmatpush.msra.mxu0 0.0
        %2227 = vmatpush.msra.mxu0 0.0
        %2228 = vmatpush.msra.mxu0 0.0
        %2229 = vmatpush.msra.mxu0 0.0
        %2230 = vmatpush.msra.mxu0 0.0
        %2231 = vmatpush.msra.mxu0 0.0
        %2232 = vmatpush.msra.mxu0 0.0
        %2233 = vmatpush.msra.mxu0 0.0
        %2234 = vmatpush.msra.mxu0 0.0
        %2235 = vmatpush.msra.mxu0 0.0
        %2236 = vmatpush.msra.mxu0 0.0
        %2237 = vmatpush.msra.mxu0 0.0
        %2238 = vmatpush.msra.mxu0 0.0
        %2239 = vmatpush.msra.mxu0 0.0
        %2240 = vmatpush.msra.mxu0 0.0
        %2241 = vmatpush.msra.mxu0 %v2222
        %2242 = vmatmul.f32.gmra.mxu0 %v2210
        %v2243 = vpop.f32.mrf.mxu0
        %v2244 = vadd.f32 0.0, %v2243
        %2245 = vmatmul.f32.gmra.mxu0 %v2213
        %v2246 = vpop.f32.mrf.mxu0
        %v2247 = vadd.f32 0.0, %v2246
        %2248 = vmatmul.f32.gmra.mxu0 %v2216
        %v2249 = vpop.f32.mrf.mxu0
        %v2250 = vadd.f32 0.0, %v2249
        %2251 = vmatmul.f32.gmra.mxu0 %v2219
        %v2252 = vpop.f32.mrf.mxu0
        %v2253 = vadd.f32 0.0, %v2252
        %2254 = vdwg.mxu0
        %2255 = vmatpush.msra.mxu0 0.0
        %2256 = vmatpush.msra.mxu0 0.0
        %2257 = vmatpush.msra.mxu0 0.0
        %2258 = vmatpush.msra.mxu0 0.0
        %2259 = vmatpush.msra.mxu0 0.0
        %2260 = vmatpush.msra.mxu0 0.0
        %2261 = vmatpush.msra.mxu0 0.0
        %2262 = vmatpush.msra.mxu0 0.0
        %2263 = vmatpush.msra.mxu0 0.0
        %2264 = vmatpush.msra.mxu0 0.0
        %2265 = vmatpush.msra.mxu0 0.0
        %2266 = vmatpush.msra.mxu0 0.0
        %2267 = vmatpush.msra.mxu0 0.0
        %2268 = vmatpush.msra.mxu0 0.0
        %2269 = vmatpush.msra.mxu0 0.0
        %2270 = vmatpush.msra.mxu0 %v2224
        %2271 = vmatmul.f32.gmra.mxu0 %v2210
        %v2272 = vpop.f32.mrf.mxu0
        %v2273 = vadd.f32 0.0, %v2272
        %2274 = vmatmul.f32.gmra.mxu0 %v2213
        %v2275 = vpop.f32.mrf.mxu0
        %v2276 = vadd.f32 0.0, %v2275
        %2277 = vmatmul.f32.gmra.mxu0 %v2216
        %v2278 = vpop.f32.mrf.mxu0
        %v2279 = vadd.f32 0.0, %v2278
        %2280 = vmatmul.f32.gmra.mxu0 %v2219
        %v2281 = vpop.f32.mrf.mxu0
        %v2282 = vadd.f32 0.0, %v2281
        %2283 = vdwg.mxu0
        %2284 = vst [vmem:[#allocation1] ss:$4 sm:$0xff] %v806
        %v2285 = vld.sshfl [vmem:[#allocation1] sm:$0xff pattern:$0x73625140]
        %v2286 = vld.sshfl [vmem:[#allocation1 + $0x8] sm:$0xff pattern:$0x73625140]
        %v2288 = vsel %vm2208, %v2173, 0
        %v2291 = vsel %vm2208, %v2183, 0
        %v2294 = vsel %vm2208, %v2193, 0
        %v2297 = vsel %vm2208, %v2203, 0
        %v2299 = vsel %vm2221, %v2285, 0
        %v2301 = vsel %vm2221, %v2286, 0
        %2303 = vmatpush.msra.mxu0 0.0
        %2304 = vmatpush.msra.mxu0 0.0
        %2305 = vmatpush.msra.mxu0 0.0
        %2306 = vmatpush.msra.mxu0 0.0
        %2307 = vmatpush.msra.mxu0 0.0
        %2308 = vmatpush.msra.mxu0 0.0
        %2309 = vmatpush.msra.mxu0 0.0
        %2310 = vmatpush.msra.mxu0 0.0
        %2311 = vmatpush.msra.mxu0 0.0
        %2312 = vmatpush.msra.mxu0 0.0
        %2313 = vmatpush.msra.mxu0 0.0
        %2314 = vmatpush.msra.mxu0 0.0
        %2315 = vmatpush.msra.mxu0 0.0
        %2316 = vmatpush.msra.mxu0 0.0
        %2317 = vmatpush.msra.mxu0 0.0
        %2318 = vmatpush.msra.mxu0 %v2299
        %2319 = vmatmul.f32.gmra.mxu0 %v2288
        %v2320 = vpop.f32.mrf.mxu0
        %v2321 = vadd.f32 0.0, %v2320
        %2322 = vmatmul.f32.gmra.mxu0 %v2291
        %v2323 = vpop.f32.mrf.mxu0
        %v2324 = vadd.f32 0.0, %v2323
        %2325 = vmatmul.f32.gmra.mxu0 %v2294
        %v2326 = vpop.f32.mrf.mxu0
        %v2327 = vadd.f32 0.0, %v2326
        %2328 = vmatmul.f32.gmra.mxu0 %v2297
        %v2329 = vpop.f32.mrf.mxu0
        %v2330 = vadd.f32 0.0, %v2329
        %2331 = vdwg.mxu0
        %2332 = vmatpush.msra.mxu0 0.0
        %2333 = vmatpush.msra.mxu0 0.0
        %2334 = vmatpush.msra.mxu0 0.0
        %2335 = vmatpush.msra.mxu0 0.0
        %2336 = vmatpush.msra.mxu0 0.0
        %2337 = vmatpush.msra.mxu0 0.0
        %2338 = vmatpush.msra.mxu0 0.0
        %2339 = vmatpush.msra.mxu0 0.0
        %2340 = vmatpush.msra.mxu0 0.0
        %2341 = vmatpush.msra.mxu0 0.0
        %2342 = vmatpush.msra.mxu0 0.0
        %2343 = vmatpush.msra.mxu0 0.0
        %2344 = vmatpush.msra.mxu0 0.0
        %2345 = vmatpush.msra.mxu0 0.0
        %2346 = vmatpush.msra.mxu0 0.0
        %2347 = vmatpush.msra.mxu0 %v2301
        %2348 = vmatmul.f32.gmra.mxu0 %v2288
        %v2349 = vpop.f32.mrf.mxu0
        %v2350 = vadd.f32 0.0, %v2349
        %2351 = vmatmul.f32.gmra.mxu0 %v2291
        %v2352 = vpop.f32.mrf.mxu0
        %v2353 = vadd.f32 0.0, %v2352
        %2354 = vmatmul.f32.gmra.mxu0 %v2294
        %v2355 = vpop.f32.mrf.mxu0
        %v2356 = vadd.f32 0.0, %v2355
        %2357 = vmatmul.f32.gmra.mxu0 %v2297
        %v2358 = vpop.f32.mrf.mxu0
        %v2359 = vadd.f32 0.0, %v2358
        %2360 = vdwg.mxu0
        %v2361 = vsub.f32 %v2012, %v2244
        %v2362 = vsub.f32 %v2013, %v2273
        %v2363 = vsub.f32 %v2014, %v2247
        %v2364 = vsub.f32 %v2015, %v2276
        %v2365 = vsub.f32 %v2016, %v2250
        %v2366 = vsub.f32 %v2017, %v2279
        %v2367 = vsub.f32 %v2018, %v2253
        %v2368 = vsub.f32 %v2019, %v2282
        %v2369 = vmul.f32 %v2361, %v2321
        %v2370 = vmul.f32 %v2362, %v2350
        %v2371 = vmul.f32 %v2363, %v2324
        %v2372 = vmul.f32 %v2364, %v2353
        %v2373 = vmul.f32 %v2365, %v2327
        %v2374 = vmul.f32 %v2366, %v2356
        %v2375 = vmul.f32 %v2367, %v2330
        %v2376 = vmul.f32 %v2368, %v2359
        %2377 = vrot.lane.b32.xlu0 %v2369, 127
        %v2378 = vpop.permute.xlu0 %2377
        %2379 = vrot.lane.b32.xlu0 %v2371, 127
        %v2380 = vpop.permute.xlu0 %2379
        %2381 = vrot.lane.b32.xlu0 %v2373, 127
        %v2382 = vpop.permute.xlu0 %2381
        %2383 = vrot.lane.b32.xlu0 %v2375, 127
        %v2384 = vpop.permute.xlu0 %2383
        %2385 = vrot.lane.b32.xlu0 %v2370, 127
        %v2386 = vpop.permute.xlu0 %2385
        %2387 = vrot.lane.b32.xlu0 %v2372, 127
        %v2388 = vpop.permute.xlu0 %2387
        %2389 = vrot.lane.b32.xlu0 %v2374, 127
        %v2390 = vpop.permute.xlu0 %2389
        %2391 = vrot.lane.b32.xlu0 %v2376, 127
        %v2392 = vpop.permute.xlu0 %2391
        %v2393 = vsel %vm825, %v2378, %v2386
        %v2394 = vsel %vm825, %v2380, %v2388
        %v2395 = vsel %vm825, %v2382, %v2390
        %v2396 = vsel %vm825, %v2384, %v2392
        %v2397 = vsel %vm825, %v2386, %v2378
        %v2398 = vsel %vm825, %v2388, %v2380
        %v2399 = vsel %vm825, %v2390, %v2382
        %v2400 = vsel %vm825, %v2392, %v2384
        %2401 = vrot.lane.b32.xlu0 %v2369, 1
        %v2402 = vpop.permute.xlu0 %2401
        %2403 = vrot.lane.b32.xlu0 %v2371, 1
        %v2404 = vpop.permute.xlu0 %2403
        %2405 = vrot.lane.b32.xlu0 %v2373, 1
        %v2406 = vpop.permute.xlu0 %2405
        %2407 = vrot.lane.b32.xlu0 %v2375, 1
        %v2408 = vpop.permute.xlu0 %2407
        %2409 = vrot.lane.b32.xlu0 %v2370, 1
        %v2410 = vpop.permute.xlu0 %2409
        %2411 = vrot.lane.b32.xlu0 %v2372, 1
        %v2412 = vpop.permute.xlu0 %2411
        %2413 = vrot.lane.b32.xlu0 %v2374, 1
        %v2414 = vpop.permute.xlu0 %2413
        %2415 = vrot.lane.b32.xlu0 %v2376, 1
        %v2416 = vpop.permute.xlu0 %2415
        %v2417 = vsel %vm850, %v2402, %v2410
        %v2418 = vsel %vm850, %v2404, %v2412
        %v2419 = vsel %vm850, %v2406, %v2414
        %v2420 = vsel %vm850, %v2408, %v2416
        %v2421 = vsel %vm850, %v2410, %v2402
        %v2422 = vsel %vm850, %v2412, %v2404
        %v2423 = vsel %vm850, %v2414, %v2406
        %v2424 = vsel %vm850, %v2416, %v2408
        %2425 = vrot.lane.b32.xlu0 %v2369, 126
        %v2426 = vpop.permute.xlu0 %2425
        %2427 = vrot.lane.b32.xlu0 %v2371, 126
        %v2428 = vpop.permute.xlu0 %2427
        %2429 = vrot.lane.b32.xlu0 %v2373, 126
        %v2430 = vpop.permute.xlu0 %2429
        %2431 = vrot.lane.b32.xlu0 %v2375, 126
        %v2432 = vpop.permute.xlu0 %2431
        %2433 = vrot.lane.b32.xlu0 %v2370, 126
        %v2434 = vpop.permute.xlu0 %2433
        %2435 = vrot.lane.b32.xlu0 %v2372, 126
        %v2436 = vpop.permute.xlu0 %2435
        %2437 = vrot.lane.b32.xlu0 %v2374, 126
        %v2438 = vpop.permute.xlu0 %2437
        %2439 = vrot.lane.b32.xlu0 %v2376, 126
        %v2440 = vpop.permute.xlu0 %2439
        %v2441 = vsel %vm875, %v2426, %v2434
        %v2442 = vsel %vm875, %v2428, %v2436
        %v2443 = vsel %vm875, %v2430, %v2438
        %v2444 = vsel %vm875, %v2432, %v2440
        %v2445 = vsel %vm875, %v2434, %v2426
        %v2446 = vsel %vm875, %v2436, %v2428
        %v2447 = vsel %vm875, %v2438, %v2430
        %v2448 = vsel %vm875, %v2440, %v2432
        %2449 = vrot.lane.b32.xlu0 %v2369, 2
        %v2450 = vpop.permute.xlu0 %2449
        %2451 = vrot.lane.b32.xlu0 %v2371, 2
        %v2452 = vpop.permute.xlu0 %2451
        %2453 = vrot.lane.b32.xlu0 %v2373, 2
        %v2454 = vpop.permute.xlu0 %2453
        %2455 = vrot.lane.b32.xlu0 %v2375, 2
        %v2456 = vpop.permute.xlu0 %2455
        %2457 = vrot.lane.b32.xlu0 %v2370, 2
        %v2458 = vpop.permute.xlu0 %2457
        %2459 = vrot.lane.b32.xlu0 %v2372, 2
        %v2460 = vpop.permute.xlu0 %2459
        %2461 = vrot.lane.b32.xlu0 %v2374, 2
        %v2462 = vpop.permute.xlu0 %2461
        %2463 = vrot.lane.b32.xlu0 %v2376, 2
        %v2464 = vpop.permute.xlu0 %2463
        %v2465 = vsel %vm900, %v2450, %v2458
        %v2466 = vsel %vm900, %v2452, %v2460
        %v2467 = vsel %vm900, %v2454, %v2462
        %v2468 = vsel %vm900, %v2456, %v2464
        %v2469 = vsel %vm900, %v2458, %v2450
        %v2470 = vsel %vm900, %v2460, %v2452
        %v2471 = vsel %vm900, %v2462, %v2454
        %v2472 = vsel %vm900, %v2464, %v2456
        %v2473 = vsel %vm911, %v2441, %v2469
        %v2474 = vsel %vm912, %v2445, %v2465
        %v2475 = vsel %vm911, %v2442, %v2470
        %v2476 = vsel %vm912, %v2446, %v2466
        %v2477 = vsel %vm911, %v2443, %v2471
        %v2478 = vsel %vm912, %v2447, %v2467
        %v2479 = vsel %vm911, %v2444, %v2472
        %v2480 = vsel %vm912, %v2448, %v2468
        %v2481 = vsel %vm913, %v2369, %v2473
        %v2482 = vsel %vm914, %v2370, %v2474
        %v2483 = vsel %vm913, %v2371, %v2475
        %v2484 = vsel %vm914, %v2372, %v2476
        %v2485 = vsel %vm913, %v2373, %v2477
        %v2486 = vsel %vm914, %v2374, %v2478
        %v2487 = vsel %vm913, %v2375, %v2479
        %v2488 = vsel %vm914, %v2376, %v2480
        %v2489 = vld [vmem:[#allocation5] sm:$0xff]
        %v2490 = vld [vmem:[#allocation5 + $0x8] sm:$0xff]
        %v2491 = vld [vmem:[#allocation5 + $0x10] sm:$0xff]
        %v2492 = vld [vmem:[#allocation5 + $0x18] sm:$0xff]
        %v2493 = vsel %vm911, %v2393, %v2421
        %v2494 = vsel %vm912, %v2397, %v2417
        %v2495 = vsel %vm911, %v2394, %v2422
        %v2496 = vsel %vm912, %v2398, %v2418
        %v2497 = vsel %vm911, %v2395, %v2423
        %v2498 = vsel %vm912, %v2399, %v2419
        %v2499 = vsel %vm911, %v2396, %v2424
        %v2500 = vsel %vm912, %v2400, %v2420
        %s2501 = scalar_lea.vmem [#allocation5], 32
        %v2502 = vld [vmem:[%s2501] sm:$0xff]
        %v2503 = vld [vmem:[%s2501 + $0x8] sm:$0xff]
        %v2504 = vld [vmem:[%s2501 + $0x10] sm:$0xff]
        %v2505 = vld [vmem:[%s2501 + $0x18] sm:$0xff]
        %v2507 = vsel %vm952, %v2502, 0
        %v2510 = vsel %vm952, %v2503, 0
        %v2513 = vsel %vm952, %v2504, 0
        %v2516 = vsel %vm952, %v2505, 0
        %2518 = vmatpush.msra.mxu0 0.0
        %2519 = vmatpush.msra.mxu0 0.0
        %2520 = vmatpush.msra.mxu0 0.0
        %2521 = vmatpush.msra.mxu0 0.0
        %2522 = vmatpush.msra.mxu0 0.0
        %2523 = vmatpush.msra.mxu0 0.0
        %2524 = vmatpush.msra.mxu0 0.0
        %2525 = vmatpush.msra.mxu0 0.0
        %2526 = vmatpush.msra.mxu0 0.0
        %2527 = vmatpush.msra.mxu0 0.0
        %2528 = vmatpush.msra.mxu0 0.0
        %2529 = vmatpush.msra.mxu0 0.0
        %2530 = vmatpush.msra.mxu0 %v2499
        %2531 = vmatpush.msra.mxu0 %v2497
        %2532 = vmatpush.msra.mxu0 %v2495
        %2533 = vmatpush.msra.mxu0 %v2493
        %2534 = vmatmul.f32.gmra.mxu0 %v2507
        %v2535 = vpop.f32.mrf.mxu0
        %v2536 = vadd.f32 0.0, %v2535
        %2537 = vmatmul.f32.gmra.mxu0 %v2510
        %v2538 = vpop.f32.mrf.mxu0
        %v2539 = vadd.f32 0.0, %v2538
        %2540 = vmatmul.f32.gmra.mxu0 %v2513
        %v2541 = vpop.f32.mrf.mxu0
        %v2542 = vadd.f32 0.0, %v2541
        %2543 = vmatmul.f32.gmra.mxu0 %v2516
        %v2544 = vpop.f32.mrf.mxu0
        %v2545 = vadd.f32 0.0, %v2544
        %2546 = vdwg.mxu0
        %2547 = vmatpush.msra.mxu0 0.0
        %2548 = vmatpush.msra.mxu0 0.0
        %2549 = vmatpush.msra.mxu0 0.0
        %2550 = vmatpush.msra.mxu0 0.0
        %2551 = vmatpush.msra.mxu0 0.0
        %2552 = vmatpush.msra.mxu0 0.0
        %2553 = vmatpush.msra.mxu0 0.0
        %2554 = vmatpush.msra.mxu0 0.0
        %2555 = vmatpush.msra.mxu0 0.0
        %2556 = vmatpush.msra.mxu0 0.0
        %2557 = vmatpush.msra.mxu0 0.0
        %2558 = vmatpush.msra.mxu0 0.0
        %2559 = vmatpush.msra.mxu0 %v2500
        %2560 = vmatpush.msra.mxu0 %v2498
        %2561 = vmatpush.msra.mxu0 %v2496
        %2562 = vmatpush.msra.mxu0 %v2494
        %2563 = vmatmul.f32.gmra.mxu0 %v2507
        %v2564 = vpop.f32.mrf.mxu0
        %v2565 = vadd.f32 0.0, %v2564
        %2566 = vmatmul.f32.gmra.mxu0 %v2510
        %v2567 = vpop.f32.mrf.mxu0
        %v2568 = vadd.f32 0.0, %v2567
        %2569 = vmatmul.f32.gmra.mxu0 %v2513
        %v2570 = vpop.f32.mrf.mxu0
        %v2571 = vadd.f32 0.0, %v2570
        %2572 = vmatmul.f32.gmra.mxu0 %v2516
        %v2573 = vpop.f32.mrf.mxu0
        %v2574 = vadd.f32 0.0, %v2573
        %2575 = vdwg.mxu0
        %v2577 = vsel %vm952, %v2489, 0
        %v2580 = vsel %vm952, %v2490, 0
        %v2583 = vsel %vm952, %v2491, 0
        %v2586 = vsel %vm952, %v2492, 0
        %2588 = vmatpush.msra.mxu0 0.0
        %2589 = vmatpush.msra.mxu0 0.0
        %2590 = vmatpush.msra.mxu0 0.0
        %2591 = vmatpush.msra.mxu0 0.0
        %2592 = vmatpush.msra.mxu0 0.0
        %2593 = vmatpush.msra.mxu0 0.0
        %2594 = vmatpush.msra.mxu0 0.0
        %2595 = vmatpush.msra.mxu0 0.0
        %2596 = vmatpush.msra.mxu0 0.0
        %2597 = vmatpush.msra.mxu0 0.0
        %2598 = vmatpush.msra.mxu0 0.0
        %2599 = vmatpush.msra.mxu0 0.0
        %2600 = vmatpush.msra.mxu0 %v2487
        %2601 = vmatpush.msra.mxu0 %v2485
        %2602 = vmatpush.msra.mxu0 %v2483
        %2603 = vmatpush.msra.mxu0 %v2481
        %2604 = vmatmul.f32.gmra.mxu0 %v2577
        %v2605 = vpop.f32.mrf.mxu0
        %v2606 = vadd.f32 %v2536, %v2605
        %2607 = vmatmul.f32.gmra.mxu0 %v2580
        %v2608 = vpop.f32.mrf.mxu0
        %v2609 = vadd.f32 %v2539, %v2608
        %2610 = vmatmul.f32.gmra.mxu0 %v2583
        %v2611 = vpop.f32.mrf.mxu0
        %v2612 = vadd.f32 %v2542, %v2611
        %2613 = vmatmul.f32.gmra.mxu0 %v2586
        %v2614 = vpop.f32.mrf.mxu0
        %v2615 = vadd.f32 %v2545, %v2614
        %2616 = vdwg.mxu0
        %2617 = vmatpush.msra.mxu0 0.0
        %2618 = vmatpush.msra.mxu0 0.0
        %2619 = vmatpush.msra.mxu0 0.0
        %2620 = vmatpush.msra.mxu0 0.0
        %2621 = vmatpush.msra.mxu0 0.0
        %2622 = vmatpush.msra.mxu0 0.0
        %2623 = vmatpush.msra.mxu0 0.0
        %2624 = vmatpush.msra.mxu0 0.0
        %2625 = vmatpush.msra.mxu0 0.0
        %2626 = vmatpush.msra.mxu0 0.0
        %2627 = vmatpush.msra.mxu0 0.0
        %2628 = vmatpush.msra.mxu0 0.0
        %2629 = vmatpush.msra.mxu0 %v2488
        %2630 = vmatpush.msra.mxu0 %v2486
        %2631 = vmatpush.msra.mxu0 %v2484
        %2632 = vmatpush.msra.mxu0 %v2482
        %2633 = vmatmul.f32.gmra.mxu0 %v2577
        %v2634 = vpop.f32.mrf.mxu0
        %v2635 = vadd.f32 %v2565, %v2634
        %2636 = vmatmul.f32.gmra.mxu0 %v2580
        %v2637 = vpop.f32.mrf.mxu0
        %v2638 = vadd.f32 %v2568, %v2637
        %2639 = vmatmul.f32.gmra.mxu0 %v2583
        %v2640 = vpop.f32.mrf.mxu0
        %v2641 = vadd.f32 %v2571, %v2640
        %2642 = vmatmul.f32.gmra.mxu0 %v2586
        %v2643 = vpop.f32.mrf.mxu0
        %v2644 = vadd.f32 %v2574, %v2643
        %2645 = vdwg.mxu0
        %s2646 = scalar_lea.vmem [#allocation5], 64
        %v2647 = vld [vmem:[%s2646] sm:$0xff]
        %v2648 = vld [vmem:[%s2646 + $0x8] sm:$0xff]
        %v2649 = vld [vmem:[%s2646 + $0x10] sm:$0xff]
        %v2650 = vld [vmem:[%s2646 + $0x18] sm:$0xff]
        %v2652 = vsel %vm952, %v2647, 0
        %v2655 = vsel %vm952, %v2648, 0
        %v2658 = vsel %vm952, %v2649, 0
        %v2661 = vsel %vm952, %v2650, 0
        %2663 = vmatpush.msra.mxu0 0.0
        %2664 = vmatpush.msra.mxu0 0.0
        %2665 = vmatpush.msra.mxu0 0.0
        %2666 = vmatpush.msra.mxu0 0.0
        %2667 = vmatpush.msra.mxu0 0.0
        %2668 = vmatpush.msra.mxu0 0.0
        %2669 = vmatpush.msra.mxu0 0.0
        %2670 = vmatpush.msra.mxu0 0.0
        %2671 = vmatpush.msra.mxu0 0.0
        %2672 = vmatpush.msra.mxu0 0.0
        %2673 = vmatpush.msra.mxu0 0.0
        %2674 = vmatpush.msra.mxu0 0.0
        %2675 = vmatpush.msra.mxu0 %v2375
        %2676 = vmatpush.msra.mxu0 %v2373
        %2677 = vmatpush.msra.mxu0 %v2371
        %2678 = vmatpush.msra.mxu0 %v2369
        %2679 = vmatmul.f32.gmra.mxu0 %v2652
        %v2680 = vpop.f32.mrf.mxu0
        %v2681 = vadd.f32 0.0, %v2680
        %2682 = vmatmul.f32.gmra.mxu0 %v2655
        %v2683 = vpop.f32.mrf.mxu0
        %v2684 = vadd.f32 0.0, %v2683
        %2685 = vmatmul.f32.gmra.mxu0 %v2658
        %v2686 = vpop.f32.mrf.mxu0
        %v2687 = vadd.f32 0.0, %v2686
        %2688 = vmatmul.f32.gmra.mxu0 %v2661
        %v2689 = vpop.f32.mrf.mxu0
        %v2690 = vadd.f32 0.0, %v2689
        %2691 = vdwg.mxu0
        %2692 = vmatpush.msra.mxu0 0.0
        %2693 = vmatpush.msra.mxu0 0.0
        %2694 = vmatpush.msra.mxu0 0.0
        %2695 = vmatpush.msra.mxu0 0.0
        %2696 = vmatpush.msra.mxu0 0.0
        %2697 = vmatpush.msra.mxu0 0.0
        %2698 = vmatpush.msra.mxu0 0.0
        %2699 = vmatpush.msra.mxu0 0.0
        %2700 = vmatpush.msra.mxu0 0.0
        %2701 = vmatpush.msra.mxu0 0.0
        %2702 = vmatpush.msra.mxu0 0.0
        %2703 = vmatpush.msra.mxu0 0.0
        %2704 = vmatpush.msra.mxu0 %v2376
        %2705 = vmatpush.msra.mxu0 %v2374
        %2706 = vmatpush.msra.mxu0 %v2372
        %2707 = vmatpush.msra.mxu0 %v2370
        %2708 = vmatmul.f32.gmra.mxu0 %v2652
        %v2709 = vpop.f32.mrf.mxu0
        %v2710 = vadd.f32 0.0, %v2709
        %2711 = vmatmul.f32.gmra.mxu0 %v2655
        %v2712 = vpop.f32.mrf.mxu0
        %v2713 = vadd.f32 0.0, %v2712
        %2714 = vmatmul.f32.gmra.mxu0 %v2658
        %v2715 = vpop.f32.mrf.mxu0
        %v2716 = vadd.f32 0.0, %v2715
        %2717 = vmatmul.f32.gmra.mxu0 %v2661
        %v2718 = vpop.f32.mrf.mxu0
        %v2719 = vadd.f32 0.0, %v2718
        %2720 = vdwg.mxu0
        %v2721 = vadd.f32 %v2606, %v2681
        %v2722 = vadd.f32 %v2635, %v2710
        %v2723 = vadd.f32 %v2609, %v2684
        %v2724 = vadd.f32 %v2638, %v2713
        %v2725 = vadd.f32 %v2612, %v2687
        %v2726 = vadd.f32 %v2641, %v2716
        %v2727 = vadd.f32 %v2615, %v2690
        %v2728 = vadd.f32 %v2644, %v2719
        %v2729 = vsel %vm915, %v2421, %v2393
        %v2730 = vsel %vm916, %v2417, %v2397
        %v2731 = vsel %vm915, %v2422, %v2394
        %v2732 = vsel %vm916, %v2418, %v2398
        %v2733 = vsel %vm915, %v2423, %v2395
        %v2734 = vsel %vm916, %v2419, %v2399
        %v2735 = vsel %vm915, %v2424, %v2396
        %v2736 = vsel %vm916, %v2420, %v2400
        %s2737 = scalar_lea.vmem [#allocation5], 96
        %v2738 = vld [vmem:[%s2737] sm:$0xff]
        %v2739 = vld [vmem:[%s2737 + $0x8] sm:$0xff]
        %v2740 = vld [vmem:[%s2737 + $0x10] sm:$0xff]
        %v2741 = vld [vmem:[%s2737 + $0x18] sm:$0xff]
        %v2743 = vsel %vm952, %v2738, 0
        %v2746 = vsel %vm952, %v2739, 0
        %v2749 = vsel %vm952, %v2740, 0
        %v2752 = vsel %vm952, %v2741, 0
        %2754 = vmatpush.msra.mxu0 0.0
        %2755 = vmatpush.msra.mxu0 0.0
        %2756 = vmatpush.msra.mxu0 0.0
        %2757 = vmatpush.msra.mxu0 0.0
        %2758 = vmatpush.msra.mxu0 0.0
        %2759 = vmatpush.msra.mxu0 0.0
        %2760 = vmatpush.msra.mxu0 0.0
        %2761 = vmatpush.msra.mxu0 0.0
        %2762 = vmatpush.msra.mxu0 0.0
        %2763 = vmatpush.msra.mxu0 0.0
        %2764 = vmatpush.msra.mxu0 0.0
        %2765 = vmatpush.msra.mxu0 0.0
        %2766 = vmatpush.msra.mxu0 %v2735
        %2767 = vmatpush.msra.mxu0 %v2733
        %2768 = vmatpush.msra.mxu0 %v2731
        %2769 = vmatpush.msra.mxu0 %v2729
        %2770 = vmatmul.f32.gmra.mxu0 %v2743
        %v2771 = vpop.f32.mrf.mxu0
        %v2772 = vadd.f32 0.0, %v2771
        %2773 = vmatmul.f32.gmra.mxu0 %v2746
        %v2774 = vpop.f32.mrf.mxu0
        %v2775 = vadd.f32 0.0, %v2774
        %2776 = vmatmul.f32.gmra.mxu0 %v2749
        %v2777 = vpop.f32.mrf.mxu0
        %v2778 = vadd.f32 0.0, %v2777
        %2779 = vmatmul.f32.gmra.mxu0 %v2752
        %v2780 = vpop.f32.mrf.mxu0
        %v2781 = vadd.f32 0.0, %v2780
        %2782 = vdwg.mxu0
        %2783 = vmatpush.msra.mxu0 0.0
        %2784 = vmatpush.msra.mxu0 0.0
        %2785 = vmatpush.msra.mxu0 0.0
        %2786 = vmatpush.msra.mxu0 0.0
        %2787 = vmatpush.msra.mxu0 0.0
        %2788 = vmatpush.msra.mxu0 0.0
        %2789 = vmatpush.msra.mxu0 0.0
        %2790 = vmatpush.msra.mxu0 0.0
        %2791 = vmatpush.msra.mxu0 0.0
        %2792 = vmatpush.msra.mxu0 0.0
        %2793 = vmatpush.msra.mxu0 0.0
        %2794 = vmatpush.msra.mxu0 0.0
        %2795 = vmatpush.msra.mxu0 %v2736
        %2796 = vmatpush.msra.mxu0 %v2734
        %2797 = vmatpush.msra.mxu0 %v2732
        %2798 = vmatpush.msra.mxu0 %v2730
        %2799 = vmatmul.f32.gmra.mxu0 %v2743
        %v2800 = vpop.f32.mrf.mxu0
        %v2801 = vadd.f32 0.0, %v2800
        %2802 = vmatmul.f32.gmra.mxu0 %v2746
        %v2803 = vpop.f32.mrf.mxu0
        %v2804 = vadd.f32 0.0, %v2803
        %2805 = vmatmul.f32.gmra.mxu0 %v2749
        %v2806 = vpop.f32.mrf.mxu0
        %v2807 = vadd.f32 0.0, %v2806
        %2808 = vmatmul.f32.gmra.mxu0 %v2752
        %v2809 = vpop.f32.mrf.mxu0
        %v2810 = vadd.f32 0.0, %v2809
        %2811 = vdwg.mxu0
        %v2812 = vadd.f32 %v2721, %v2772
        %v2813 = vadd.f32 %v2722, %v2801
        %v2814 = vadd.f32 %v2723, %v2775
        %v2815 = vadd.f32 %v2724, %v2804
        %v2816 = vadd.f32 %v2725, %v2778
        %v2817 = vadd.f32 %v2726, %v2807
        %v2818 = vadd.f32 %v2727, %v2781
        %v2819 = vadd.f32 %v2728, %v2810
        %v2820 = vsel %vm915, %v2469, %v2441
        %v2821 = vsel %vm916, %v2465, %v2445
        %v2822 = vsel %vm915, %v2470, %v2442
        %v2823 = vsel %vm916, %v2466, %v2446
        %v2824 = vsel %vm915, %v2471, %v2443
        %v2825 = vsel %vm916, %v2467, %v2447
        %v2826 = vsel %vm915, %v2472, %v2444
        %v2827 = vsel %vm916, %v2468, %v2448
        %v2828 = vsel %vm917, %v2369, %v2820
        %v2829 = vsel %vm918, %v2370, %v2821
        %v2830 = vsel %vm917, %v2371, %v2822
        %v2831 = vsel %vm918, %v2372, %v2823
        %v2832 = vsel %vm917, %v2373, %v2824
        %v2833 = vsel %vm918, %v2374, %v2825
        %v2834 = vsel %vm917, %v2375, %v2826
        %v2835 = vsel %vm918, %v2376, %v2827
        %s2836 = scalar_lea.vmem [#allocation5], 128
        %v2837 = vld [vmem:[%s2836] sm:$0xff]
        %v2838 = vld [vmem:[%s2836 + $0x8] sm:$0xff]
        %v2839 = vld [vmem:[%s2836 + $0x10] sm:$0xff]
        %v2840 = vld [vmem:[%s2836 + $0x18] sm:$0xff]
        %v2842 = vsel %vm952, %v2837, 0
        %v2845 = vsel %vm952, %v2838, 0
        %v2848 = vsel %vm952, %v2839, 0
        %v2851 = vsel %vm952, %v2840, 0
        %2853 = vmatpush.msra.mxu0 0.0
        %2854 = vmatpush.msra.mxu0 0.0
        %2855 = vmatpush.msra.mxu0 0.0
        %2856 = vmatpush.msra.mxu0 0.0
        %2857 = vmatpush.msra.mxu0 0.0
        %2858 = vmatpush.msra.mxu0 0.0
        %2859 = vmatpush.msra.mxu0 0.0
        %2860 = vmatpush.msra.mxu0 0.0
        %2861 = vmatpush.msra.mxu0 0.0
        %2862 = vmatpush.msra.mxu0 0.0
        %2863 = vmatpush.msra.mxu0 0.0
        %2864 = vmatpush.msra.mxu0 0.0
        %2865 = vmatpush.msra.mxu0 %v2834
        %2866 = vmatpush.msra.mxu0 %v2832
        %2867 = vmatpush.msra.mxu0 %v2830
        %2868 = vmatpush.msra.mxu0 %v2828
        %2869 = vmatmul.f32.gmra.mxu0 %v2842
        %v2870 = vpop.f32.mrf.mxu0
        %v2871 = vadd.f32 0.0, %v2870
        %2872 = vmatmul.f32.gmra.mxu0 %v2845
        %v2873 = vpop.f32.mrf.mxu0
        %v2874 = vadd.f32 0.0, %v2873
        %2875 = vmatmul.f32.gmra.mxu0 %v2848
        %v2876 = vpop.f32.mrf.mxu0
        %v2877 = vadd.f32 0.0, %v2876
        %2878 = vmatmul.f32.gmra.mxu0 %v2851
        %v2879 = vpop.f32.mrf.mxu0
        %v2880 = vadd.f32 0.0, %v2879
        %2881 = vdwg.mxu0
        %2882 = vmatpush.msra.mxu0 0.0
        %2883 = vmatpush.msra.mxu0 0.0
        %2884 = vmatpush.msra.mxu0 0.0
        %2885 = vmatpush.msra.mxu0 0.0
        %2886 = vmatpush.msra.mxu0 0.0
        %2887 = vmatpush.msra.mxu0 0.0
        %2888 = vmatpush.msra.mxu0 0.0
        %2889 = vmatpush.msra.mxu0 0.0
        %2890 = vmatpush.msra.mxu0 0.0
        %2891 = vmatpush.msra.mxu0 0.0
        %2892 = vmatpush.msra.mxu0 0.0
        %2893 = vmatpush.msra.mxu0 0.0
        %2894 = vmatpush.msra.mxu0 %v2835
        %2895 = vmatpush.msra.mxu0 %v2833
        %2896 = vmatpush.msra.mxu0 %v2831
        %2897 = vmatpush.msra.mxu0 %v2829
        %2898 = vmatmul.f32.gmra.mxu0 %v2842
        %v2899 = vpop.f32.mrf.mxu0
        %v2900 = vadd.f32 0.0, %v2899
        %2901 = vmatmul.f32.gmra.mxu0 %v2845
        %v2902 = vpop.f32.mrf.mxu0
        %v2903 = vadd.f32 0.0, %v2902
        %2904 = vmatmul.f32.gmra.mxu0 %v2848
        %v2905 = vpop.f32.mrf.mxu0
        %v2906 = vadd.f32 0.0, %v2905
        %2907 = vmatmul.f32.gmra.mxu0 %v2851
        %v2908 = vpop.f32.mrf.mxu0
        %v2909 = vadd.f32 0.0, %v2908
        %2910 = vdwg.mxu0
        %v2911 = vadd.f32 %v2812, %v2871
        %v2912 = vadd.f32 %v2813, %v2900
        %v2913 = vadd.f32 %v2814, %v2874
        %v2914 = vadd.f32 %v2815, %v2903
        %v2915 = vadd.f32 %v2816, %v2877
        %v2916 = vadd.f32 %v2817, %v2906
        %v2917 = vadd.f32 %v2818, %v2880
        %v2918 = vadd.f32 %v2819, %v2909
        %v2919 = vld [vmem:[%s6] sm:$0xff]
        %v2920 = vld [vmem:[%s6 + $0x8] sm:$0xff]
        %v2921 = vld [vmem:[%s6 + $0x10] sm:$0xff]
        %v2922 = vld [vmem:[%s6 + $0x18] sm:$0xff]
        %2924 = vset.pattern.permute.xlu0 0
        %2925 = vperm.xlu0 %2924, %v2919
        %v2926 = vpop.permute.xlu0 %2925
        %2929 = vset.pattern.permute.xlu0 0
        %2930 = vperm.xlu0 %2929, %v2920
        %v2931 = vpop.permute.xlu0 %2930
        %2934 = vset.pattern.permute.xlu0 0
        %2935 = vperm.xlu0 %2934, %v2921
        %v2936 = vpop.permute.xlu0 %2935
        %2939 = vset.pattern.permute.xlu0 0
        %2940 = vperm.xlu0 %2939, %v2922
        %v2941 = vpop.permute.xlu0 %2940
        %v2943 = vadd.f32 %v2911, %v2926
        %v2944 = vadd.f32 %v2912, %v2926
        %v2945 = vadd.f32 %v2913, %v2931
        %v2946 = vadd.f32 %v2914, %v2931
        %v2947 = vadd.f32 %v2915, %v2936
        %v2948 = vadd.f32 %v2916, %v2936
        %v2949 = vadd.f32 %v2917, %v2941
        %v2950 = vadd.f32 %v2918, %v2941
        %vm2951 = vcmp.ge.f32.partialorder %v2943, 0.0
        %vm2952 = vcmp.ge.f32.partialorder %v2944, 0.0
        %vm2953 = vcmp.ge.f32.partialorder %v2945, 0.0
        %vm2954 = vcmp.ge.f32.partialorder %v2946, 0.0
        %vm2955 = vcmp.ge.f32.partialorder %v2947, 0.0
        %vm2956 = vcmp.ge.f32.partialorder %v2948, 0.0
        %vm2957 = vcmp.ge.f32.partialorder %v2949, 0.0
        %vm2958 = vcmp.ge.f32.partialorder %v2950, 0.0
        %v2959 = vmul.f32 %v2943, 0.01
        %v2960 = vmul.f32 %v2944, 0.01
        %v2961 = vmul.f32 %v2945, 0.01
        %v2962 = vmul.f32 %v2946, 0.01
        %v2963 = vmul.f32 %v2947, 0.01
        %v2964 = vmul.f32 %v2948, 0.01
        %v2965 = vmul.f32 %v2949, 0.01
        %v2966 = vmul.f32 %v2950, 0.01
        %v2967 = vsel %vm2951, %v2943, %v2959
        %v2968 = vsel %vm2952, %v2944, %v2960
        %v2969 = vsel %vm2953, %v2945, %v2961
        %v2970 = vsel %vm2954, %v2946, %v2962
        %v2971 = vsel %vm2955, %v2947, %v2963
        %v2972 = vsel %vm2956, %v2948, %v2964
        %v2973 = vsel %vm2957, %v2949, %v2965
        %v2974 = vsel %vm2958, %v2950, %v2966
        %2975 = vrot.lane.b32.xlu0 %v2967, 127
        %v2976 = vpop.permute.xlu0 %2975
        %2977 = vrot.lane.b32.xlu0 %v2969, 127
        %v2978 = vpop.permute.xlu0 %2977
        %2979 = vrot.lane.b32.xlu0 %v2971, 127
        %v2980 = vpop.permute.xlu0 %2979
        %2981 = vrot.lane.b32.xlu0 %v2973, 127
        %v2982 = vpop.permute.xlu0 %2981
        %2983 = vrot.lane.b32.xlu0 %v2968, 127
        %v2984 = vpop.permute.xlu0 %2983
        %2985 = vrot.lane.b32.xlu0 %v2970, 127
        %v2986 = vpop.permute.xlu0 %2985
        %2987 = vrot.lane.b32.xlu0 %v2972, 127
        %v2988 = vpop.permute.xlu0 %2987
        %2989 = vrot.lane.b32.xlu0 %v2974, 127
        %v2990 = vpop.permute.xlu0 %2989
        %v2991 = vsel %vm825, %v2976, %v2984
        %v2992 = vsel %vm825, %v2978, %v2986
        %v2993 = vsel %vm825, %v2980, %v2988
        %v2994 = vsel %vm825, %v2982, %v2990
        %v2995 = vsel %vm825, %v2984, %v2976
        %v2996 = vsel %vm825, %v2986, %v2978
        %v2997 = vsel %vm825, %v2988, %v2980
        %v2998 = vsel %vm825, %v2990, %v2982
        %2999 = vrot.lane.b32.xlu0 %v2967, 1
        %v3000 = vpop.permute.xlu0 %2999
        %3001 = vrot.lane.b32.xlu0 %v2969, 1
        %v3002 = vpop.permute.xlu0 %3001
        %3003 = vrot.lane.b32.xlu0 %v2971, 1
        %v3004 = vpop.permute.xlu0 %3003
        %3005 = vrot.lane.b32.xlu0 %v2973, 1
        %v3006 = vpop.permute.xlu0 %3005
        %3007 = vrot.lane.b32.xlu0 %v2968, 1
        %v3008 = vpop.permute.xlu0 %3007
        %3009 = vrot.lane.b32.xlu0 %v2970, 1
        %v3010 = vpop.permute.xlu0 %3009
        %3011 = vrot.lane.b32.xlu0 %v2972, 1
        %v3012 = vpop.permute.xlu0 %3011
        %3013 = vrot.lane.b32.xlu0 %v2974, 1
        %v3014 = vpop.permute.xlu0 %3013
        %v3015 = vsel %vm850, %v3000, %v3008
        %v3016 = vsel %vm850, %v3002, %v3010
        %v3017 = vsel %vm850, %v3004, %v3012
        %v3018 = vsel %vm850, %v3006, %v3014
        %v3019 = vsel %vm850, %v3008, %v3000
        %v3020 = vsel %vm850, %v3010, %v3002
        %v3021 = vsel %vm850, %v3012, %v3004
        %v3022 = vsel %vm850, %v3014, %v3006
        %3023 = vrot.lane.b32.xlu0 %v2967, 126
        %v3024 = vpop.permute.xlu0 %3023
        %3025 = vrot.lane.b32.xlu0 %v2969, 126
        %v3026 = vpop.permute.xlu0 %3025
        %3027 = vrot.lane.b32.xlu0 %v2971, 126
        %v3028 = vpop.permute.xlu0 %3027
        %3029 = vrot.lane.b32.xlu0 %v2973, 126
        %v3030 = vpop.permute.xlu0 %3029
        %3031 = vrot.lane.b32.xlu0 %v2968, 126
        %v3032 = vpop.permute.xlu0 %3031
        %3033 = vrot.lane.b32.xlu0 %v2970, 126
        %v3034 = vpop.permute.xlu0 %3033
        %3035 = vrot.lane.b32.xlu0 %v2972, 126
        %v3036 = vpop.permute.xlu0 %3035
        %3037 = vrot.lane.b32.xlu0 %v2974, 126
        %v3038 = vpop.permute.xlu0 %3037
        %v3039 = vsel %vm875, %v3024, %v3032
        %v3040 = vsel %vm875, %v3026, %v3034
        %v3041 = vsel %vm875, %v3028, %v3036
        %v3042 = vsel %vm875, %v3030, %v3038
        %v3043 = vsel %vm875, %v3032, %v3024
        %v3044 = vsel %vm875, %v3034, %v3026
        %v3045 = vsel %vm875, %v3036, %v3028
        %v3046 = vsel %vm875, %v3038, %v3030
        %3047 = vrot.lane.b32.xlu0 %v2967, 2
        %v3048 = vpop.permute.xlu0 %3047
        %3049 = vrot.lane.b32.xlu0 %v2969, 2
        %v3050 = vpop.permute.xlu0 %3049
        %3051 = vrot.lane.b32.xlu0 %v2971, 2
        %v3052 = vpop.permute.xlu0 %3051
        %3053 = vrot.lane.b32.xlu0 %v2973, 2
        %v3054 = vpop.permute.xlu0 %3053
        %3055 = vrot.lane.b32.xlu0 %v2968, 2
        %v3056 = vpop.permute.xlu0 %3055
        %3057 = vrot.lane.b32.xlu0 %v2970, 2
        %v3058 = vpop.permute.xlu0 %3057
        %3059 = vrot.lane.b32.xlu0 %v2972, 2
        %v3060 = vpop.permute.xlu0 %3059
        %3061 = vrot.lane.b32.xlu0 %v2974, 2
        %v3062 = vpop.permute.xlu0 %3061
        %v3063 = vsel %vm900, %v3048, %v3056
        %v3064 = vsel %vm900, %v3050, %v3058
        %v3065 = vsel %vm900, %v3052, %v3060
        %v3066 = vsel %vm900, %v3054, %v3062
        %v3067 = vsel %vm900, %v3056, %v3048
        %v3068 = vsel %vm900, %v3058, %v3050
        %v3069 = vsel %vm900, %v3060, %v3052
        %v3070 = vsel %vm900, %v3062, %v3054
        %v3071 = vsel %vm911, %v3039, %v3067
        %v3072 = vsel %vm912, %v3043, %v3063
        %v3073 = vsel %vm911, %v3040, %v3068
        %v3074 = vsel %vm912, %v3044, %v3064
        %v3075 = vsel %vm911, %v3041, %v3069
        %v3076 = vsel %vm912, %v3045, %v3065
        %v3077 = vsel %vm911, %v3042, %v3070
        %v3078 = vsel %vm912, %v3046, %v3066
        %v3079 = vsel %vm913, %v2967, %v3071
        %v3080 = vsel %vm914, %v2968, %v3072
        %v3081 = vsel %vm913, %v2969, %v3073
        %v3082 = vsel %vm914, %v2970, %v3074
        %v3083 = vsel %vm913, %v2971, %v3075
        %v3084 = vsel %vm914, %v2972, %v3076
        %v3085 = vsel %vm913, %v2973, %v3077
        %v3086 = vsel %vm914, %v2974, %v3078
        %v3087 = vld [vmem:[#allocation7] sm:$0xff]
        %v3088 = vld [vmem:[#allocation7 + $0x8] sm:$0xff]
        %v3089 = vld [vmem:[#allocation7 + $0x10] sm:$0xff]
        %v3090 = vld [vmem:[#allocation7 + $0x18] sm:$0xff]
        %v3091 = vsel %vm911, %v2991, %v3019
        %v3092 = vsel %vm912, %v2995, %v3015
        %v3093 = vsel %vm911, %v2992, %v3020
        %v3094 = vsel %vm912, %v2996, %v3016
        %v3095 = vsel %vm911, %v2993, %v3021
        %v3096 = vsel %vm912, %v2997, %v3017
        %v3097 = vsel %vm911, %v2994, %v3022
        %v3098 = vsel %vm912, %v2998, %v3018
        %s3099 = scalar_lea.vmem [#allocation7], 32
        %v3100 = vld [vmem:[%s3099] sm:$0xff]
        %v3101 = vld [vmem:[%s3099 + $0x8] sm:$0xff]
        %v3102 = vld [vmem:[%s3099 + $0x10] sm:$0xff]
        %v3103 = vld [vmem:[%s3099 + $0x18] sm:$0xff]
        %v3105 = vsel %vm952, %v3100, 0
        %v3108 = vsel %vm952, %v3101, 0
        %v3111 = vsel %vm952, %v3102, 0
        %v3114 = vsel %vm952, %v3103, 0
        %3116 = vmatpush.msra.mxu0 0.0
        %3117 = vmatpush.msra.mxu0 0.0
        %3118 = vmatpush.msra.mxu0 0.0
        %3119 = vmatpush.msra.mxu0 0.0
        %3120 = vmatpush.msra.mxu0 0.0
        %3121 = vmatpush.msra.mxu0 0.0
        %3122 = vmatpush.msra.mxu0 0.0
        %3123 = vmatpush.msra.mxu0 0.0
        %3124 = vmatpush.msra.mxu0 0.0
        %3125 = vmatpush.msra.mxu0 0.0
        %3126 = vmatpush.msra.mxu0 0.0
        %3127 = vmatpush.msra.mxu0 0.0
        %3128 = vmatpush.msra.mxu0 %v3097
        %3129 = vmatpush.msra.mxu0 %v3095
        %3130 = vmatpush.msra.mxu0 %v3093
        %3131 = vmatpush.msra.mxu0 %v3091
        %3132 = vmatmul.f32.gmra.mxu0 %v3105
        %v3133 = vpop.f32.mrf.mxu0
        %v3134 = vadd.f32 0.0, %v3133
        %3135 = vmatmul.f32.gmra.mxu0 %v3108
        %v3136 = vpop.f32.mrf.mxu0
        %v3137 = vadd.f32 0.0, %v3136
        %3138 = vmatmul.f32.gmra.mxu0 %v3111
        %v3139 = vpop.f32.mrf.mxu0
        %v3140 = vadd.f32 0.0, %v3139
        %3141 = vmatmul.f32.gmra.mxu0 %v3114
        %v3142 = vpop.f32.mrf.mxu0
        %v3143 = vadd.f32 0.0, %v3142
        %3144 = vdwg.mxu0
        %3145 = vmatpush.msra.mxu0 0.0
        %3146 = vmatpush.msra.mxu0 0.0
        %3147 = vmatpush.msra.mxu0 0.0
        %3148 = vmatpush.msra.mxu0 0.0
        %3149 = vmatpush.msra.mxu0 0.0
        %3150 = vmatpush.msra.mxu0 0.0
        %3151 = vmatpush.msra.mxu0 0.0
        %3152 = vmatpush.msra.mxu0 0.0
        %3153 = vmatpush.msra.mxu0 0.0
        %3154 = vmatpush.msra.mxu0 0.0
        %3155 = vmatpush.msra.mxu0 0.0
        %3156 = vmatpush.msra.mxu0 0.0
        %3157 = vmatpush.msra.mxu0 %v3098
        %3158 = vmatpush.msra.mxu0 %v3096
        %3159 = vmatpush.msra.mxu0 %v3094
        %3160 = vmatpush.msra.mxu0 %v3092
        %3161 = vmatmul.f32.gmra.mxu0 %v3105
        %v3162 = vpop.f32.mrf.mxu0
        %v3163 = vadd.f32 0.0, %v3162
        %3164 = vmatmul.f32.gmra.mxu0 %v3108
        %v3165 = vpop.f32.mrf.mxu0
        %v3166 = vadd.f32 0.0, %v3165
        %3167 = vmatmul.f32.gmra.mxu0 %v3111
        %v3168 = vpop.f32.mrf.mxu0
        %v3169 = vadd.f32 0.0, %v3168
        %3170 = vmatmul.f32.gmra.mxu0 %v3114
        %v3171 = vpop.f32.mrf.mxu0
        %v3172 = vadd.f32 0.0, %v3171
        %3173 = vdwg.mxu0
        %v3175 = vsel %vm952, %v3087, 0
        %v3178 = vsel %vm952, %v3088, 0
        %v3181 = vsel %vm952, %v3089, 0
        %v3184 = vsel %vm952, %v3090, 0
        %3186 = vmatpush.msra.mxu0 0.0
        %3187 = vmatpush.msra.mxu0 0.0
        %3188 = vmatpush.msra.mxu0 0.0
        %3189 = vmatpush.msra.mxu0 0.0
        %3190 = vmatpush.msra.mxu0 0.0
        %3191 = vmatpush.msra.mxu0 0.0
        %3192 = vmatpush.msra.mxu0 0.0
        %3193 = vmatpush.msra.mxu0 0.0
        %3194 = vmatpush.msra.mxu0 0.0
        %3195 = vmatpush.msra.mxu0 0.0
        %3196 = vmatpush.msra.mxu0 0.0
        %3197 = vmatpush.msra.mxu0 0.0
        %3198 = vmatpush.msra.mxu0 %v3085
        %3199 = vmatpush.msra.mxu0 %v3083
        %3200 = vmatpush.msra.mxu0 %v3081
        %3201 = vmatpush.msra.mxu0 %v3079
        %3202 = vmatmul.f32.gmra.mxu0 %v3175
        %v3203 = vpop.f32.mrf.mxu0
        %v3204 = vadd.f32 %v3134, %v3203
        %3205 = vmatmul.f32.gmra.mxu0 %v3178
        %v3206 = vpop.f32.mrf.mxu0
        %v3207 = vadd.f32 %v3137, %v3206
        %3208 = vmatmul.f32.gmra.mxu0 %v3181
        %v3209 = vpop.f32.mrf.mxu0
        %v3210 = vadd.f32 %v3140, %v3209
        %3211 = vmatmul.f32.gmra.mxu0 %v3184
        %v3212 = vpop.f32.mrf.mxu0
        %v3213 = vadd.f32 %v3143, %v3212
        %3214 = vdwg.mxu0
        %3215 = vmatpush.msra.mxu0 0.0
        %3216 = vmatpush.msra.mxu0 0.0
        %3217 = vmatpush.msra.mxu0 0.0
        %3218 = vmatpush.msra.mxu0 0.0
        %3219 = vmatpush.msra.mxu0 0.0
        %3220 = vmatpush.msra.mxu0 0.0
        %3221 = vmatpush.msra.mxu0 0.0
        %3222 = vmatpush.msra.mxu0 0.0
        %3223 = vmatpush.msra.mxu0 0.0
        %3224 = vmatpush.msra.mxu0 0.0
        %3225 = vmatpush.msra.mxu0 0.0
        %3226 = vmatpush.msra.mxu0 0.0
        %3227 = vmatpush.msra.mxu0 %v3086
        %3228 = vmatpush.msra.mxu0 %v3084
        %3229 = vmatpush.msra.mxu0 %v3082
        %3230 = vmatpush.msra.mxu0 %v3080
        %3231 = vmatmul.f32.gmra.mxu0 %v3175
        %v3232 = vpop.f32.mrf.mxu0
        %v3233 = vadd.f32 %v3163, %v3232
        %3234 = vmatmul.f32.gmra.mxu0 %v3178
        %v3235 = vpop.f32.mrf.mxu0
        %v3236 = vadd.f32 %v3166, %v3235
        %3237 = vmatmul.f32.gmra.mxu0 %v3181
        %v3238 = vpop.f32.mrf.mxu0
        %v3239 = vadd.f32 %v3169, %v3238
        %3240 = vmatmul.f32.gmra.mxu0 %v3184
        %v3241 = vpop.f32.mrf.mxu0
        %v3242 = vadd.f32 %v3172, %v3241
        %3243 = vdwg.mxu0
        %s3244 = scalar_lea.vmem [#allocation7], 64
        %v3245 = vld [vmem:[%s3244] sm:$0xff]
        %v3246 = vld [vmem:[%s3244 + $0x8] sm:$0xff]
        %v3247 = vld [vmem:[%s3244 + $0x10] sm:$0xff]
        %v3248 = vld [vmem:[%s3244 + $0x18] sm:$0xff]
        %v3250 = vsel %vm952, %v3245, 0
        %v3253 = vsel %vm952, %v3246, 0
        %v3256 = vsel %vm952, %v3247, 0
        %v3259 = vsel %vm952, %v3248, 0
        %3261 = vmatpush.msra.mxu0 0.0
        %3262 = vmatpush.msra.mxu0 0.0
        %3263 = vmatpush.msra.mxu0 0.0
        %3264 = vmatpush.msra.mxu0 0.0
        %3265 = vmatpush.msra.mxu0 0.0
        %3266 = vmatpush.msra.mxu0 0.0
        %3267 = vmatpush.msra.mxu0 0.0
        %3268 = vmatpush.msra.mxu0 0.0
        %3269 = vmatpush.msra.mxu0 0.0
        %3270 = vmatpush.msra.mxu0 0.0
        %3271 = vmatpush.msra.mxu0 0.0
        %3272 = vmatpush.msra.mxu0 0.0
        %3273 = vmatpush.msra.mxu0 %v2973
        %3274 = vmatpush.msra.mxu0 %v2971
        %3275 = vmatpush.msra.mxu0 %v2969
        %3276 = vmatpush.msra.mxu0 %v2967
        %3277 = vmatmul.f32.gmra.mxu0 %v3250
        %v3278 = vpop.f32.mrf.mxu0
        %v3279 = vadd.f32 0.0, %v3278
        %3280 = vmatmul.f32.gmra.mxu0 %v3253
        %v3281 = vpop.f32.mrf.mxu0
        %v3282 = vadd.f32 0.0, %v3281
        %3283 = vmatmul.f32.gmra.mxu0 %v3256
        %v3284 = vpop.f32.mrf.mxu0
        %v3285 = vadd.f32 0.0, %v3284
        %3286 = vmatmul.f32.gmra.mxu0 %v3259
        %v3287 = vpop.f32.mrf.mxu0
        %v3288 = vadd.f32 0.0, %v3287
        %3289 = vdwg.mxu0
        %3290 = vmatpush.msra.mxu0 0.0
        %3291 = vmatpush.msra.mxu0 0.0
        %3292 = vmatpush.msra.mxu0 0.0
        %3293 = vmatpush.msra.mxu0 0.0
        %3294 = vmatpush.msra.mxu0 0.0
        %3295 = vmatpush.msra.mxu0 0.0
        %3296 = vmatpush.msra.mxu0 0.0
        %3297 = vmatpush.msra.mxu0 0.0
        %3298 = vmatpush.msra.mxu0 0.0
        %3299 = vmatpush.msra.mxu0 0.0
        %3300 = vmatpush.msra.mxu0 0.0
        %3301 = vmatpush.msra.mxu0 0.0
        %3302 = vmatpush.msra.mxu0 %v2974
        %3303 = vmatpush.msra.mxu0 %v2972
        %3304 = vmatpush.msra.mxu0 %v2970
        %3305 = vmatpush.msra.mxu0 %v2968
        %3306 = vmatmul.f32.gmra.mxu0 %v3250
        %v3307 = vpop.f32.mrf.mxu0
        %v3308 = vadd.f32 0.0, %v3307
        %3309 = vmatmul.f32.gmra.mxu0 %v3253
        %v3310 = vpop.f32.mrf.mxu0
        %v3311 = vadd.f32 0.0, %v3310
        %3312 = vmatmul.f32.gmra.mxu0 %v3256
        %v3313 = vpop.f32.mrf.mxu0
        %v3314 = vadd.f32 0.0, %v3313
        %3315 = vmatmul.f32.gmra.mxu0 %v3259
        %v3316 = vpop.f32.mrf.mxu0
        %v3317 = vadd.f32 0.0, %v3316
        %3318 = vdwg.mxu0
        %v3319 = vadd.f32 %v3204, %v3279
        %v3320 = vadd.f32 %v3233, %v3308
        %v3321 = vadd.f32 %v3207, %v3282
        %v3322 = vadd.f32 %v3236, %v3311
        %v3323 = vadd.f32 %v3210, %v3285
        %v3324 = vadd.f32 %v3239, %v3314
        %v3325 = vadd.f32 %v3213, %v3288
        %v3326 = vadd.f32 %v3242, %v3317
        %v3327 = vsel %vm915, %v3019, %v2991
        %v3328 = vsel %vm916, %v3015, %v2995
        %v3329 = vsel %vm915, %v3020, %v2992
        %v3330 = vsel %vm916, %v3016, %v2996
        %v3331 = vsel %vm915, %v3021, %v2993
        %v3332 = vsel %vm916, %v3017, %v2997
        %v3333 = vsel %vm915, %v3022, %v2994
        %v3334 = vsel %vm916, %v3018, %v2998
        %s3335 = scalar_lea.vmem [#allocation7], 96
        %v3336 = vld [vmem:[%s3335] sm:$0xff]
        %v3337 = vld [vmem:[%s3335 + $0x8] sm:$0xff]
        %v3338 = vld [vmem:[%s3335 + $0x10] sm:$0xff]
        %v3339 = vld [vmem:[%s3335 + $0x18] sm:$0xff]
        %v3341 = vsel %vm952, %v3336, 0
        %v3344 = vsel %vm952, %v3337, 0
        %v3347 = vsel %vm952, %v3338, 0
        %v3350 = vsel %vm952, %v3339, 0
        %3352 = vmatpush.msra.mxu0 0.0
        %3353 = vmatpush.msra.mxu0 0.0
        %3354 = vmatpush.msra.mxu0 0.0
        %3355 = vmatpush.msra.mxu0 0.0
        %3356 = vmatpush.msra.mxu0 0.0
        %3357 = vmatpush.msra.mxu0 0.0
        %3358 = vmatpush.msra.mxu0 0.0
        %3359 = vmatpush.msra.mxu0 0.0
        %3360 = vmatpush.msra.mxu0 0.0
        %3361 = vmatpush.msra.mxu0 0.0
        %3362 = vmatpush.msra.mxu0 0.0
        %3363 = vmatpush.msra.mxu0 0.0
        %3364 = vmatpush.msra.mxu0 %v3333
        %3365 = vmatpush.msra.mxu0 %v3331
        %3366 = vmatpush.msra.mxu0 %v3329
        %3367 = vmatpush.msra.mxu0 %v3327
        %3368 = vmatmul.f32.gmra.mxu0 %v3341
        %v3369 = vpop.f32.mrf.mxu0
        %v3370 = vadd.f32 0.0, %v3369
        %3371 = vmatmul.f32.gmra.mxu0 %v3344
        %v3372 = vpop.f32.mrf.mxu0
        %v3373 = vadd.f32 0.0, %v3372
        %3374 = vmatmul.f32.gmra.mxu0 %v3347
        %v3375 = vpop.f32.mrf.mxu0
        %v3376 = vadd.f32 0.0, %v3375
        %3377 = vmatmul.f32.gmra.mxu0 %v3350
        %v3378 = vpop.f32.mrf.mxu0
        %v3379 = vadd.f32 0.0, %v3378
        %3380 = vdwg.mxu0
        %3381 = vmatpush.msra.mxu0 0.0
        %3382 = vmatpush.msra.mxu0 0.0
        %3383 = vmatpush.msra.mxu0 0.0
        %3384 = vmatpush.msra.mxu0 0.0
        %3385 = vmatpush.msra.mxu0 0.0
        %3386 = vmatpush.msra.mxu0 0.0
        %3387 = vmatpush.msra.mxu0 0.0
        %3388 = vmatpush.msra.mxu0 0.0
        %3389 = vmatpush.msra.mxu0 0.0
        %3390 = vmatpush.msra.mxu0 0.0
        %3391 = vmatpush.msra.mxu0 0.0
        %3392 = vmatpush.msra.mxu0 0.0
        %3393 = vmatpush.msra.mxu0 %v3334
        %3394 = vmatpush.msra.mxu0 %v3332
        %3395 = vmatpush.msra.mxu0 %v3330
        %3396 = vmatpush.msra.mxu0 %v3328
        %3397 = vmatmul.f32.gmra.mxu0 %v3341
        %v3398 = vpop.f32.mrf.mxu0
        %v3399 = vadd.f32 0.0, %v3398
        %3400 = vmatmul.f32.gmra.mxu0 %v3344
        %v3401 = vpop.f32.mrf.mxu0
        %v3402 = vadd.f32 0.0, %v3401
        %3403 = vmatmul.f32.gmra.mxu0 %v3347
        %v3404 = vpop.f32.mrf.mxu0
        %v3405 = vadd.f32 0.0, %v3404
        %3406 = vmatmul.f32.gmra.mxu0 %v3350
        %v3407 = vpop.f32.mrf.mxu0
        %v3408 = vadd.f32 0.0, %v3407
        %3409 = vdwg.mxu0
        %v3410 = vadd.f32 %v3319, %v3370
        %v3411 = vadd.f32 %v3320, %v3399
        %v3412 = vadd.f32 %v3321, %v3373
        %v3413 = vadd.f32 %v3322, %v3402
        %v3414 = vadd.f32 %v3323, %v3376
        %v3415 = vadd.f32 %v3324, %v3405
        %v3416 = vadd.f32 %v3325, %v3379
        %v3417 = vadd.f32 %v3326, %v3408
        %v3418 = vsel %vm915, %v3067, %v3039
        %v3419 = vsel %vm916, %v3063, %v3043
        %v3420 = vsel %vm915, %v3068, %v3040
        %v3421 = vsel %vm916, %v3064, %v3044
        %v3422 = vsel %vm915, %v3069, %v3041
        %v3423 = vsel %vm916, %v3065, %v3045
        %v3424 = vsel %vm915, %v3070, %v3042
        %v3425 = vsel %vm916, %v3066, %v3046
        %v3426 = vsel %vm917, %v2967, %v3418
        %v3427 = vsel %vm918, %v2968, %v3419
        %v3428 = vsel %vm917, %v2969, %v3420
        %v3429 = vsel %vm918, %v2970, %v3421
        %v3430 = vsel %vm917, %v2971, %v3422
        %v3431 = vsel %vm918, %v2972, %v3423
        %v3432 = vsel %vm917, %v2973, %v3424
        %v3433 = vsel %vm918, %v2974, %v3425
        %s3434 = scalar_lea.vmem [#allocation7], 128
        %v3435 = vld [vmem:[%s3434] sm:$0xff]
        %v3436 = vld [vmem:[%s3434 + $0x8] sm:$0xff]
        %v3437 = vld [vmem:[%s3434 + $0x10] sm:$0xff]
        %v3438 = vld [vmem:[%s3434 + $0x18] sm:$0xff]
        %v3440 = vsel %vm952, %v3435, 0
        %v3443 = vsel %vm952, %v3436, 0
        %v3446 = vsel %vm952, %v3437, 0
        %v3449 = vsel %vm952, %v3438, 0
        %3451 = vmatpush.msra.mxu0 0.0
        %3452 = vmatpush.msra.mxu0 0.0
        %3453 = vmatpush.msra.mxu0 0.0
        %3454 = vmatpush.msra.mxu0 0.0
        %3455 = vmatpush.msra.mxu0 0.0
        %3456 = vmatpush.msra.mxu0 0.0
        %3457 = vmatpush.msra.mxu0 0.0
        %3458 = vmatpush.msra.mxu0 0.0
        %3459 = vmatpush.msra.mxu0 0.0
        %3460 = vmatpush.msra.mxu0 0.0
        %3461 = vmatpush.msra.mxu0 0.0
        %3462 = vmatpush.msra.mxu0 0.0
        %3463 = vmatpush.msra.mxu0 %v3432
        %3464 = vmatpush.msra.mxu0 %v3430
        %3465 = vmatpush.msra.mxu0 %v3428
        %3466 = vmatpush.msra.mxu0 %v3426
        %3467 = vmatmul.f32.gmra.mxu0 %v3440
        %v3468 = vpop.f32.mrf.mxu0
        %v3469 = vadd.f32 0.0, %v3468
        %3470 = vmatmul.f32.gmra.mxu0 %v3443
        %v3471 = vpop.f32.mrf.mxu0
        %v3472 = vadd.f32 0.0, %v3471
        %3473 = vmatmul.f32.gmra.mxu0 %v3446
        %v3474 = vpop.f32.mrf.mxu0
        %v3475 = vadd.f32 0.0, %v3474
        %3476 = vmatmul.f32.gmra.mxu0 %v3449
        %v3477 = vpop.f32.mrf.mxu0
        %v3478 = vadd.f32 0.0, %v3477
        %3479 = vdwg.mxu0
        %3480 = vmatpush.msra.mxu0 0.0
        %3481 = vmatpush.msra.mxu0 0.0
        %3482 = vmatpush.msra.mxu0 0.0
        %3483 = vmatpush.msra.mxu0 0.0
        %3484 = vmatpush.msra.mxu0 0.0
        %3485 = vmatpush.msra.mxu0 0.0
        %3486 = vmatpush.msra.mxu0 0.0
        %3487 = vmatpush.msra.mxu0 0.0
        %3488 = vmatpush.msra.mxu0 0.0
        %3489 = vmatpush.msra.mxu0 0.0
        %3490 = vmatpush.msra.mxu0 0.0
        %3491 = vmatpush.msra.mxu0 0.0
        %3492 = vmatpush.msra.mxu0 %v3433
        %3493 = vmatpush.msra.mxu0 %v3431
        %3494 = vmatpush.msra.mxu0 %v3429
        %3495 = vmatpush.msra.mxu0 %v3427
        %3496 = vmatmul.f32.gmra.mxu0 %v3440
        %v3497 = vpop.f32.mrf.mxu0
        %v3498 = vadd.f32 0.0, %v3497
        %3499 = vmatmul.f32.gmra.mxu0 %v3443
        %v3500 = vpop.f32.mrf.mxu0
        %v3501 = vadd.f32 0.0, %v3500
        %3502 = vmatmul.f32.gmra.mxu0 %v3446
        %v3503 = vpop.f32.mrf.mxu0
        %v3504 = vadd.f32 0.0, %v3503
        %3505 = vmatmul.f32.gmra.mxu0 %v3449
        %v3506 = vpop.f32.mrf.mxu0
        %v3507 = vadd.f32 0.0, %v3506
        %3508 = vdwg.mxu0
        %v3509 = vadd.f32 %v3410, %v3469
        %v3510 = vadd.f32 %v3411, %v3498
        %v3511 = vadd.f32 %v3412, %v3472
        %v3512 = vadd.f32 %v3413, %v3501
        %v3513 = vadd.f32 %v3414, %v3475
        %v3514 = vadd.f32 %v3415, %v3504
        %v3515 = vadd.f32 %v3416, %v3478
        %v3516 = vadd.f32 %v3417, %v3507
        %v3517 = vld [vmem:[%s8] sm:$0xff]
        %v3518 = vld [vmem:[%s8 + $0x8] sm:$0xff]
        %v3519 = vld [vmem:[%s8 + $0x10] sm:$0xff]
        %v3520 = vld [vmem:[%s8 + $0x18] sm:$0xff]
        %3522 = vset.pattern.permute.xlu0 0
        %3523 = vperm.xlu0 %3522, %v3517
        %v3524 = vpop.permute.xlu0 %3523
        %3527 = vset.pattern.permute.xlu0 0
        %3528 = vperm.xlu0 %3527, %v3518
        %v3529 = vpop.permute.xlu0 %3528
        %3532 = vset.pattern.permute.xlu0 0
        %3533 = vperm.xlu0 %3532, %v3519
        %v3534 = vpop.permute.xlu0 %3533
        %3537 = vset.pattern.permute.xlu0 0
        %3538 = vperm.xlu0 %3537, %v3520
        %v3539 = vpop.permute.xlu0 %3538
        %v3541 = vadd.f32 %v3509, %v3524
        %v3542 = vadd.f32 %v3510, %v3524
        %v3543 = vadd.f32 %v3511, %v3529
        %v3544 = vadd.f32 %v3512, %v3529
        %v3545 = vadd.f32 %v3513, %v3534
        %v3546 = vadd.f32 %v3514, %v3534
        %v3547 = vadd.f32 %v3515, %v3539
        %v3548 = vadd.f32 %v3516, %v3539
        %vm3549 = vcmp.ge.f32.partialorder %v3541, 0.0
        %vm3550 = vcmp.ge.f32.partialorder %v3542, 0.0
        %vm3551 = vcmp.ge.f32.partialorder %v3543, 0.0
        %vm3552 = vcmp.ge.f32.partialorder %v3544, 0.0
        %vm3553 = vcmp.ge.f32.partialorder %v3545, 0.0
        %vm3554 = vcmp.ge.f32.partialorder %v3546, 0.0
        %vm3555 = vcmp.ge.f32.partialorder %v3547, 0.0
        %vm3556 = vcmp.ge.f32.partialorder %v3548, 0.0
        %v3557 = vmul.f32 %v3541, 0.01
        %v3558 = vmul.f32 %v3542, 0.01
        %v3559 = vmul.f32 %v3543, 0.01
        %v3560 = vmul.f32 %v3544, 0.01
        %v3561 = vmul.f32 %v3545, 0.01
        %v3562 = vmul.f32 %v3546, 0.01
        %v3563 = vmul.f32 %v3547, 0.01
        %v3564 = vmul.f32 %v3548, 0.01
        %v3565 = vsel %vm3549, %v3541, %v3557
        %v3566 = vsel %vm3550, %v3542, %v3558
        %v3567 = vsel %vm3551, %v3543, %v3559
        %v3568 = vsel %vm3552, %v3544, %v3560
        %v3569 = vsel %vm3553, %v3545, %v3561
        %v3570 = vsel %vm3554, %v3546, %v3562
        %v3571 = vsel %vm3555, %v3547, %v3563
        %v3572 = vsel %vm3556, %v3548, %v3564
        %3573 = vmatpush.msra.mxu0 %v789
        %3574 = vmatpush.msra.mxu0 %v788
        %3575 = vmatpush.msra.mxu0 %v787
        %3576 = vmatpush.msra.mxu0 %v786
        %3577 = vmatpush.msra.mxu0 %v785
        %3578 = vmatpush.msra.mxu0 %v784
        %3579 = vmatpush.msra.mxu0 %v783
        %3580 = vmatpush.msra.mxu0 %v782
        %3581 = vmatpush.msra.mxu0 %v781
        %3582 = vmatpush.msra.mxu0 %v780
        %3583 = vmatpush.msra.mxu0 %v779
        %3584 = vmatpush.msra.mxu0 %v778
        %3585 = vmatpush.msra.mxu0 %v777
        %3586 = vmatpush.msra.mxu0 %v776
        %3587 = vmatpush.msra.mxu0 %v775
        %3588 = vmatpush.msra.mxu0 %v774
        %3589 = vmatmul.f32.gmra.mxu0 %v3565
        %v3590 = vpop.f32.mrf.mxu0
        %v3591 = vadd.f32 0.0, %v3590
        %3592 = vmatmul.f32.gmra.mxu0 %v3567
        %v3593 = vpop.f32.mrf.mxu0
        %v3594 = vadd.f32 0.0, %v3593
        %3595 = vmatmul.f32.gmra.mxu0 %v3569
        %v3596 = vpop.f32.mrf.mxu0
        %v3597 = vadd.f32 0.0, %v3596
        %3598 = vmatmul.f32.gmra.mxu0 %v3571
        %v3599 = vpop.f32.mrf.mxu0
        %v3600 = vadd.f32 0.0, %v3599
        %3601 = vdwg.mxu0
        %3602 = vmatpush.msra.mxu0 %v805
        %3603 = vmatpush.msra.mxu0 %v804
        %3604 = vmatpush.msra.mxu0 %v803
        %3605 = vmatpush.msra.mxu0 %v802
        %3606 = vmatpush.msra.mxu0 %v801
        %3607 = vmatpush.msra.mxu0 %v800
        %3608 = vmatpush.msra.mxu0 %v799
        %3609 = vmatpush.msra.mxu0 %v798
        %3610 = vmatpush.msra.mxu0 %v797
        %3611 = vmatpush.msra.mxu0 %v796
        %3612 = vmatpush.msra.mxu0 %v795
        %3613 = vmatpush.msra.mxu0 %v794
        %3614 = vmatpush.msra.mxu0 %v793
        %3615 = vmatpush.msra.mxu0 %v792
        %3616 = vmatpush.msra.mxu0 %v791
        %3617 = vmatpush.msra.mxu0 %v790
        %3618 = vmatmul.f32.gmra.mxu0 %v3566
        %v3619 = vpop.f32.mrf.mxu0
        %v3620 = vadd.f32 %v3591, %v3619
        %3621 = vmatmul.f32.gmra.mxu0 %v3568
        %v3622 = vpop.f32.mrf.mxu0
        %v3623 = vadd.f32 %v3594, %v3622
        %3624 = vmatmul.f32.gmra.mxu0 %v3570
        %v3625 = vpop.f32.mrf.mxu0
        %v3626 = vadd.f32 %v3597, %v3625
        %3627 = vmatmul.f32.gmra.mxu0 %v3572
        %v3628 = vpop.f32.mrf.mxu0
        %v3629 = vadd.f32 %v3600, %v3628
        %3630 = vdwg.mxu0
        %v3631 = vmul.f32 %v3620, 0.0078125
        %v3632 = vmul.f32 %v3623, 0.0078125
        %v3633 = vmul.f32 %v3626, 0.0078125
        %v3634 = vmul.f32 %v3629, 0.0078125
        %v3635 = vmul.f32 %v3565, %v3565
        %v3636 = vmul.f32 %v3566, %v3566
        %v3637 = vmul.f32 %v3567, %v3567
        %v3638 = vmul.f32 %v3568, %v3568
        %v3639 = vmul.f32 %v3569, %v3569
        %v3640 = vmul.f32 %v3570, %v3570
        %v3641 = vmul.f32 %v3571, %v3571
        %v3642 = vmul.f32 %v3572, %v3572
        %3643 = vmatpush.msra.mxu0 %v789
        %3644 = vmatpush.msra.mxu0 %v788
        %3645 = vmatpush.msra.mxu0 %v787
        %3646 = vmatpush.msra.mxu0 %v786
        %3647 = vmatpush.msra.mxu0 %v785
        %3648 = vmatpush.msra.mxu0 %v784
        %3649 = vmatpush.msra.mxu0 %v783
        %3650 = vmatpush.msra.mxu0 %v782
        %3651 = vmatpush.msra.mxu0 %v781
        %3652 = vmatpush.msra.mxu0 %v780
        %3653 = vmatpush.msra.mxu0 %v779
        %3654 = vmatpush.msra.mxu0 %v778
        %3655 = vmatpush.msra.mxu0 %v777
        %3656 = vmatpush.msra.mxu0 %v776
        %3657 = vmatpush.msra.mxu0 %v775
        %3658 = vmatpush.msra.mxu0 %v774
        %3659 = vmatmul.f32.gmra.mxu0 %v3635
        %v3660 = vpop.f32.mrf.mxu0
        %v3661 = vadd.f32 0.0, %v3660
        %3662 = vmatmul.f32.gmra.mxu0 %v3637
        %v3663 = vpop.f32.mrf.mxu0
        %v3664 = vadd.f32 0.0, %v3663
        %3665 = vmatmul.f32.gmra.mxu0 %v3639
        %v3666 = vpop.f32.mrf.mxu0
        %v3667 = vadd.f32 0.0, %v3666
        %3668 = vmatmul.f32.gmra.mxu0 %v3641
        %v3669 = vpop.f32.mrf.mxu0
        %v3670 = vadd.f32 0.0, %v3669
        %3671 = vdwg.mxu0
        %3672 = vmatpush.msra.mxu0 %v805
        %3673 = vmatpush.msra.mxu0 %v804
        %3674 = vmatpush.msra.mxu0 %v803
        %3675 = vmatpush.msra.mxu0 %v802
        %3676 = vmatpush.msra.mxu0 %v801
        %3677 = vmatpush.msra.mxu0 %v800
        %3678 = vmatpush.msra.mxu0 %v799
        %3679 = vmatpush.msra.mxu0 %v798
        %3680 = vmatpush.msra.mxu0 %v797
        %3681 = vmatpush.msra.mxu0 %v796
        %3682 = vmatpush.msra.mxu0 %v795
        %3683 = vmatpush.msra.mxu0 %v794
        %3684 = vmatpush.msra.mxu0 %v793
        %3685 = vmatpush.msra.mxu0 %v792
        %3686 = vmatpush.msra.mxu0 %v791
        %3687 = vmatpush.msra.mxu0 %v790
        %3688 = vmatmul.f32.gmra.mxu0 %v3636
        %v3689 = vpop.f32.mrf.mxu0
        %v3690 = vadd.f32 %v3661, %v3689
        %3691 = vmatmul.f32.gmra.mxu0 %v3638
        %v3692 = vpop.f32.mrf.mxu0
        %v3693 = vadd.f32 %v3664, %v3692
        %3694 = vmatmul.f32.gmra.mxu0 %v3640
        %v3695 = vpop.f32.mrf.mxu0
        %v3696 = vadd.f32 %v3667, %v3695
        %3697 = vmatmul.f32.gmra.mxu0 %v3642
        %v3698 = vpop.f32.mrf.mxu0
        %v3699 = vadd.f32 %v3670, %v3698
        %3700 = vdwg.mxu0
        %v3701 = vmul.f32 %v3690, 0.0078125
        %v3702 = vmul.f32 %v3693, 0.0078125
        %v3703 = vmul.f32 %v3696, 0.0078125
        %v3704 = vmul.f32 %v3699, 0.0078125
        %v3705 = vmul.f32 %v3631, %v3631
        %v3706 = vmul.f32 %v3632, %v3632
        %v3707 = vmul.f32 %v3633, %v3633
        %v3708 = vmul.f32 %v3634, %v3634
        %v3709 = vsub.f32 %v3701, %v3705
        %v3710 = vsub.f32 %v3702, %v3706
        %v3711 = vsub.f32 %v3703, %v3707
        %v3712 = vsub.f32 %v3704, %v3708
        %v3713 = vadd.f32 %v3709, 1e-05
        %v3714 = vadd.f32 %v3710, 1e-05
        %v3715 = vadd.f32 %v3711, 1e-05
        %v3716 = vadd.f32 %v3712, 1e-05
        %v3717 = vrsqrt.pop %v3713
        %v3718 = vmul.f32 %v3717, %v3713
        %v3719 = vmul.f32 %v3718, %v3717
        %v3720 = vmul.f32 0.5, %v3719
        %v3721 = vsub.f32 1.5, %v3720
        %v3722 = vmul.f32 %v3717, %v3721
        %vm3723 = vweird.f32 %v3713
        %vm3724 = vweird.f32 %v3717
        %vm3725 = vmor %vm3723, %vm3724
        %v3726 = vsel %vm3725, %v3717, %v3722
        %v3727 = vrsqrt.pop %v3714
        %v3728 = vmul.f32 %v3727, %v3714
        %v3729 = vmul.f32 %v3728, %v3727
        %v3730 = vmul.f32 0.5, %v3729
        %v3731 = vsub.f32 1.5, %v3730
        %v3732 = vmul.f32 %v3727, %v3731
        %vm3733 = vweird.f32 %v3714
        %vm3734 = vweird.f32 %v3727
        %vm3735 = vmor %vm3733, %vm3734
        %v3736 = vsel %vm3735, %v3727, %v3732
        %v3737 = vrsqrt.pop %v3715
        %v3738 = vmul.f32 %v3737, %v3715
        %v3739 = vmul.f32 %v3738, %v3737
        %v3740 = vmul.f32 0.5, %v3739
        %v3741 = vsub.f32 1.5, %v3740
        %v3742 = vmul.f32 %v3737, %v3741
        %vm3743 = vweird.f32 %v3715
        %vm3744 = vweird.f32 %v3737
        %vm3745 = vmor %vm3743, %vm3744
        %v3746 = vsel %vm3745, %v3737, %v3742
        %v3747 = vrsqrt.pop %v3716
        %v3748 = vmul.f32 %v3747, %v3716
        %v3749 = vmul.f32 %v3748, %v3747
        %v3750 = vmul.f32 0.5, %v3749
        %v3751 = vsub.f32 1.5, %v3750
        %v3752 = vmul.f32 %v3747, %v3751
        %vm3753 = vweird.f32 %v3716
        %vm3754 = vweird.f32 %v3747
        %vm3755 = vmor %vm3753, %vm3754
        %v3756 = vsel %vm3755, %v3747, %v3752
        %3757 = vst [vmem:[#allocation1] ss:$4 sm:$0xff] %v806
        %v3758 = vld.sshfl [vmem:[#allocation1] sm:$0xff pattern:$0x73625140]
        %v3759 = vld.sshfl [vmem:[#allocation1 + $0x8] sm:$0xff pattern:$0x73625140]
        %v3761 = vsel %vm2208, %v3631, 0
        %v3764 = vsel %vm2208, %v3632, 0
        %v3767 = vsel %vm2208, %v3633, 0
        %v3770 = vsel %vm2208, %v3634, 0
        %v3772 = vsel %vm2221, %v3758, 0
        %v3774 = vsel %vm2221, %v3759, 0
        %3776 = vmatpush.msra.mxu0 0.0
        %3777 = vmatpush.msra.mxu0 0.0
        %3778 = vmatpush.msra.mxu0 0.0
        %3779 = vmatpush.msra.mxu0 0.0
        %3780 = vmatpush.msra.mxu0 0.0
        %3781 = vmatpush.msra.mxu0 0.0
        %3782 = vmatpush.msra.mxu0 0.0
        %3783 = vmatpush.msra.mxu0 0.0
        %3784 = vmatpush.msra.mxu0 0.0
        %3785 = vmatpush.msra.mxu0 0.0
        %3786 = vmatpush.msra.mxu0 0.0
        %3787 = vmatpush.msra.mxu0 0.0
        %3788 = vmatpush.msra.mxu0 0.0
        %3789 = vmatpush.msra.mxu0 0.0
        %3790 = vmatpush.msra.mxu0 0.0
        %3791 = vmatpush.msra.mxu0 %v3772
        %3792 = vmatmul.f32.gmra.mxu0 %v3761
        %v3793 = vpop.f32.mrf.mxu0
        %v3794 = vadd.f32 0.0, %v3793
        %3795 = vmatmul.f32.gmra.mxu0 %v3764
        %v3796 = vpop.f32.mrf.mxu0
        %v3797 = vadd.f32 0.0, %v3796
        %3798 = vmatmul.f32.gmra.mxu0 %v3767
        %v3799 = vpop.f32.mrf.mxu0
        %v3800 = vadd.f32 0.0, %v3799
        %3801 = vmatmul.f32.gmra.mxu0 %v3770
        %v3802 = vpop.f32.mrf.mxu0
        %v3803 = vadd.f32 0.0, %v3802
        %3804 = vdwg.mxu0
        %3805 = vmatpush.msra.mxu0 0.0
        %3806 = vmatpush.msra.mxu0 0.0
        %3807 = vmatpush.msra.mxu0 0.0
        %3808 = vmatpush.msra.mxu0 0.0
        %3809 = vmatpush.msra.mxu0 0.0
        %3810 = vmatpush.msra.mxu0 0.0
        %3811 = vmatpush.msra.mxu0 0.0
        %3812 = vmatpush.msra.mxu0 0.0
        %3813 = vmatpush.msra.mxu0 0.0
        %3814 = vmatpush.msra.mxu0 0.0
        %3815 = vmatpush.msra.mxu0 0.0
        %3816 = vmatpush.msra.mxu0 0.0
        %3817 = vmatpush.msra.mxu0 0.0
        %3818 = vmatpush.msra.mxu0 0.0
        %3819 = vmatpush.msra.mxu0 0.0
        %3820 = vmatpush.msra.mxu0 %v3774
        %3821 = vmatmul.f32.gmra.mxu0 %v3761
        %v3822 = vpop.f32.mrf.mxu0
        %v3823 = vadd.f32 0.0, %v3822
        %3824 = vmatmul.f32.gmra.mxu0 %v3764
        %v3825 = vpop.f32.mrf.mxu0
        %v3826 = vadd.f32 0.0, %v3825
        %3827 = vmatmul.f32.gmra.mxu0 %v3767
        %v3828 = vpop.f32.mrf.mxu0
        %v3829 = vadd.f32 0.0, %v3828
        %3830 = vmatmul.f32.gmra.mxu0 %v3770
        %v3831 = vpop.f32.mrf.mxu0
        %v3832 = vadd.f32 0.0, %v3831
        %3833 = vdwg.mxu0
        %3834 = vst [vmem:[#allocation1] ss:$4 sm:$0xff] %v806
        %v3835 = vld.sshfl [vmem:[#allocation1] sm:$0xff pattern:$0x73625140]
        %v3836 = vld.sshfl [vmem:[#allocation1 + $0x8] sm:$0xff pattern:$0x73625140]
        %v3838 = vsel %vm2208, %v3726, 0
        %v3841 = vsel %vm2208, %v3736, 0
        %v3844 = vsel %vm2208, %v3746, 0
        %v3847 = vsel %vm2208, %v3756, 0
        %v3849 = vsel %vm2221, %v3835, 0
        %v3851 = vsel %vm2221, %v3836, 0
        %3853 = vmatpush.msra.mxu0 0.0
        %3854 = vmatpush.msra.mxu0 0.0
        %3855 = vmatpush.msra.mxu0 0.0
        %3856 = vmatpush.msra.mxu0 0.0
        %3857 = vmatpush.msra.mxu0 0.0
        %3858 = vmatpush.msra.mxu0 0.0
        %3859 = vmatpush.msra.mxu0 0.0
        %3860 = vmatpush.msra.mxu0 0.0
        %3861 = vmatpush.msra.mxu0 0.0
        %3862 = vmatpush.msra.mxu0 0.0
        %3863 = vmatpush.msra.mxu0 0.0
        %3864 = vmatpush.msra.mxu0 0.0
        %3865 = vmatpush.msra.mxu0 0.0
        %3866 = vmatpush.msra.mxu0 0.0
        %3867 = vmatpush.msra.mxu0 0.0
        %3868 = vmatpush.msra.mxu0 %v3849
        %3869 = vmatmul.f32.gmra.mxu0 %v3838
        %v3870 = vpop.f32.mrf.mxu0
        %v3871 = vadd.f32 0.0, %v3870
        %3872 = vmatmul.f32.gmra.mxu0 %v3841
        %v3873 = vpop.f32.mrf.mxu0
        %v3874 = vadd.f32 0.0, %v3873
        %3875 = vmatmul.f32.gmra.mxu0 %v3844
        %v3876 = vpop.f32.mrf.mxu0
        %v3877 = vadd.f32 0.0, %v3876
        %3878 = vmatmul.f32.gmra.mxu0 %v3847
        %v3879 = vpop.f32.mrf.mxu0
        %v3880 = vadd.f32 0.0, %v3879
        %3881 = vdwg.mxu0
        %3882 = vmatpush.msra.mxu0 0.0
        %3883 = vmatpush.msra.mxu0 0.0
        %3884 = vmatpush.msra.mxu0 0.0
        %3885 = vmatpush.msra.mxu0 0.0
        %3886 = vmatpush.msra.mxu0 0.0
        %3887 = vmatpush.msra.mxu0 0.0
        %3888 = vmatpush.msra.mxu0 0.0
        %3889 = vmatpush.msra.mxu0 0.0
        %3890 = vmatpush.msra.mxu0 0.0
        %3891 = vmatpush.msra.mxu0 0.0
        %3892 = vmatpush.msra.mxu0 0.0
        %3893 = vmatpush.msra.mxu0 0.0
        %3894 = vmatpush.msra.mxu0 0.0
        %3895 = vmatpush.msra.mxu0 0.0
        %3896 = vmatpush.msra.mxu0 0.0
        %3897 = vmatpush.msra.mxu0 %v3851
        %3898 = vmatmul.f32.gmra.mxu0 %v3838
        %v3899 = vpop.f32.mrf.mxu0
        %v3900 = vadd.f32 0.0, %v3899
        %3901 = vmatmul.f32.gmra.mxu0 %v3841
        %v3902 = vpop.f32.mrf.mxu0
        %v3903 = vadd.f32 0.0, %v3902
        %3904 = vmatmul.f32.gmra.mxu0 %v3844
        %v3905 = vpop.f32.mrf.mxu0
        %v3906 = vadd.f32 0.0, %v3905
        %3907 = vmatmul.f32.gmra.mxu0 %v3847
        %v3908 = vpop.f32.mrf.mxu0
        %v3909 = vadd.f32 0.0, %v3908
        %3910 = vdwg.mxu0
        %v3911 = vsub.f32 %v3565, %v3794
        %v3912 = vsub.f32 %v3566, %v3823
        %v3913 = vsub.f32 %v3567, %v3797
        %v3914 = vsub.f32 %v3568, %v3826
        %v3915 = vsub.f32 %v3569, %v3800
        %v3916 = vsub.f32 %v3570, %v3829
        %v3917 = vsub.f32 %v3571, %v3803
        %v3918 = vsub.f32 %v3572, %v3832
        %v3919 = vmul.f32 %v3911, %v3871
        %v3920 = vmul.f32 %v3912, %v3900
        %v3921 = vmul.f32 %v3913, %v3874
        %v3922 = vmul.f32 %v3914, %v3903
        %v3923 = vmul.f32 %v3915, %v3877
        %v3924 = vmul.f32 %v3916, %v3906
        %v3925 = vmul.f32 %v3917, %v3880
        %v3926 = vmul.f32 %v3918, %v3909
        %v3927 = vadd.f32 %v3919, %v2369
        %v3928 = vadd.f32 %v3920, %v2370
        %v3929 = vadd.f32 %v3921, %v2371
        %v3930 = vadd.f32 %v3922, %v2372
        %v3931 = vadd.f32 %v3923, %v2373
        %v3932 = vadd.f32 %v3924, %v2374
        %v3933 = vadd.f32 %v3925, %v2375
        %v3934 = vadd.f32 %v3926, %v2376
        %3935 = vrot.lane.b32.xlu0 %v3927, 127
        %v3936 = vpop.permute.xlu0 %3935
        %3937 = vrot.lane.b32.xlu0 %v3929, 127
        %v3938 = vpop.permute.xlu0 %3937
        %3939 = vrot.lane.b32.xlu0 %v3931, 127
        %v3940 = vpop.permute.xlu0 %3939
        %3941 = vrot.lane.b32.xlu0 %v3933, 127
        %v3942 = vpop.permute.xlu0 %3941
        %3943 = vrot.lane.b32.xlu0 %v3928, 127
        %v3944 = vpop.permute.xlu0 %3943
        %3945 = vrot.lane.b32.xlu0 %v3930, 127
        %v3946 = vpop.permute.xlu0 %3945
        %3947 = vrot.lane.b32.xlu0 %v3932, 127
        %v3948 = vpop.permute.xlu0 %3947
        %3949 = vrot.lane.b32.xlu0 %v3934, 127
        %v3950 = vpop.permute.xlu0 %3949
        %v3951 = vsel %vm825, %v3936, %v3944
        %v3952 = vsel %vm825, %v3938, %v3946
        %v3953 = vsel %vm825, %v3940, %v3948
        %v3954 = vsel %vm825, %v3942, %v3950
        %v3955 = vsel %vm825, %v3944, %v3936
        %v3956 = vsel %vm825, %v3946, %v3938
        %v3957 = vsel %vm825, %v3948, %v3940
        %v3958 = vsel %vm825, %v3950, %v3942
        %3959 = vrot.lane.b32.xlu0 %v3927, 1
        %v3960 = vpop.permute.xlu0 %3959
        %3961 = vrot.lane.b32.xlu0 %v3929, 1
        %v3962 = vpop.permute.xlu0 %3961
        %3963 = vrot.lane.b32.xlu0 %v3931, 1
        %v3964 = vpop.permute.xlu0 %3963
        %3965 = vrot.lane.b32.xlu0 %v3933, 1
        %v3966 = vpop.permute.xlu0 %3965
        %3967 = vrot.lane.b32.xlu0 %v3928, 1
        %v3968 = vpop.permute.xlu0 %3967
        %3969 = vrot.lane.b32.xlu0 %v3930, 1
        %v3970 = vpop.permute.xlu0 %3969
        %3971 = vrot.lane.b32.xlu0 %v3932, 1
        %v3972 = vpop.permute.xlu0 %3971
        %3973 = vrot.lane.b32.xlu0 %v3934, 1
        %v3974 = vpop.permute.xlu0 %3973
        %v3975 = vsel %vm850, %v3960, %v3968
        %v3976 = vsel %vm850, %v3962, %v3970
        %v3977 = vsel %vm850, %v3964, %v3972
        %v3978 = vsel %vm850, %v3966, %v3974
        %v3979 = vsel %vm850, %v3968, %v3960
        %v3980 = vsel %vm850, %v3970, %v3962
        %v3981 = vsel %vm850, %v3972, %v3964
        %v3982 = vsel %vm850, %v3974, %v3966
        %3983 = vrot.lane.b32.xlu0 %v3927, 126
        %v3984 = vpop.permute.xlu0 %3983
        %3985 = vrot.lane.b32.xlu0 %v3929, 126
        %v3986 = vpop.permute.xlu0 %3985
        %3987 = vrot.lane.b32.xlu0 %v3931, 126
        %v3988 = vpop.permute.xlu0 %3987
        %3989 = vrot.lane.b32.xlu0 %v3933, 126
        %v3990 = vpop.permute.xlu0 %3989
        %3991 = vrot.lane.b32.xlu0 %v3928, 126
        %v3992 = vpop.permute.xlu0 %3991
        %3993 = vrot.lane.b32.xlu0 %v3930, 126
        %v3994 = vpop.permute.xlu0 %3993
        %3995 = vrot.lane.b32.xlu0 %v3932, 126
        %v3996 = vpop.permute.xlu0 %3995
        %3997 = vrot.lane.b32.xlu0 %v3934, 126
        %v3998 = vpop.permute.xlu0 %3997
        %v3999 = vsel %vm875, %v3984, %v3992
        %v4000 = vsel %vm875, %v3986, %v3994
        %v4001 = vsel %vm875, %v3988, %v3996
        %v4002 = vsel %vm875, %v3990, %v3998
        %v4003 = vsel %vm875, %v3992, %v3984
        %v4004 = vsel %vm875, %v3994, %v3986
        %v4005 = vsel %vm875, %v3996, %v3988
        %v4006 = vsel %vm875, %v3998, %v3990
        %4007 = vrot.lane.b32.xlu0 %v3927, 2
        %v4008 = vpop.permute.xlu0 %4007
        %4009 = vrot.lane.b32.xlu0 %v3929, 2
        %v4010 = vpop.permute.xlu0 %4009
        %4011 = vrot.lane.b32.xlu0 %v3931, 2
        %v4012 = vpop.permute.xlu0 %4011
        %4013 = vrot.lane.b32.xlu0 %v3933, 2
        %v4014 = vpop.permute.xlu0 %4013
        %4015 = vrot.lane.b32.xlu0 %v3928, 2
        %v4016 = vpop.permute.xlu0 %4015
        %4017 = vrot.lane.b32.xlu0 %v3930, 2
        %v4018 = vpop.permute.xlu0 %4017
        %4019 = vrot.lane.b32.xlu0 %v3932, 2
        %v4020 = vpop.permute.xlu0 %4019
        %4021 = vrot.lane.b32.xlu0 %v3934, 2
        %v4022 = vpop.permute.xlu0 %4021
        %v4023 = vsel %vm900, %v4008, %v4016
        %v4024 = vsel %vm900, %v4010, %v4018
        %v4025 = vsel %vm900, %v4012, %v4020
        %v4026 = vsel %vm900, %v4014, %v4022
        %v4027 = vsel %vm900, %v4016, %v4008
        %v4028 = vsel %vm900, %v4018, %v4010
        %v4029 = vsel %vm900, %v4020, %v4012
        %v4030 = vsel %vm900, %v4022, %v4014
        %v4031 = vsel %vm911, %v3999, %v4027
        %v4032 = vsel %vm912, %v4003, %v4023
        %v4033 = vsel %vm911, %v4000, %v4028
        %v4034 = vsel %vm912, %v4004, %v4024
        %v4035 = vsel %vm911, %v4001, %v4029
        %v4036 = vsel %vm912, %v4005, %v4025
        %v4037 = vsel %vm911, %v4002, %v4030
        %v4038 = vsel %vm912, %v4006, %v4026
        %v4039 = vsel %vm913, %v3927, %v4031
        %v4040 = vsel %vm914, %v3928, %v4032
        %v4041 = vsel %vm913, %v3929, %v4033
        %v4042 = vsel %vm914, %v3930, %v4034
        %v4043 = vsel %vm913, %v3931, %v4035
        %v4044 = vsel %vm914, %v3932, %v4036
        %v4045 = vsel %vm913, %v3933, %v4037
        %v4046 = vsel %vm914, %v3934, %v4038
        %v4047 = vld [vmem:[#allocation8] sm:$0xff]
        %v4048 = vld [vmem:[#allocation8 + $0x8] sm:$0xff]
        %v4049 = vld [vmem:[#allocation8 + $0x10] sm:$0xff]
        %v4050 = vld [vmem:[#allocation8 + $0x18] sm:$0xff]
        %v4051 = vsel %vm911, %v3951, %v3979
        %v4052 = vsel %vm912, %v3955, %v3975
        %v4053 = vsel %vm911, %v3952, %v3980
        %v4054 = vsel %vm912, %v3956, %v3976
        %v4055 = vsel %vm911, %v3953, %v3981
        %v4056 = vsel %vm912, %v3957, %v3977
        %v4057 = vsel %vm911, %v3954, %v3982
        %v4058 = vsel %vm912, %v3958, %v3978
        %s4059 = scalar_lea.vmem [#allocation8], 32
        %v4060 = vld [vmem:[%s4059] sm:$0xff]
        %v4061 = vld [vmem:[%s4059 + $0x8] sm:$0xff]
        %v4062 = vld [vmem:[%s4059 + $0x10] sm:$0xff]
        %v4063 = vld [vmem:[%s4059 + $0x18] sm:$0xff]
        %v4065 = vsel %vm952, %v4060, 0
        %v4068 = vsel %vm952, %v4061, 0
        %v4071 = vsel %vm952, %v4062, 0
        %v4074 = vsel %vm952, %v4063, 0
        %4076 = vmatpush.msra.mxu0 0.0
        %4077 = vmatpush.msra.mxu0 0.0
        %4078 = vmatpush.msra.mxu0 0.0
        %4079 = vmatpush.msra.mxu0 0.0
        %4080 = vmatpush.msra.mxu0 0.0
        %4081 = vmatpush.msra.mxu0 0.0
        %4082 = vmatpush.msra.mxu0 0.0
        %4083 = vmatpush.msra.mxu0 0.0
        %4084 = vmatpush.msra.mxu0 0.0
        %4085 = vmatpush.msra.mxu0 0.0
        %4086 = vmatpush.msra.mxu0 0.0
        %4087 = vmatpush.msra.mxu0 0.0
        %4088 = vmatpush.msra.mxu0 %v4057
        %4089 = vmatpush.msra.mxu0 %v4055
        %4090 = vmatpush.msra.mxu0 %v4053
        %4091 = vmatpush.msra.mxu0 %v4051
        %4092 = vmatmul.f32.gmra.mxu0 %v4065
        %v4093 = vpop.f32.mrf.mxu0
        %v4094 = vadd.f32 0.0, %v4093
        %4095 = vmatmul.f32.gmra.mxu0 %v4068
        %v4096 = vpop.f32.mrf.mxu0
        %v4097 = vadd.f32 0.0, %v4096
        %4098 = vmatmul.f32.gmra.mxu0 %v4071
        %v4099 = vpop.f32.mrf.mxu0
        %v4100 = vadd.f32 0.0, %v4099
        %4101 = vmatmul.f32.gmra.mxu0 %v4074
        %v4102 = vpop.f32.mrf.mxu0
        %v4103 = vadd.f32 0.0, %v4102
        %4104 = vdwg.mxu0
        %4105 = vmatpush.msra.mxu0 0.0
        %4106 = vmatpush.msra.mxu0 0.0
        %4107 = vmatpush.msra.mxu0 0.0
        %4108 = vmatpush.msra.mxu0 0.0
        %4109 = vmatpush.msra.mxu0 0.0
        %4110 = vmatpush.msra.mxu0 0.0
        %4111 = vmatpush.msra.mxu0 0.0
        %4112 = vmatpush.msra.mxu0 0.0
        %4113 = vmatpush.msra.mxu0 0.0
        %4114 = vmatpush.msra.mxu0 0.0
        %4115 = vmatpush.msra.mxu0 0.0
        %4116 = vmatpush.msra.mxu0 0.0
        %4117 = vmatpush.msra.mxu0 %v4058
        %4118 = vmatpush.msra.mxu0 %v4056
        %4119 = vmatpush.msra.mxu0 %v4054
        %4120 = vmatpush.msra.mxu0 %v4052
        %4121 = vmatmul.f32.gmra.mxu0 %v4065
        %v4122 = vpop.f32.mrf.mxu0
        %v4123 = vadd.f32 0.0, %v4122
        %4124 = vmatmul.f32.gmra.mxu0 %v4068
        %v4125 = vpop.f32.mrf.mxu0
        %v4126 = vadd.f32 0.0, %v4125
        %4127 = vmatmul.f32.gmra.mxu0 %v4071
        %v4128 = vpop.f32.mrf.mxu0
        %v4129 = vadd.f32 0.0, %v4128
        %4130 = vmatmul.f32.gmra.mxu0 %v4074
        %v4131 = vpop.f32.mrf.mxu0
        %v4132 = vadd.f32 0.0, %v4131
        %4133 = vdwg.mxu0
        %v4135 = vsel %vm952, %v4047, 0
        %v4138 = vsel %vm952, %v4048, 0
        %v4141 = vsel %vm952, %v4049, 0
        %v4144 = vsel %vm952, %v4050, 0
        %4146 = vmatpush.msra.mxu0 0.0
        %4147 = vmatpush.msra.mxu0 0.0
        %4148 = vmatpush.msra.mxu0 0.0
        %4149 = vmatpush.msra.mxu0 0.0
        %4150 = vmatpush.msra.mxu0 0.0
        %4151 = vmatpush.msra.mxu0 0.0
        %4152 = vmatpush.msra.mxu0 0.0
        %4153 = vmatpush.msra.mxu0 0.0
        %4154 = vmatpush.msra.mxu0 0.0
        %4155 = vmatpush.msra.mxu0 0.0
        %4156 = vmatpush.msra.mxu0 0.0
        %4157 = vmatpush.msra.mxu0 0.0
        %4158 = vmatpush.msra.mxu0 %v4045
        %4159 = vmatpush.msra.mxu0 %v4043
        %4160 = vmatpush.msra.mxu0 %v4041
        %4161 = vmatpush.msra.mxu0 %v4039
        %4162 = vmatmul.f32.gmra.mxu0 %v4135
        %v4163 = vpop.f32.mrf.mxu0
        %v4164 = vadd.f32 %v4094, %v4163
        %4165 = vmatmul.f32.gmra.mxu0 %v4138
        %v4166 = vpop.f32.mrf.mxu0
        %v4167 = vadd.f32 %v4097, %v4166
        %4168 = vmatmul.f32.gmra.mxu0 %v4141
        %v4169 = vpop.f32.mrf.mxu0
        %v4170 = vadd.f32 %v4100, %v4169
        %4171 = vmatmul.f32.gmra.mxu0 %v4144
        %v4172 = vpop.f32.mrf.mxu0
        %v4173 = vadd.f32 %v4103, %v4172
        %4174 = vdwg.mxu0
        %4175 = vmatpush.msra.mxu0 0.0
        %4176 = vmatpush.msra.mxu0 0.0
        %4177 = vmatpush.msra.mxu0 0.0
        %4178 = vmatpush.msra.mxu0 0.0
        %4179 = vmatpush.msra.mxu0 0.0
        %4180 = vmatpush.msra.mxu0 0.0
        %4181 = vmatpush.msra.mxu0 0.0
        %4182 = vmatpush.msra.mxu0 0.0
        %4183 = vmatpush.msra.mxu0 0.0
        %4184 = vmatpush.msra.mxu0 0.0
        %4185 = vmatpush.msra.mxu0 0.0
        %4186 = vmatpush.msra.mxu0 0.0
        %4187 = vmatpush.msra.mxu0 %v4046
        %4188 = vmatpush.msra.mxu0 %v4044
        %4189 = vmatpush.msra.mxu0 %v4042
        %4190 = vmatpush.msra.mxu0 %v4040
        %4191 = vmatmul.f32.gmra.mxu0 %v4135
        %v4192 = vpop.f32.mrf.mxu0
        %v4193 = vadd.f32 %v4123, %v4192
        %4194 = vmatmul.f32.gmra.mxu0 %v4138
        %v4195 = vpop.f32.mrf.mxu0
        %v4196 = vadd.f32 %v4126, %v4195
        %4197 = vmatmul.f32.gmra.mxu0 %v4141
        %v4198 = vpop.f32.mrf.mxu0
        %v4199 = vadd.f32 %v4129, %v4198
        %4200 = vmatmul.f32.gmra.mxu0 %v4144
        %v4201 = vpop.f32.mrf.mxu0
        %v4202 = vadd.f32 %v4132, %v4201
        %4203 = vdwg.mxu0
        %s4204 = scalar_lea.vmem [#allocation8], 64
        %v4205 = vld [vmem:[%s4204] sm:$0xff]
        %v4206 = vld [vmem:[%s4204 + $0x8] sm:$0xff]
        %v4207 = vld [vmem:[%s4204 + $0x10] sm:$0xff]
        %v4208 = vld [vmem:[%s4204 + $0x18] sm:$0xff]
        %v4210 = vsel %vm952, %v4205, 0
        %v4213 = vsel %vm952, %v4206, 0
        %v4216 = vsel %vm952, %v4207, 0
        %v4219 = vsel %vm952, %v4208, 0
        %4221 = vmatpush.msra.mxu0 0.0
        %4222 = vmatpush.msra.mxu0 0.0
        %4223 = vmatpush.msra.mxu0 0.0
        %4224 = vmatpush.msra.mxu0 0.0
        %4225 = vmatpush.msra.mxu0 0.0
        %4226 = vmatpush.msra.mxu0 0.0
        %4227 = vmatpush.msra.mxu0 0.0
        %4228 = vmatpush.msra.mxu0 0.0
        %4229 = vmatpush.msra.mxu0 0.0
        %4230 = vmatpush.msra.mxu0 0.0
        %4231 = vmatpush.msra.mxu0 0.0
        %4232 = vmatpush.msra.mxu0 0.0
        %4233 = vmatpush.msra.mxu0 %v3933
        %4234 = vmatpush.msra.mxu0 %v3931
        %4235 = vmatpush.msra.mxu0 %v3929
        %4236 = vmatpush.msra.mxu0 %v3927
        %4237 = vmatmul.f32.gmra.mxu0 %v4210
        %v4238 = vpop.f32.mrf.mxu0
        %v4239 = vadd.f32 0.0, %v4238
        %4240 = vmatmul.f32.gmra.mxu0 %v4213
        %v4241 = vpop.f32.mrf.mxu0
        %v4242 = vadd.f32 0.0, %v4241
        %4243 = vmatmul.f32.gmra.mxu0 %v4216
        %v4244 = vpop.f32.mrf.mxu0
        %v4245 = vadd.f32 0.0, %v4244
        %4246 = vmatmul.f32.gmra.mxu0 %v4219
        %v4247 = vpop.f32.mrf.mxu0
        %v4248 = vadd.f32 0.0, %v4247
        %4249 = vdwg.mxu0
        %4250 = vmatpush.msra.mxu0 0.0
        %4251 = vmatpush.msra.mxu0 0.0
        %4252 = vmatpush.msra.mxu0 0.0
        %4253 = vmatpush.msra.mxu0 0.0
        %4254 = vmatpush.msra.mxu0 0.0
        %4255 = vmatpush.msra.mxu0 0.0
        %4256 = vmatpush.msra.mxu0 0.0
        %4257 = vmatpush.msra.mxu0 0.0
        %4258 = vmatpush.msra.mxu0 0.0
        %4259 = vmatpush.msra.mxu0 0.0
        %4260 = vmatpush.msra.mxu0 0.0
        %4261 = vmatpush.msra.mxu0 0.0
        %4262 = vmatpush.msra.mxu0 %v3934
        %4263 = vmatpush.msra.mxu0 %v3932
        %4264 = vmatpush.msra.mxu0 %v3930
        %4265 = vmatpush.msra.mxu0 %v3928
        %4266 = vmatmul.f32.gmra.mxu0 %v4210
        %v4267 = vpop.f32.mrf.mxu0
        %v4268 = vadd.f32 0.0, %v4267
        %4269 = vmatmul.f32.gmra.mxu0 %v4213
        %v4270 = vpop.f32.mrf.mxu0
        %v4271 = vadd.f32 0.0, %v4270
        %4272 = vmatmul.f32.gmra.mxu0 %v4216
        %v4273 = vpop.f32.mrf.mxu0
        %v4274 = vadd.f32 0.0, %v4273
        %4275 = vmatmul.f32.gmra.mxu0 %v4219
        %v4276 = vpop.f32.mrf.mxu0
        %v4277 = vadd.f32 0.0, %v4276
        %4278 = vdwg.mxu0
        %v4279 = vadd.f32 %v4164, %v4239
        %v4280 = vadd.f32 %v4193, %v4268
        %v4281 = vadd.f32 %v4167, %v4242
        %v4282 = vadd.f32 %v4196, %v4271
        %v4283 = vadd.f32 %v4170, %v4245
        %v4284 = vadd.f32 %v4199, %v4274
        %v4285 = vadd.f32 %v4173, %v4248
        %v4286 = vadd.f32 %v4202, %v4277
        %v4287 = vsel %vm915, %v3979, %v3951
        %v4288 = vsel %vm916, %v3975, %v3955
        %v4289 = vsel %vm915, %v3980, %v3952
        %v4290 = vsel %vm916, %v3976, %v3956
        %v4291 = vsel %vm915, %v3981, %v3953
        %v4292 = vsel %vm916, %v3977, %v3957
        %v4293 = vsel %vm915, %v3982, %v3954
        %v4294 = vsel %vm916, %v3978, %v3958
        %s4295 = scalar_lea.vmem [#allocation8], 96
        %v4296 = vld [vmem:[%s4295] sm:$0xff]
        %v4297 = vld [vmem:[%s4295 + $0x8] sm:$0xff]
        %v4298 = vld [vmem:[%s4295 + $0x10] sm:$0xff]
        %v4299 = vld [vmem:[%s4295 + $0x18] sm:$0xff]
        %v4301 = vsel %vm952, %v4296, 0
        %v4304 = vsel %vm952, %v4297, 0
        %v4307 = vsel %vm952, %v4298, 0
        %v4310 = vsel %vm952, %v4299, 0
        %4312 = vmatpush.msra.mxu0 0.0
        %4313 = vmatpush.msra.mxu0 0.0
        %4314 = vmatpush.msra.mxu0 0.0
        %4315 = vmatpush.msra.mxu0 0.0
        %4316 = vmatpush.msra.mxu0 0.0
        %4317 = vmatpush.msra.mxu0 0.0
        %4318 = vmatpush.msra.mxu0 0.0
        %4319 = vmatpush.msra.mxu0 0.0
        %4320 = vmatpush.msra.mxu0 0.0
        %4321 = vmatpush.msra.mxu0 0.0
        %4322 = vmatpush.msra.mxu0 0.0
        %4323 = vmatpush.msra.mxu0 0.0
        %4324 = vmatpush.msra.mxu0 %v4293
        %4325 = vmatpush.msra.mxu0 %v4291
        %4326 = vmatpush.msra.mxu0 %v4289
        %4327 = vmatpush.msra.mxu0 %v4287
        %4328 = vmatmul.f32.gmra.mxu0 %v4301
        %v4329 = vpop.f32.mrf.mxu0
        %v4330 = vadd.f32 0.0, %v4329
        %4331 = vmatmul.f32.gmra.mxu0 %v4304
        %v4332 = vpop.f32.mrf.mxu0
        %v4333 = vadd.f32 0.0, %v4332
        %4334 = vmatmul.f32.gmra.mxu0 %v4307
        %v4335 = vpop.f32.mrf.mxu0
        %v4336 = vadd.f32 0.0, %v4335
        %4337 = vmatmul.f32.gmra.mxu0 %v4310
        %v4338 = vpop.f32.mrf.mxu0
        %v4339 = vadd.f32 0.0, %v4338
        %4340 = vdwg.mxu0
        %4341 = vmatpush.msra.mxu0 0.0
        %4342 = vmatpush.msra.mxu0 0.0
        %4343 = vmatpush.msra.mxu0 0.0
        %4344 = vmatpush.msra.mxu0 0.0
        %4345 = vmatpush.msra.mxu0 0.0
        %4346 = vmatpush.msra.mxu0 0.0
        %4347 = vmatpush.msra.mxu0 0.0
        %4348 = vmatpush.msra.mxu0 0.0
        %4349 = vmatpush.msra.mxu0 0.0
        %4350 = vmatpush.msra.mxu0 0.0
        %4351 = vmatpush.msra.mxu0 0.0
        %4352 = vmatpush.msra.mxu0 0.0
        %4353 = vmatpush.msra.mxu0 %v4294
        %4354 = vmatpush.msra.mxu0 %v4292
        %4355 = vmatpush.msra.mxu0 %v4290
        %4356 = vmatpush.msra.mxu0 %v4288
        %4357 = vmatmul.f32.gmra.mxu0 %v4301
        %v4358 = vpop.f32.mrf.mxu0
        %v4359 = vadd.f32 0.0, %v4358
        %4360 = vmatmul.f32.gmra.mxu0 %v4304
        %v4361 = vpop.f32.mrf.mxu0
        %v4362 = vadd.f32 0.0, %v4361
        %4363 = vmatmul.f32.gmra.mxu0 %v4307
        %v4364 = vpop.f32.mrf.mxu0
        %v4365 = vadd.f32 0.0, %v4364
        %4366 = vmatmul.f32.gmra.mxu0 %v4310
        %v4367 = vpop.f32.mrf.mxu0
        %v4368 = vadd.f32 0.0, %v4367
        %4369 = vdwg.mxu0
        %v4370 = vadd.f32 %v4279, %v4330
        %v4371 = vadd.f32 %v4280, %v4359
        %v4372 = vadd.f32 %v4281, %v4333
        %v4373 = vadd.f32 %v4282, %v4362
        %v4374 = vadd.f32 %v4283, %v4336
        %v4375 = vadd.f32 %v4284, %v4365
        %v4376 = vadd.f32 %v4285, %v4339
        %v4377 = vadd.f32 %v4286, %v4368
        %v4378 = vsel %vm915, %v4027, %v3999
        %v4379 = vsel %vm916, %v4023, %v4003
        %v4380 = vsel %vm915, %v4028, %v4000
        %v4381 = vsel %vm916, %v4024, %v4004
        %v4382 = vsel %vm915, %v4029, %v4001
        %v4383 = vsel %vm916, %v4025, %v4005
        %v4384 = vsel %vm915, %v4030, %v4002
        %v4385 = vsel %vm916, %v4026, %v4006
        %v4386 = vsel %vm917, %v3927, %v4378
        %v4387 = vsel %vm918, %v3928, %v4379
        %v4388 = vsel %vm917, %v3929, %v4380
        %v4389 = vsel %vm918, %v3930, %v4381
        %v4390 = vsel %vm917, %v3931, %v4382
        %v4391 = vsel %vm918, %v3932, %v4383
        %v4392 = vsel %vm917, %v3933, %v4384
        %v4393 = vsel %vm918, %v3934, %v4385
        %s4394 = scalar_lea.vmem [#allocation8], 128
        %v4395 = vld [vmem:[%s4394] sm:$0xff]
        %v4396 = vld [vmem:[%s4394 + $0x8] sm:$0xff]
        %v4397 = vld [vmem:[%s4394 + $0x10] sm:$0xff]
        %v4398 = vld [vmem:[%s4394 + $0x18] sm:$0xff]
        %v4400 = vsel %vm952, %v4395, 0
        %v4403 = vsel %vm952, %v4396, 0
        %v4406 = vsel %vm952, %v4397, 0
        %v4409 = vsel %vm952, %v4398, 0
        %4411 = vmatpush.msra.mxu0 0.0
        %4412 = vmatpush.msra.mxu0 0.0
        %4413 = vmatpush.msra.mxu0 0.0
        %4414 = vmatpush.msra.mxu0 0.0
        %4415 = vmatpush.msra.mxu0 0.0
        %4416 = vmatpush.msra.mxu0 0.0
        %4417 = vmatpush.msra.mxu0 0.0
        %4418 = vmatpush.msra.mxu0 0.0
        %4419 = vmatpush.msra.mxu0 0.0
        %4420 = vmatpush.msra.mxu0 0.0
        %4421 = vmatpush.msra.mxu0 0.0
        %4422 = vmatpush.msra.mxu0 0.0
        %4423 = vmatpush.msra.mxu0 %v4392
        %4424 = vmatpush.msra.mxu0 %v4390
        %4425 = vmatpush.msra.mxu0 %v4388
        %4426 = vmatpush.msra.mxu0 %v4386
        %4427 = vmatmul.f32.gmra.mxu0 %v4400
        %v4428 = vpop.f32.mrf.mxu0
        %v4429 = vadd.f32 0.0, %v4428
        %4430 = vmatmul.f32.gmra.mxu0 %v4403
        %v4431 = vpop.f32.mrf.mxu0
        %v4432 = vadd.f32 0.0, %v4431
        %4433 = vmatmul.f32.gmra.mxu0 %v4406
        %v4434 = vpop.f32.mrf.mxu0
        %v4435 = vadd.f32 0.0, %v4434
        %4436 = vmatmul.f32.gmra.mxu0 %v4409
        %v4437 = vpop.f32.mrf.mxu0
        %v4438 = vadd.f32 0.0, %v4437
        %4439 = vdwg.mxu0
        %4440 = vmatpush.msra.mxu0 0.0
        %4441 = vmatpush.msra.mxu0 0.0
        %4442 = vmatpush.msra.mxu0 0.0
        %4443 = vmatpush.msra.mxu0 0.0
        %4444 = vmatpush.msra.mxu0 0.0
        %4445 = vmatpush.msra.mxu0 0.0
        %4446 = vmatpush.msra.mxu0 0.0
        %4447 = vmatpush.msra.mxu0 0.0
        %4448 = vmatpush.msra.mxu0 0.0
        %4449 = vmatpush.msra.mxu0 0.0
        %4450 = vmatpush.msra.mxu0 0.0
        %4451 = vmatpush.msra.mxu0 0.0
        %4452 = vmatpush.msra.mxu0 %v4393
        %4453 = vmatpush.msra.mxu0 %v4391
        %4454 = vmatpush.msra.mxu0 %v4389
        %4455 = vmatpush.msra.mxu0 %v4387
        %4456 = vmatmul.f32.gmra.mxu0 %v4400
        %v4457 = vpop.f32.mrf.mxu0
        %v4458 = vadd.f32 0.0, %v4457
        %4459 = vmatmul.f32.gmra.mxu0 %v4403
        %v4460 = vpop.f32.mrf.mxu0
        %v4461 = vadd.f32 0.0, %v4460
        %4462 = vmatmul.f32.gmra.mxu0 %v4406
        %v4463 = vpop.f32.mrf.mxu0
        %v4464 = vadd.f32 0.0, %v4463
        %4465 = vmatmul.f32.gmra.mxu0 %v4409
        %v4466 = vpop.f32.mrf.mxu0
        %v4467 = vadd.f32 0.0, %v4466
        %4468 = vdwg.mxu0
        %v4469 = vadd.f32 %v4370, %v4429
        %v4470 = vadd.f32 %v4371, %v4458
        %v4471 = vadd.f32 %v4372, %v4432
        %v4472 = vadd.f32 %v4373, %v4461
        %v4473 = vadd.f32 %v4374, %v4435
        %v4474 = vadd.f32 %v4375, %v4464
        %v4475 = vadd.f32 %v4376, %v4438
        %v4476 = vadd.f32 %v4377, %v4467
        %v4477 = vld [vmem:[%s10] sm:$0xff]
        %v4478 = vld [vmem:[%s10 + $0x8] sm:$0xff]
        %v4479 = vld [vmem:[%s10 + $0x10] sm:$0xff]
        %v4480 = vld [vmem:[%s10 + $0x18] sm:$0xff]
        %4482 = vset.pattern.permute.xlu0 0
        %4483 = vperm.xlu0 %4482, %v4477
        %v4484 = vpop.permute.xlu0 %4483
        %4487 = vset.pattern.permute.xlu0 0
        %4488 = vperm.xlu0 %4487, %v4478
        %v4489 = vpop.permute.xlu0 %4488
        %4492 = vset.pattern.permute.xlu0 0
        %4493 = vperm.xlu0 %4492, %v4479
        %v4494 = vpop.permute.xlu0 %4493
        %4497 = vset.pattern.permute.xlu0 0
        %4498 = vperm.xlu0 %4497, %v4480
        %v4499 = vpop.permute.xlu0 %4498
        %v4501 = vadd.f32 %v4469, %v4484
        %v4502 = vadd.f32 %v4470, %v4484
        %v4503 = vadd.f32 %v4471, %v4489
        %v4504 = vadd.f32 %v4472, %v4489
        %v4505 = vadd.f32 %v4473, %v4494
        %v4506 = vadd.f32 %v4474, %v4494
        %v4507 = vadd.f32 %v4475, %v4499
        %v4508 = vadd.f32 %v4476, %v4499
        %vm4509 = vcmp.ge.f32.partialorder %v4501, 0.0
        %vm4510 = vcmp.ge.f32.partialorder %v4502, 0.0
        %vm4511 = vcmp.ge.f32.partialorder %v4503, 0.0
        %vm4512 = vcmp.ge.f32.partialorder %v4504, 0.0
        %vm4513 = vcmp.ge.f32.partialorder %v4505, 0.0
        %vm4514 = vcmp.ge.f32.partialorder %v4506, 0.0
        %vm4515 = vcmp.ge.f32.partialorder %v4507, 0.0
        %vm4516 = vcmp.ge.f32.partialorder %v4508, 0.0
        %v4517 = vmul.f32 %v4501, 0.01
        %v4518 = vmul.f32 %v4502, 0.01
        %v4519 = vmul.f32 %v4503, 0.01
        %v4520 = vmul.f32 %v4504, 0.01
        %v4521 = vmul.f32 %v4505, 0.01
        %v4522 = vmul.f32 %v4506, 0.01
        %v4523 = vmul.f32 %v4507, 0.01
        %v4524 = vmul.f32 %v4508, 0.01
        %v4525 = vsel %vm4509, %v4501, %v4517
        %v4526 = vsel %vm4510, %v4502, %v4518
        %v4527 = vsel %vm4511, %v4503, %v4519
        %v4528 = vsel %vm4512, %v4504, %v4520
        %v4529 = vsel %vm4513, %v4505, %v4521
        %v4530 = vsel %vm4514, %v4506, %v4522
        %v4531 = vsel %vm4515, %v4507, %v4523
        %v4532 = vsel %vm4516, %v4508, %v4524
        %4533 = vrot.lane.b32.xlu0 %v4525, 127
        %v4534 = vpop.permute.xlu0 %4533
        %4535 = vrot.lane.b32.xlu0 %v4527, 127
        %v4536 = vpop.permute.xlu0 %4535
        %4537 = vrot.lane.b32.xlu0 %v4529, 127
        %v4538 = vpop.permute.xlu0 %4537
        %4539 = vrot.lane.b32.xlu0 %v4531, 127
        %v4540 = vpop.permute.xlu0 %4539
        %4541 = vrot.lane.b32.xlu0 %v4526, 127
        %v4542 = vpop.permute.xlu0 %4541
        %4543 = vrot.lane.b32.xlu0 %v4528, 127
        %v4544 = vpop.permute.xlu0 %4543
        %4545 = vrot.lane.b32.xlu0 %v4530, 127
        %v4546 = vpop.permute.xlu0 %4545
        %4547 = vrot.lane.b32.xlu0 %v4532, 127
        %v4548 = vpop.permute.xlu0 %4547
        %v4549 = vsel %vm825, %v4534, %v4542
        %v4550 = vsel %vm825, %v4536, %v4544
        %v4551 = vsel %vm825, %v4538, %v4546
        %v4552 = vsel %vm825, %v4540, %v4548
        %v4553 = vsel %vm825, %v4542, %v4534
        %v4554 = vsel %vm825, %v4544, %v4536
        %v4555 = vsel %vm825, %v4546, %v4538
        %v4556 = vsel %vm825, %v4548, %v4540
        %4557 = vrot.lane.b32.xlu0 %v4525, 1
        %v4558 = vpop.permute.xlu0 %4557
        %4559 = vrot.lane.b32.xlu0 %v4527, 1
        %v4560 = vpop.permute.xlu0 %4559
        %4561 = vrot.lane.b32.xlu0 %v4529, 1
        %v4562 = vpop.permute.xlu0 %4561
        %4563 = vrot.lane.b32.xlu0 %v4531, 1
        %v4564 = vpop.permute.xlu0 %4563
        %4565 = vrot.lane.b32.xlu0 %v4526, 1
        %v4566 = vpop.permute.xlu0 %4565
        %4567 = vrot.lane.b32.xlu0 %v4528, 1
        %v4568 = vpop.permute.xlu0 %4567
        %4569 = vrot.lane.b32.xlu0 %v4530, 1
        %v4570 = vpop.permute.xlu0 %4569
        %4571 = vrot.lane.b32.xlu0 %v4532, 1
        %v4572 = vpop.permute.xlu0 %4571
        %v4573 = vsel %vm850, %v4558, %v4566
        %v4574 = vsel %vm850, %v4560, %v4568
        %v4575 = vsel %vm850, %v4562, %v4570
        %v4576 = vsel %vm850, %v4564, %v4572
        %v4577 = vsel %vm850, %v4566, %v4558
        %v4578 = vsel %vm850, %v4568, %v4560
        %v4579 = vsel %vm850, %v4570, %v4562
        %v4580 = vsel %vm850, %v4572, %v4564
        %4581 = vrot.lane.b32.xlu0 %v4525, 126
        %v4582 = vpop.permute.xlu0 %4581
        %4583 = vrot.lane.b32.xlu0 %v4527, 126
        %v4584 = vpop.permute.xlu0 %4583
        %4585 = vrot.lane.b32.xlu0 %v4529, 126
        %v4586 = vpop.permute.xlu0 %4585
        %4587 = vrot.lane.b32.xlu0 %v4531, 126
        %v4588 = vpop.permute.xlu0 %4587
        %4589 = vrot.lane.b32.xlu0 %v4526, 126
        %v4590 = vpop.permute.xlu0 %4589
        %4591 = vrot.lane.b32.xlu0 %v4528, 126
        %v4592 = vpop.permute.xlu0 %4591
        %4593 = vrot.lane.b32.xlu0 %v4530, 126
        %v4594 = vpop.permute.xlu0 %4593
        %4595 = vrot.lane.b32.xlu0 %v4532, 126
        %v4596 = vpop.permute.xlu0 %4595
        %v4597 = vsel %vm875, %v4582, %v4590
        %v4598 = vsel %vm875, %v4584, %v4592
        %v4599 = vsel %vm875, %v4586, %v4594
        %v4600 = vsel %vm875, %v4588, %v4596
        %v4601 = vsel %vm875, %v4590, %v4582
        %v4602 = vsel %vm875, %v4592, %v4584
        %v4603 = vsel %vm875, %v4594, %v4586
        %v4604 = vsel %vm875, %v4596, %v4588
        %4605 = vrot.lane.b32.xlu0 %v4525, 2
        %v4606 = vpop.permute.xlu0 %4605
        %4607 = vrot.lane.b32.xlu0 %v4527, 2
        %v4608 = vpop.permute.xlu0 %4607
        %4609 = vrot.lane.b32.xlu0 %v4529, 2
        %v4610 = vpop.permute.xlu0 %4609
        %4611 = vrot.lane.b32.xlu0 %v4531, 2
        %v4612 = vpop.permute.xlu0 %4611
        %4613 = vrot.lane.b32.xlu0 %v4526, 2
        %v4614 = vpop.permute.xlu0 %4613
        %4615 = vrot.lane.b32.xlu0 %v4528, 2
        %v4616 = vpop.permute.xlu0 %4615
        %4617 = vrot.lane.b32.xlu0 %v4530, 2
        %v4618 = vpop.permute.xlu0 %4617
        %4619 = vrot.lane.b32.xlu0 %v4532, 2
        %v4620 = vpop.permute.xlu0 %4619
        %v4621 = vsel %vm900, %v4606, %v4614
        %v4622 = vsel %vm900, %v4608, %v4616
        %v4623 = vsel %vm900, %v4610, %v4618
        %v4624 = vsel %vm900, %v4612, %v4620
        %v4625 = vsel %vm900, %v4614, %v4606
        %v4626 = vsel %vm900, %v4616, %v4608
        %v4627 = vsel %vm900, %v4618, %v4610
        %v4628 = vsel %vm900, %v4620, %v4612
        %v4629 = vsel %vm911, %v4597, %v4625
        %v4630 = vsel %vm912, %v4601, %v4621
        %v4631 = vsel %vm911, %v4598, %v4626
        %v4632 = vsel %vm912, %v4602, %v4622
        %v4633 = vsel %vm911, %v4599, %v4627
        %v4634 = vsel %vm912, %v4603, %v4623
        %v4635 = vsel %vm911, %v4600, %v4628
        %v4636 = vsel %vm912, %v4604, %v4624
        %v4637 = vsel %vm913, %v4525, %v4629
        %v4638 = vsel %vm914, %v4526, %v4630
        %v4639 = vsel %vm913, %v4527, %v4631
        %v4640 = vsel %vm914, %v4528, %v4632
        %v4641 = vsel %vm913, %v4529, %v4633
        %v4642 = vsel %vm914, %v4530, %v4634
        %v4643 = vsel %vm913, %v4531, %v4635
        %v4644 = vsel %vm914, %v4532, %v4636
        %v4645 = vld [vmem:[#allocation10] sm:$0xff]
        %v4646 = vld [vmem:[#allocation10 + $0x8] sm:$0xff]
        %v4647 = vld [vmem:[#allocation10 + $0x10] sm:$0xff]
        %v4648 = vld [vmem:[#allocation10 + $0x18] sm:$0xff]
        %v4649 = vsel %vm911, %v4549, %v4577
        %v4650 = vsel %vm912, %v4553, %v4573
        %v4651 = vsel %vm911, %v4550, %v4578
        %v4652 = vsel %vm912, %v4554, %v4574
        %v4653 = vsel %vm911, %v4551, %v4579
        %v4654 = vsel %vm912, %v4555, %v4575
        %v4655 = vsel %vm911, %v4552, %v4580
        %v4656 = vsel %vm912, %v4556, %v4576
        %s4657 = scalar_lea.vmem [#allocation10], 32
        %v4658 = vld [vmem:[%s4657] sm:$0xff]
        %v4659 = vld [vmem:[%s4657 + $0x8] sm:$0xff]
        %v4660 = vld [vmem:[%s4657 + $0x10] sm:$0xff]
        %v4661 = vld [vmem:[%s4657 + $0x18] sm:$0xff]
        %v4663 = vsel %vm952, %v4658, 0
        %v4666 = vsel %vm952, %v4659, 0
        %v4669 = vsel %vm952, %v4660, 0
        %v4672 = vsel %vm952, %v4661, 0
        %4674 = vmatpush.msra.mxu0 0.0
        %4675 = vmatpush.msra.mxu0 0.0
        %4676 = vmatpush.msra.mxu0 0.0
        %4677 = vmatpush.msra.mxu0 0.0
        %4678 = vmatpush.msra.mxu0 0.0
        %4679 = vmatpush.msra.mxu0 0.0
        %4680 = vmatpush.msra.mxu0 0.0
        %4681 = vmatpush.msra.mxu0 0.0
        %4682 = vmatpush.msra.mxu0 0.0
        %4683 = vmatpush.msra.mxu0 0.0
        %4684 = vmatpush.msra.mxu0 0.0
        %4685 = vmatpush.msra.mxu0 0.0
        %4686 = vmatpush.msra.mxu0 %v4655
        %4687 = vmatpush.msra.mxu0 %v4653
        %4688 = vmatpush.msra.mxu0 %v4651
        %4689 = vmatpush.msra.mxu0 %v4649
        %4690 = vmatmul.f32.gmra.mxu0 %v4663
        %v4691 = vpop.f32.mrf.mxu0
        %v4692 = vadd.f32 0.0, %v4691
        %4693 = vmatmul.f32.gmra.mxu0 %v4666
        %v4694 = vpop.f32.mrf.mxu0
        %v4695 = vadd.f32 0.0, %v4694
        %4696 = vmatmul.f32.gmra.mxu0 %v4669
        %v4697 = vpop.f32.mrf.mxu0
        %v4698 = vadd.f32 0.0, %v4697
        %4699 = vmatmul.f32.gmra.mxu0 %v4672
        %v4700 = vpop.f32.mrf.mxu0
        %v4701 = vadd.f32 0.0, %v4700
        %4702 = vdwg.mxu0
        %4703 = vmatpush.msra.mxu0 0.0
        %4704 = vmatpush.msra.mxu0 0.0
        %4705 = vmatpush.msra.mxu0 0.0
        %4706 = vmatpush.msra.mxu0 0.0
        %4707 = vmatpush.msra.mxu0 0.0
        %4708 = vmatpush.msra.mxu0 0.0
        %4709 = vmatpush.msra.mxu0 0.0
        %4710 = vmatpush.msra.mxu0 0.0
        %4711 = vmatpush.msra.mxu0 0.0
        %4712 = vmatpush.msra.mxu0 0.0
        %4713 = vmatpush.msra.mxu0 0.0
        %4714 = vmatpush.msra.mxu0 0.0
        %4715 = vmatpush.msra.mxu0 %v4656
        %4716 = vmatpush.msra.mxu0 %v4654
        %4717 = vmatpush.msra.mxu0 %v4652
        %4718 = vmatpush.msra.mxu0 %v4650
        %4719 = vmatmul.f32.gmra.mxu0 %v4663
        %v4720 = vpop.f32.mrf.mxu0
        %v4721 = vadd.f32 0.0, %v4720
        %4722 = vmatmul.f32.gmra.mxu0 %v4666
        %v4723 = vpop.f32.mrf.mxu0
        %v4724 = vadd.f32 0.0, %v4723
        %4725 = vmatmul.f32.gmra.mxu0 %v4669
        %v4726 = vpop.f32.mrf.mxu0
        %v4727 = vadd.f32 0.0, %v4726
        %4728 = vmatmul.f32.gmra.mxu0 %v4672
        %v4729 = vpop.f32.mrf.mxu0
        %v4730 = vadd.f32 0.0, %v4729
        %4731 = vdwg.mxu0
        %v4733 = vsel %vm952, %v4645, 0
        %v4736 = vsel %vm952, %v4646, 0
        %v4739 = vsel %vm952, %v4647, 0
        %v4742 = vsel %vm952, %v4648, 0
        %4744 = vmatpush.msra.mxu0 0.0
        %4745 = vmatpush.msra.mxu0 0.0
        %4746 = vmatpush.msra.mxu0 0.0
        %4747 = vmatpush.msra.mxu0 0.0
        %4748 = vmatpush.msra.mxu0 0.0
        %4749 = vmatpush.msra.mxu0 0.0
        %4750 = vmatpush.msra.mxu0 0.0
        %4751 = vmatpush.msra.mxu0 0.0
        %4752 = vmatpush.msra.mxu0 0.0
        %4753 = vmatpush.msra.mxu0 0.0
        %4754 = vmatpush.msra.mxu0 0.0
        %4755 = vmatpush.msra.mxu0 0.0
        %4756 = vmatpush.msra.mxu0 %v4643
        %4757 = vmatpush.msra.mxu0 %v4641
        %4758 = vmatpush.msra.mxu0 %v4639
        %4759 = vmatpush.msra.mxu0 %v4637
        %4760 = vmatmul.f32.gmra.mxu0 %v4733
        %v4761 = vpop.f32.mrf.mxu0
        %v4762 = vadd.f32 %v4692, %v4761
        %4763 = vmatmul.f32.gmra.mxu0 %v4736
        %v4764 = vpop.f32.mrf.mxu0
        %v4765 = vadd.f32 %v4695, %v4764
        %4766 = vmatmul.f32.gmra.mxu0 %v4739
        %v4767 = vpop.f32.mrf.mxu0
        %v4768 = vadd.f32 %v4698, %v4767
        %4769 = vmatmul.f32.gmra.mxu0 %v4742
        %v4770 = vpop.f32.mrf.mxu0
        %v4771 = vadd.f32 %v4701, %v4770
        %4772 = vdwg.mxu0
        %4773 = vmatpush.msra.mxu0 0.0
        %4774 = vmatpush.msra.mxu0 0.0
        %4775 = vmatpush.msra.mxu0 0.0
        %4776 = vmatpush.msra.mxu0 0.0
        %4777 = vmatpush.msra.mxu0 0.0
        %4778 = vmatpush.msra.mxu0 0.0
        %4779 = vmatpush.msra.mxu0 0.0
        %4780 = vmatpush.msra.mxu0 0.0
        %4781 = vmatpush.msra.mxu0 0.0
        %4782 = vmatpush.msra.mxu0 0.0
        %4783 = vmatpush.msra.mxu0 0.0
        %4784 = vmatpush.msra.mxu0 0.0
        %4785 = vmatpush.msra.mxu0 %v4644
        %4786 = vmatpush.msra.mxu0 %v4642
        %4787 = vmatpush.msra.mxu0 %v4640
        %4788 = vmatpush.msra.mxu0 %v4638
        %4789 = vmatmul.f32.gmra.mxu0 %v4733
        %v4790 = vpop.f32.mrf.mxu0
        %v4791 = vadd.f32 %v4721, %v4790
        %4792 = vmatmul.f32.gmra.mxu0 %v4736
        %v4793 = vpop.f32.mrf.mxu0
        %v4794 = vadd.f32 %v4724, %v4793
        %4795 = vmatmul.f32.gmra.mxu0 %v4739
        %v4796 = vpop.f32.mrf.mxu0
        %v4797 = vadd.f32 %v4727, %v4796
        %4798 = vmatmul.f32.gmra.mxu0 %v4742
        %v4799 = vpop.f32.mrf.mxu0
        %v4800 = vadd.f32 %v4730, %v4799
        %4801 = vdwg.mxu0
        %s4802 = scalar_lea.vmem [#allocation10], 64
        %v4803 = vld [vmem:[%s4802] sm:$0xff]
        %v4804 = vld [vmem:[%s4802 + $0x8] sm:$0xff]
        %v4805 = vld [vmem:[%s4802 + $0x10] sm:$0xff]
        %v4806 = vld [vmem:[%s4802 + $0x18] sm:$0xff]
        %v4808 = vsel %vm952, %v4803, 0
        %v4811 = vsel %vm952, %v4804, 0
        %v4814 = vsel %vm952, %v4805, 0
        %v4817 = vsel %vm952, %v4806, 0
        %4819 = vmatpush.msra.mxu0 0.0
        %4820 = vmatpush.msra.mxu0 0.0
        %4821 = vmatpush.msra.mxu0 0.0
        %4822 = vmatpush.msra.mxu0 0.0
        %4823 = vmatpush.msra.mxu0 0.0
        %4824 = vmatpush.msra.mxu0 0.0
        %4825 = vmatpush.msra.mxu0 0.0
        %4826 = vmatpush.msra.mxu0 0.0
        %4827 = vmatpush.msra.mxu0 0.0
        %4828 = vmatpush.msra.mxu0 0.0
        %4829 = vmatpush.msra.mxu0 0.0
        %4830 = vmatpush.msra.mxu0 0.0
        %4831 = vmatpush.msra.mxu0 %v4531
        %4832 = vmatpush.msra.mxu0 %v4529
        %4833 = vmatpush.msra.mxu0 %v4527
        %4834 = vmatpush.msra.mxu0 %v4525
        %4835 = vmatmul.f32.gmra.mxu0 %v4808
        %v4836 = vpop.f32.mrf.mxu0
        %v4837 = vadd.f32 0.0, %v4836
        %4838 = vmatmul.f32.gmra.mxu0 %v4811
        %v4839 = vpop.f32.mrf.mxu0
        %v4840 = vadd.f32 0.0, %v4839
        %4841 = vmatmul.f32.gmra.mxu0 %v4814
        %v4842 = vpop.f32.mrf.mxu0
        %v4843 = vadd.f32 0.0, %v4842
        %4844 = vmatmul.f32.gmra.mxu0 %v4817
        %v4845 = vpop.f32.mrf.mxu0
        %v4846 = vadd.f32 0.0, %v4845
        %4847 = vdwg.mxu0
        %4848 = vmatpush.msra.mxu0 0.0
        %4849 = vmatpush.msra.mxu0 0.0
        %4850 = vmatpush.msra.mxu0 0.0
        %4851 = vmatpush.msra.mxu0 0.0
        %4852 = vmatpush.msra.mxu0 0.0
        %4853 = vmatpush.msra.mxu0 0.0
        %4854 = vmatpush.msra.mxu0 0.0
        %4855 = vmatpush.msra.mxu0 0.0
        %4856 = vmatpush.msra.mxu0 0.0
        %4857 = vmatpush.msra.mxu0 0.0
        %4858 = vmatpush.msra.mxu0 0.0
        %4859 = vmatpush.msra.mxu0 0.0
        %4860 = vmatpush.msra.mxu0 %v4532
        %4861 = vmatpush.msra.mxu0 %v4530
        %4862 = vmatpush.msra.mxu0 %v4528
        %4863 = vmatpush.msra.mxu0 %v4526
        %4864 = vmatmul.f32.gmra.mxu0 %v4808
        %v4865 = vpop.f32.mrf.mxu0
        %v4866 = vadd.f32 0.0, %v4865
        %4867 = vmatmul.f32.gmra.mxu0 %v4811
        %v4868 = vpop.f32.mrf.mxu0
        %v4869 = vadd.f32 0.0, %v4868
        %4870 = vmatmul.f32.gmra.mxu0 %v4814
        %v4871 = vpop.f32.mrf.mxu0
        %v4872 = vadd.f32 0.0, %v4871
        %4873 = vmatmul.f32.gmra.mxu0 %v4817
        %v4874 = vpop.f32.mrf.mxu0
        %v4875 = vadd.f32 0.0, %v4874
        %4876 = vdwg.mxu0
        %v4877 = vadd.f32 %v4762, %v4837
        %v4878 = vadd.f32 %v4791, %v4866
        %v4879 = vadd.f32 %v4765, %v4840
        %v4880 = vadd.f32 %v4794, %v4869
        %v4881 = vadd.f32 %v4768, %v4843
        %v4882 = vadd.f32 %v4797, %v4872
        %v4883 = vadd.f32 %v4771, %v4846
        %v4884 = vadd.f32 %v4800, %v4875
        %v4885 = vsel %vm915, %v4577, %v4549
        %v4886 = vsel %vm916, %v4573, %v4553
        %v4887 = vsel %vm915, %v4578, %v4550
        %v4888 = vsel %vm916, %v4574, %v4554
        %v4889 = vsel %vm915, %v4579, %v4551
        %v4890 = vsel %vm916, %v4575, %v4555
        %v4891 = vsel %vm915, %v4580, %v4552
        %v4892 = vsel %vm916, %v4576, %v4556
        %s4893 = scalar_lea.vmem [#allocation10], 96
        %v4894 = vld [vmem:[%s4893] sm:$0xff]
        %v4895 = vld [vmem:[%s4893 + $0x8] sm:$0xff]
        %v4896 = vld [vmem:[%s4893 + $0x10] sm:$0xff]
        %v4897 = vld [vmem:[%s4893 + $0x18] sm:$0xff]
        %v4899 = vsel %vm952, %v4894, 0
        %v4902 = vsel %vm952, %v4895, 0
        %v4905 = vsel %vm952, %v4896, 0
        %v4908 = vsel %vm952, %v4897, 0
        %4910 = vmatpush.msra.mxu0 0.0
        %4911 = vmatpush.msra.mxu0 0.0
        %4912 = vmatpush.msra.mxu0 0.0
        %4913 = vmatpush.msra.mxu0 0.0
        %4914 = vmatpush.msra.mxu0 0.0
        %4915 = vmatpush.msra.mxu0 0.0
        %4916 = vmatpush.msra.mxu0 0.0
        %4917 = vmatpush.msra.mxu0 0.0
        %4918 = vmatpush.msra.mxu0 0.0
        %4919 = vmatpush.msra.mxu0 0.0
        %4920 = vmatpush.msra.mxu0 0.0
        %4921 = vmatpush.msra.mxu0 0.0
        %4922 = vmatpush.msra.mxu0 %v4891
        %4923 = vmatpush.msra.mxu0 %v4889
        %4924 = vmatpush.msra.mxu0 %v4887
        %4925 = vmatpush.msra.mxu0 %v4885
        %4926 = vmatmul.f32.gmra.mxu0 %v4899
        %v4927 = vpop.f32.mrf.mxu0
        %v4928 = vadd.f32 0.0, %v4927
        %4929 = vmatmul.f32.gmra.mxu0 %v4902
        %v4930 = vpop.f32.mrf.mxu0
        %v4931 = vadd.f32 0.0, %v4930
        %4932 = vmatmul.f32.gmra.mxu0 %v4905
        %v4933 = vpop.f32.mrf.mxu0
        %v4934 = vadd.f32 0.0, %v4933
        %4935 = vmatmul.f32.gmra.mxu0 %v4908
        %v4936 = vpop.f32.mrf.mxu0
        %v4937 = vadd.f32 0.0, %v4936
        %4938 = vdwg.mxu0
        %4939 = vmatpush.msra.mxu0 0.0
        %4940 = vmatpush.msra.mxu0 0.0
        %4941 = vmatpush.msra.mxu0 0.0
        %4942 = vmatpush.msra.mxu0 0.0
        %4943 = vmatpush.msra.mxu0 0.0
        %4944 = vmatpush.msra.mxu0 0.0
        %4945 = vmatpush.msra.mxu0 0.0
        %4946 = vmatpush.msra.mxu0 0.0
        %4947 = vmatpush.msra.mxu0 0.0
        %4948 = vmatpush.msra.mxu0 0.0
        %4949 = vmatpush.msra.mxu0 0.0
        %4950 = vmatpush.msra.mxu0 0.0
        %4951 = vmatpush.msra.mxu0 %v4892
        %4952 = vmatpush.msra.mxu0 %v4890
        %4953 = vmatpush.msra.mxu0 %v4888
        %4954 = vmatpush.msra.mxu0 %v4886
        %4955 = vmatmul.f32.gmra.mxu0 %v4899
        %v4956 = vpop.f32.mrf.mxu0
        %v4957 = vadd.f32 0.0, %v4956
        %4958 = vmatmul.f32.gmra.mxu0 %v4902
        %v4959 = vpop.f32.mrf.mxu0
        %v4960 = vadd.f32 0.0, %v4959
        %4961 = vmatmul.f32.gmra.mxu0 %v4905
        %v4962 = vpop.f32.mrf.mxu0
        %v4963 = vadd.f32 0.0, %v4962
        %4964 = vmatmul.f32.gmra.mxu0 %v4908
        %v4965 = vpop.f32.mrf.mxu0
        %v4966 = vadd.f32 0.0, %v4965
        %4967 = vdwg.mxu0
        %v4968 = vadd.f32 %v4877, %v4928
        %v4969 = vadd.f32 %v4878, %v4957
        %v4970 = vadd.f32 %v4879, %v4931
        %v4971 = vadd.f32 %v4880, %v4960
        %v4972 = vadd.f32 %v4881, %v4934
        %v4973 = vadd.f32 %v4882, %v4963
        %v4974 = vadd.f32 %v4883, %v4937
        %v4975 = vadd.f32 %v4884, %v4966
        %v4976 = vsel %vm915, %v4625, %v4597
        %v4977 = vsel %vm916, %v4621, %v4601
        %v4978 = vsel %vm915, %v4626, %v4598
        %v4979 = vsel %vm916, %v4622, %v4602
        %v4980 = vsel %vm915, %v4627, %v4599
        %v4981 = vsel %vm916, %v4623, %v4603
        %v4982 = vsel %vm915, %v4628, %v4600
        %v4983 = vsel %vm916, %v4624, %v4604
        %v4984 = vsel %vm917, %v4525, %v4976
        %v4985 = vsel %vm918, %v4526, %v4977
        %v4986 = vsel %vm917, %v4527, %v4978
        %v4987 = vsel %vm918, %v4528, %v4979
        %v4988 = vsel %vm917, %v4529, %v4980
        %v4989 = vsel %vm918, %v4530, %v4981
        %v4990 = vsel %vm917, %v4531, %v4982
        %v4991 = vsel %vm918, %v4532, %v4983
        %s4992 = scalar_lea.vmem [#allocation10], 128
        %v4993 = vld [vmem:[%s4992] sm:$0xff]
        %v4994 = vld [vmem:[%s4992 + $0x8] sm:$0xff]
        %v4995 = vld [vmem:[%s4992 + $0x10] sm:$0xff]
        %v4996 = vld [vmem:[%s4992 + $0x18] sm:$0xff]
        %v4998 = vsel %vm952, %v4993, 0
        %v5001 = vsel %vm952, %v4994, 0
        %v5004 = vsel %vm952, %v4995, 0
        %v5007 = vsel %vm952, %v4996, 0
        %5009 = vmatpush.msra.mxu0 0.0
        %5010 = vmatpush.msra.mxu0 0.0
        %5011 = vmatpush.msra.mxu0 0.0
        %5012 = vmatpush.msra.mxu0 0.0
        %5013 = vmatpush.msra.mxu0 0.0
        %5014 = vmatpush.msra.mxu0 0.0
        %5015 = vmatpush.msra.mxu0 0.0
        %5016 = vmatpush.msra.mxu0 0.0
        %5017 = vmatpush.msra.mxu0 0.0
        %5018 = vmatpush.msra.mxu0 0.0
        %5019 = vmatpush.msra.mxu0 0.0
        %5020 = vmatpush.msra.mxu0 0.0
        %5021 = vmatpush.msra.mxu0 %v4990
        %5022 = vmatpush.msra.mxu0 %v4988
        %5023 = vmatpush.msra.mxu0 %v4986
        %5024 = vmatpush.msra.mxu0 %v4984
        %5025 = vmatmul.f32.gmra.mxu0 %v4998
        %v5026 = vpop.f32.mrf.mxu0
        %v5027 = vadd.f32 0.0, %v5026
        %5028 = vmatmul.f32.gmra.mxu0 %v5001
        %v5029 = vpop.f32.mrf.mxu0
        %v5030 = vadd.f32 0.0, %v5029
        %5031 = vmatmul.f32.gmra.mxu0 %v5004
        %v5032 = vpop.f32.mrf.mxu0
        %v5033 = vadd.f32 0.0, %v5032
        %5034 = vmatmul.f32.gmra.mxu0 %v5007
        %v5035 = vpop.f32.mrf.mxu0
        %v5036 = vadd.f32 0.0, %v5035
        %5037 = vdwg.mxu0
        %5038 = vmatpush.msra.mxu0 0.0
        %5039 = vmatpush.msra.mxu0 0.0
        %5040 = vmatpush.msra.mxu0 0.0
        %5041 = vmatpush.msra.mxu0 0.0
        %5042 = vmatpush.msra.mxu0 0.0
        %5043 = vmatpush.msra.mxu0 0.0
        %5044 = vmatpush.msra.mxu0 0.0
        %5045 = vmatpush.msra.mxu0 0.0
        %5046 = vmatpush.msra.mxu0 0.0
        %5047 = vmatpush.msra.mxu0 0.0
        %5048 = vmatpush.msra.mxu0 0.0
        %5049 = vmatpush.msra.mxu0 0.0
        %5050 = vmatpush.msra.mxu0 %v4991
        %5051 = vmatpush.msra.mxu0 %v4989
        %5052 = vmatpush.msra.mxu0 %v4987
        %5053 = vmatpush.msra.mxu0 %v4985
        %5054 = vmatmul.f32.gmra.mxu0 %v4998
        %v5055 = vpop.f32.mrf.mxu0
        %v5056 = vadd.f32 0.0, %v5055
        %5057 = vmatmul.f32.gmra.mxu0 %v5001
        %v5058 = vpop.f32.mrf.mxu0
        %v5059 = vadd.f32 0.0, %v5058
        %5060 = vmatmul.f32.gmra.mxu0 %v5004
        %v5061 = vpop.f32.mrf.mxu0
        %v5062 = vadd.f32 0.0, %v5061
        %5063 = vmatmul.f32.gmra.mxu0 %v5007
        %v5064 = vpop.f32.mrf.mxu0
        %v5065 = vadd.f32 0.0, %v5064
        %5066 = vdwg.mxu0
        %v5067 = vadd.f32 %v4968, %v5027
        %v5068 = vadd.f32 %v4969, %v5056
        %v5069 = vadd.f32 %v4970, %v5030
        %v5070 = vadd.f32 %v4971, %v5059
        %v5071 = vadd.f32 %v4972, %v5033
        %v5072 = vadd.f32 %v4973, %v5062
        %v5073 = vadd.f32 %v4974, %v5036
        %v5074 = vadd.f32 %v4975, %v5065
        %v5075 = vld [vmem:[%s12] sm:$0xff]
        %v5076 = vld [vmem:[%s12 + $0x8] sm:$0xff]
        %v5077 = vld [vmem:[%s12 + $0x10] sm:$0xff]
        %v5078 = vld [vmem:[%s12 + $0x18] sm:$0xff]
        %5080 = vset.pattern.permute.xlu0 0
        %5081 = vperm.xlu0 %5080, %v5075
        %v5082 = vpop.permute.xlu0 %5081
        %5085 = vset.pattern.permute.xlu0 0
        %5086 = vperm.xlu0 %5085, %v5076
        %v5087 = vpop.permute.xlu0 %5086
        %5090 = vset.pattern.permute.xlu0 0
        %5091 = vperm.xlu0 %5090, %v5077
        %v5092 = vpop.permute.xlu0 %5091
        %5095 = vset.pattern.permute.xlu0 0
        %5096 = vperm.xlu0 %5095, %v5078
        %v5097 = vpop.permute.xlu0 %5096
        %v5099 = vadd.f32 %v5067, %v5082
        %v5100 = vadd.f32 %v5068, %v5082
        %v5101 = vadd.f32 %v5069, %v5087
        %v5102 = vadd.f32 %v5070, %v5087
        %v5103 = vadd.f32 %v5071, %v5092
        %v5104 = vadd.f32 %v5072, %v5092
        %v5105 = vadd.f32 %v5073, %v5097
        %v5106 = vadd.f32 %v5074, %v5097
        %vm5107 = vcmp.ge.f32.partialorder %v5099, 0.0
        %vm5108 = vcmp.ge.f32.partialorder %v5100, 0.0
        %vm5109 = vcmp.ge.f32.partialorder %v5101, 0.0
        %vm5110 = vcmp.ge.f32.partialorder %v5102, 0.0
        %vm5111 = vcmp.ge.f32.partialorder %v5103, 0.0
        %vm5112 = vcmp.ge.f32.partialorder %v5104, 0.0
        %vm5113 = vcmp.ge.f32.partialorder %v5105, 0.0
        %vm5114 = vcmp.ge.f32.partialorder %v5106, 0.0
        %v5115 = vmul.f32 %v5099, 0.01
        %v5116 = vmul.f32 %v5100, 0.01
        %v5117 = vmul.f32 %v5101, 0.01
        %v5118 = vmul.f32 %v5102, 0.01
        %v5119 = vmul.f32 %v5103, 0.01
        %v5120 = vmul.f32 %v5104, 0.01
        %v5121 = vmul.f32 %v5105, 0.01
        %v5122 = vmul.f32 %v5106, 0.01
        %v5123 = vsel %vm5107, %v5099, %v5115
        %v5124 = vsel %vm5108, %v5100, %v5116
        %v5125 = vsel %vm5109, %v5101, %v5117
        %v5126 = vsel %vm5110, %v5102, %v5118
        %v5127 = vsel %vm5111, %v5103, %v5119
        %v5128 = vsel %vm5112, %v5104, %v5120
        %v5129 = vsel %vm5113, %v5105, %v5121
        %v5130 = vsel %vm5114, %v5106, %v5122
        %5131 = vmatpush.msra.mxu0 %v789
        %5132 = vmatpush.msra.mxu0 %v788
        %5133 = vmatpush.msra.mxu0 %v787
        %5134 = vmatpush.msra.mxu0 %v786
        %5135 = vmatpush.msra.mxu0 %v785
        %5136 = vmatpush.msra.mxu0 %v784
        %5137 = vmatpush.msra.mxu0 %v783
        %5138 = vmatpush.msra.mxu0 %v782
        %5139 = vmatpush.msra.mxu0 %v781
        %5140 = vmatpush.msra.mxu0 %v780
        %5141 = vmatpush.msra.mxu0 %v779
        %5142 = vmatpush.msra.mxu0 %v778
        %5143 = vmatpush.msra.mxu0 %v777
        %5144 = vmatpush.msra.mxu0 %v776
        %5145 = vmatpush.msra.mxu0 %v775
        %5146 = vmatpush.msra.mxu0 %v774
        %5147 = vmatmul.f32.gmra.mxu0 %v5123
        %v5148 = vpop.f32.mrf.mxu0
        %v5149 = vadd.f32 0.0, %v5148
        %5150 = vmatmul.f32.gmra.mxu0 %v5125
        %v5151 = vpop.f32.mrf.mxu0
        %v5152 = vadd.f32 0.0, %v5151
        %5153 = vmatmul.f32.gmra.mxu0 %v5127
        %v5154 = vpop.f32.mrf.mxu0
        %v5155 = vadd.f32 0.0, %v5154
        %5156 = vmatmul.f32.gmra.mxu0 %v5129
        %v5157 = vpop.f32.mrf.mxu0
        %v5158 = vadd.f32 0.0, %v5157
        %5159 = vdwg.mxu0
        %5160 = vmatpush.msra.mxu0 %v805
        %5161 = vmatpush.msra.mxu0 %v804
        %5162 = vmatpush.msra.mxu0 %v803
        %5163 = vmatpush.msra.mxu0 %v802
        %5164 = vmatpush.msra.mxu0 %v801
        %5165 = vmatpush.msra.mxu0 %v800
        %5166 = vmatpush.msra.mxu0 %v799
        %5167 = vmatpush.msra.mxu0 %v798
        %5168 = vmatpush.msra.mxu0 %v797
        %5169 = vmatpush.msra.mxu0 %v796
        %5170 = vmatpush.msra.mxu0 %v795
        %5171 = vmatpush.msra.mxu0 %v794
        %5172 = vmatpush.msra.mxu0 %v793
        %5173 = vmatpush.msra.mxu0 %v792
        %5174 = vmatpush.msra.mxu0 %v791
        %5175 = vmatpush.msra.mxu0 %v790
        %5176 = vmatmul.f32.gmra.mxu0 %v5124
        %v5177 = vpop.f32.mrf.mxu0
        %v5178 = vadd.f32 %v5149, %v5177
        %5179 = vmatmul.f32.gmra.mxu0 %v5126
        %v5180 = vpop.f32.mrf.mxu0
        %v5181 = vadd.f32 %v5152, %v5180
        %5182 = vmatmul.f32.gmra.mxu0 %v5128
        %v5183 = vpop.f32.mrf.mxu0
        %v5184 = vadd.f32 %v5155, %v5183
        %5185 = vmatmul.f32.gmra.mxu0 %v5130
        %v5186 = vpop.f32.mrf.mxu0
        %v5187 = vadd.f32 %v5158, %v5186
        %5188 = vdwg.mxu0
        %v5189 = vmul.f32 %v5178, 0.0078125
        %v5190 = vmul.f32 %v5181, 0.0078125
        %v5191 = vmul.f32 %v5184, 0.0078125
        %v5192 = vmul.f32 %v5187, 0.0078125
        %v5193 = vmul.f32 %v5123, %v5123
        %v5194 = vmul.f32 %v5124, %v5124
        %v5195 = vmul.f32 %v5125, %v5125
        %v5196 = vmul.f32 %v5126, %v5126
        %v5197 = vmul.f32 %v5127, %v5127
        %v5198 = vmul.f32 %v5128, %v5128
        %v5199 = vmul.f32 %v5129, %v5129
        %v5200 = vmul.f32 %v5130, %v5130
        %5201 = vmatpush.msra.mxu0 %v789
        %5202 = vmatpush.msra.mxu0 %v788
        %5203 = vmatpush.msra.mxu0 %v787
        %5204 = vmatpush.msra.mxu0 %v786
        %5205 = vmatpush.msra.mxu0 %v785
        %5206 = vmatpush.msra.mxu0 %v784
        %5207 = vmatpush.msra.mxu0 %v783
        %5208 = vmatpush.msra.mxu0 %v782
        %5209 = vmatpush.msra.mxu0 %v781
        %5210 = vmatpush.msra.mxu0 %v780
        %5211 = vmatpush.msra.mxu0 %v779
        %5212 = vmatpush.msra.mxu0 %v778
        %5213 = vmatpush.msra.mxu0 %v777
        %5214 = vmatpush.msra.mxu0 %v776
        %5215 = vmatpush.msra.mxu0 %v775
        %5216 = vmatpush.msra.mxu0 %v774
        %5217 = vmatmul.f32.gmra.mxu0 %v5193
        %v5218 = vpop.f32.mrf.mxu0
        %v5219 = vadd.f32 0.0, %v5218
        %5220 = vmatmul.f32.gmra.mxu0 %v5195
        %v5221 = vpop.f32.mrf.mxu0
        %v5222 = vadd.f32 0.0, %v5221
        %5223 = vmatmul.f32.gmra.mxu0 %v5197
        %v5224 = vpop.f32.mrf.mxu0
        %v5225 = vadd.f32 0.0, %v5224
        %5226 = vmatmul.f32.gmra.mxu0 %v5199
        %v5227 = vpop.f32.mrf.mxu0
        %v5228 = vadd.f32 0.0, %v5227
        %5229 = vdwg.mxu0
        %5230 = vmatpush.msra.mxu0 %v805
        %5231 = vmatpush.msra.mxu0 %v804
        %5232 = vmatpush.msra.mxu0 %v803
        %5233 = vmatpush.msra.mxu0 %v802
        %5234 = vmatpush.msra.mxu0 %v801
        %5235 = vmatpush.msra.mxu0 %v800
        %5236 = vmatpush.msra.mxu0 %v799
        %5237 = vmatpush.msra.mxu0 %v798
        %5238 = vmatpush.msra.mxu0 %v797
        %5239 = vmatpush.msra.mxu0 %v796
        %5240 = vmatpush.msra.mxu0 %v795
        %5241 = vmatpush.msra.mxu0 %v794
        %5242 = vmatpush.msra.mxu0 %v793
        %5243 = vmatpush.msra.mxu0 %v792
        %5244 = vmatpush.msra.mxu0 %v791
        %5245 = vmatpush.msra.mxu0 %v790
        %5246 = vmatmul.f32.gmra.mxu0 %v5194
        %v5247 = vpop.f32.mrf.mxu0
        %v5248 = vadd.f32 %v5219, %v5247
        %5249 = vmatmul.f32.gmra.mxu0 %v5196
        %v5250 = vpop.f32.mrf.mxu0
        %v5251 = vadd.f32 %v5222, %v5250
        %5252 = vmatmul.f32.gmra.mxu0 %v5198
        %v5253 = vpop.f32.mrf.mxu0
        %v5254 = vadd.f32 %v5225, %v5253
        %5255 = vmatmul.f32.gmra.mxu0 %v5200
        %v5256 = vpop.f32.mrf.mxu0
        %v5257 = vadd.f32 %v5228, %v5256
        %5258 = vdwg.mxu0
        %v5259 = vmul.f32 %v5248, 0.0078125
        %v5260 = vmul.f32 %v5251, 0.0078125
        %v5261 = vmul.f32 %v5254, 0.0078125
        %v5262 = vmul.f32 %v5257, 0.0078125
        %v5263 = vmul.f32 %v5189, %v5189
        %v5264 = vmul.f32 %v5190, %v5190
        %v5265 = vmul.f32 %v5191, %v5191
        %v5266 = vmul.f32 %v5192, %v5192
        %v5267 = vsub.f32 %v5259, %v5263
        %v5268 = vsub.f32 %v5260, %v5264
        %v5269 = vsub.f32 %v5261, %v5265
        %v5270 = vsub.f32 %v5262, %v5266
        %v5271 = vadd.f32 %v5267, 1e-05
        %v5272 = vadd.f32 %v5268, 1e-05
        %v5273 = vadd.f32 %v5269, 1e-05
        %v5274 = vadd.f32 %v5270, 1e-05
        %v5275 = vrsqrt.pop %v5271
        %v5276 = vmul.f32 %v5275, %v5271
        %v5277 = vmul.f32 %v5276, %v5275
        %v5278 = vmul.f32 0.5, %v5277
        %v5279 = vsub.f32 1.5, %v5278
        %v5280 = vmul.f32 %v5275, %v5279
        %vm5281 = vweird.f32 %v5271
        %vm5282 = vweird.f32 %v5275
        %vm5283 = vmor %vm5281, %vm5282
        %v5284 = vsel %vm5283, %v5275, %v5280
        %v5285 = vrsqrt.pop %v5272
        %v5286 = vmul.f32 %v5285, %v5272
        %v5287 = vmul.f32 %v5286, %v5285
        %v5288 = vmul.f32 0.5, %v5287
        %v5289 = vsub.f32 1.5, %v5288
        %v5290 = vmul.f32 %v5285, %v5289
        %vm5291 = vweird.f32 %v5272
        %vm5292 = vweird.f32 %v5285
        %vm5293 = vmor %vm5291, %vm5292
        %v5294 = vsel %vm5293, %v5285, %v5290
        %v5295 = vrsqrt.pop %v5273
        %v5296 = vmul.f32 %v5295, %v5273
        %v5297 = vmul.f32 %v5296, %v5295
        %v5298 = vmul.f32 0.5, %v5297
        %v5299 = vsub.f32 1.5, %v5298
        %v5300 = vmul.f32 %v5295, %v5299
        %vm5301 = vweird.f32 %v5273
        %vm5302 = vweird.f32 %v5295
        %vm5303 = vmor %vm5301, %vm5302
        %v5304 = vsel %vm5303, %v5295, %v5300
        %v5305 = vrsqrt.pop %v5274
        %v5306 = vmul.f32 %v5305, %v5274
        %v5307 = vmul.f32 %v5306, %v5305
        %v5308 = vmul.f32 0.5, %v5307
        %v5309 = vsub.f32 1.5, %v5308
        %v5310 = vmul.f32 %v5305, %v5309
        %vm5311 = vweird.f32 %v5274
        %vm5312 = vweird.f32 %v5305
        %vm5313 = vmor %vm5311, %vm5312
        %v5314 = vsel %vm5313, %v5305, %v5310
        %5315 = vst [vmem:[#allocation1] ss:$4 sm:$0xff] %v806
        %v5316 = vld.sshfl [vmem:[#allocation1] sm:$0xff pattern:$0x73625140]
        %v5317 = vld.sshfl [vmem:[#allocation1 + $0x8] sm:$0xff pattern:$0x73625140]
        %v5319 = vsel %vm2208, %v5189, 0
        %v5322 = vsel %vm2208, %v5190, 0
        %v5325 = vsel %vm2208, %v5191, 0
        %v5328 = vsel %vm2208, %v5192, 0
        %v5330 = vsel %vm2221, %v5316, 0
        %v5332 = vsel %vm2221, %v5317, 0
        %5334 = vmatpush.msra.mxu0 0.0
        %5335 = vmatpush.msra.mxu0 0.0
        %5336 = vmatpush.msra.mxu0 0.0
        %5337 = vmatpush.msra.mxu0 0.0
        %5338 = vmatpush.msra.mxu0 0.0
        %5339 = vmatpush.msra.mxu0 0.0
        %5340 = vmatpush.msra.mxu0 0.0
        %5341 = vmatpush.msra.mxu0 0.0
        %5342 = vmatpush.msra.mxu0 0.0
        %5343 = vmatpush.msra.mxu0 0.0
        %5344 = vmatpush.msra.mxu0 0.0
        %5345 = vmatpush.msra.mxu0 0.0
        %5346 = vmatpush.msra.mxu0 0.0
        %5347 = vmatpush.msra.mxu0 0.0
        %5348 = vmatpush.msra.mxu0 0.0
        %5349 = vmatpush.msra.mxu0 %v5330
        %5350 = vmatmul.f32.gmra.mxu0 %v5319
        %v5351 = vpop.f32.mrf.mxu0
        %v5352 = vadd.f32 0.0, %v5351
        %5353 = vmatmul.f32.gmra.mxu0 %v5322
        %v5354 = vpop.f32.mrf.mxu0
        %v5355 = vadd.f32 0.0, %v5354
        %5356 = vmatmul.f32.gmra.mxu0 %v5325
        %v5357 = vpop.f32.mrf.mxu0
        %v5358 = vadd.f32 0.0, %v5357
        %5359 = vmatmul.f32.gmra.mxu0 %v5328
        %v5360 = vpop.f32.mrf.mxu0
        %v5361 = vadd.f32 0.0, %v5360
        %5362 = vdwg.mxu0
        %5363 = vmatpush.msra.mxu0 0.0
        %5364 = vmatpush.msra.mxu0 0.0
        %5365 = vmatpush.msra.mxu0 0.0
        %5366 = vmatpush.msra.mxu0 0.0
        %5367 = vmatpush.msra.mxu0 0.0
        %5368 = vmatpush.msra.mxu0 0.0
        %5369 = vmatpush.msra.mxu0 0.0
        %5370 = vmatpush.msra.mxu0 0.0
        %5371 = vmatpush.msra.mxu0 0.0
        %5372 = vmatpush.msra.mxu0 0.0
        %5373 = vmatpush.msra.mxu0 0.0
        %5374 = vmatpush.msra.mxu0 0.0
        %5375 = vmatpush.msra.mxu0 0.0
        %5376 = vmatpush.msra.mxu0 0.0
        %5377 = vmatpush.msra.mxu0 0.0
        %5378 = vmatpush.msra.mxu0 %v5332
        %5379 = vmatmul.f32.gmra.mxu0 %v5319
        %v5380 = vpop.f32.mrf.mxu0
        %v5381 = vadd.f32 0.0, %v5380
        %5382 = vmatmul.f32.gmra.mxu0 %v5322
        %v5383 = vpop.f32.mrf.mxu0
        %v5384 = vadd.f32 0.0, %v5383
        %5385 = vmatmul.f32.gmra.mxu0 %v5325
        %v5386 = vpop.f32.mrf.mxu0
        %v5387 = vadd.f32 0.0, %v5386
        %5388 = vmatmul.f32.gmra.mxu0 %v5328
        %v5389 = vpop.f32.mrf.mxu0
        %v5390 = vadd.f32 0.0, %v5389
        %5391 = vdwg.mxu0
        %5392 = vst [vmem:[#allocation1] ss:$4 sm:$0xff] %v806
        %v5393 = vld.sshfl [vmem:[#allocation1] sm:$0xff pattern:$0x73625140]
        %v5394 = vld.sshfl [vmem:[#allocation1 + $0x8] sm:$0xff pattern:$0x73625140]
        %v5396 = vsel %vm2208, %v5284, 0
        %v5399 = vsel %vm2208, %v5294, 0
        %v5402 = vsel %vm2208, %v5304, 0
        %v5405 = vsel %vm2208, %v5314, 0
        %v5407 = vsel %vm2221, %v5393, 0
        %v5409 = vsel %vm2221, %v5394, 0
        %5411 = vmatpush.msra.mxu0 0.0
        %5412 = vmatpush.msra.mxu0 0.0
        %5413 = vmatpush.msra.mxu0 0.0
        %5414 = vmatpush.msra.mxu0 0.0
        %5415 = vmatpush.msra.mxu0 0.0
        %5416 = vmatpush.msra.mxu0 0.0
        %5417 = vmatpush.msra.mxu0 0.0
        %5418 = vmatpush.msra.mxu0 0.0
        %5419 = vmatpush.msra.mxu0 0.0
        %5420 = vmatpush.msra.mxu0 0.0
        %5421 = vmatpush.msra.mxu0 0.0
        %5422 = vmatpush.msra.mxu0 0.0
        %5423 = vmatpush.msra.mxu0 0.0
        %5424 = vmatpush.msra.mxu0 0.0
        %5425 = vmatpush.msra.mxu0 0.0
        %5426 = vmatpush.msra.mxu0 %v5407
        %5427 = vmatmul.f32.gmra.mxu0 %v5396
        %v5428 = vpop.f32.mrf.mxu0
        %v5429 = vadd.f32 0.0, %v5428
        %5430 = vmatmul.f32.gmra.mxu0 %v5399
        %v5431 = vpop.f32.mrf.mxu0
        %v5432 = vadd.f32 0.0, %v5431
        %5433 = vmatmul.f32.gmra.mxu0 %v5402
        %v5434 = vpop.f32.mrf.mxu0
        %v5435 = vadd.f32 0.0, %v5434
        %5436 = vmatmul.f32.gmra.mxu0 %v5405
        %v5437 = vpop.f32.mrf.mxu0
        %v5438 = vadd.f32 0.0, %v5437
        %5439 = vdwg.mxu0
        %5440 = vmatpush.msra.mxu0 0.0
        %5441 = vmatpush.msra.mxu0 0.0
        %5442 = vmatpush.msra.mxu0 0.0
        %5443 = vmatpush.msra.mxu0 0.0
        %5444 = vmatpush.msra.mxu0 0.0
        %5445 = vmatpush.msra.mxu0 0.0
        %5446 = vmatpush.msra.mxu0 0.0
        %5447 = vmatpush.msra.mxu0 0.0
        %5448 = vmatpush.msra.mxu0 0.0
        %5449 = vmatpush.msra.mxu0 0.0
        %5450 = vmatpush.msra.mxu0 0.0
        %5451 = vmatpush.msra.mxu0 0.0
        %5452 = vmatpush.msra.mxu0 0.0
        %5453 = vmatpush.msra.mxu0 0.0
        %5454 = vmatpush.msra.mxu0 0.0
        %5455 = vmatpush.msra.mxu0 %v5409
        %5456 = vmatmul.f32.gmra.mxu0 %v5396
        %v5457 = vpop.f32.mrf.mxu0
        %v5458 = vadd.f32 0.0, %v5457
        %5459 = vmatmul.f32.gmra.mxu0 %v5399
        %v5460 = vpop.f32.mrf.mxu0
        %v5461 = vadd.f32 0.0, %v5460
        %5462 = vmatmul.f32.gmra.mxu0 %v5402
        %v5463 = vpop.f32.mrf.mxu0
        %v5464 = vadd.f32 0.0, %v5463
        %5465 = vmatmul.f32.gmra.mxu0 %v5405
        %v5466 = vpop.f32.mrf.mxu0
        %v5467 = vadd.f32 0.0, %v5466
        %5468 = vdwg.mxu0
        %v5469 = vsub.f32 %v5123, %v5352
        %v5470 = vsub.f32 %v5124, %v5381
        %v5471 = vsub.f32 %v5125, %v5355
        %v5472 = vsub.f32 %v5126, %v5384
        %v5473 = vsub.f32 %v5127, %v5358
        %v5474 = vsub.f32 %v5128, %v5387
        %v5475 = vsub.f32 %v5129, %v5361
        %v5476 = vsub.f32 %v5130, %v5390
        %v5477 = vmul.f32 %v5469, %v5429
        %v5478 = vmul.f32 %v5470, %v5458
        %v5479 = vmul.f32 %v5471, %v5432
        %v5480 = vmul.f32 %v5472, %v5461
        %v5481 = vmul.f32 %v5473, %v5435
        %v5482 = vmul.f32 %v5474, %v5464
        %v5483 = vmul.f32 %v5475, %v5438
        %v5484 = vmul.f32 %v5476, %v5467
        %v5485 = vadd.f32 %v5477, %v3927
        %v5486 = vadd.f32 %v5478, %v3928
        %v5487 = vadd.f32 %v5479, %v3929
        %v5488 = vadd.f32 %v5480, %v3930
        %v5489 = vadd.f32 %v5481, %v3931
        %v5490 = vadd.f32 %v5482, %v3932
        %v5491 = vadd.f32 %v5483, %v3933
        %v5492 = vadd.f32 %v5484, %v3934
        %5493 = vrot.lane.b32.xlu0 %v5485, 127
        %v5494 = vpop.permute.xlu0 %5493
        %5495 = vrot.lane.b32.xlu0 %v5487, 127
        %v5496 = vpop.permute.xlu0 %5495
        %5497 = vrot.lane.b32.xlu0 %v5489, 127
        %v5498 = vpop.permute.xlu0 %5497
        %5499 = vrot.lane.b32.xlu0 %v5491, 127
        %v5500 = vpop.permute.xlu0 %5499
        %5501 = vrot.lane.b32.xlu0 %v5486, 127
        %v5502 = vpop.permute.xlu0 %5501
        %5503 = vrot.lane.b32.xlu0 %v5488, 127
        %v5504 = vpop.permute.xlu0 %5503
        %5505 = vrot.lane.b32.xlu0 %v5490, 127
        %v5506 = vpop.permute.xlu0 %5505
        %5507 = vrot.lane.b32.xlu0 %v5492, 127
        %v5508 = vpop.permute.xlu0 %5507
        %v5509 = vsel %vm825, %v5494, %v5502
        %v5510 = vsel %vm825, %v5496, %v5504
        %v5511 = vsel %vm825, %v5498, %v5506
        %v5512 = vsel %vm825, %v5500, %v5508
        %v5513 = vsel %vm825, %v5502, %v5494
        %v5514 = vsel %vm825, %v5504, %v5496
        %v5515 = vsel %vm825, %v5506, %v5498
        %v5516 = vsel %vm825, %v5508, %v5500
        %5517 = vrot.lane.b32.xlu0 %v5485, 1
        %v5518 = vpop.permute.xlu0 %5517
        %5519 = vrot.lane.b32.xlu0 %v5487, 1
        %v5520 = vpop.permute.xlu0 %5519
        %5521 = vrot.lane.b32.xlu0 %v5489, 1
        %v5522 = vpop.permute.xlu0 %5521
        %5523 = vrot.lane.b32.xlu0 %v5491, 1
        %v5524 = vpop.permute.xlu0 %5523
        %5525 = vrot.lane.b32.xlu0 %v5486, 1
        %v5526 = vpop.permute.xlu0 %5525
        %5527 = vrot.lane.b32.xlu0 %v5488, 1
        %v5528 = vpop.permute.xlu0 %5527
        %5529 = vrot.lane.b32.xlu0 %v5490, 1
        %v5530 = vpop.permute.xlu0 %5529
        %5531 = vrot.lane.b32.xlu0 %v5492, 1
        %v5532 = vpop.permute.xlu0 %5531
        %v5533 = vsel %vm850, %v5518, %v5526
        %v5534 = vsel %vm850, %v5520, %v5528
        %v5535 = vsel %vm850, %v5522, %v5530
        %v5536 = vsel %vm850, %v5524, %v5532
        %v5537 = vsel %vm850, %v5526, %v5518
        %v5538 = vsel %vm850, %v5528, %v5520
        %v5539 = vsel %vm850, %v5530, %v5522
        %v5540 = vsel %vm850, %v5532, %v5524
        %v5541 = vsel %vm911, %v5509, %v5537
        %v5542 = vsel %vm912, %v5513, %v5533
        %v5543 = vsel %vm911, %v5510, %v5538
        %v5544 = vsel %vm912, %v5514, %v5534
        %v5545 = vsel %vm911, %v5511, %v5539
        %v5546 = vsel %vm912, %v5515, %v5535
        %v5547 = vsel %vm911, %v5512, %v5540
        %v5548 = vsel %vm912, %v5516, %v5536
        %v5549 = vld [vmem:[%s13] sm:$0xff]
        %v5550 = vld [vmem:[%s13 + $0x8] sm:$0xff]
        %s5551 = scalar_lea.vmem %s13, 16
        %v5552 = vld [vmem:[%s5551] sm:$0xff]
        %v5553 = vld [vmem:[%s5551 + $0x8] sm:$0xff]
        %v5555 = vsel %vm952, %v5552, 0
        %v5558 = vsel %vm952, %v5553, 0
        %5560 = vmatpush.msra.mxu0 0.0
        %5561 = vmatpush.msra.mxu0 0.0
        %5562 = vmatpush.msra.mxu0 0.0
        %5563 = vmatpush.msra.mxu0 0.0
        %5564 = vmatpush.msra.mxu0 0.0
        %5565 = vmatpush.msra.mxu0 0.0
        %5566 = vmatpush.msra.mxu0 0.0
        %5567 = vmatpush.msra.mxu0 0.0
        %5568 = vmatpush.msra.mxu0 0.0
        %5569 = vmatpush.msra.mxu0 0.0
        %5570 = vmatpush.msra.mxu0 0.0
        %5571 = vmatpush.msra.mxu0 0.0
        %5572 = vmatpush.msra.mxu0 %v5491
        %5573 = vmatpush.msra.mxu0 %v5489
        %5574 = vmatpush.msra.mxu0 %v5487
        %5575 = vmatpush.msra.mxu0 %v5485
        %5576 = vmatmul.f32.gmra.mxu0 %v5555
        %v5577 = vpop.f32.mrf.mxu0
        %v5578 = vadd.f32 0.0, %v5577
        %5579 = vmatmul.f32.gmra.mxu0 %v5558
        %v5580 = vpop.f32.mrf.mxu0
        %v5581 = vadd.f32 0.0, %v5580
        %5582 = vdwg.mxu0
        %5583 = vmatpush.msra.mxu0 0.0
        %5584 = vmatpush.msra.mxu0 0.0
        %5585 = vmatpush.msra.mxu0 0.0
        %5586 = vmatpush.msra.mxu0 0.0
        %5587 = vmatpush.msra.mxu0 0.0
        %5588 = vmatpush.msra.mxu0 0.0
        %5589 = vmatpush.msra.mxu0 0.0
        %5590 = vmatpush.msra.mxu0 0.0
        %5591 = vmatpush.msra.mxu0 0.0
        %5592 = vmatpush.msra.mxu0 0.0
        %5593 = vmatpush.msra.mxu0 0.0
        %5594 = vmatpush.msra.mxu0 0.0
        %5595 = vmatpush.msra.mxu0 %v5492
        %5596 = vmatpush.msra.mxu0 %v5490
        %5597 = vmatpush.msra.mxu0 %v5488
        %5598 = vmatpush.msra.mxu0 %v5486
        %5599 = vmatmul.f32.gmra.mxu0 %v5555
        %v5600 = vpop.f32.mrf.mxu0
        %v5601 = vadd.f32 0.0, %v5600
        %5602 = vmatmul.f32.gmra.mxu0 %v5558
        %v5603 = vpop.f32.mrf.mxu0
        %v5604 = vadd.f32 0.0, %v5603
        %5605 = vdwg.mxu0
        %v5607 = vsel %vm952, %v5549, 0
        %v5610 = vsel %vm952, %v5550, 0
        %5612 = vmatpush.msra.mxu0 0.0
        %5613 = vmatpush.msra.mxu0 0.0
        %5614 = vmatpush.msra.mxu0 0.0
        %5615 = vmatpush.msra.mxu0 0.0
        %5616 = vmatpush.msra.mxu0 0.0
        %5617 = vmatpush.msra.mxu0 0.0
        %5618 = vmatpush.msra.mxu0 0.0
        %5619 = vmatpush.msra.mxu0 0.0
        %5620 = vmatpush.msra.mxu0 0.0
        %5621 = vmatpush.msra.mxu0 0.0
        %5622 = vmatpush.msra.mxu0 0.0
        %5623 = vmatpush.msra.mxu0 0.0
        %5624 = vmatpush.msra.mxu0 %v5547
        %5625 = vmatpush.msra.mxu0 %v5545
        %5626 = vmatpush.msra.mxu0 %v5543
        %5627 = vmatpush.msra.mxu0 %v5541
        %5628 = vmatmul.f32.gmra.mxu0 %v5607
        %v5629 = vpop.f32.mrf.mxu0
        %v5630 = vadd.f32 %v5578, %v5629
        %5631 = vmatmul.f32.gmra.mxu0 %v5610
        %v5632 = vpop.f32.mrf.mxu0
        %v5633 = vadd.f32 %v5581, %v5632
        %5634 = vdwg.mxu0
        %5635 = vmatpush.msra.mxu0 0.0
        %5636 = vmatpush.msra.mxu0 0.0
        %5637 = vmatpush.msra.mxu0 0.0
        %5638 = vmatpush.msra.mxu0 0.0
        %5639 = vmatpush.msra.mxu0 0.0
        %5640 = vmatpush.msra.mxu0 0.0
        %5641 = vmatpush.msra.mxu0 0.0
        %5642 = vmatpush.msra.mxu0 0.0
        %5643 = vmatpush.msra.mxu0 0.0
        %5644 = vmatpush.msra.mxu0 0.0
        %5645 = vmatpush.msra.mxu0 0.0
        %5646 = vmatpush.msra.mxu0 0.0
        %5647 = vmatpush.msra.mxu0 %v5548
        %5648 = vmatpush.msra.mxu0 %v5546
        %5649 = vmatpush.msra.mxu0 %v5544
        %5650 = vmatpush.msra.mxu0 %v5542
        %5651 = vmatmul.f32.gmra.mxu0 %v5607
        %v5652 = vpop.f32.mrf.mxu0
        %v5653 = vadd.f32 %v5601, %v5652
        %5654 = vmatmul.f32.gmra.mxu0 %v5610
        %v5655 = vpop.f32.mrf.mxu0
        %v5656 = vadd.f32 %v5604, %v5655
        %5657 = vdwg.mxu0
        %v5658 = vsel %vm915, %v5537, %v5509
        %v5659 = vsel %vm916, %v5533, %v5513
        %v5660 = vsel %vm915, %v5538, %v5510
        %v5661 = vsel %vm916, %v5534, %v5514
        %v5662 = vsel %vm915, %v5539, %v5511
        %v5663 = vsel %vm916, %v5535, %v5515
        %v5664 = vsel %vm915, %v5540, %v5512
        %v5665 = vsel %vm916, %v5536, %v5516
        %s5666 = scalar_lea.vmem %s13, 32
        %v5667 = vld [vmem:[%s5666] sm:$0xff]
        %v5668 = vld [vmem:[%s5666 + $0x8] sm:$0xff]
        %v5670 = vsel %vm952, %v5667, 0
        %v5673 = vsel %vm952, %v5668, 0
        %5675 = vmatpush.msra.mxu0 0.0
        %5676 = vmatpush.msra.mxu0 0.0
        %5677 = vmatpush.msra.mxu0 0.0
        %5678 = vmatpush.msra.mxu0 0.0
        %5679 = vmatpush.msra.mxu0 0.0
        %5680 = vmatpush.msra.mxu0 0.0
        %5681 = vmatpush.msra.mxu0 0.0
        %5682 = vmatpush.msra.mxu0 0.0
        %5683 = vmatpush.msra.mxu0 0.0
        %5684 = vmatpush.msra.mxu0 0.0
        %5685 = vmatpush.msra.mxu0 0.0
        %5686 = vmatpush.msra.mxu0 0.0
        %5687 = vmatpush.msra.mxu0 %v5664
        %5688 = vmatpush.msra.mxu0 %v5662
        %5689 = vmatpush.msra.mxu0 %v5660
        %5690 = vmatpush.msra.mxu0 %v5658
        %5691 = vmatmul.f32.gmra.mxu0 %v5670
        %v5692 = vpop.f32.mrf.mxu0
        %v5693 = vadd.f32 0.0, %v5692
        %5694 = vmatmul.f32.gmra.mxu0 %v5673
        %v5695 = vpop.f32.mrf.mxu0
        %v5696 = vadd.f32 0.0, %v5695
        %5697 = vdwg.mxu0
        %5698 = vmatpush.msra.mxu0 0.0
        %5699 = vmatpush.msra.mxu0 0.0
        %5700 = vmatpush.msra.mxu0 0.0
        %5701 = vmatpush.msra.mxu0 0.0
        %5702 = vmatpush.msra.mxu0 0.0
        %5703 = vmatpush.msra.mxu0 0.0
        %5704 = vmatpush.msra.mxu0 0.0
        %5705 = vmatpush.msra.mxu0 0.0
        %5706 = vmatpush.msra.mxu0 0.0
        %5707 = vmatpush.msra.mxu0 0.0
        %5708 = vmatpush.msra.mxu0 0.0
        %5709 = vmatpush.msra.mxu0 0.0
        %5710 = vmatpush.msra.mxu0 %v5665
        %5711 = vmatpush.msra.mxu0 %v5663
        %5712 = vmatpush.msra.mxu0 %v5661
        %5713 = vmatpush.msra.mxu0 %v5659
        %5714 = vmatmul.f32.gmra.mxu0 %v5670
        %v5715 = vpop.f32.mrf.mxu0
        %v5716 = vadd.f32 0.0, %v5715
        %5717 = vmatmul.f32.gmra.mxu0 %v5673
        %v5718 = vpop.f32.mrf.mxu0
        %v5719 = vadd.f32 0.0, %v5718
        %5720 = vdwg.mxu0
        %v5721 = vadd.f32 %v5630, %v5693
        %v5722 = vadd.f32 %v5653, %v5716
        %v5723 = vadd.f32 %v5633, %v5696
        %v5724 = vadd.f32 %v5656, %v5719
        %v5725 = vld [vmem:[%s14] sm:$0xff]
        %v5726 = vld [vmem:[%s14 + $0x8] sm:$0xff]
        %5728 = vset.pattern.permute.xlu0 0
        %5729 = vperm.xlu0 %5728, %v5725
        %v5730 = vpop.permute.xlu0 %5729
        %5733 = vset.pattern.permute.xlu0 0
        %5734 = vperm.xlu0 %5733, %v5726
        %v5735 = vpop.permute.xlu0 %5734
        %v5737 = vadd.f32 %v5721, %v5730
        %v5738 = vadd.f32 %v5722, %v5730
        %v5739 = vadd.f32 %v5723, %v5735
        %v5740 = vadd.f32 %v5724, %v5735
        %vm5741 = vcmp.ge.f32.partialorder %v5737, 0.0
        %vm5742 = vcmp.ge.f32.partialorder %v5738, 0.0
        %vm5743 = vcmp.ge.f32.partialorder %v5739, 0.0
        %vm5744 = vcmp.ge.f32.partialorder %v5740, 0.0
        %v5745 = vmul.f32 %v5737, 0.01
        %v5746 = vmul.f32 %v5738, 0.01
        %v5747 = vmul.f32 %v5739, 0.01
        %v5748 = vmul.f32 %v5740, 0.01
        %v5749 = vsel %vm5741, %v5737, %v5745
        %v5750 = vsel %vm5742, %v5738, %v5746
        %v5751 = vsel %vm5743, %v5739, %v5747
        %v5752 = vsel %vm5744, %v5740, %v5748
        %5753 = vrot.lane.b32.xlu0 %v5749, 127
        %v5754 = vpop.permute.xlu0 %5753
        %5755 = vrot.lane.b32.xlu0 %v5751, 127
        %v5756 = vpop.permute.xlu0 %5755
        %5757 = vrot.lane.b32.xlu0 %v5750, 127
        %v5758 = vpop.permute.xlu0 %5757
        %5759 = vrot.lane.b32.xlu0 %v5752, 127
        %v5760 = vpop.permute.xlu0 %5759
        %v5761 = vsel %vm825, %v5754, %v5758
        %v5762 = vsel %vm825, %v5756, %v5760
        %v5763 = vsel %vm825, %v5758, %v5754
        %v5764 = vsel %vm825, %v5760, %v5756
        %5765 = vrot.lane.b32.xlu0 %v5749, 1
        %v5766 = vpop.permute.xlu0 %5765
        %5767 = vrot.lane.b32.xlu0 %v5751, 1
        %v5768 = vpop.permute.xlu0 %5767
        %5769 = vrot.lane.b32.xlu0 %v5750, 1
        %v5770 = vpop.permute.xlu0 %5769
        %5771 = vrot.lane.b32.xlu0 %v5752, 1
        %v5772 = vpop.permute.xlu0 %5771
        %v5773 = vsel %vm850, %v5766, %v5770
        %v5774 = vsel %vm850, %v5768, %v5772
        %v5775 = vsel %vm850, %v5770, %v5766
        %v5776 = vsel %vm850, %v5772, %v5768
        %v5777 = vsel %vm911, %v5761, %v5775
        %v5778 = vsel %vm912, %v5763, %v5773
        %v5779 = vsel %vm911, %v5762, %v5776
        %v5780 = vsel %vm912, %v5764, %v5774
        %v5781 = vld [vmem:[%s15] sm:$0xff]
        %v5782 = vld [vmem:[%s15 + $0x8] sm:$0xff]
        %s5783 = scalar_lea.vmem %s15, 16
        %v5784 = vld [vmem:[%s5783] sm:$0xff]
        %v5785 = vld [vmem:[%s5783 + $0x8] sm:$0xff]
        %vm5786 = vcmask 130048
        %v5788 = vsel %vm5786, %v5784, 0
        %v5791 = vsel %vm5786, %v5785, 0
        %5793 = vmatpush.msra.mxu0 0.0
        %5794 = vmatpush.msra.mxu0 0.0
        %5795 = vmatpush.msra.mxu0 0.0
        %5796 = vmatpush.msra.mxu0 0.0
        %5797 = vmatpush.msra.mxu0 0.0
        %5798 = vmatpush.msra.mxu0 0.0
        %5799 = vmatpush.msra.mxu0 0.0
        %5800 = vmatpush.msra.mxu0 0.0
        %5801 = vmatpush.msra.mxu0 0.0
        %5802 = vmatpush.msra.mxu0 0.0
        %5803 = vmatpush.msra.mxu0 0.0
        %5804 = vmatpush.msra.mxu0 0.0
        %5805 = vmatpush.msra.mxu0 0.0
        %5806 = vmatpush.msra.mxu0 0.0
        %5807 = vmatpush.msra.mxu0 %v5751
        %5808 = vmatpush.msra.mxu0 %v5749
        %5809 = vmatmul.f32.gmra.mxu0 %v5788
        %v5810 = vpop.f32.mrf.mxu0
        %v5811 = vadd.f32 0.0, %v5810
        %5812 = vmatmul.f32.gmra.mxu0 %v5791
        %v5813 = vpop.f32.mrf.mxu0
        %v5814 = vadd.f32 0.0, %v5813
        %5815 = vdwg.mxu0
        %5816 = vmatpush.msra.mxu0 0.0
        %5817 = vmatpush.msra.mxu0 0.0
        %5818 = vmatpush.msra.mxu0 0.0
        %5819 = vmatpush.msra.mxu0 0.0
        %5820 = vmatpush.msra.mxu0 0.0
        %5821 = vmatpush.msra.mxu0 0.0
        %5822 = vmatpush.msra.mxu0 0.0
        %5823 = vmatpush.msra.mxu0 0.0
        %5824 = vmatpush.msra.mxu0 0.0
        %5825 = vmatpush.msra.mxu0 0.0
        %5826 = vmatpush.msra.mxu0 0.0
        %5827 = vmatpush.msra.mxu0 0.0
        %5828 = vmatpush.msra.mxu0 0.0
        %5829 = vmatpush.msra.mxu0 0.0
        %5830 = vmatpush.msra.mxu0 %v5752
        %5831 = vmatpush.msra.mxu0 %v5750
        %5832 = vmatmul.f32.gmra.mxu0 %v5788
        %v5833 = vpop.f32.mrf.mxu0
        %v5834 = vadd.f32 0.0, %v5833
        %5835 = vmatmul.f32.gmra.mxu0 %v5791
        %v5836 = vpop.f32.mrf.mxu0
        %v5837 = vadd.f32 0.0, %v5836
        %5838 = vdwg.mxu0
        %v5840 = vsel %vm5786, %v5781, 0
        %v5843 = vsel %vm5786, %v5782, 0
        %5845 = vmatpush.msra.mxu0 0.0
        %5846 = vmatpush.msra.mxu0 0.0
        %5847 = vmatpush.msra.mxu0 0.0
        %5848 = vmatpush.msra.mxu0 0.0
        %5849 = vmatpush.msra.mxu0 0.0
        %5850 = vmatpush.msra.mxu0 0.0
        %5851 = vmatpush.msra.mxu0 0.0
        %5852 = vmatpush.msra.mxu0 0.0
        %5853 = vmatpush.msra.mxu0 0.0
        %5854 = vmatpush.msra.mxu0 0.0
        %5855 = vmatpush.msra.mxu0 0.0
        %5856 = vmatpush.msra.mxu0 0.0
        %5857 = vmatpush.msra.mxu0 0.0
        %5858 = vmatpush.msra.mxu0 0.0
        %5859 = vmatpush.msra.mxu0 %v5779
        %5860 = vmatpush.msra.mxu0 %v5777
        %5861 = vmatmul.f32.gmra.mxu0 %v5840
        %v5862 = vpop.f32.mrf.mxu0
        %v5863 = vadd.f32 %v5811, %v5862
        %5864 = vmatmul.f32.gmra.mxu0 %v5843
        %v5865 = vpop.f32.mrf.mxu0
        %v5866 = vadd.f32 %v5814, %v5865
        %5867 = vdwg.mxu0
        %5868 = vmatpush.msra.mxu0 0.0
        %5869 = vmatpush.msra.mxu0 0.0
        %5870 = vmatpush.msra.mxu0 0.0
        %5871 = vmatpush.msra.mxu0 0.0
        %5872 = vmatpush.msra.mxu0 0.0
        %5873 = vmatpush.msra.mxu0 0.0
        %5874 = vmatpush.msra.mxu0 0.0
        %5875 = vmatpush.msra.mxu0 0.0
        %5876 = vmatpush.msra.mxu0 0.0
        %5877 = vmatpush.msra.mxu0 0.0
        %5878 = vmatpush.msra.mxu0 0.0
        %5879 = vmatpush.msra.mxu0 0.0
        %5880 = vmatpush.msra.mxu0 0.0
        %5881 = vmatpush.msra.mxu0 0.0
        %5882 = vmatpush.msra.mxu0 %v5780
        %5883 = vmatpush.msra.mxu0 %v5778
        %5884 = vmatmul.f32.gmra.mxu0 %v5840
        %v5885 = vpop.f32.mrf.mxu0
        %v5886 = vadd.f32 %v5834, %v5885
        %5887 = vmatmul.f32.gmra.mxu0 %v5843
        %v5888 = vpop.f32.mrf.mxu0
        %v5889 = vadd.f32 %v5837, %v5888
        %5890 = vdwg.mxu0
        %v5891 = vsel %vm915, %v5775, %v5761
        %v5892 = vsel %vm916, %v5773, %v5763
        %v5893 = vsel %vm915, %v5776, %v5762
        %v5894 = vsel %vm916, %v5774, %v5764
        %s5895 = scalar_lea.vmem %s15, 32
        %v5896 = vld [vmem:[%s5895] sm:$0xff]
        %v5897 = vld [vmem:[%s5895 + $0x8] sm:$0xff]
        %v5899 = vsel %vm5786, %v5896, 0
        %v5902 = vsel %vm5786, %v5897, 0
        %5904 = vmatpush.msra.mxu0 0.0
        %5905 = vmatpush.msra.mxu0 0.0
        %5906 = vmatpush.msra.mxu0 0.0
        %5907 = vmatpush.msra.mxu0 0.0
        %5908 = vmatpush.msra.mxu0 0.0
        %5909 = vmatpush.msra.mxu0 0.0
        %5910 = vmatpush.msra.mxu0 0.0
        %5911 = vmatpush.msra.mxu0 0.0
        %5912 = vmatpush.msra.mxu0 0.0
        %5913 = vmatpush.msra.mxu0 0.0
        %5914 = vmatpush.msra.mxu0 0.0
        %5915 = vmatpush.msra.mxu0 0.0
        %5916 = vmatpush.msra.mxu0 0.0
        %5917 = vmatpush.msra.mxu0 0.0
        %5918 = vmatpush.msra.mxu0 %v5893
        %5919 = vmatpush.msra.mxu0 %v5891
        %5920 = vmatmul.f32.gmra.mxu0 %v5899
        %v5921 = vpop.f32.mrf.mxu0
        %v5922 = vadd.f32 0.0, %v5921
        %5923 = vmatmul.f32.gmra.mxu0 %v5902
        %v5924 = vpop.f32.mrf.mxu0
        %v5925 = vadd.f32 0.0, %v5924
        %5926 = vdwg.mxu0
        %5927 = vmatpush.msra.mxu0 0.0
        %5928 = vmatpush.msra.mxu0 0.0
        %5929 = vmatpush.msra.mxu0 0.0
        %5930 = vmatpush.msra.mxu0 0.0
        %5931 = vmatpush.msra.mxu0 0.0
        %5932 = vmatpush.msra.mxu0 0.0
        %5933 = vmatpush.msra.mxu0 0.0
        %5934 = vmatpush.msra.mxu0 0.0
        %5935 = vmatpush.msra.mxu0 0.0
        %5936 = vmatpush.msra.mxu0 0.0
        %5937 = vmatpush.msra.mxu0 0.0
        %5938 = vmatpush.msra.mxu0 0.0
        %5939 = vmatpush.msra.mxu0 0.0
        %5940 = vmatpush.msra.mxu0 0.0
        %5941 = vmatpush.msra.mxu0 %v5894
        %5942 = vmatpush.msra.mxu0 %v5892
        %5943 = vmatmul.f32.gmra.mxu0 %v5899
        %v5944 = vpop.f32.mrf.mxu0
        %v5945 = vadd.f32 0.0, %v5944
        %5946 = vmatmul.f32.gmra.mxu0 %v5902
        %v5947 = vpop.f32.mrf.mxu0
        %v5948 = vadd.f32 0.0, %v5947
        %5949 = vdwg.mxu0
        %v5950 = vadd.f32 %v5863, %v5922
        %v5951 = vadd.f32 %v5886, %v5945
        %v5952 = vadd.f32 %v5866, %v5925
        %v5953 = vadd.f32 %v5889, %v5948
        %v5954 = vld [vmem:[%s16] sm:$0xff]
        %v5955 = vld [vmem:[%s16 + $0x8] sm:$0xff]
        %5957 = vset.pattern.permute.xlu0 0
        %5958 = vperm.xlu0 %5957, %v5954
        %v5959 = vpop.permute.xlu0 %5958
        %5962 = vset.pattern.permute.xlu0 0
        %5963 = vperm.xlu0 %5962, %v5955
        %v5964 = vpop.permute.xlu0 %5963
        %v5966 = vadd.f32 %v5950, %v5959
        %v5967 = vadd.f32 %v5951, %v5959
        %v5968 = vadd.f32 %v5952, %v5964
        %v5969 = vadd.f32 %v5953, %v5964
        %vm5970 = vcmp.ge.f32.partialorder %v5966, 0.0
        %vm5971 = vcmp.ge.f32.partialorder %v5967, 0.0
        %vm5972 = vcmp.ge.f32.partialorder %v5968, 0.0
        %vm5973 = vcmp.ge.f32.partialorder %v5969, 0.0
        %v5974 = vmul.f32 %v5966, 0.01
        %v5975 = vmul.f32 %v5967, 0.01
        %v5976 = vmul.f32 %v5968, 0.01
        %v5977 = vmul.f32 %v5969, 0.01
        %v5978 = vsel %vm5970, %v5966, %v5974
        %v5979 = vsel %vm5971, %v5967, %v5975
        %v5980 = vsel %vm5972, %v5968, %v5976
        %v5981 = vsel %vm5973, %v5969, %v5977
        %5982 = vmatpush.msra.mxu0 %v789
        %5983 = vmatpush.msra.mxu0 %v788
        %5984 = vmatpush.msra.mxu0 %v787
        %5985 = vmatpush.msra.mxu0 %v786
        %5986 = vmatpush.msra.mxu0 %v785
        %5987 = vmatpush.msra.mxu0 %v784
        %5988 = vmatpush.msra.mxu0 %v783
        %5989 = vmatpush.msra.mxu0 %v782
        %5990 = vmatpush.msra.mxu0 %v781
        %5991 = vmatpush.msra.mxu0 %v780
        %5992 = vmatpush.msra.mxu0 %v779
        %5993 = vmatpush.msra.mxu0 %v778
        %5994 = vmatpush.msra.mxu0 %v777
        %5995 = vmatpush.msra.mxu0 %v776
        %5996 = vmatpush.msra.mxu0 %v775
        %5997 = vmatpush.msra.mxu0 %v774
        %5998 = vmatmul.f32.gmra.mxu0 %v5978
        %v5999 = vpop.f32.mrf.mxu0
        %v6000 = vadd.f32 0.0, %v5999
        %6001 = vmatmul.f32.gmra.mxu0 %v5980
        %v6002 = vpop.f32.mrf.mxu0
        %v6003 = vadd.f32 0.0, %v6002
        %6004 = vdwg.mxu0
        %6005 = vmatpush.msra.mxu0 %v805
        %6006 = vmatpush.msra.mxu0 %v804
        %6007 = vmatpush.msra.mxu0 %v803
        %6008 = vmatpush.msra.mxu0 %v802
        %6009 = vmatpush.msra.mxu0 %v801
        %6010 = vmatpush.msra.mxu0 %v800
        %6011 = vmatpush.msra.mxu0 %v799
        %6012 = vmatpush.msra.mxu0 %v798
        %6013 = vmatpush.msra.mxu0 %v797
        %6014 = vmatpush.msra.mxu0 %v796
        %6015 = vmatpush.msra.mxu0 %v795
        %6016 = vmatpush.msra.mxu0 %v794
        %6017 = vmatpush.msra.mxu0 %v793
        %6018 = vmatpush.msra.mxu0 %v792
        %6019 = vmatpush.msra.mxu0 %v791
        %6020 = vmatpush.msra.mxu0 %v790
        %6021 = vmatmul.f32.gmra.mxu0 %v5979
        %v6022 = vpop.f32.mrf.mxu0
        %v6023 = vadd.f32 %v6000, %v6022
        %6024 = vmatmul.f32.gmra.mxu0 %v5981
        %v6025 = vpop.f32.mrf.mxu0
        %v6026 = vadd.f32 %v6003, %v6025
        %6027 = vdwg.mxu0
        %v6028 = vmul.f32 %v6023, 0.0078125
        %v6029 = vmul.f32 %v6026, 0.0078125
        %v6030 = vmul.f32 %v5978, %v5978
        %v6031 = vmul.f32 %v5979, %v5979
        %v6032 = vmul.f32 %v5980, %v5980
        %v6033 = vmul.f32 %v5981, %v5981
        %6034 = vmatpush.msra.mxu0 %v789
        %6035 = vmatpush.msra.mxu0 %v788
        %6036 = vmatpush.msra.mxu0 %v787
        %6037 = vmatpush.msra.mxu0 %v786
        %6038 = vmatpush.msra.mxu0 %v785
        %6039 = vmatpush.msra.mxu0 %v784
        %6040 = vmatpush.msra.mxu0 %v783
        %6041 = vmatpush.msra.mxu0 %v782
        %6042 = vmatpush.msra.mxu0 %v781
        %6043 = vmatpush.msra.mxu0 %v780
        %6044 = vmatpush.msra.mxu0 %v779
        %6045 = vmatpush.msra.mxu0 %v778
        %6046 = vmatpush.msra.mxu0 %v777
        %6047 = vmatpush.msra.mxu0 %v776
        %6048 = vmatpush.msra.mxu0 %v775
        %6049 = vmatpush.msra.mxu0 %v774
        %6050 = vmatmul.f32.gmra.mxu0 %v6030
        %v6051 = vpop.f32.mrf.mxu0
        %v6052 = vadd.f32 0.0, %v6051
        %6053 = vmatmul.f32.gmra.mxu0 %v6032
        %v6054 = vpop.f32.mrf.mxu0
        %v6055 = vadd.f32 0.0, %v6054
        %6056 = vdwg.mxu0
        %6057 = vmatpush.msra.mxu0 %v805
        %6058 = vmatpush.msra.mxu0 %v804
        %6059 = vmatpush.msra.mxu0 %v803
        %6060 = vmatpush.msra.mxu0 %v802
        %6061 = vmatpush.msra.mxu0 %v801
        %6062 = vmatpush.msra.mxu0 %v800
        %6063 = vmatpush.msra.mxu0 %v799
        %6064 = vmatpush.msra.mxu0 %v798
        %6065 = vmatpush.msra.mxu0 %v797
        %6066 = vmatpush.msra.mxu0 %v796
        %6067 = vmatpush.msra.mxu0 %v795
        %6068 = vmatpush.msra.mxu0 %v794
        %6069 = vmatpush.msra.mxu0 %v793
        %6070 = vmatpush.msra.mxu0 %v792
        %6071 = vmatpush.msra.mxu0 %v791
        %6072 = vmatpush.msra.mxu0 %v790
        %6073 = vmatmul.f32.gmra.mxu0 %v6031
        %v6074 = vpop.f32.mrf.mxu0
        %v6075 = vadd.f32 %v6052, %v6074
        %6076 = vmatmul.f32.gmra.mxu0 %v6033
        %v6077 = vpop.f32.mrf.mxu0
        %v6078 = vadd.f32 %v6055, %v6077
        %6079 = vdwg.mxu0
        %v6080 = vmul.f32 %v6075, 0.0078125
        %v6081 = vmul.f32 %v6078, 0.0078125
        %v6082 = vmul.f32 %v6028, %v6028
        %v6083 = vmul.f32 %v6029, %v6029
        %v6084 = vsub.f32 %v6080, %v6082
        %v6085 = vsub.f32 %v6081, %v6083
        %v6086 = vadd.f32 %v6084, 1e-05
        %v6087 = vadd.f32 %v6085, 1e-05
        %v6088 = vrsqrt.pop %v6086
        %v6089 = vmul.f32 %v6088, %v6086
        %v6090 = vmul.f32 %v6089, %v6088
        %v6091 = vmul.f32 0.5, %v6090
        %v6092 = vsub.f32 1.5, %v6091
        %v6093 = vmul.f32 %v6088, %v6092
        %vm6094 = vweird.f32 %v6086
        %vm6095 = vweird.f32 %v6088
        %vm6096 = vmor %vm6094, %vm6095
        %v6097 = vsel %vm6096, %v6088, %v6093
        %v6098 = vrsqrt.pop %v6087
        %v6099 = vmul.f32 %v6098, %v6087
        %v6100 = vmul.f32 %v6099, %v6098
        %v6101 = vmul.f32 0.5, %v6100
        %v6102 = vsub.f32 1.5, %v6101
        %v6103 = vmul.f32 %v6098, %v6102
        %vm6104 = vweird.f32 %v6087
        %vm6105 = vweird.f32 %v6098
        %vm6106 = vmor %vm6104, %vm6105
        %v6107 = vsel %vm6106, %v6098, %v6103
        %6108 = vst [vmem:[#allocation1] ss:$4 sm:$0xff] %v806
        %v6109 = vld.sshfl [vmem:[#allocation1] sm:$0xff pattern:$0x73625140]
        %v6110 = vld.sshfl [vmem:[#allocation1 + $0x8] sm:$0xff pattern:$0x73625140]
        %v6112 = vsel %vm2208, %v6028, 0
        %v6115 = vsel %vm2208, %v6029, 0
        %v6117 = vsel %vm2221, %v6109, 0
        %v6119 = vsel %vm2221, %v6110, 0
        %6121 = vmatpush.msra.mxu0 0.0
        %6122 = vmatpush.msra.mxu0 0.0
        %6123 = vmatpush.msra.mxu0 0.0
        %6124 = vmatpush.msra.mxu0 0.0
        %6125 = vmatpush.msra.mxu0 0.0
        %6126 = vmatpush.msra.mxu0 0.0
        %6127 = vmatpush.msra.mxu0 0.0
        %6128 = vmatpush.msra.mxu0 0.0
        %6129 = vmatpush.msra.mxu0 0.0
        %6130 = vmatpush.msra.mxu0 0.0
        %6131 = vmatpush.msra.mxu0 0.0
        %6132 = vmatpush.msra.mxu0 0.0
        %6133 = vmatpush.msra.mxu0 0.0
        %6134 = vmatpush.msra.mxu0 0.0
        %6135 = vmatpush.msra.mxu0 0.0
        %6136 = vmatpush.msra.mxu0 %v6117
        %6137 = vmatmul.f32.gmra.mxu0 %v6112
        %v6138 = vpop.f32.mrf.mxu0
        %v6139 = vadd.f32 0.0, %v6138
        %6140 = vmatmul.f32.gmra.mxu0 %v6115
        %v6141 = vpop.f32.mrf.mxu0
        %v6142 = vadd.f32 0.0, %v6141
        %6143 = vdwg.mxu0
        %6144 = vmatpush.msra.mxu0 0.0
        %6145 = vmatpush.msra.mxu0 0.0
        %6146 = vmatpush.msra.mxu0 0.0
        %6147 = vmatpush.msra.mxu0 0.0
        %6148 = vmatpush.msra.mxu0 0.0
        %6149 = vmatpush.msra.mxu0 0.0
        %6150 = vmatpush.msra.mxu0 0.0
        %6151 = vmatpush.msra.mxu0 0.0
        %6152 = vmatpush.msra.mxu0 0.0
        %6153 = vmatpush.msra.mxu0 0.0
        %6154 = vmatpush.msra.mxu0 0.0
        %6155 = vmatpush.msra.mxu0 0.0
        %6156 = vmatpush.msra.mxu0 0.0
        %6157 = vmatpush.msra.mxu0 0.0
        %6158 = vmatpush.msra.mxu0 0.0
        %6159 = vmatpush.msra.mxu0 %v6119
        %6160 = vmatmul.f32.gmra.mxu0 %v6112
        %v6161 = vpop.f32.mrf.mxu0
        %v6162 = vadd.f32 0.0, %v6161
        %6163 = vmatmul.f32.gmra.mxu0 %v6115
        %v6164 = vpop.f32.mrf.mxu0
        %v6165 = vadd.f32 0.0, %v6164
        %6166 = vdwg.mxu0
        %6167 = vst [vmem:[#allocation1] ss:$4 sm:$0xff] %v806
        %v6168 = vld.sshfl [vmem:[#allocation1] sm:$0xff pattern:$0x73625140]
        %v6169 = vld.sshfl [vmem:[#allocation1 + $0x8] sm:$0xff pattern:$0x73625140]
        %v6171 = vsel %vm2208, %v6097, 0
        %v6174 = vsel %vm2208, %v6107, 0
        %v6176 = vsel %vm2221, %v6168, 0
        %v6178 = vsel %vm2221, %v6169, 0
        %6180 = vmatpush.msra.mxu0 0.0
        %6181 = vmatpush.msra.mxu0 0.0
        %6182 = vmatpush.msra.mxu0 0.0
        %6183 = vmatpush.msra.mxu0 0.0
        %6184 = vmatpush.msra.mxu0 0.0
        %6185 = vmatpush.msra.mxu0 0.0
        %6186 = vmatpush.msra.mxu0 0.0
        %6187 = vmatpush.msra.mxu0 0.0
        %6188 = vmatpush.msra.mxu0 0.0
        %6189 = vmatpush.msra.mxu0 0.0
        %6190 = vmatpush.msra.mxu0 0.0
        %6191 = vmatpush.msra.mxu0 0.0
        %6192 = vmatpush.msra.mxu0 0.0
        %6193 = vmatpush.msra.mxu0 0.0
        %6194 = vmatpush.msra.mxu0 0.0
        %6195 = vmatpush.msra.mxu0 %v6176
        %6196 = vmatmul.f32.gmra.mxu0 %v6171
        %v6197 = vpop.f32.mrf.mxu0
        %v6198 = vadd.f32 0.0, %v6197
        %6199 = vmatmul.f32.gmra.mxu0 %v6174
        %v6200 = vpop.f32.mrf.mxu0
        %v6201 = vadd.f32 0.0, %v6200
        %6202 = vdwg.mxu0
        %6203 = vmatpush.msra.mxu0 0.0
        %6204 = vmatpush.msra.mxu0 0.0
        %6205 = vmatpush.msra.mxu0 0.0
        %6206 = vmatpush.msra.mxu0 0.0
        %6207 = vmatpush.msra.mxu0 0.0
        %6208 = vmatpush.msra.mxu0 0.0
        %6209 = vmatpush.msra.mxu0 0.0
        %6210 = vmatpush.msra.mxu0 0.0
        %6211 = vmatpush.msra.mxu0 0.0
        %6212 = vmatpush.msra.mxu0 0.0
        %6213 = vmatpush.msra.mxu0 0.0
        %6214 = vmatpush.msra.mxu0 0.0
        %6215 = vmatpush.msra.mxu0 0.0
        %6216 = vmatpush.msra.mxu0 0.0
        %6217 = vmatpush.msra.mxu0 0.0
        %6218 = vmatpush.msra.mxu0 %v6178
        %6219 = vmatmul.f32.gmra.mxu0 %v6171
        %v6220 = vpop.f32.mrf.mxu0
        %v6221 = vadd.f32 0.0, %v6220
        %6222 = vmatmul.f32.gmra.mxu0 %v6174
        %v6223 = vpop.f32.mrf.mxu0
        %v6224 = vadd.f32 0.0, %v6223
        %6225 = vdwg.mxu0
        %v6226 = vsub.f32 %v5978, %v6139
        %v6227 = vsub.f32 %v5979, %v6162
        %v6228 = vsub.f32 %v5980, %v6142
        %v6229 = vsub.f32 %v5981, %v6165
        %v6230 = vmul.f32 %v6226, %v6198
        %v6231 = vmul.f32 %v6227, %v6221
        %v6232 = vmul.f32 %v6228, %v6201
        %v6233 = vmul.f32 %v6229, %v6224
        %v6234 = vld [vmem:[%s17] sm:$0xff]
        %v6235 = vld [vmem:[%s17 + $0x8] sm:$0xff]
        %v6236 = vld [vmem:[%s18] sm:$0xff]
        %v6237 = vld [vmem:[%s18 + $0x8] sm:$0xff]
        %6239 = vset.pattern.permute.xlu0 0
        %6240 = vperm.xlu0 %6239, %v6236
        %v6241 = vpop.permute.xlu0 %6240
        %6244 = vset.pattern.permute.xlu0 0
        %6245 = vperm.xlu0 %6244, %v6237
        %v6246 = vpop.permute.xlu0 %6245
        %v6249 = vsel %vm5786, %v6234, 0
        %v6252 = vsel %vm5786, %v6235, 0
        %6254 = vmatpush.msra.mxu0 0.0
        %6255 = vmatpush.msra.mxu0 0.0
        %6256 = vmatpush.msra.mxu0 0.0
        %6257 = vmatpush.msra.mxu0 0.0
        %6258 = vmatpush.msra.mxu0 0.0
        %6259 = vmatpush.msra.mxu0 0.0
        %6260 = vmatpush.msra.mxu0 0.0
        %6261 = vmatpush.msra.mxu0 0.0
        %6262 = vmatpush.msra.mxu0 0.0
        %6263 = vmatpush.msra.mxu0 0.0
        %6264 = vmatpush.msra.mxu0 0.0
        %6265 = vmatpush.msra.mxu0 0.0
        %6266 = vmatpush.msra.mxu0 0.0
        %6267 = vmatpush.msra.mxu0 0.0
        %6268 = vmatpush.msra.mxu0 %v6232
        %6269 = vmatpush.msra.mxu0 %v6230
        %6270 = vmatmul.f32.gmra.mxu0 %v6249
        %v6271 = vpop.f32.mrf.mxu0
        %v6272 = vadd.f32 %v6241, %v6271
        %6273 = vmatmul.f32.gmra.mxu0 %v6252
        %v6274 = vpop.f32.mrf.mxu0
        %v6275 = vadd.f32 %v6246, %v6274
        %6276 = vdwg.mxu0
        %6277 = vmatpush.msra.mxu0 0.0
        %6278 = vmatpush.msra.mxu0 0.0
        %6279 = vmatpush.msra.mxu0 0.0
        %6280 = vmatpush.msra.mxu0 0.0
        %6281 = vmatpush.msra.mxu0 0.0
        %6282 = vmatpush.msra.mxu0 0.0
        %6283 = vmatpush.msra.mxu0 0.0
        %6284 = vmatpush.msra.mxu0 0.0
        %6285 = vmatpush.msra.mxu0 0.0
        %6286 = vmatpush.msra.mxu0 0.0
        %6287 = vmatpush.msra.mxu0 0.0
        %6288 = vmatpush.msra.mxu0 0.0
        %6289 = vmatpush.msra.mxu0 0.0
        %6290 = vmatpush.msra.mxu0 0.0
        %6291 = vmatpush.msra.mxu0 %v6233
        %6292 = vmatpush.msra.mxu0 %v6231
        %6293 = vmatmul.f32.gmra.mxu0 %v6249
        %v6294 = vpop.f32.mrf.mxu0
        %v6295 = vadd.f32 %v6241, %v6294
        %6296 = vmatmul.f32.gmra.mxu0 %v6252
        %v6297 = vpop.f32.mrf.mxu0
        %v6298 = vadd.f32 %v6246, %v6297
        %6299 = vdwg.mxu0
        %6300 = vst [vmem:[%s759] sm:$0xff] %v6272
        %6301 = vst [vmem:[%s759 + $0x8] sm:$0xff] %v6295
        %6302 = vst [vmem:[%s759 + $0x10] sm:$0xff] %v6275
        %6303 = vst [vmem:[%s759 + $0x18] sm:$0xff] %v6298
        %s6304 = sand.u32 %s514, 1
        %s6305 = scalar_lea.sflag [#allocation4], %s6304
        %s6306 = sand.u32 %s514, 1
        %s6307 = smul.addr %s6306, 32
        %s6308 = scalar_lea.vmem [#allocation11], %s6307
        // Predicated region
        $region129: #{tpu_custom_call.1} parent=107 // pred_check
          %p6309 = pneg %p524
        $region130: #{tpu_custom_call.1} parent=107 // pred_check_branch
          %6311 = sbr.rel (%p6309) target = $region132
        $region131: #{tpu_custom_call.1} parent=107 // pred_region
          %6313 = vsyncadd %s6305, 0
          %s6314 = smul.addr %s39, 4
          %s6315 = smul.addr %s6314, 8
          %s6316 = scalar_lea.hbm %s22, %s6315
          %s6317 = sshll.u32 %s6308, 4
          %s6318 = int_to_ptr.vmem [resolvable:$true] %s6317
          %s6319 = sshll.u32 %s6316, 4
          %s6320 = int_to_ptr.hbm [resolvable:$true] %s6319
          %6325 = dma.vmem_to_hbm [thread:$0]  %s6318, 512, %s6320, %s6305, 256, 256, 16
        $region132: #{tpu_custom_call.1} parent=107 // pred_fallthru
          _
      $region108: #{tpu_custom_call.1} parent=5 // pred_fallthru
        _
      %p6326 = scmp.le.s32.totalorder 2, %s34
      // Predicated region
      $region133: #{tpu_custom_call.1} parent=5 // pred_check
        %p6327 = pneg %p6326
      $region134: #{tpu_custom_call.1} parent=5 // pred_check_branch
        %6329 = sbr.rel (%p6327) target = $region136
      $region135: #{tpu_custom_call.1} parent=5 // pred_region
        %s6330 = ssub.s32 %s34, 2
        // Predicated region
        $region137: #{tpu_custom_call.1} parent=135 // pred_check
          %p6331 = pneg %p530
        $region138: #{tpu_custom_call.1} parent=135 // pred_check_branch
          %6333 = sbr.rel (%p6331) target = $region140
        $region139: #{tpu_custom_call.1} parent=135 // pred_region
          %s6334 = sand.u32 %s515, 1
          %s6335 = scalar_lea.sflag [#allocation4], %s6334
          %s6336 = sand.u32 %s515, 1
          %s6337 = smul.addr %s6336, 32
          %s6338 = scalar_lea.vmem [#allocation11], %s6337
          %6340 = dma.done %s6335, 512
        $region140: #{tpu_custom_call.1} parent=135 // pred_fallthru
          _
      $region136: #{tpu_custom_call.1} parent=5 // pred_fallthru
        _
    $region6: #{tpu_custom_call.1} parent=1 // loop_footer
      %s38 = sadd.s32 1, %s34
    $region7: #{tpu_custom_call.1} parent=1 // loop_footer_branch
      %33 = sbr.rel target = $region3
    $region8: #{tpu_custom_call.1} parent=1 // loop_exit
      _
    %6341 = vsyncpa [#allocation3], 1
    %s6342 = scalar_lea.sflag [#allocation3], 1
    %6343 = vsyncpa %s6342, 1
    %6344 = vsyncpa [#allocation6], 1
    %6345 = vsyncpa [#allocation9], 1
    %6346 = vsyncpa [#allocation4], 1
    %s6347 = scalar_lea.sflag [#allocation4], 1
    %6348 = vsyncpa %s6347, 1

</llo_original>
